<compile_context>
chip_gen: v6e
topology: v6e:2x2x1
jax: 0.10.0
libtpu: 0.0.40
codegen_flags: <defaults>
</compile_context>

<pallas_src>
import functools

import numpy as np

import jax
import jax.numpy as jnp
from jax import lax
from jax.experimental import pallas as pl
from jax.experimental.pallas import tpu as pltpu


BATCH_BLOCK = 8  # images per grid step (multiple of 8 keeps every row slice tile-aligned)


# ---------------------------------------------------------------------------
# Fused kernel: full network forward for B images per grid step
# ---------------------------------------------------------------------------
def _lenet_kernel(x_ref, t1_ref, b1_ref, s1a_ref, s1b_ref,
                  t2_ref, b2_ref, s2a_ref, s2b_ref,
                  wf1_ref, bf1_ref, wf2_ref, bf2_ref, out_ref):
    B = out_ref.shape[0]
    f32 = jnp.float32
    bf16 = jnp.bfloat16

    # ---- conv1 (1->20, 5x5) on the MXU: 5 banded matmuls accumulated in f32 -------------
    # x_ref rows are ordered (input_row, image): row = r*B + b.  For kernel row kh the LHS
    # rows [kh*B, kh*B + 24*B) give x[b, h+kh, :] at local row h*B + b.
    c1 = None
    for kh in range(5):
        lhs = x_ref[pl.ds(kh * B, 24 * B), :].astype(bf16)                    # (24B, 28)
        term = jnp.dot(lhs, t1_ref[kh], preferred_element_type=f32)           # (24B, 480)
        c1 = term if c1 is None else c1 + term
    a1 = jnp.maximum(c1 + b1_ref[...], 0.0)                                   # (24B, 480) lanes=(w,c)

    # ---- pool1 (2x2): row-pair max on sublane tiles, column-pair max via selection ------
    a1r = a1.reshape(12, 2, B, 480)
    hp1 = jnp.maximum(a1r[:, 0], a1r[:, 1]).reshape(12 * B, 480)              # (12B, 480)
    hp1b = hp1.astype(bf16)
    p1 = jnp.maximum(
        jnp.dot(hp1b, s1a_ref[...], preferred_element_type=f32),
        jnp.dot(hp1b, s1b_ref[...], preferred_element_type=f32))              # (12B, 240) lanes=(pw,c)

    # ---- conv2 (20->50, 5x5) on the MXU: 5 banded matmuls -------------------------------
    c2 = None
    for kh in range(5):
        lhs = p1[kh * B: kh * B + 8 * B, :].astype(bf16)                      # (8B, 240)
        term = jnp.dot(lhs, t2_ref[kh], preferred_element_type=f32)           # (8B, 400)
        c2 = term if c2 is None else c2 + term
    a2 = jnp.maximum(c2 + b2_ref[...], 0.0)                                   # (8B, 400) lanes=(w2,c2)

    # ---- pool2 (2x2) ---------------------------------------------------------------------
    a2r = a2.reshape(4, 2, B, 400)
    hp2 = jnp.maximum(a2r[:, 0], a2r[:, 1]).reshape(4 * B, 400)               # (4B, 400)
    hp2b = hp2.astype(bf16)
    p2 = jnp.maximum(
        jnp.dot(hp2b, s2a_ref[...], preferred_element_type=f32),
        jnp.dot(hp2b, s2b_ref[...], preferred_element_type=f32))              # (4B, 200) lanes=(pw2,c2)

    # ---- fc1 (800->500): 4 accumulating (B,200)x(200,500) matmuls, rows pre-permuted -----
    h = bf1_ref[...]                                                          # (1, 500)
    for ph in range(4):
        lhs = p2[ph * B: (ph + 1) * B, :].astype(bf16)                        # (B, 200)
        h = h + jnp.dot(lhs, wf1_ref[ph], preferred_element_type=f32)         # (B, 500)
    h = jnp.maximum(h, 0.0)

    # ---- fc2 (500->10): only (narrow) store in the whole kernel --------------------------
    y = jnp.dot(h.astype(bf16), wf2_ref[...], preferred_element_type=f32) + bf2_ref[...]
    out_ref[...] = y                                                          # (B, 10)


# ---------------------------------------------------------------------------
# Parameters (PyTorch layout) and kernel-layout packing
# ---------------------------------------------------------------------------
def init_torch_weights(key):
    """PyTorch-layout weights, uniform(-1/sqrt(fan_in), +1/sqrt(fan_in))."""
    def uniform(k, shape, fan_in):
        bound = 1.0 / float(fan_in) ** 0.5
        return jax.random.uniform(k, shape, jnp.float32, -bound, bound)

    ks = jax.random.split(key, 8)
    return {
        "conv1_w": uniform(ks[0], (20, 1, 5, 5), 25),
        "conv1_b": uniform(ks[1], (20,), 25),
        "conv2_w": uniform(ks[2], (50, 20, 5, 5), 500),
        "conv2_b": uniform(ks[3], (50,), 500),
        "fc1_w": uniform(ks[4], (500, 800), 800),
        "fc1_b": uniform(ks[5], (500,), 800),
        "fc2_w": uniform(ks[6], (10, 500), 500),
        "fc2_b": uniform(ks[7], (10,), 500),
    }


def pack_params(tw):
    """One-time re-layout: banded conv weights, 0/1 pool selections, permuted fc1 (bf16)."""
    conv1_w = np.asarray(tw["conv1_w"], np.float32)   # (20,1,5,5)  [cout, cin, kh, kw]
    conv2_w = np.asarray(tw["conv2_w"], np.float32)   # (50,20,5,5)
    fc1_w = np.asarray(tw["fc1_w"], np.float32)       # (500, 800)

    # conv1 banded weights: T1[kh, j, 20*w + c] = conv1_w[c, 0, kh, j - w]
    T1 = np.zeros((5, 28, 24 * 20), np.float32)
    for kh in range(5):
        for w in range(24):
            for kw in range(5):
                T1[kh, w + kw, 20 * w: 20 * w + 20] = conv1_w[:, 0, kh, kw]
    b1t = np.tile(np.asarray(tw["conv1_b"], np.float32), 24).reshape(1, 480)

    # pool1 column selections (480 -> 240): even / odd w
    S1a = np.zeros((480, 240), np.float32)
    S1b = np.zeros((480, 240), np.float32)
    for pw in range(12):
        for c in range(20):
            S1a[20 * (2 * pw) + c, 20 * pw + c] = 1.0
            S1b[20 * (2 * pw + 1) + c, 20 * pw + c] = 1.0

    # conv2 banded weights: T2[kh, 20*j + c, 50*w2 + c2] = conv2_w[c2, c, kh, j - w2]
    T2 = np.zeros((5, 240, 8 * 50), np.float32)
    for kh in range(5):
        for w2 in range(8):
            for kw in range(5):
                j = w2 + kw
                T2[kh, 20 * j: 20 * j + 20, 50 * w2: 50 * w2 + 50] = conv2_w[:, :, kh, kw].T
    b2t = np.tile(np.asarray(tw["conv2_b"], np.float32), 8).reshape(1, 400)

    # pool2 column selections (400 -> 200)
    S2a = np.zeros((400, 200), np.float32)
    S2b = np.zeros((400, 200), np.float32)
    for pw in range(4):
        for c in range(50):
            S2a[50 * (2 * pw) + c, 50 * pw + c] = 1.0
            S2b[50 * (2 * pw + 1) + c, 50 * pw + c] = 1.0

    # fc1 rows permuted from PyTorch (c,h,w) flatten order to our (ph2, pw2*50 + c2) layout
    WF1 = fc1_w.reshape(500, 50, 4, 4).transpose(2, 3, 1, 0).reshape(4, 200, 500)
    bf1 = np.asarray(tw["fc1_b"], np.float32).reshape(1, 500)
    WF2 = np.asarray(tw["fc2_w"], np.float32).T       # (500, 10)
    bf2 = np.asarray(tw["fc2_b"], np.float32).reshape(1, 10)

    bf16 = jnp.bfloat16
    return {
        "t1": jnp.asarray(T1, bf16), "b1": jnp.asarray(b1t),
        "s1a": jnp.asarray(S1a, bf16), "s1b": jnp.asarray(S1b, bf16),
        "t2": jnp.asarray(T2, bf16), "b2": jnp.asarray(b2t),
        "s2a": jnp.asarray(S2a, bf16), "s2b": jnp.asarray(S2b, bf16),
        "wf1": jnp.asarray(WF1, bf16), "bf1": jnp.asarray(bf1),
        "wf2": jnp.asarray(WF2, bf16), "bf2": jnp.asarray(bf2),
    }


# ---------------------------------------------------------------------------
# Forward pass (single pallas_call, B images per grid step)
# ---------------------------------------------------------------------------
@functools.partial(jax.jit, static_argnames=("block_b",))
def net_forward(x_nchw, params, block_b=BATCH_BLOCK):
    N = x_nchw.shape[0]
    B = block_b
    n_pad = (-N) % B
    x = x_nchw.reshape(N, 28, 28).astype(jnp.float32)
    if n_pad:
        x = jnp.pad(x, ((0, n_pad), (0, 0), (0, 0)))
    n_blocks = (N + n_pad) // B

    # Layout plumbing: per block of B images, rows ordered (image_row, image) so the kernel
    # sees a (28*B, 28) slab -> contiguous DMA, batch on the sublane/M axis everywhere.
    x_rows = x.reshape(n_blocks, B, 28, 28).transpose(0, 2, 1, 3).reshape(n_blocks * 28 * B, 28)

    weight_keys = ("t1", "b1", "s1a", "s1b", "t2", "b2", "s2a", "s2b",
                   "wf1", "bf1", "wf2", "bf2")
    weights = [params[k] for k in weight_keys]

    flops = 2 * (N + n_pad) * (24 * 24 * 25 * 20 + 8 * 8 * 25 * 20 * 50 + 800 * 500 + 500 * 10)
    bytes_accessed = int(x_rows.size * 4 + (N + n_pad) * 10 * 4
                         + sum(int(np.prod(w.shape)) * w.dtype.itemsize for w in weights))

    weight_specs = [
        pl.BlockSpec(w.shape, (lambda n, nd=w.ndim: (0,) * nd)) for w in weights
    ]

    out = pl.pallas_call(
        _lenet_kernel,
        out_shape=jax.ShapeDtypeStruct((N + n_pad, 10), jnp.float32),
        grid=(n_blocks,),
        in_specs=[pl.BlockSpec((28 * B, 28), lambda n: (n, 0))] + weight_specs,
        out_specs=pl.BlockSpec((B, 10), lambda n: (n, 0)),
        compiler_params=pltpu.CompilerParams(
            dimension_semantics=("parallel",),               # v7x: blocks split across both TCs
            vmem_limit_bytes=32 * 1024 * 1024),              # safe on v5e/v6e/v7x
        cost_estimate=pl.CostEstimate(flops=int(flops), transcendentals=0,
                                      bytes_accessed=bytes_accessed),
    )(x_rows, *weights)

    return out[:N]


# ---------------------------------------------------------------------------
# Pure-JAX reference (mirrors the PyTorch module exactly), for a sanity check
# ---------------------------------------------------------------------------
@jax.jit
def reference_forward(x_nchw, tw):
    x = x_nchw.astype(jnp.float32)
    y = lax.conv_general_dilated(x, tw["conv1_w"], (1, 1), "VALID",
                                 dimension_numbers=("NCHW", "OIHW", "NCHW"))
    y = jax.nn.relu(y + tw["conv1_b"].reshape(1, -1, 1, 1))
    y = lax.reduce_window(y, -jnp.inf, lax.max, (1, 1, 2, 2), (1, 1, 2, 2), "VALID")
    y = lax.conv_general_dilated(y, tw["conv2_w"], (1, 1), "VALID",
                                 dimension_numbers=("NCHW", "OIHW", "NCHW"))
    y = jax.nn.relu(y + tw["conv2_b"].reshape(1, -1, 1, 1))
    y = lax.reduce_window(y, -jnp.inf, lax.max, (1, 1, 2, 2), (1, 1, 2, 2), "VALID")
    y = y.reshape(y.shape[0], 4 * 4 * 50)
    y = jax.nn.relu(y @ tw["fc1_w"].T + tw["fc1_b"])
    return y @ tw["fc2_w"].T + tw["fc2_b"]


if __name__ == "__main__":
    key = jax.random.PRNGKey(0)
    kx, kp = jax.random.split(key)
    torch_w = init_torch_weights(kp)
    params = pack_params(torch_w)

    # MNIST-shaped input (spatial 28 is required by view(-1, 4*4*50)); N=16 -> grid of 2
    # batch blocks of 8 images, exercising the batched path (and both v7x TensorCores).
    N = 16
    x = jax.random.normal(kx, (N, 1, 28, 28), dtype=jnp.float32)

    out = jax.block_until_ready(net_forward(x, params))

    assert out.shape == (N, 10), out.shape
    assert bool(jnp.all(jnp.isfinite(out)))

    # Numerical check vs. the f32 pure-JAX reference of the PyTorch module.
    # Tolerance reflects bf16 weights/activations in the MXU path (f32 accumulation).
    ref = jax.block_until_ready(reference_forward(x, torch_w))
    np.testing.assert_allclose(np.asarray(out), np.asarray(ref), rtol=5e-2, atol=2e-2)

    print("KERNEL_OK")
</pallas_src>

<mosaic_0001>
module attributes {stable_mosaic.version = 11 : i64} {
  func.func @_lenet_kernel(%arg0: i32, %arg1: memref<224x28xf32, #tpu.memory_space<vmem>>, %arg2: memref<5x28x480xbf16, #tpu.memory_space<vmem>>, %arg3: memref<1x480xf32, #tpu.memory_space<vmem>>, %arg4: memref<480x240xbf16, #tpu.memory_space<vmem>>, %arg5: memref<480x240xbf16, #tpu.memory_space<vmem>>, %arg6: memref<5x240x400xbf16, #tpu.memory_space<vmem>>, %arg7: memref<1x400xf32, #tpu.memory_space<vmem>>, %arg8: memref<400x200xbf16, #tpu.memory_space<vmem>>, %arg9: memref<400x200xbf16, #tpu.memory_space<vmem>>, %arg10: memref<4x200x500xbf16, #tpu.memory_space<vmem>>, %arg11: memref<1x500xf32, #tpu.memory_space<vmem>>, %arg12: memref<500x10xbf16, #tpu.memory_space<vmem>>, %arg13: memref<1x10xf32, #tpu.memory_space<vmem>>, %arg14: memref<8x10xf32, #tpu.memory_space<vmem>>) attributes {dimension_semantics = [#tpu.dimension_semantics<parallel>], iteration_bounds = array<i64: 2>, scalar_prefetch = 0 : i64, scratch_operands = 0 : i64, tpu.core_type = #tpu.core_type<tc>, window_params = [{transform_indices = @transform_0, window_bounds = array<i64: 224, 28>}, {pipeline_mode = #tpu.pipeline_mode<synchronous>, transform_indices = @transform_1, window_bounds = array<i64: 5, 28, 480>}, {pipeline_mode = #tpu.pipeline_mode<synchronous>, transform_indices = @transform_2, window_bounds = array<i64: 1, 480>}, {pipeline_mode = #tpu.pipeline_mode<synchronous>, transform_indices = @transform_3, window_bounds = array<i64: 480, 240>}, {pipeline_mode = #tpu.pipeline_mode<synchronous>, transform_indices = @transform_4, window_bounds = array<i64: 480, 240>}, {pipeline_mode = #tpu.pipeline_mode<synchronous>, transform_indices = @transform_5, window_bounds = array<i64: 5, 240, 400>}, {pipeline_mode = #tpu.pipeline_mode<synchronous>, transform_indices = @transform_6, window_bounds = array<i64: 1, 400>}, {pipeline_mode = #tpu.pipeline_mode<synchronous>, transform_indices = @transform_7, window_bounds = array<i64: 400, 200>}, {pipeline_mode = #tpu.pipeline_mode<synchronous>, transform_indices = @transform_8, window_bounds = array<i64: 400, 200>}, {pipeline_mode = #tpu.pipeline_mode<synchronous>, transform_indices = @transform_9, window_bounds = array<i64: 4, 200, 500>}, {pipeline_mode = #tpu.pipeline_mode<synchronous>, transform_indices = @transform_10, window_bounds = array<i64: 1, 500>}, {pipeline_mode = #tpu.pipeline_mode<synchronous>, transform_indices = @transform_11, window_bounds = array<i64: 500, 10>}, {pipeline_mode = #tpu.pipeline_mode<synchronous>, transform_indices = @transform_12, window_bounds = array<i64: 1, 10>}, {transform_indices = @transform_13, window_bounds = array<i64: 8, 10>}]} {
    %c0 = arith.constant 0 : index
    %c0_0 = arith.constant 0 : index
    %0 = vector.load %arg1[%c0, %c0_0] : memref<224x28xf32, #tpu.memory_space<vmem>>, vector<192x28xf32>
    %1 = arith.truncf %0 : vector<192x28xf32> to vector<192x28xbf16>
    %c0_1 = arith.constant 0 : index
    %c0_2 = arith.constant 0 : index
    %c0_3 = arith.constant 0 : index
    %2 = vector.load %arg2[%c0_1, %c0_2, %c0_3] : memref<5x28x480xbf16, #tpu.memory_space<vmem>>, vector<1x28x480xbf16>
    %3 = vector.shape_cast %2 : vector<1x28x480xbf16> to vector<28x480xbf16>
    %cst = arith.constant dense<0.000000e+00> : vector<192x480xf32>
    %4 = tpu.matmul %1, %3, %cst {dimension_numbers = #tpu.dot_dimension_numbers<[1], [0], [0], [1], [0, 0, 1, 1], [], []>} : vector<192x28xbf16>, vector<28x480xbf16>, vector<192x480xf32> -> vector<192x480xf32>
    %c8 = arith.constant 8 : index
    %c0_4 = arith.constant 0 : index
    %5 = vector.load %arg1[%c8, %c0_4] : memref<224x28xf32, #tpu.memory_space<vmem>>, vector<192x28xf32>
    %6 = arith.truncf %5 : vector<192x28xf32> to vector<192x28xbf16>
    %c1 = arith.constant 1 : index
    %c0_5 = arith.constant 0 : index
    %c0_6 = arith.constant 0 : index
    %7 = vector.load %arg2[%c1, %c0_5, %c0_6] : memref<5x28x480xbf16, #tpu.memory_space<vmem>>, vector<1x28x480xbf16>
    %8 = vector.shape_cast %7 : vector<1x28x480xbf16> to vector<28x480xbf16>
    %cst_7 = arith.constant dense<0.000000e+00> : vector<192x480xf32>
    %9 = tpu.matmul %6, %8, %cst_7 {dimension_numbers = #tpu.dot_dimension_numbers<[1], [0], [0], [1], [0, 0, 1, 1], [], []>} : vector<192x28xbf16>, vector<28x480xbf16>, vector<192x480xf32> -> vector<192x480xf32>
    %10 = arith.addf %4, %9 : vector<192x480xf32>
    %c16 = arith.constant 16 : index
    %c0_8 = arith.constant 0 : index
    %11 = vector.load %arg1[%c16, %c0_8] : memref<224x28xf32, #tpu.memory_space<vmem>>, vector<192x28xf32>
    %12 = arith.truncf %11 : vector<192x28xf32> to vector<192x28xbf16>
    %c2 = arith.constant 2 : index
    %c0_9 = arith.constant 0 : index
    %c0_10 = arith.constant 0 : index
    %13 = vector.load %arg2[%c2, %c0_9, %c0_10] : memref<5x28x480xbf16, #tpu.memory_space<vmem>>, vector<1x28x480xbf16>
    %14 = vector.shape_cast %13 : vector<1x28x480xbf16> to vector<28x480xbf16>
    %cst_11 = arith.constant dense<0.000000e+00> : vector<192x480xf32>
    %15 = tpu.matmul %12, %14, %cst_11 {dimension_numbers = #tpu.dot_dimension_numbers<[1], [0], [0], [1], [0, 0, 1, 1], [], []>} : vector<192x28xbf16>, vector<28x480xbf16>, vector<192x480xf32> -> vector<192x480xf32>
    %16 = arith.addf %10, %15 : vector<192x480xf32>
    %c24 = arith.constant 24 : index
    %c0_12 = arith.constant 0 : index
    %17 = vector.load %arg1[%c24, %c0_12] : memref<224x28xf32, #tpu.memory_space<vmem>>, vector<192x28xf32>
    %18 = arith.truncf %17 : vector<192x28xf32> to vector<192x28xbf16>
    %c3 = arith.constant 3 : index
    %c0_13 = arith.constant 0 : index
    %c0_14 = arith.constant 0 : index
    %19 = vector.load %arg2[%c3, %c0_13, %c0_14] : memref<5x28x480xbf16, #tpu.memory_space<vmem>>, vector<1x28x480xbf16>
    %20 = vector.shape_cast %19 : vector<1x28x480xbf16> to vector<28x480xbf16>
    %cst_15 = arith.constant dense<0.000000e+00> : vector<192x480xf32>
    %21 = tpu.matmul %18, %20, %cst_15 {dimension_numbers = #tpu.dot_dimension_numbers<[1], [0], [0], [1], [0, 0, 1, 1], [], []>} : vector<192x28xbf16>, vector<28x480xbf16>, vector<192x480xf32> -> vector<192x480xf32>
    %22 = arith.addf %16, %21 : vector<192x480xf32>
    %c32 = arith.constant 32 : index
    %c0_16 = arith.constant 0 : index
    %23 = vector.load %arg1[%c32, %c0_16] : memref<224x28xf32, #tpu.memory_space<vmem>>, vector<192x28xf32>
    %24 = arith.truncf %23 : vector<192x28xf32> to vector<192x28xbf16>
    %c4 = arith.constant 4 : index
    %c0_17 = arith.constant 0 : index
    %c0_18 = arith.constant 0 : index
    %25 = vector.load %arg2[%c4, %c0_17, %c0_18] : memref<5x28x480xbf16, #tpu.memory_space<vmem>>, vector<1x28x480xbf16>
    %26 = vector.shape_cast %25 : vector<1x28x480xbf16> to vector<28x480xbf16>
    %cst_19 = arith.constant dense<0.000000e+00> : vector<192x480xf32>
    %27 = tpu.matmul %24, %26, %cst_19 {dimension_numbers = #tpu.dot_dimension_numbers<[1], [0], [0], [1], [0, 0, 1, 1], [], []>} : vector<192x28xbf16>, vector<28x480xbf16>, vector<192x480xf32> -> vector<192x480xf32>
    %28 = arith.addf %22, %27 : vector<192x480xf32>
    %c0_20 = arith.constant 0 : index
    %c0_21 = arith.constant 0 : index
    %29 = vector.load %arg3[%c0_20, %c0_21] : memref<1x480xf32, #tpu.memory_space<vmem>>, vector<1x480xf32>
    %30 = vector.broadcast %29 : vector<1x480xf32> to vector<192x480xf32>
    %31 = arith.addf %28, %30 : vector<192x480xf32>
    %cst_22 = arith.constant 0.000000e+00 : f32
    %32 = vector.broadcast %cst_22 : f32 to vector<192x480xf32>
    %33 = arith.maximumf %31, %32 : vector<192x480xf32>
    %34 = vector.shape_cast %33 : vector<192x480xf32> to vector<12x2x8x480xf32>
    %35 = vector.extract_strided_slice %34 {offsets = [0, 0, 0, 0], sizes = [12, 1, 8, 480], strides = [1, 1, 1, 1]} : vector<12x2x8x480xf32> to vector<12x1x8x480xf32>
    %36 = vector.shape_cast %35 : vector<12x1x8x480xf32> to vector<12x8x480xf32>
    %37 = vector.extract_strided_slice %34 {offsets = [0, 1, 0, 0], sizes = [12, 1, 8, 480], strides = [1, 1, 1, 1]} : vector<12x2x8x480xf32> to vector<12x1x8x480xf32>
    %38 = vector.shape_cast %37 : vector<12x1x8x480xf32> to vector<12x8x480xf32>
    %39 = arith.maximumf %36, %38 : vector<12x8x480xf32>
    %40 = vector.shape_cast %39 : vector<12x8x480xf32> to vector<96x480xf32>
    %41 = arith.truncf %40 : vector<96x480xf32> to vector<96x480xbf16>
    %c0_23 = arith.constant 0 : index
    %c0_24 = arith.constant 0 : index
    %42 = vector.load %arg4[%c0_23, %c0_24] : memref<480x240xbf16, #tpu.memory_space<vmem>>, vector<480x240xbf16>
    %cst_25 = arith.constant dense<0.000000e+00> : vector<96x240xf32>
    %43 = tpu.matmul %41, %42, %cst_25 {dimension_numbers = #tpu.dot_dimension_numbers<[1], [0], [0], [1], [0, 0, 1, 1], [], []>} : vector<96x480xbf16>, vector<480x240xbf16>, vector<96x240xf32> -> vector<96x240xf32>
    %c0_26 = arith.constant 0 : index
    %c0_27 = arith.constant 0 : index
    %44 = vector.load %arg5[%c0_26, %c0_27] : memref<480x240xbf16, #tpu.memory_space<vmem>>, vector<480x240xbf16>
    %cst_28 = arith.constant dense<0.000000e+00> : vector<96x240xf32>
    %45 = tpu.matmul %41, %44, %cst_28 {dimension_numbers = #tpu.dot_dimension_numbers<[1], [0], [0], [1], [0, 0, 1, 1], [], []>} : vector<96x480xbf16>, vector<480x240xbf16>, vector<96x240xf32> -> vector<96x240xf32>
    %46 = arith.maximumf %43, %45 : vector<96x240xf32>
    %47 = vector.extract_strided_slice %46 {offsets = [0, 0], sizes = [64, 240], strides = [1, 1]} : vector<96x240xf32> to vector<64x240xf32>
    %48 = arith.truncf %47 : vector<64x240xf32> to vector<64x240xbf16>
    %c0_29 = arith.constant 0 : index
    %c0_30 = arith.constant 0 : index
    %c0_31 = arith.constant 0 : index
    %49 = vector.load %arg6[%c0_29, %c0_30, %c0_31] : memref<5x240x400xbf16, #tpu.memory_space<vmem>>, vector<1x240x400xbf16>
    %50 = vector.shape_cast %49 : vector<1x240x400xbf16> to vector<240x400xbf16>
    %cst_32 = arith.constant dense<0.000000e+00> : vector<64x400xf32>
    %51 = tpu.matmul %48, %50, %cst_32 {dimension_numbers = #tpu.dot_dimension_numbers<[1], [0], [0], [1], [0, 0, 1, 1], [], []>} : vector<64x240xbf16>, vector<240x400xbf16>, vector<64x400xf32> -> vector<64x400xf32>
    %52 = vector.extract_strided_slice %46 {offsets = [8, 0], sizes = [64, 240], strides = [1, 1]} : vector<96x240xf32> to vector<64x240xf32>
    %53 = arith.truncf %52 : vector<64x240xf32> to vector<64x240xbf16>
    %c1_33 = arith.constant 1 : index
    %c0_34 = arith.constant 0 : index
    %c0_35 = arith.constant 0 : index
    %54 = vector.load %arg6[%c1_33, %c0_34, %c0_35] : memref<5x240x400xbf16, #tpu.memory_space<vmem>>, vector<1x240x400xbf16>
    %55 = vector.shape_cast %54 : vector<1x240x400xbf16> to vector<240x400xbf16>
    %cst_36 = arith.constant dense<0.000000e+00> : vector<64x400xf32>
    %56 = tpu.matmul %53, %55, %cst_36 {dimension_numbers = #tpu.dot_dimension_numbers<[1], [0], [0], [1], [0, 0, 1, 1], [], []>} : vector<64x240xbf16>, vector<240x400xbf16>, vector<64x400xf32> -> vector<64x400xf32>
    %57 = arith.addf %51, %56 : vector<64x400xf32>
    %58 = vector.extract_strided_slice %46 {offsets = [16, 0], sizes = [64, 240], strides = [1, 1]} : vector<96x240xf32> to vector<64x240xf32>
    %59 = arith.truncf %58 : vector<64x240xf32> to vector<64x240xbf16>
    %c2_37 = arith.constant 2 : index
    %c0_38 = arith.constant 0 : index
    %c0_39 = arith.constant 0 : index
    %60 = vector.load %arg6[%c2_37, %c0_38, %c0_39] : memref<5x240x400xbf16, #tpu.memory_space<vmem>>, vector<1x240x400xbf16>
    %61 = vector.shape_cast %60 : vector<1x240x400xbf16> to vector<240x400xbf16>
    %cst_40 = arith.constant dense<0.000000e+00> : vector<64x400xf32>
    %62 = tpu.matmul %59, %61, %cst_40 {dimension_numbers = #tpu.dot_dimension_numbers<[1], [0], [0], [1], [0, 0, 1, 1], [], []>} : vector<64x240xbf16>, vector<240x400xbf16>, vector<64x400xf32> -> vector<64x400xf32>
    %63 = arith.addf %57, %62 : vector<64x400xf32>
    %64 = vector.extract_strided_slice %46 {offsets = [24, 0], sizes = [64, 240], strides = [1, 1]} : vector<96x240xf32> to vector<64x240xf32>
    %65 = arith.truncf %64 : vector<64x240xf32> to vector<64x240xbf16>
    %c3_41 = arith.constant 3 : index
    %c0_42 = arith.constant 0 : index
    %c0_43 = arith.constant 0 : index
    %66 = vector.load %arg6[%c3_41, %c0_42, %c0_43] : memref<5x240x400xbf16, #tpu.memory_space<vmem>>, vector<1x240x400xbf16>
    %67 = vector.shape_cast %66 : vector<1x240x400xbf16> to vector<240x400xbf16>
    %cst_44 = arith.constant dense<0.000000e+00> : vector<64x400xf32>
    %68 = tpu.matmul %65, %67, %cst_44 {dimension_numbers = #tpu.dot_dimension_numbers<[1], [0], [0], [1], [0, 0, 1, 1], [], []>} : vector<64x240xbf16>, vector<240x400xbf16>, vector<64x400xf32> -> vector<64x400xf32>
    %69 = arith.addf %63, %68 : vector<64x400xf32>
    %70 = vector.extract_strided_slice %46 {offsets = [32, 0], sizes = [64, 240], strides = [1, 1]} : vector<96x240xf32> to vector<64x240xf32>
    %71 = arith.truncf %70 : vector<64x240xf32> to vector<64x240xbf16>
    %c4_45 = arith.constant 4 : index
    %c0_46 = arith.constant 0 : index
    %c0_47 = arith.constant 0 : index
    %72 = vector.load %arg6[%c4_45, %c0_46, %c0_47] : memref<5x240x400xbf16, #tpu.memory_space<vmem>>, vector<1x240x400xbf16>
    %73 = vector.shape_cast %72 : vector<1x240x400xbf16> to vector<240x400xbf16>
    %cst_48 = arith.constant dense<0.000000e+00> : vector<64x400xf32>
    %74 = tpu.matmul %71, %73, %cst_48 {dimension_numbers = #tpu.dot_dimension_numbers<[1], [0], [0], [1], [0, 0, 1, 1], [], []>} : vector<64x240xbf16>, vector<240x400xbf16>, vector<64x400xf32> -> vector<64x400xf32>
    %75 = arith.addf %69, %74 : vector<64x400xf32>
    %c0_49 = arith.constant 0 : index
    %c0_50 = arith.constant 0 : index
    %76 = vector.load %arg7[%c0_49, %c0_50] : memref<1x400xf32, #tpu.memory_space<vmem>>, vector<1x400xf32>
    %77 = vector.broadcast %76 : vector<1x400xf32> to vector<64x400xf32>
    %78 = arith.addf %75, %77 : vector<64x400xf32>
    %cst_51 = arith.constant 0.000000e+00 : f32
    %79 = vector.broadcast %cst_51 : f32 to vector<64x400xf32>
    %80 = arith.maximumf %78, %79 : vector<64x400xf32>
    %81 = vector.shape_cast %80 : vector<64x400xf32> to vector<4x2x8x400xf32>
    %82 = vector.extract_strided_slice %81 {offsets = [0, 0, 0, 0], sizes = [4, 1, 8, 400], strides = [1, 1, 1, 1]} : vector<4x2x8x400xf32> to vector<4x1x8x400xf32>
    %83 = vector.shape_cast %82 : vector<4x1x8x400xf32> to vector<4x8x400xf32>
    %84 = vector.extract_strided_slice %81 {offsets = [0, 1, 0, 0], sizes = [4, 1, 8, 400], strides = [1, 1, 1, 1]} : vector<4x2x8x400xf32> to vector<4x1x8x400xf32>
    %85 = vector.shape_cast %84 : vector<4x1x8x400xf32> to vector<4x8x400xf32>
    %86 = arith.maximumf %83, %85 : vector<4x8x400xf32>
    %87 = vector.shape_cast %86 : vector<4x8x400xf32> to vector<32x400xf32>
    %88 = arith.truncf %87 : vector<32x400xf32> to vector<32x400xbf16>
    %c0_52 = arith.constant 0 : index
    %c0_53 = arith.constant 0 : index
    %89 = vector.load %arg8[%c0_52, %c0_53] : memref<400x200xbf16, #tpu.memory_space<vmem>>, vector<400x200xbf16>
    %cst_54 = arith.constant dense<0.000000e+00> : vector<32x200xf32>
    %90 = tpu.matmul %88, %89, %cst_54 {dimension_numbers = #tpu.dot_dimension_numbers<[1], [0], [0], [1], [0, 0, 1, 1], [], []>} : vector<32x400xbf16>, vector<400x200xbf16>, vector<32x200xf32> -> vector<32x200xf32>
    %c0_55 = arith.constant 0 : index
    %c0_56 = arith.constant 0 : index
    %91 = vector.load %arg9[%c0_55, %c0_56] : memref<400x200xbf16, #tpu.memory_space<vmem>>, vector<400x200xbf16>
    %cst_57 = arith.constant dense<0.000000e+00> : vector<32x200xf32>
    %92 = tpu.matmul %88, %91, %cst_57 {dimension_numbers = #tpu.dot_dimension_numbers<[1], [0], [0], [1], [0, 0, 1, 1], [], []>} : vector<32x400xbf16>, vector<400x200xbf16>, vector<32x200xf32> -> vector<32x200xf32>
    %93 = arith.maximumf %90, %92 : vector<32x200xf32>
    %c0_58 = arith.constant 0 : index
    %c0_59 = arith.constant 0 : index
    %94 = vector.load %arg11[%c0_58, %c0_59] : memref<1x500xf32, #tpu.memory_space<vmem>>, vector<1x500xf32>
    %95 = vector.extract_strided_slice %93 {offsets = [0, 0], sizes = [8, 200], strides = [1, 1]} : vector<32x200xf32> to vector<8x200xf32>
    %96 = arith.truncf %95 : vector<8x200xf32> to vector<8x200xbf16>
    %c0_60 = arith.constant 0 : index
    %c0_61 = arith.constant 0 : index
    %c0_62 = arith.constant 0 : index
    %97 = vector.load %arg10[%c0_60, %c0_61, %c0_62] : memref<4x200x500xbf16, #tpu.memory_space<vmem>>, vector<1x200x500xbf16>
    %98 = vector.shape_cast %97 : vector<1x200x500xbf16> to vector<200x500xbf16>
    %cst_63 = arith.constant dense<0.000000e+00> : vector<8x500xf32>
    %99 = tpu.matmul %96, %98, %cst_63 {dimension_numbers = #tpu.dot_dimension_numbers<[1], [0], [0], [1], [0, 0, 1, 1], [], []>} : vector<8x200xbf16>, vector<200x500xbf16>, vector<8x500xf32> -> vector<8x500xf32>
    %100 = vector.broadcast %94 : vector<1x500xf32> to vector<8x500xf32>
    %101 = arith.addf %100, %99 : vector<8x500xf32>
    %102 = vector.extract_strided_slice %93 {offsets = [8, 0], sizes = [8, 200], strides = [1, 1]} : vector<32x200xf32> to vector<8x200xf32>
    %103 = arith.truncf %102 : vector<8x200xf32> to vector<8x200xbf16>
    %c1_64 = arith.constant 1 : index
    %c0_65 = arith.constant 0 : index
    %c0_66 = arith.constant 0 : index
    %104 = vector.load %arg10[%c1_64, %c0_65, %c0_66] : memref<4x200x500xbf16, #tpu.memory_space<vmem>>, vector<1x200x500xbf16>
    %105 = vector.shape_cast %104 : vector<1x200x500xbf16> to vector<200x500xbf16>
    %cst_67 = arith.constant dense<0.000000e+00> : vector<8x500xf32>
    %106 = tpu.matmul %103, %105, %cst_67 {dimension_numbers = #tpu.dot_dimension_numbers<[1], [0], [0], [1], [0, 0, 1, 1], [], []>} : vector<8x200xbf16>, vector<200x500xbf16>, vector<8x500xf32> -> vector<8x500xf32>
    %107 = arith.addf %101, %106 : vector<8x500xf32>
    %108 = vector.extract_strided_slice %93 {offsets = [16, 0], sizes = [8, 200], strides = [1, 1]} : vector<32x200xf32> to vector<8x200xf32>
    %109 = arith.truncf %108 : vector<8x200xf32> to vector<8x200xbf16>
    %c2_68 = arith.constant 2 : index
    %c0_69 = arith.constant 0 : index
    %c0_70 = arith.constant 0 : index
    %110 = vector.load %arg10[%c2_68, %c0_69, %c0_70] : memref<4x200x500xbf16, #tpu.memory_space<vmem>>, vector<1x200x500xbf16>
    %111 = vector.shape_cast %110 : vector<1x200x500xbf16> to vector<200x500xbf16>
    %cst_71 = arith.constant dense<0.000000e+00> : vector<8x500xf32>
    %112 = tpu.matmul %109, %111, %cst_71 {dimension_numbers = #tpu.dot_dimension_numbers<[1], [0], [0], [1], [0, 0, 1, 1], [], []>} : vector<8x200xbf16>, vector<200x500xbf16>, vector<8x500xf32> -> vector<8x500xf32>
    %113 = arith.addf %107, %112 : vector<8x500xf32>
    %114 = vector.extract_strided_slice %93 {offsets = [24, 0], sizes = [8, 200], strides = [1, 1]} : vector<32x200xf32> to vector<8x200xf32>
    %115 = arith.truncf %114 : vector<8x200xf32> to vector<8x200xbf16>
    %c3_72 = arith.constant 3 : index
    %c0_73 = arith.constant 0 : index
    %c0_74 = arith.constant 0 : index
    %116 = vector.load %arg10[%c3_72, %c0_73, %c0_74] : memref<4x200x500xbf16, #tpu.memory_space<vmem>>, vector<1x200x500xbf16>
    %117 = vector.shape_cast %116 : vector<1x200x500xbf16> to vector<200x500xbf16>
    %cst_75 = arith.constant dense<0.000000e+00> : vector<8x500xf32>
    %118 = tpu.matmul %115, %117, %cst_75 {dimension_numbers = #tpu.dot_dimension_numbers<[1], [0], [0], [1], [0, 0, 1, 1], [], []>} : vector<8x200xbf16>, vector<200x500xbf16>, vector<8x500xf32> -> vector<8x500xf32>
    %119 = arith.addf %113, %118 : vector<8x500xf32>
    %cst_76 = arith.constant 0.000000e+00 : f32
    %120 = vector.broadcast %cst_76 : f32 to vector<8x500xf32>
    %121 = arith.maximumf %119, %120 : vector<8x500xf32>
    %122 = arith.truncf %121 : vector<8x500xf32> to vector<8x500xbf16>
    %c0_77 = arith.constant 0 : index
    %c0_78 = arith.constant 0 : index
    %123 = vector.load %arg12[%c0_77, %c0_78] : memref<500x10xbf16, #tpu.memory_space<vmem>>, vector<500x10xbf16>
    %cst_79 = arith.constant dense<0.000000e+00> : vector<8x10xf32>
    %124 = tpu.matmul %122, %123, %cst_79 {dimension_numbers = #tpu.dot_dimension_numbers<[1], [0], [0], [1], [0, 0, 1, 1], [], []>} : vector<8x500xbf16>, vector<500x10xbf16>, vector<8x10xf32> -> vector<8x10xf32>
    %c0_80 = arith.constant 0 : index
    %c0_81 = arith.constant 0 : index
    %125 = vector.load %arg13[%c0_80, %c0_81] : memref<1x10xf32, #tpu.memory_space<vmem>>, vector<1x10xf32>
    %126 = vector.broadcast %125 : vector<1x10xf32> to vector<8x10xf32>
    %127 = arith.addf %124, %126 : vector<8x10xf32>
    %c0_82 = arith.constant 0 : index
    %c0_83 = arith.constant 0 : index
    %128 = vector.load %arg14[%c0_82, %c0_83] : memref<8x10xf32, #tpu.memory_space<vmem>>, vector<8x10xf32>
    tpu.vector_store %arg14[%c0_82, %c0_83], %127 {strides = array<i32>} : memref<8x10xf32, #tpu.memory_space<vmem>>, vector<8x10xf32>,
    return
  }
  func.func @transform_0(%arg0: i32) -> (i32, i32) {
    %c0_i32 = arith.constant 0 : i32
    %c0_i32_0 = arith.constant 0 : i32
    return %arg0, %c0_i32 : i32, i32
  }
  func.func @transform_1(%arg0: i32) -> (i32, i32, i32) {
    %c0_i32 = arith.constant 0 : i32
    %c0_i32_0 = arith.constant 0 : i32
    %c0_i32_1 = arith.constant 0 : i32
    %c0_i32_2 = arith.constant 0 : i32
    return %c0_i32, %c0_i32_0, %c0_i32_1 : i32, i32, i32
  }
  func.func @transform_2(%arg0: i32) -> (i32, i32) {
    %c0_i32 = arith.constant 0 : i32
    %c0_i32_0 = arith.constant 0 : i32
    %c0_i32_1 = arith.constant 0 : i32
    return %c0_i32, %c0_i32_0 : i32, i32
  }
  func.func @transform_3(%arg0: i32) -> (i32, i32) {
    %c0_i32 = arith.constant 0 : i32
    %c0_i32_0 = arith.constant 0 : i32
    %c0_i32_1 = arith.constant 0 : i32
    return %c0_i32, %c0_i32_0 : i32, i32
  }
  func.func @transform_4(%arg0: i32) -> (i32, i32) {
    %c0_i32 = arith.constant 0 : i32
    %c0_i32_0 = arith.constant 0 : i32
    %c0_i32_1 = arith.constant 0 : i32
    return %c0_i32, %c0_i32_0 : i32, i32
  }
  func.func @transform_5(%arg0: i32) -> (i32, i32, i32) {
    %c0_i32 = arith.constant 0 : i32
    %c0_i32_0 = arith.constant 0 : i32
    %c0_i32_1 = arith.constant 0 : i32
    %c0_i32_2 = arith.constant 0 : i32
    return %c0_i32, %c0_i32_0, %c0_i32_1 : i32, i32, i32
  }
  func.func @transform_6(%arg0: i32) -> (i32, i32) {
    %c0_i32 = arith.constant 0 : i32
    %c0_i32_0 = arith.constant 0 : i32
    %c0_i32_1 = arith.constant 0 : i32
    return %c0_i32, %c0_i32_0 : i32, i32
  }
  func.func @transform_7(%arg0: i32) -> (i32, i32) {
    %c0_i32 = arith.constant 0 : i32
    %c0_i32_0 = arith.constant 0 : i32
    %c0_i32_1 = arith.constant 0 : i32
    return %c0_i32, %c0_i32_0 : i32, i32
  }
  func.func @transform_8(%arg0: i32) -> (i32, i32) {
    %c0_i32 = arith.constant 0 : i32
    %c0_i32_0 = arith.constant 0 : i32
    %c0_i32_1 = arith.constant 0 : i32
    return %c0_i32, %c0_i32_0 : i32, i32
  }
  func.func @transform_9(%arg0: i32) -> (i32, i32, i32) {
    %c0_i32 = arith.constant 0 : i32
    %c0_i32_0 = arith.constant 0 : i32
    %c0_i32_1 = arith.constant 0 : i32
    %c0_i32_2 = arith.constant 0 : i32
    return %c0_i32, %c0_i32_0, %c0_i32_1 : i32, i32, i32
  }
  func.func @transform_10(%arg0: i32) -> (i32, i32) {
    %c0_i32 = arith.constant 0 : i32
    %c0_i32_0 = arith.constant 0 : i32
    %c0_i32_1 = arith.constant 0 : i32
    return %c0_i32, %c0_i32_0 : i32, i32
  }
  func.func @transform_11(%arg0: i32) -> (i32, i32) {
    %c0_i32 = arith.constant 0 : i32
    %c0_i32_0 = arith.constant 0 : i32
    %c0_i32_1 = arith.constant 0 : i32
    return %c0_i32, %c0_i32_0 : i32, i32
  }
  func.func @transform_12(%arg0: i32) -> (i32, i32) {
    %c0_i32 = arith.constant 0 : i32
    %c0_i32_0 = arith.constant 0 : i32
    %c0_i32_1 = arith.constant 0 : i32
    return %c0_i32, %c0_i32_0 : i32, i32
  }
  func.func @transform_13(%arg0: i32) -> (i32, i32) {
    %c0_i32 = arith.constant 0 : i32
    %c0_i32_0 = arith.constant 0 : i32
    return %arg0, %c0_i32 : i32, i32
  }
}

</mosaic_0001>

<llo_original>
// kernel: net_forward.1
$region0: #{net_forward.1}
  #allocation0 [shape = 'u32[]', space=smem, size = 0x4, offset = 0x4, fixed_abs, tag = 'smem constant byte address 0x4 - core index']
  #allocation1 [shape = 'u32[144,128]{1,0:T(1,128)}', space=vmem, size = 0x12000, scoped, tag = 'internal scratch']
  %s0 = inlined_call_operand.vmem [shape: f32[448,28], index: 0, kind: input, shape index: {}]
  %s1 = inlined_call_operand.vmem [shape: bf16[5,28,480], index: 1, kind: input, shape index: {}]
  %s2 = inlined_call_operand.vmem [shape: f32[1,480], index: 2, kind: input, shape index: {}]
  %s3 = inlined_call_operand.vmem [shape: bf16[480,240], index: 3, kind: input, shape index: {}]
  %s4 = inlined_call_operand.vmem [shape: bf16[480,240], index: 4, kind: input, shape index: {}]
  %s5 = inlined_call_operand.vmem [shape: bf16[5,240,400], index: 5, kind: input, shape index: {}]
  %s6 = inlined_call_operand.vmem [shape: f32[1,400], index: 6, kind: input, shape index: {}]
  %s7 = inlined_call_operand.vmem [shape: bf16[400,200], index: 7, kind: input, shape index: {}]
  %s8 = inlined_call_operand.vmem [shape: bf16[400,200], index: 8, kind: input, shape index: {}]
  %s9 = inlined_call_operand.vmem [shape: bf16[4,200,500], index: 9, kind: input, shape index: {}]
  %s10 = inlined_call_operand.vmem [shape: f32[1,500], index: 10, kind: input, shape index: {}]
  %s11 = inlined_call_operand.vmem [shape: bf16[500,10], index: 11, kind: input, shape index: {}]
  %s12 = inlined_call_operand.vmem [shape: f32[1,10], index: 12, kind: input, shape index: {}]
  %s13 = inlined_call_operand.hbm [shape: f32[16,10], index: 13, kind: output, shape index: {}]
  %s14 = sld [smem:[#allocation0]]
  $region85: #{net_forward.1} parent=0
    _
  %s16 = ssub.s32 1, %s14
  %s17 = scalar_select 0, %s16, %s14
  $region1: #{net_forward.1} parent=0
    #allocation2 [shape = 'u8[8192]{0}', space=vmem, size = 0x2000, scoped, tag = 'output window, operand 0']
    #allocation3 [shape = 's32[2]{0}', space=sflag, size = 0x8, scoped, tag = 'scoped memory for net_forward.1']
    %18 = vsyncpa [#allocation3], 0
    %s19 = scalar_lea.sflag [#allocation3], 1
    %20 = vsyncpa %s19, 0
    loop: start=0, step=1, limit=4
    $region2: #{net_forward.1} parent=1 // loop_pre_header
      _
    $region3: #{net_forward.1} parent=1 // loop_header
      %s22 = sphi 0, %s26
      %p23 = scmp.ge.s32.totalorder %s22, 4
      %s32 = sphi 0, %s34
      %s35 = sphi 0, %s32
      %s36 = sphi 0, %s35
      %s52 = sphi 0, %s36
      %s56 = sphi 0, %s56
      %s58 = sphi 0, %s56
      %s59 = sphi 0, %s58
      %s73 = sphi 0, %s59
      %s77 = sphi 0, %s77
      %s79 = sphi 0, %s77
      %s80 = sphi 0, %s79
      %s94 = sphi 0, %s80
      %s98 = sphi 0, %s98
      %s100 = sphi 0, %s98
      %s101 = sphi 0, %s100
      %s115 = sphi 0, %s101
      %s119 = sphi 0, %s119
      %s121 = sphi 0, %s119
      %s122 = sphi 0, %s121
      %s136 = sphi 0, %s122
      %s140 = sphi 0, %s140
      %s142 = sphi 0, %s140
      %s143 = sphi 0, %s142
      %s157 = sphi 0, %s143
      %s161 = sphi 0, %s161
      %s163 = sphi 0, %s161
      %s164 = sphi 0, %s163
      %s178 = sphi 0, %s164
      %s182 = sphi 0, %s182
      %s184 = sphi 0, %s182
      %s185 = sphi 0, %s184
      %s199 = sphi 0, %s185
      %s203 = sphi 0, %s203
      %s205 = sphi 0, %s203
      %s206 = sphi 0, %s205
      %s220 = sphi 0, %s206
      %s224 = sphi 0, %s224
      %s226 = sphi 0, %s224
      %s227 = sphi 0, %s226
      %s241 = sphi 0, %s227
      %s245 = sphi 0, %s245
      %s247 = sphi 0, %s245
      %s248 = sphi 0, %s247
      %s262 = sphi 0, %s248
      %s266 = sphi 0, %s266
      %s268 = sphi 0, %s266
      %s269 = sphi 0, %s268
      %s283 = sphi 0, %s269
      %s287 = sphi 0, %s287
      %s289 = sphi 0, %s287
      %s290 = sphi 0, %s289
      %s304 = sphi 0, %s290
      %s310 = sphi 0, %s312
      %s313 = sphi 0, %s310
      %s314 = sphi 0, %s313
      %s330 = sphi 0, %s314
    $region4: #{net_forward.1} parent=1 // loop_header_branch
      %25 = sbr.rel (%p23) target = $region8
    $region5: #{net_forward.1} parent=1 // loop_body
      %s27 = ssub.s32 %s22, 1
      %s28 = ssub.s32 %s22, 2
      %s29 = sadd.s32 %s22, 1
      %s30 = ssub.s32 %s22, %s29
      %p31 = scmp.eq.s32.totalorder %s30, 0
      %s33 = sadd.s32 %s32, 1
      %s34 = scalar_select %p31, %s32, %s33
      %p37 = pneg %p31
      %p38 = scmp.eq.s32.totalorder %s22, 1
      %p39 = por %p37, %p38
      %p40 = scmp.ne.s32.totalorder %s32, %s35
      %p41 = scmp.eq.s32.totalorder %s22, 0
      %p42 = por %p40, %p41
      %p43 = scmp.ne.s32.totalorder %s32, %s35
      %p44 = scmp.eq.s32.totalorder %s27, 1
      %p45 = por %p43, %p44
      %p46 = scmp.ne.s32.totalorder %s35, %s36
      %p47 = scmp.eq.s32.totalorder %s27, 0
      %p48 = por %p46, %p47
      %p49 = scmp.ne.s32.totalorder %s35, %s36
      %p50 = scmp.eq.s32.totalorder %s28, 1
      %p51 = por %p49, %p50
      %p53 = scmp.ne.s32.totalorder %s36, %s52
      %p54 = scmp.eq.s32.totalorder %s28, 0
      %p55 = por %p53, %p54
      %s57 = sadd.s32 %s56, 1
      %p60 = scmp.eq.s32.totalorder %s22, 1
      %p61 = scmp.ne.s32.totalorder %s56, %s58
      %p62 = scmp.eq.s32.totalorder %s22, 0
      %p63 = por %p61, %p62
      %p64 = scmp.ne.s32.totalorder %s56, %s58
      %p65 = scmp.eq.s32.totalorder %s27, 1
      %p66 = por %p64, %p65
      %p67 = scmp.ne.s32.totalorder %s58, %s59
      %p68 = scmp.eq.s32.totalorder %s27, 0
      %p69 = por %p67, %p68
      %p70 = scmp.ne.s32.totalorder %s58, %s59
      %p71 = scmp.eq.s32.totalorder %s28, 1
      %p72 = por %p70, %p71
      %p74 = scmp.ne.s32.totalorder %s59, %s73
      %p75 = scmp.eq.s32.totalorder %s28, 0
      %p76 = por %p74, %p75
      %s78 = sadd.s32 %s77, 1
      %p81 = scmp.eq.s32.totalorder %s22, 1
      %p82 = scmp.ne.s32.totalorder %s77, %s79
      %p83 = scmp.eq.s32.totalorder %s22, 0
      %p84 = por %p82, %p83
      %p85 = scmp.ne.s32.totalorder %s77, %s79
      %p86 = scmp.eq.s32.totalorder %s27, 1
      %p87 = por %p85, %p86
      %p88 = scmp.ne.s32.totalorder %s79, %s80
      %p89 = scmp.eq.s32.totalorder %s27, 0
      %p90 = por %p88, %p89
      %p91 = scmp.ne.s32.totalorder %s79, %s80
      %p92 = scmp.eq.s32.totalorder %s28, 1
      %p93 = por %p91, %p92
      %p95 = scmp.ne.s32.totalorder %s80, %s94
      %p96 = scmp.eq.s32.totalorder %s28, 0
      %p97 = por %p95, %p96
      %s99 = sadd.s32 %s98, 1
      %p102 = scmp.eq.s32.totalorder %s22, 1
      %p103 = scmp.ne.s32.totalorder %s98, %s100
      %p104 = scmp.eq.s32.totalorder %s22, 0
      %p105 = por %p103, %p104
      %p106 = scmp.ne.s32.totalorder %s98, %s100
      %p107 = scmp.eq.s32.totalorder %s27, 1
      %p108 = por %p106, %p107
      %p109 = scmp.ne.s32.totalorder %s100, %s101
      %p110 = scmp.eq.s32.totalorder %s27, 0
      %p111 = por %p109, %p110
      %p112 = scmp.ne.s32.totalorder %s100, %s101
      %p113 = scmp.eq.s32.totalorder %s28, 1
      %p114 = por %p112, %p113
      %p116 = scmp.ne.s32.totalorder %s101, %s115
      %p117 = scmp.eq.s32.totalorder %s28, 0
      %p118 = por %p116, %p117
      %s120 = sadd.s32 %s119, 1
      %p123 = scmp.eq.s32.totalorder %s22, 1
      %p124 = scmp.ne.s32.totalorder %s119, %s121
      %p125 = scmp.eq.s32.totalorder %s22, 0
      %p126 = por %p124, %p125
      %p127 = scmp.ne.s32.totalorder %s119, %s121
      %p128 = scmp.eq.s32.totalorder %s27, 1
      %p129 = por %p127, %p128
      %p130 = scmp.ne.s32.totalorder %s121, %s122
      %p131 = scmp.eq.s32.totalorder %s27, 0
      %p132 = por %p130, %p131
      %p133 = scmp.ne.s32.totalorder %s121, %s122
      %p134 = scmp.eq.s32.totalorder %s28, 1
      %p135 = por %p133, %p134
      %p137 = scmp.ne.s32.totalorder %s122, %s136
      %p138 = scmp.eq.s32.totalorder %s28, 0
      %p139 = por %p137, %p138
      %s141 = sadd.s32 %s140, 1
      %p144 = scmp.eq.s32.totalorder %s22, 1
      %p145 = scmp.ne.s32.totalorder %s140, %s142
      %p146 = scmp.eq.s32.totalorder %s22, 0
      %p147 = por %p145, %p146
      %p148 = scmp.ne.s32.totalorder %s140, %s142
      %p149 = scmp.eq.s32.totalorder %s27, 1
      %p150 = por %p148, %p149
      %p151 = scmp.ne.s32.totalorder %s142, %s143
      %p152 = scmp.eq.s32.totalorder %s27, 0
      %p153 = por %p151, %p152
      %p154 = scmp.ne.s32.totalorder %s142, %s143
      %p155 = scmp.eq.s32.totalorder %s28, 1
      %p156 = por %p154, %p155
      %p158 = scmp.ne.s32.totalorder %s143, %s157
      %p159 = scmp.eq.s32.totalorder %s28, 0
      %p160 = por %p158, %p159
      %s162 = sadd.s32 %s161, 1
      %p165 = scmp.eq.s32.totalorder %s22, 1
      %p166 = scmp.ne.s32.totalorder %s161, %s163
      %p167 = scmp.eq.s32.totalorder %s22, 0
      %p168 = por %p166, %p167
      %p169 = scmp.ne.s32.totalorder %s161, %s163
      %p170 = scmp.eq.s32.totalorder %s27, 1
      %p171 = por %p169, %p170
      %p172 = scmp.ne.s32.totalorder %s163, %s164
      %p173 = scmp.eq.s32.totalorder %s27, 0
      %p174 = por %p172, %p173
      %p175 = scmp.ne.s32.totalorder %s163, %s164
      %p176 = scmp.eq.s32.totalorder %s28, 1
      %p177 = por %p175, %p176
      %p179 = scmp.ne.s32.totalorder %s164, %s178
      %p180 = scmp.eq.s32.totalorder %s28, 0
      %p181 = por %p179, %p180
      %s183 = sadd.s32 %s182, 1
      %p186 = scmp.eq.s32.totalorder %s22, 1
      %p187 = scmp.ne.s32.totalorder %s182, %s184
      %p188 = scmp.eq.s32.totalorder %s22, 0
      %p189 = por %p187, %p188
      %p190 = scmp.ne.s32.totalorder %s182, %s184
      %p191 = scmp.eq.s32.totalorder %s27, 1
      %p192 = por %p190, %p191
      %p193 = scmp.ne.s32.totalorder %s184, %s185
      %p194 = scmp.eq.s32.totalorder %s27, 0
      %p195 = por %p193, %p194
      %p196 = scmp.ne.s32.totalorder %s184, %s185
      %p197 = scmp.eq.s32.totalorder %s28, 1
      %p198 = por %p196, %p197
      %p200 = scmp.ne.s32.totalorder %s185, %s199
      %p201 = scmp.eq.s32.totalorder %s28, 0
      %p202 = por %p200, %p201
      %s204 = sadd.s32 %s203, 1
      %p207 = scmp.eq.s32.totalorder %s22, 1
      %p208 = scmp.ne.s32.totalorder %s203, %s205
      %p209 = scmp.eq.s32.totalorder %s22, 0
      %p210 = por %p208, %p209
      %p211 = scmp.ne.s32.totalorder %s203, %s205
      %p212 = scmp.eq.s32.totalorder %s27, 1
      %p213 = por %p211, %p212
      %p214 = scmp.ne.s32.totalorder %s205, %s206
      %p215 = scmp.eq.s32.totalorder %s27, 0
      %p216 = por %p214, %p215
      %p217 = scmp.ne.s32.totalorder %s205, %s206
      %p218 = scmp.eq.s32.totalorder %s28, 1
      %p219 = por %p217, %p218
      %p221 = scmp.ne.s32.totalorder %s206, %s220
      %p222 = scmp.eq.s32.totalorder %s28, 0
      %p223 = por %p221, %p222
      %s225 = sadd.s32 %s224, 1
      %p228 = scmp.eq.s32.totalorder %s22, 1
      %p229 = scmp.ne.s32.totalorder %s224, %s226
      %p230 = scmp.eq.s32.totalorder %s22, 0
      %p231 = por %p229, %p230
      %p232 = scmp.ne.s32.totalorder %s224, %s226
      %p233 = scmp.eq.s32.totalorder %s27, 1
      %p234 = por %p232, %p233
      %p235 = scmp.ne.s32.totalorder %s226, %s227
      %p236 = scmp.eq.s32.totalorder %s27, 0
      %p237 = por %p235, %p236
      %p238 = scmp.ne.s32.totalorder %s226, %s227
      %p239 = scmp.eq.s32.totalorder %s28, 1
      %p240 = por %p238, %p239
      %p242 = scmp.ne.s32.totalorder %s227, %s241
      %p243 = scmp.eq.s32.totalorder %s28, 0
      %p244 = por %p242, %p243
      %s246 = sadd.s32 %s245, 1
      %p249 = scmp.eq.s32.totalorder %s22, 1
      %p250 = scmp.ne.s32.totalorder %s245, %s247
      %p251 = scmp.eq.s32.totalorder %s22, 0
      %p252 = por %p250, %p251
      %p253 = scmp.ne.s32.totalorder %s245, %s247
      %p254 = scmp.eq.s32.totalorder %s27, 1
      %p255 = por %p253, %p254
      %p256 = scmp.ne.s32.totalorder %s247, %s248
      %p257 = scmp.eq.s32.totalorder %s27, 0
      %p258 = por %p256, %p257
      %p259 = scmp.ne.s32.totalorder %s247, %s248
      %p260 = scmp.eq.s32.totalorder %s28, 1
      %p261 = por %p259, %p260
      %p263 = scmp.ne.s32.totalorder %s248, %s262
      %p264 = scmp.eq.s32.totalorder %s28, 0
      %p265 = por %p263, %p264
      %s267 = sadd.s32 %s266, 1
      %p270 = scmp.eq.s32.totalorder %s22, 1
      %p271 = scmp.ne.s32.totalorder %s266, %s268
      %p272 = scmp.eq.s32.totalorder %s22, 0
      %p273 = por %p271, %p272
      %p274 = scmp.ne.s32.totalorder %s266, %s268
      %p275 = scmp.eq.s32.totalorder %s27, 1
      %p276 = por %p274, %p275
      %p277 = scmp.ne.s32.totalorder %s268, %s269
      %p278 = scmp.eq.s32.totalorder %s27, 0
      %p279 = por %p277, %p278
      %p280 = scmp.ne.s32.totalorder %s268, %s269
      %p281 = scmp.eq.s32.totalorder %s28, 1
      %p282 = por %p280, %p281
      %p284 = scmp.ne.s32.totalorder %s269, %s283
      %p285 = scmp.eq.s32.totalorder %s28, 0
      %p286 = por %p284, %p285
      %s288 = sadd.s32 %s287, 1
      %p291 = scmp.eq.s32.totalorder %s22, 1
      %p292 = scmp.ne.s32.totalorder %s287, %s289
      %p293 = scmp.eq.s32.totalorder %s22, 0
      %p294 = por %p292, %p293
      %p295 = scmp.ne.s32.totalorder %s287, %s289
      %p296 = scmp.eq.s32.totalorder %s27, 1
      %p297 = por %p295, %p296
      %p298 = scmp.ne.s32.totalorder %s289, %s290
      %p299 = scmp.eq.s32.totalorder %s27, 0
      %p300 = por %p298, %p299
      %p301 = scmp.ne.s32.totalorder %s289, %s290
      %p302 = scmp.eq.s32.totalorder %s28, 1
      %p303 = por %p301, %p302
      %p305 = scmp.ne.s32.totalorder %s290, %s304
      %p306 = scmp.eq.s32.totalorder %s28, 0
      %p307 = por %p305, %p306
      %s308 = ssub.s32 %s22, %s29
      %p309 = scmp.eq.s32.totalorder %s308, 0
      %s311 = sadd.s32 %s310, 1
      %s312 = scalar_select %p309, %s310, %s311
      %p315 = pneg %p309
      %p316 = scmp.eq.s32.totalorder %s22, 1
      %p317 = por %p315, %p316
      %p318 = scmp.ne.s32.totalorder %s310, %s313
      %p319 = scmp.eq.s32.totalorder %s22, 0
      %p320 = por %p318, %p319
      %p321 = scmp.ne.s32.totalorder %s310, %s313
      %p322 = scmp.eq.s32.totalorder %s27, 1
      %p323 = por %p321, %p322
      %p324 = scmp.ne.s32.totalorder %s313, %s314
      %p325 = scmp.eq.s32.totalorder %s27, 0
      %p326 = por %p324, %p325
      %p327 = scmp.ne.s32.totalorder %s313, %s314
      %p328 = scmp.eq.s32.totalorder %s28, 1
      %p329 = por %p327, %p328
      %p331 = scmp.ne.s32.totalorder %s314, %s330
      %p332 = scmp.eq.s32.totalorder %s28, 0
      %p333 = por %p331, %p332
      %p334 = scmp.le.s32.totalorder 1, %s22
      %p335 = scmp.lt.s32.totalorder %s22, 3
      %p336 = pnand %p334, %p335
      %p337 = pneg %p336
      // Predicated region
      $region9: #{net_forward.1} parent=5 // pred_check
        _
      $region10: #{net_forward.1} parent=5 // pred_check_branch
        %339 = sbr.rel (%p336) target = $region12
      $region11: #{net_forward.1} parent=5 // pred_region
        %s340 = ssub.s32 %s22, 1
        // Predicated region
        $region13: #{net_forward.1} parent=11 // pred_check
          %p341 = pneg %p69
        $region14: #{net_forward.1} parent=11 // pred_check_branch
          %343 = sbr.rel (%p341) target = $region16
        $region15: #{net_forward.1} parent=11 // pred_region
          _
        $region16: #{net_forward.1} parent=11 // pred_fallthru
          _
        // Predicated region
        $region17: #{net_forward.1} parent=11 // pred_check
          %p344 = pneg %p90
        $region18: #{net_forward.1} parent=11 // pred_check_branch
          %346 = sbr.rel (%p344) target = $region20
        $region19: #{net_forward.1} parent=11 // pred_region
          _
        $region20: #{net_forward.1} parent=11 // pred_fallthru
          _
        // Predicated region
        $region21: #{net_forward.1} parent=11 // pred_check
          %p347 = pneg %p111
        $region22: #{net_forward.1} parent=11 // pred_check_branch
          %349 = sbr.rel (%p347) target = $region24
        $region23: #{net_forward.1} parent=11 // pred_region
          _
        $region24: #{net_forward.1} parent=11 // pred_fallthru
          _
        // Predicated region
        $region25: #{net_forward.1} parent=11 // pred_check
          %p350 = pneg %p132
        $region26: #{net_forward.1} parent=11 // pred_check_branch
          %352 = sbr.rel (%p350) target = $region28
        $region27: #{net_forward.1} parent=11 // pred_region
          _
        $region28: #{net_forward.1} parent=11 // pred_fallthru
          _
        // Predicated region
        $region29: #{net_forward.1} parent=11 // pred_check
          %p353 = pneg %p153
        $region30: #{net_forward.1} parent=11 // pred_check_branch
          %355 = sbr.rel (%p353) target = $region32
        $region31: #{net_forward.1} parent=11 // pred_region
          _
        $region32: #{net_forward.1} parent=11 // pred_fallthru
          _
        // Predicated region
        $region33: #{net_forward.1} parent=11 // pred_check
          %p356 = pneg %p174
        $region34: #{net_forward.1} parent=11 // pred_check_branch
          %358 = sbr.rel (%p356) target = $region36
        $region35: #{net_forward.1} parent=11 // pred_region
          _
        $region36: #{net_forward.1} parent=11 // pred_fallthru
          _
        // Predicated region
        $region37: #{net_forward.1} parent=11 // pred_check
          %p359 = pneg %p195
        $region38: #{net_forward.1} parent=11 // pred_check_branch
          %361 = sbr.rel (%p359) target = $region40
        $region39: #{net_forward.1} parent=11 // pred_region
          _
        $region40: #{net_forward.1} parent=11 // pred_fallthru
          _
        // Predicated region
        $region41: #{net_forward.1} parent=11 // pred_check
          %p362 = pneg %p216
        $region42: #{net_forward.1} parent=11 // pred_check_branch
          %364 = sbr.rel (%p362) target = $region44
        $region43: #{net_forward.1} parent=11 // pred_region
          _
        $region44: #{net_forward.1} parent=11 // pred_fallthru
          _
        // Predicated region
        $region45: #{net_forward.1} parent=11 // pred_check
          %p365 = pneg %p237
        $region46: #{net_forward.1} parent=11 // pred_check_branch
          %367 = sbr.rel (%p365) target = $region48
        $region47: #{net_forward.1} parent=11 // pred_region
          _
        $region48: #{net_forward.1} parent=11 // pred_fallthru
          _
        // Predicated region
        $region49: #{net_forward.1} parent=11 // pred_check
          %p368 = pneg %p258
        $region50: #{net_forward.1} parent=11 // pred_check_branch
          %370 = sbr.rel (%p368) target = $region52
        $region51: #{net_forward.1} parent=11 // pred_region
          _
        $region52: #{net_forward.1} parent=11 // pred_fallthru
          _
        // Predicated region
        $region53: #{net_forward.1} parent=11 // pred_check
          %p371 = pneg %p279
        $region54: #{net_forward.1} parent=11 // pred_check_branch
          %373 = sbr.rel (%p371) target = $region56
        $region55: #{net_forward.1} parent=11 // pred_region
          _
        $region56: #{net_forward.1} parent=11 // pred_fallthru
          _
        // Predicated region
        $region57: #{net_forward.1} parent=11 // pred_check
          %p374 = pneg %p300
        $region58: #{net_forward.1} parent=11 // pred_check_branch
          %376 = sbr.rel (%p374) target = $region60
        $region59: #{net_forward.1} parent=11 // pred_region
          _
        $region60: #{net_forward.1} parent=11 // pred_fallthru
          _
      $region12: #{net_forward.1} parent=5 // pred_fallthru
        _
      %p377 = scmp.lt.s32.totalorder %s22, 2
      // Predicated region
      $region61: #{net_forward.1} parent=5 // pred_check
        %p378 = pneg %p377
      $region62: #{net_forward.1} parent=5 // pred_check_branch
        %380 = sbr.rel (%p378) target = $region64
      $region63: #{net_forward.1} parent=5 // pred_region
        // Predicated region
        $region65: #{net_forward.1} parent=63 // pred_check
          %p381 = pneg %p42
        $region66: #{net_forward.1} parent=63 // pred_check_branch
          %383 = sbr.rel (%p381) target = $region68
        $region67: #{net_forward.1} parent=63 // pred_region
          %s384 = smul.u32 28, %s22
          %p385 = scmp.lt.s32.totalorder %s384, 55
          %s386 = scalar_select %p385, %s384, 55
          %s387 = smul.addr %s386, 8
          %s388 = scalar_lea.vmem %s0, %s387
          %s389 = smul.u32 28, %s22
        $region68: #{net_forward.1} parent=63 // pred_fallthru
          _
      $region64: #{net_forward.1} parent=5 // pred_fallthru
        _
      %p390 = scmp.le.s32.totalorder 1, %s22
      %p391 = scmp.lt.s32.totalorder %s22, 3
      %p392 = pnand %p390, %p391
      %p393 = pneg %p392
      // Predicated region
      $region69: #{net_forward.1} parent=5 // pred_check
        _
      $region70: #{net_forward.1} parent=5 // pred_check_branch
        %395 = sbr.rel (%p392) target = $region72
      $region71: #{net_forward.1} parent=5 // pred_region
        %s396 = ssub.s32 %s22, 1
        %s397 = smul.u32 28, %s27
        %p398 = scmp.lt.s32.totalorder %s397, 55
        %s399 = scalar_select %p398, %s397, 55
        %s400 = smul.addr %s399, 8
        %s401 = scalar_lea.vmem %s0, %s400
        %p402 = pneg %p48
        %p403 = pneg %p45
        %p404 = pneg %p69
        %p405 = pneg %p66
        %p406 = pneg %p90
        %p407 = pneg %p87
        %p408 = pneg %p111
        %p409 = pneg %p108
        %p410 = pneg %p132
        %p411 = pneg %p129
        %p412 = pneg %p153
        %p413 = pneg %p150
        %p414 = pneg %p174
        %p415 = pneg %p171
        %p416 = pneg %p195
        %p417 = pneg %p192
        %p418 = pneg %p216
        %p419 = pneg %p213
        %p420 = pneg %p237
        %p421 = pneg %p234
        %p422 = pneg %p258
        %p423 = pneg %p255
        %p424 = pneg %p279
        %p425 = pneg %p276
        %p426 = pneg %p300
        %p427 = pneg %p297
        %p428 = pneg %p326
        %p429 = pneg %p323
        %s430 = sand.u32 %s313, 1
        %s431 = scalar_lea.sflag [#allocation3], %s430
        %s432 = sand.u32 %s313, 1
        %s433 = smul.addr %s432, 8
        %s434 = scalar_lea.vmem [#allocation2], %s433
        %s435 = smul.u32 28, %s27
        %p436 = scmp.lt.s32.totalorder %s435, 55
        %s437 = scalar_select %p436, %s435, 55
        %s438 = smul.addr %s437, 8
        %s439 = scalar_lea.vmem %s0, %s438
        %s440 = smul.u32 28, %s27
        %v442 = vld [vmem:[%s439] sm:$0xff]
        %v443 = vld [vmem:[%s439 + $0x8] sm:$0xff]
        %v444 = vld [vmem:[%s439 + $0x10] sm:$0xff]
        %v445 = vld [vmem:[%s439 + $0x18] sm:$0xff]
        %v446 = vld [vmem:[%s439 + $0x20] sm:$0xff]
        %v447 = vld [vmem:[%s439 + $0x28] sm:$0xff]
        %v448 = vld [vmem:[%s439 + $0x30] sm:$0xff]
        %v449 = vld [vmem:[%s439 + $0x38] sm:$0xff]
        %v450 = vld [vmem:[%s439 + $0x40] sm:$0xff]
        %v451 = vld [vmem:[%s439 + $0x48] sm:$0xff]
        %v452 = vld [vmem:[%s439 + $0x50] sm:$0xff]
        %v453 = vld [vmem:[%s439 + $0x58] sm:$0xff]
        %v454 = vld [vmem:[%s439 + $0x60] sm:$0xff]
        %v455 = vld [vmem:[%s439 + $0x68] sm:$0xff]
        %v456 = vld [vmem:[%s439 + $0x70] sm:$0xff]
        %v457 = vld [vmem:[%s439 + $0x78] sm:$0xff]
        %v458 = vld [vmem:[%s439 + $0x80] sm:$0xff]
        %v459 = vld [vmem:[%s439 + $0x88] sm:$0xff]
        %v460 = vld [vmem:[%s439 + $0x90] sm:$0xff]
        %v461 = vld [vmem:[%s439 + $0x98] sm:$0xff]
        %v462 = vld [vmem:[%s439 + $0xa0] sm:$0xff]
        %v463 = vld [vmem:[%s439 + $0xa8] sm:$0xff]
        %v464 = vld [vmem:[%s439 + $0xb0] sm:$0xff]
        %v465 = vld [vmem:[%s439 + $0xb8] sm:$0xff]
        %v466 = vpack.c.bf16 %v443, %v442
        %v467 = vpack.c.bf16 %v445, %v444
        %v468 = vpack.c.bf16 %v447, %v446
        %v469 = vpack.c.bf16 %v449, %v448
        %v470 = vpack.c.bf16 %v451, %v450
        %v471 = vpack.c.bf16 %v453, %v452
        %v472 = vpack.c.bf16 %v455, %v454
        %v473 = vpack.c.bf16 %v457, %v456
        %v474 = vpack.c.bf16 %v459, %v458
        %v475 = vpack.c.bf16 %v461, %v460
        %v476 = vpack.c.bf16 %v463, %v462
        %v477 = vpack.c.bf16 %v465, %v464
        %v478 = vld [vmem:[%s1] sm:$0xff]
        %v479 = vld [vmem:[%s1 + $0x8] sm:$0xff]
        %v480 = vld [vmem:[%s1 + $0x10] sm:$0xff]
        %v481 = vld [vmem:[%s1 + $0x18] sm:$0xff]
        %v482 = vld [vmem:[%s1 + $0x20] sm:$0xff]
        %v483 = vld [vmem:[%s1 + $0x28] sm:$0xff]
        %v484 = vld [vmem:[%s1 + $0x30] sm:$0x33]
        %v485 = vld [vmem:[%s1 + $0x38] sm:$0x33]
        %v486 = vld [vmem:[%s439 + $0xc0] sm:$0xff]
        %v487 = vpack.c.bf16 %v444, %v443
        %v488 = vpack.c.bf16 %v446, %v445
        %v489 = vpack.c.bf16 %v448, %v447
        %v490 = vpack.c.bf16 %v450, %v449
        %v491 = vpack.c.bf16 %v452, %v451
        %v492 = vpack.c.bf16 %v454, %v453
        %v493 = vpack.c.bf16 %v456, %v455
        %v494 = vpack.c.bf16 %v458, %v457
        %v495 = vpack.c.bf16 %v460, %v459
        %v496 = vpack.c.bf16 %v462, %v461
        %v497 = vpack.c.bf16 %v464, %v463
        %v498 = vpack.c.bf16 %v486, %v465
        %s499 = scalar_lea.vmem %s1, 64
        %v500 = vld [vmem:[%s499] sm:$0xff]
        %v501 = vld [vmem:[%s499 + $0x8] sm:$0xff]
        %v502 = vld [vmem:[%s499 + $0x10] sm:$0xff]
        %v503 = vld [vmem:[%s499 + $0x18] sm:$0xff]
        %v504 = vld [vmem:[%s499 + $0x20] sm:$0xff]
        %v505 = vld [vmem:[%s499 + $0x28] sm:$0xff]
        %v506 = vld [vmem:[%s499 + $0x30] sm:$0x33]
        %v507 = vld [vmem:[%s499 + $0x38] sm:$0x33]
        %v516 = vunpack.c.l.b16 %v500
        %v517 = vunpack.c.h.b16 %v500
        %v518 = vunpack.c.l.b16 %v501
        %v519 = vunpack.c.h.b16 %v501
        %v520 = vunpack.c.l.b16 %v502
        %v521 = vunpack.c.h.b16 %v502
        %v522 = vunpack.c.l.b16 %v503
        %v523 = vunpack.c.h.b16 %v503
        %v524 = vunpack.c.l.b16 %v504
        %v525 = vunpack.c.h.b16 %v504
        %v526 = vunpack.c.l.b16 %v505
        %v527 = vunpack.c.h.b16 %v505
        %v528 = vunpack.c.l.b16 %v506
        %v529 = vunpack.c.h.b16 %v506
        %v530 = vunpack.c.l.b16 %v507
        %v531 = vunpack.c.h.b16 %v507
        %v532 = vpack.c.b16 %v520, %v516
        %v533 = vpack.c.b16 %v521, %v517
        %v534 = vpack.c.b16 %v522, %v518
        %v535 = vpack.c.b16 %v523, %v519
        %v536 = vpack.c.b16 %v528, %v524
        %v537 = vpack.c.b16 %v529, %v525
        %v538 = vpack.c.b16 %v530, %v526
        %v539 = vpack.c.b16 %v531, %v527
        %vm544 = vcmask 228352
        %v546 = vsel %vm544, %v487, 0
        %v549 = vsel %vm544, %v488, 0
        %v552 = vsel %vm544, %v489, 0
        %v555 = vsel %vm544, %v490, 0
        %v558 = vsel %vm544, %v491, 0
        %v561 = vsel %vm544, %v492, 0
        %v564 = vsel %vm544, %v493, 0
        %v567 = vsel %vm544, %v494, 0
        %v570 = vsel %vm544, %v495, 0
        %v573 = vsel %vm544, %v496, 0
        %v576 = vsel %vm544, %v497, 0
        %v579 = vsel %vm544, %v498, 0
        %vm581 = vcmask 1045504
        %v583 = vsel %vm581, %v536, 0
        %v586 = vsel %vm581, %v537, 0
        %v589 = vsel %vm581, %v538, 0
        %v592 = vsel %vm581, %v539, 0
        %594 = vmatprep.subr.bf16.mxu0 0
        %595 = vmatpush1.bf16.msra.mxu0 0
        %596 = vmatprep.subr.bf16.mxu0 0
        %597 = vmatpush1.bf16.msra.mxu0 0
        %598 = vmatprep.subr.bf16.mxu0 0
        %599 = vmatpush1.bf16.msra.mxu0 0
        %600 = vmatprep.subr.bf16.mxu0 0
        %601 = vmatpush1.bf16.msra.mxu0 0
        %602 = vmatprep.subr.bf16.mxu0 0
        %603 = vmatpush1.bf16.msra.mxu0 0
        %604 = vmatprep.subr.bf16.mxu0 0
        %605 = vmatpush1.bf16.msra.mxu0 0
        %606 = vmatprep.subr.bf16.mxu0 %v586
        %607 = vmatpush1.bf16.msra.mxu0 %v583
        %608 = vmatprep.subr.bf16.mxu0 %v533
        %609 = vmatpush1.bf16.msra.mxu0 %v532
        %610 = vmatprep.subr.bf16.mxu0 0
        %611 = vmatpush2.bf16.msra.mxu0 0
        %612 = vmatprep.subr.bf16.mxu0 0
        %613 = vmatpush2.bf16.msra.mxu0 0
        %614 = vmatprep.subr.bf16.mxu0 0
        %615 = vmatpush2.bf16.msra.mxu0 0
        %616 = vmatprep.subr.bf16.mxu0 0
        %617 = vmatpush2.bf16.msra.mxu0 0
        %618 = vmatprep.subr.bf16.mxu0 0
        %619 = vmatpush2.bf16.msra.mxu0 0
        %620 = vmatprep.subr.bf16.mxu0 0
        %621 = vmatpush2.bf16.msra.mxu0 0
        %622 = vmatprep.subr.bf16.mxu0 0
        %623 = vmatpush2.bf16.msra.mxu0 0
        %624 = vmatprep.subr.bf16.mxu0 0
        %625 = vmatpush2.bf16.msra.mxu0 0
        %626 = vmatprep.mubr.bf16.mxu0 0
        %627 = vmatmul.mubr.bf16.gmra.mxu0 %v546
        %v628 = vpop.f32.mrf.mxu0
        %v629 = vadd.f32 0.0, %v628
        %v630 = vpop.f32.mrf.mxu0
        %v631 = vadd.f32 0.0, %v630
        %v632 = vpop.f32.mrf.mxu0
        %v633 = vadd.f32 0.0, %v632
        %v634 = vpop.f32.mrf.mxu0
        %v635 = vadd.f32 0.0, %v634
        %636 = vmatprep.mubr.bf16.mxu0 0
        %637 = vmatmul.mubr.bf16.gmra.mxu0 %v549
        %v638 = vpop.f32.mrf.mxu0
        %v639 = vadd.f32 0.0, %v638
        %v640 = vpop.f32.mrf.mxu0
        %v641 = vadd.f32 0.0, %v640
        %v642 = vpop.f32.mrf.mxu0
        %v643 = vadd.f32 0.0, %v642
        %v644 = vpop.f32.mrf.mxu0
        %v645 = vadd.f32 0.0, %v644
        %646 = vmatprep.mubr.bf16.mxu0 0
        %647 = vmatmul.mubr.bf16.gmra.mxu0 %v552
        %v648 = vpop.f32.mrf.mxu0
        %v649 = vadd.f32 0.0, %v648
        %v650 = vpop.f32.mrf.mxu0
        %v651 = vadd.f32 0.0, %v650
        %v652 = vpop.f32.mrf.mxu0
        %v653 = vadd.f32 0.0, %v652
        %v654 = vpop.f32.mrf.mxu0
        %v655 = vadd.f32 0.0, %v654
        %656 = vmatprep.mubr.bf16.mxu0 0
        %657 = vmatmul.mubr.bf16.gmra.mxu0 %v555
        %v658 = vpop.f32.mrf.mxu0
        %v659 = vadd.f32 0.0, %v658
        %v660 = vpop.f32.mrf.mxu0
        %v661 = vadd.f32 0.0, %v660
        %v662 = vpop.f32.mrf.mxu0
        %v663 = vadd.f32 0.0, %v662
        %v664 = vpop.f32.mrf.mxu0
        %v665 = vadd.f32 0.0, %v664
        %666 = vmatprep.mubr.bf16.mxu0 0
        %667 = vmatmul.mubr.bf16.gmra.mxu0 %v558
        %v668 = vpop.f32.mrf.mxu0
        %v669 = vadd.f32 0.0, %v668
        %v670 = vpop.f32.mrf.mxu0
        %v671 = vadd.f32 0.0, %v670
        %v672 = vpop.f32.mrf.mxu0
        %v673 = vadd.f32 0.0, %v672
        %v674 = vpop.f32.mrf.mxu0
        %v675 = vadd.f32 0.0, %v674
        %676 = vmatprep.mubr.bf16.mxu0 0
        %677 = vmatmul.mubr.bf16.gmra.mxu0 %v561
        %v678 = vpop.f32.mrf.mxu0
        %v679 = vadd.f32 0.0, %v678
        %v680 = vpop.f32.mrf.mxu0
        %v681 = vadd.f32 0.0, %v680
        %v682 = vpop.f32.mrf.mxu0
        %v683 = vadd.f32 0.0, %v682
        %v684 = vpop.f32.mrf.mxu0
        %v685 = vadd.f32 0.0, %v684
        %686 = vmatprep.mubr.bf16.mxu0 0
        %687 = vmatmul.mubr.bf16.gmra.mxu0 %v564
        %v688 = vpop.f32.mrf.mxu0
        %v689 = vadd.f32 0.0, %v688
        %v690 = vpop.f32.mrf.mxu0
        %v691 = vadd.f32 0.0, %v690
        %v692 = vpop.f32.mrf.mxu0
        %v693 = vadd.f32 0.0, %v692
        %v694 = vpop.f32.mrf.mxu0
        %v695 = vadd.f32 0.0, %v694
        %696 = vmatprep.mubr.bf16.mxu0 0
        %697 = vmatmul.mubr.bf16.gmra.mxu0 %v567
        %v698 = vpop.f32.mrf.mxu0
        %v699 = vadd.f32 0.0, %v698
        %v700 = vpop.f32.mrf.mxu0
        %v701 = vadd.f32 0.0, %v700
        %v702 = vpop.f32.mrf.mxu0
        %v703 = vadd.f32 0.0, %v702
        %v704 = vpop.f32.mrf.mxu0
        %v705 = vadd.f32 0.0, %v704
        %706 = vmatprep.mubr.bf16.mxu0 0
        %707 = vmatmul.mubr.bf16.gmra.mxu0 %v570
        %v708 = vpop.f32.mrf.mxu0
        %v709 = vadd.f32 0.0, %v708
        %v710 = vpop.f32.mrf.mxu0
        %v711 = vadd.f32 0.0, %v710
        %v712 = vpop.f32.mrf.mxu0
        %v713 = vadd.f32 0.0, %v712
        %v714 = vpop.f32.mrf.mxu0
        %v715 = vadd.f32 0.0, %v714
        %716 = vmatprep.mubr.bf16.mxu0 0
        %717 = vmatmul.mubr.bf16.gmra.mxu0 %v573
        %v718 = vpop.f32.mrf.mxu0
        %v719 = vadd.f32 0.0, %v718
        %v720 = vpop.f32.mrf.mxu0
        %v721 = vadd.f32 0.0, %v720
        %v722 = vpop.f32.mrf.mxu0
        %v723 = vadd.f32 0.0, %v722
        %v724 = vpop.f32.mrf.mxu0
        %v725 = vadd.f32 0.0, %v724
        %726 = vmatprep.mubr.bf16.mxu0 0
        %727 = vmatmul.mubr.bf16.gmra.mxu0 %v576
        %v728 = vpop.f32.mrf.mxu0
        %v729 = vadd.f32 0.0, %v728
        %v730 = vpop.f32.mrf.mxu0
        %v731 = vadd.f32 0.0, %v730
        %v732 = vpop.f32.mrf.mxu0
        %v733 = vadd.f32 0.0, %v732
        %v734 = vpop.f32.mrf.mxu0
        %v735 = vadd.f32 0.0, %v734
        %736 = vmatprep.mubr.bf16.mxu0 0
        %737 = vmatmul.mubr.bf16.gmra.mxu0 %v579
        %v738 = vpop.f32.mrf.mxu0
        %v739 = vadd.f32 0.0, %v738
        %v740 = vpop.f32.mrf.mxu0
        %v741 = vadd.f32 0.0, %v740
        %v742 = vpop.f32.mrf.mxu0
        %v743 = vadd.f32 0.0, %v742
        %v744 = vpop.f32.mrf.mxu0
        %v745 = vadd.f32 0.0, %v744
        %746 = vdwg.mxu0
        %747 = vmatprep.subr.bf16.mxu0 0
        %748 = vmatpush1.bf16.msra.mxu0 0
        %749 = vmatprep.subr.bf16.mxu0 0
        %750 = vmatpush1.bf16.msra.mxu0 0
        %751 = vmatprep.subr.bf16.mxu0 0
        %752 = vmatpush1.bf16.msra.mxu0 0
        %753 = vmatprep.subr.bf16.mxu0 0
        %754 = vmatpush1.bf16.msra.mxu0 0
        %755 = vmatprep.subr.bf16.mxu0 0
        %756 = vmatpush1.bf16.msra.mxu0 0
        %757 = vmatprep.subr.bf16.mxu0 0
        %758 = vmatpush1.bf16.msra.mxu0 0
        %759 = vmatprep.subr.bf16.mxu0 %v592
        %760 = vmatpush1.bf16.msra.mxu0 %v589
        %761 = vmatprep.subr.bf16.mxu0 %v535
        %762 = vmatpush1.bf16.msra.mxu0 %v534
        %763 = vmatprep.subr.bf16.mxu0 0
        %764 = vmatpush2.bf16.msra.mxu0 0
        %765 = vmatprep.subr.bf16.mxu0 0
        %766 = vmatpush2.bf16.msra.mxu0 0
        %767 = vmatprep.subr.bf16.mxu0 0
        %768 = vmatpush2.bf16.msra.mxu0 0
        %769 = vmatprep.subr.bf16.mxu0 0
        %770 = vmatpush2.bf16.msra.mxu0 0
        %771 = vmatprep.subr.bf16.mxu0 0
        %772 = vmatpush2.bf16.msra.mxu0 0
        %773 = vmatprep.subr.bf16.mxu0 0
        %774 = vmatpush2.bf16.msra.mxu0 0
        %775 = vmatprep.subr.bf16.mxu0 0
        %776 = vmatpush2.bf16.msra.mxu0 0
        %777 = vmatprep.subr.bf16.mxu0 0
        %778 = vmatpush2.bf16.msra.mxu0 0
        %779 = vmatprep.mubr.bf16.mxu0 0
        %780 = vmatmul.mubr.bf16.gmra.mxu0 %v546
        %v781 = vpop.f32.mrf.mxu0
        %v782 = vadd.f32 0.0, %v781
        %v783 = vpop.f32.mrf.mxu0
        %v784 = vadd.f32 0.0, %v783
        %v785 = vpop.f32.mrf.mxu0
        %v786 = vadd.f32 0.0, %v785
        %v787 = vpop.f32.mrf.mxu0
        %v788 = vadd.f32 0.0, %v787
        %789 = vmatprep.mubr.bf16.mxu0 0
        %790 = vmatmul.mubr.bf16.gmra.mxu0 %v549
        %v791 = vpop.f32.mrf.mxu0
        %v792 = vadd.f32 0.0, %v791
        %v793 = vpop.f32.mrf.mxu0
        %v794 = vadd.f32 0.0, %v793
        %v795 = vpop.f32.mrf.mxu0
        %v796 = vadd.f32 0.0, %v795
        %v797 = vpop.f32.mrf.mxu0
        %v798 = vadd.f32 0.0, %v797
        %799 = vmatprep.mubr.bf16.mxu0 0
        %800 = vmatmul.mubr.bf16.gmra.mxu0 %v552
        %v801 = vpop.f32.mrf.mxu0
        %v802 = vadd.f32 0.0, %v801
        %v803 = vpop.f32.mrf.mxu0
        %v804 = vadd.f32 0.0, %v803
        %v805 = vpop.f32.mrf.mxu0
        %v806 = vadd.f32 0.0, %v805
        %v807 = vpop.f32.mrf.mxu0
        %v808 = vadd.f32 0.0, %v807
        %809 = vmatprep.mubr.bf16.mxu0 0
        %810 = vmatmul.mubr.bf16.gmra.mxu0 %v555
        %v811 = vpop.f32.mrf.mxu0
        %v812 = vadd.f32 0.0, %v811
        %v813 = vpop.f32.mrf.mxu0
        %v814 = vadd.f32 0.0, %v813
        %v815 = vpop.f32.mrf.mxu0
        %v816 = vadd.f32 0.0, %v815
        %v817 = vpop.f32.mrf.mxu0
        %v818 = vadd.f32 0.0, %v817
        %819 = vmatprep.mubr.bf16.mxu0 0
        %820 = vmatmul.mubr.bf16.gmra.mxu0 %v558
        %v821 = vpop.f32.mrf.mxu0
        %v822 = vadd.f32 0.0, %v821
        %v823 = vpop.f32.mrf.mxu0
        %v824 = vadd.f32 0.0, %v823
        %v825 = vpop.f32.mrf.mxu0
        %v826 = vadd.f32 0.0, %v825
        %v827 = vpop.f32.mrf.mxu0
        %v828 = vadd.f32 0.0, %v827
        %829 = vmatprep.mubr.bf16.mxu0 0
        %830 = vmatmul.mubr.bf16.gmra.mxu0 %v561
        %v831 = vpop.f32.mrf.mxu0
        %v832 = vadd.f32 0.0, %v831
        %v833 = vpop.f32.mrf.mxu0
        %v834 = vadd.f32 0.0, %v833
        %v835 = vpop.f32.mrf.mxu0
        %v836 = vadd.f32 0.0, %v835
        %v837 = vpop.f32.mrf.mxu0
        %v838 = vadd.f32 0.0, %v837
        %839 = vmatprep.mubr.bf16.mxu0 0
        %840 = vmatmul.mubr.bf16.gmra.mxu0 %v564
        %v841 = vpop.f32.mrf.mxu0
        %v842 = vadd.f32 0.0, %v841
        %v843 = vpop.f32.mrf.mxu0
        %v844 = vadd.f32 0.0, %v843
        %v845 = vpop.f32.mrf.mxu0
        %v846 = vadd.f32 0.0, %v845
        %v847 = vpop.f32.mrf.mxu0
        %v848 = vadd.f32 0.0, %v847
        %849 = vmatprep.mubr.bf16.mxu0 0
        %850 = vmatmul.mubr.bf16.gmra.mxu0 %v567
        %v851 = vpop.f32.mrf.mxu0
        %v852 = vadd.f32 0.0, %v851
        %v853 = vpop.f32.mrf.mxu0
        %v854 = vadd.f32 0.0, %v853
        %v855 = vpop.f32.mrf.mxu0
        %v856 = vadd.f32 0.0, %v855
        %v857 = vpop.f32.mrf.mxu0
        %v858 = vadd.f32 0.0, %v857
        %859 = vmatprep.mubr.bf16.mxu0 0
        %860 = vmatmul.mubr.bf16.gmra.mxu0 %v570
        %v861 = vpop.f32.mrf.mxu0
        %v862 = vadd.f32 0.0, %v861
        %v863 = vpop.f32.mrf.mxu0
        %v864 = vadd.f32 0.0, %v863
        %v865 = vpop.f32.mrf.mxu0
        %v866 = vadd.f32 0.0, %v865
        %v867 = vpop.f32.mrf.mxu0
        %v868 = vadd.f32 0.0, %v867
        %869 = vmatprep.mubr.bf16.mxu0 0
        %870 = vmatmul.mubr.bf16.gmra.mxu0 %v573
        %v871 = vpop.f32.mrf.mxu0
        %v872 = vadd.f32 0.0, %v871
        %v873 = vpop.f32.mrf.mxu0
        %v874 = vadd.f32 0.0, %v873
        %v875 = vpop.f32.mrf.mxu0
        %v876 = vadd.f32 0.0, %v875
        %v877 = vpop.f32.mrf.mxu0
        %v878 = vadd.f32 0.0, %v877
        %879 = vmatprep.mubr.bf16.mxu0 0
        %880 = vmatmul.mubr.bf16.gmra.mxu0 %v576
        %v881 = vpop.f32.mrf.mxu0
        %v882 = vadd.f32 0.0, %v881
        %v883 = vpop.f32.mrf.mxu0
        %v884 = vadd.f32 0.0, %v883
        %v885 = vpop.f32.mrf.mxu0
        %v886 = vadd.f32 0.0, %v885
        %v887 = vpop.f32.mrf.mxu0
        %v888 = vadd.f32 0.0, %v887
        %889 = vmatprep.mubr.bf16.mxu0 0
        %890 = vmatmul.mubr.bf16.gmra.mxu0 %v579
        %v891 = vpop.f32.mrf.mxu0
        %v892 = vadd.f32 0.0, %v891
        %v893 = vpop.f32.mrf.mxu0
        %v894 = vadd.f32 0.0, %v893
        %v895 = vpop.f32.mrf.mxu0
        %v896 = vadd.f32 0.0, %v895
        %v897 = vpop.f32.mrf.mxu0
        %v898 = vadd.f32 0.0, %v897
        %899 = vdwg.mxu0
        %v908 = vunpack.c.l.b16 %v478
        %v909 = vunpack.c.h.b16 %v478
        %v910 = vunpack.c.l.b16 %v479
        %v911 = vunpack.c.h.b16 %v479
        %v912 = vunpack.c.l.b16 %v480
        %v913 = vunpack.c.h.b16 %v480
        %v914 = vunpack.c.l.b16 %v481
        %v915 = vunpack.c.h.b16 %v481
        %v916 = vunpack.c.l.b16 %v482
        %v917 = vunpack.c.h.b16 %v482
        %v918 = vunpack.c.l.b16 %v483
        %v919 = vunpack.c.h.b16 %v483
        %v920 = vunpack.c.l.b16 %v484
        %v921 = vunpack.c.h.b16 %v484
        %v922 = vunpack.c.l.b16 %v485
        %v923 = vunpack.c.h.b16 %v485
        %v924 = vpack.c.b16 %v912, %v908
        %v925 = vpack.c.b16 %v913, %v909
        %v926 = vpack.c.b16 %v914, %v910
        %v927 = vpack.c.b16 %v915, %v911
        %v928 = vpack.c.b16 %v920, %v916
        %v929 = vpack.c.b16 %v921, %v917
        %v930 = vpack.c.b16 %v922, %v918
        %v931 = vpack.c.b16 %v923, %v919
        %v937 = vsel %vm544, %v466, 0
        %v940 = vsel %vm544, %v467, 0
        %v943 = vsel %vm544, %v468, 0
        %v946 = vsel %vm544, %v469, 0
        %v949 = vsel %vm544, %v470, 0
        %v952 = vsel %vm544, %v471, 0
        %v955 = vsel %vm544, %v472, 0
        %v958 = vsel %vm544, %v473, 0
        %v961 = vsel %vm544, %v474, 0
        %v964 = vsel %vm544, %v475, 0
        %v967 = vsel %vm544, %v476, 0
        %v970 = vsel %vm544, %v477, 0
        %v973 = vsel %vm581, %v928, 0
        %v976 = vsel %vm581, %v929, 0
        %v979 = vsel %vm581, %v930, 0
        %v982 = vsel %vm581, %v931, 0
        %984 = vmatprep.subr.bf16.mxu0 0
        %985 = vmatpush1.bf16.msra.mxu0 0
        %986 = vmatprep.subr.bf16.mxu0 0
        %987 = vmatpush1.bf16.msra.mxu0 0
        %988 = vmatprep.subr.bf16.mxu0 0
        %989 = vmatpush1.bf16.msra.mxu0 0
        %990 = vmatprep.subr.bf16.mxu0 0
        %991 = vmatpush1.bf16.msra.mxu0 0
        %992 = vmatprep.subr.bf16.mxu0 0
        %993 = vmatpush1.bf16.msra.mxu0 0
        %994 = vmatprep.subr.bf16.mxu0 0
        %995 = vmatpush1.bf16.msra.mxu0 0
        %996 = vmatprep.subr.bf16.mxu0 %v976
        %997 = vmatpush1.bf16.msra.mxu0 %v973
        %998 = vmatprep.subr.bf16.mxu0 %v925
        %999 = vmatpush1.bf16.msra.mxu0 %v924
        %1000 = vmatprep.subr.bf16.mxu0 0
        %1001 = vmatpush2.bf16.msra.mxu0 0
        %1002 = vmatprep.subr.bf16.mxu0 0
        %1003 = vmatpush2.bf16.msra.mxu0 0
        %1004 = vmatprep.subr.bf16.mxu0 0
        %1005 = vmatpush2.bf16.msra.mxu0 0
        %1006 = vmatprep.subr.bf16.mxu0 0
        %1007 = vmatpush2.bf16.msra.mxu0 0
        %1008 = vmatprep.subr.bf16.mxu0 0
        %1009 = vmatpush2.bf16.msra.mxu0 0
        %1010 = vmatprep.subr.bf16.mxu0 0
        %1011 = vmatpush2.bf16.msra.mxu0 0
        %1012 = vmatprep.subr.bf16.mxu0 0
        %1013 = vmatpush2.bf16.msra.mxu0 0
        %1014 = vmatprep.subr.bf16.mxu0 0
        %1015 = vmatpush2.bf16.msra.mxu0 0
        %1016 = vmatprep.mubr.bf16.mxu0 0
        %1017 = vmatmul.mubr.bf16.gmra.mxu0 %v937
        %v1018 = vpop.f32.mrf.mxu0
        %v1019 = vadd.f32 %v629, %v1018
        %v1020 = vpop.f32.mrf.mxu0
        %v1021 = vadd.f32 %v631, %v1020
        %v1022 = vpop.f32.mrf.mxu0
        %v1023 = vadd.f32 %v633, %v1022
        %v1024 = vpop.f32.mrf.mxu0
        %v1025 = vadd.f32 %v635, %v1024
        %1026 = vmatprep.mubr.bf16.mxu0 0
        %1027 = vmatmul.mubr.bf16.gmra.mxu0 %v940
        %v1028 = vpop.f32.mrf.mxu0
        %v1029 = vadd.f32 %v639, %v1028
        %v1030 = vpop.f32.mrf.mxu0
        %v1031 = vadd.f32 %v641, %v1030
        %v1032 = vpop.f32.mrf.mxu0
        %v1033 = vadd.f32 %v643, %v1032
        %v1034 = vpop.f32.mrf.mxu0
        %v1035 = vadd.f32 %v645, %v1034
        %1036 = vmatprep.mubr.bf16.mxu0 0
        %1037 = vmatmul.mubr.bf16.gmra.mxu0 %v943
        %v1038 = vpop.f32.mrf.mxu0
        %v1039 = vadd.f32 %v649, %v1038
        %v1040 = vpop.f32.mrf.mxu0
        %v1041 = vadd.f32 %v651, %v1040
        %v1042 = vpop.f32.mrf.mxu0
        %v1043 = vadd.f32 %v653, %v1042
        %v1044 = vpop.f32.mrf.mxu0
        %v1045 = vadd.f32 %v655, %v1044
        %1046 = vmatprep.mubr.bf16.mxu0 0
        %1047 = vmatmul.mubr.bf16.gmra.mxu0 %v946
        %v1048 = vpop.f32.mrf.mxu0
        %v1049 = vadd.f32 %v659, %v1048
        %v1050 = vpop.f32.mrf.mxu0
        %v1051 = vadd.f32 %v661, %v1050
        %v1052 = vpop.f32.mrf.mxu0
        %v1053 = vadd.f32 %v663, %v1052
        %v1054 = vpop.f32.mrf.mxu0
        %v1055 = vadd.f32 %v665, %v1054
        %1056 = vmatprep.mubr.bf16.mxu0 0
        %1057 = vmatmul.mubr.bf16.gmra.mxu0 %v949
        %v1058 = vpop.f32.mrf.mxu0
        %v1059 = vadd.f32 %v669, %v1058
        %v1060 = vpop.f32.mrf.mxu0
        %v1061 = vadd.f32 %v671, %v1060
        %v1062 = vpop.f32.mrf.mxu0
        %v1063 = vadd.f32 %v673, %v1062
        %v1064 = vpop.f32.mrf.mxu0
        %v1065 = vadd.f32 %v675, %v1064
        %1066 = vmatprep.mubr.bf16.mxu0 0
        %1067 = vmatmul.mubr.bf16.gmra.mxu0 %v952
        %v1068 = vpop.f32.mrf.mxu0
        %v1069 = vadd.f32 %v679, %v1068
        %v1070 = vpop.f32.mrf.mxu0
        %v1071 = vadd.f32 %v681, %v1070
        %v1072 = vpop.f32.mrf.mxu0
        %v1073 = vadd.f32 %v683, %v1072
        %v1074 = vpop.f32.mrf.mxu0
        %v1075 = vadd.f32 %v685, %v1074
        %1076 = vmatprep.mubr.bf16.mxu0 0
        %1077 = vmatmul.mubr.bf16.gmra.mxu0 %v955
        %v1078 = vpop.f32.mrf.mxu0
        %v1079 = vadd.f32 %v689, %v1078
        %v1080 = vpop.f32.mrf.mxu0
        %v1081 = vadd.f32 %v691, %v1080
        %v1082 = vpop.f32.mrf.mxu0
        %v1083 = vadd.f32 %v693, %v1082
        %v1084 = vpop.f32.mrf.mxu0
        %v1085 = vadd.f32 %v695, %v1084
        %1086 = vmatprep.mubr.bf16.mxu0 0
        %1087 = vmatmul.mubr.bf16.gmra.mxu0 %v958
        %v1088 = vpop.f32.mrf.mxu0
        %v1089 = vadd.f32 %v699, %v1088
        %v1090 = vpop.f32.mrf.mxu0
        %v1091 = vadd.f32 %v701, %v1090
        %v1092 = vpop.f32.mrf.mxu0
        %v1093 = vadd.f32 %v703, %v1092
        %v1094 = vpop.f32.mrf.mxu0
        %v1095 = vadd.f32 %v705, %v1094
        %1096 = vmatprep.mubr.bf16.mxu0 0
        %1097 = vmatmul.mubr.bf16.gmra.mxu0 %v961
        %v1098 = vpop.f32.mrf.mxu0
        %v1099 = vadd.f32 %v709, %v1098
        %v1100 = vpop.f32.mrf.mxu0
        %v1101 = vadd.f32 %v711, %v1100
        %v1102 = vpop.f32.mrf.mxu0
        %v1103 = vadd.f32 %v713, %v1102
        %v1104 = vpop.f32.mrf.mxu0
        %v1105 = vadd.f32 %v715, %v1104
        %1106 = vmatprep.mubr.bf16.mxu0 0
        %1107 = vmatmul.mubr.bf16.gmra.mxu0 %v964
        %v1108 = vpop.f32.mrf.mxu0
        %v1109 = vadd.f32 %v719, %v1108
        %v1110 = vpop.f32.mrf.mxu0
        %v1111 = vadd.f32 %v721, %v1110
        %v1112 = vpop.f32.mrf.mxu0
        %v1113 = vadd.f32 %v723, %v1112
        %v1114 = vpop.f32.mrf.mxu0
        %v1115 = vadd.f32 %v725, %v1114
        %1116 = vmatprep.mubr.bf16.mxu0 0
        %1117 = vmatmul.mubr.bf16.gmra.mxu0 %v967
        %v1118 = vpop.f32.mrf.mxu0
        %v1119 = vadd.f32 %v729, %v1118
        %v1120 = vpop.f32.mrf.mxu0
        %v1121 = vadd.f32 %v731, %v1120
        %v1122 = vpop.f32.mrf.mxu0
        %v1123 = vadd.f32 %v733, %v1122
        %v1124 = vpop.f32.mrf.mxu0
        %v1125 = vadd.f32 %v735, %v1124
        %1126 = vmatprep.mubr.bf16.mxu0 0
        %1127 = vmatmul.mubr.bf16.gmra.mxu0 %v970
        %v1128 = vpop.f32.mrf.mxu0
        %v1129 = vadd.f32 %v739, %v1128
        %v1130 = vpop.f32.mrf.mxu0
        %v1131 = vadd.f32 %v741, %v1130
        %v1132 = vpop.f32.mrf.mxu0
        %v1133 = vadd.f32 %v743, %v1132
        %v1134 = vpop.f32.mrf.mxu0
        %v1135 = vadd.f32 %v745, %v1134
        %1136 = vdwg.mxu0
        %1137 = vmatprep.subr.bf16.mxu0 0
        %1138 = vmatpush1.bf16.msra.mxu0 0
        %1139 = vmatprep.subr.bf16.mxu0 0
        %1140 = vmatpush1.bf16.msra.mxu0 0
        %1141 = vmatprep.subr.bf16.mxu0 0
        %1142 = vmatpush1.bf16.msra.mxu0 0
        %1143 = vmatprep.subr.bf16.mxu0 0
        %1144 = vmatpush1.bf16.msra.mxu0 0
        %1145 = vmatprep.subr.bf16.mxu0 0
        %1146 = vmatpush1.bf16.msra.mxu0 0
        %1147 = vmatprep.subr.bf16.mxu0 0
        %1148 = vmatpush1.bf16.msra.mxu0 0
        %1149 = vmatprep.subr.bf16.mxu0 %v982
        %1150 = vmatpush1.bf16.msra.mxu0 %v979
        %1151 = vmatprep.subr.bf16.mxu0 %v927
        %1152 = vmatpush1.bf16.msra.mxu0 %v926
        %1153 = vmatprep.subr.bf16.mxu0 0
        %1154 = vmatpush2.bf16.msra.mxu0 0
        %1155 = vmatprep.subr.bf16.mxu0 0
        %1156 = vmatpush2.bf16.msra.mxu0 0
        %1157 = vmatprep.subr.bf16.mxu0 0
        %1158 = vmatpush2.bf16.msra.mxu0 0
        %1159 = vmatprep.subr.bf16.mxu0 0
        %1160 = vmatpush2.bf16.msra.mxu0 0
        %1161 = vmatprep.subr.bf16.mxu0 0
        %1162 = vmatpush2.bf16.msra.mxu0 0
        %1163 = vmatprep.subr.bf16.mxu0 0
        %1164 = vmatpush2.bf16.msra.mxu0 0
        %1165 = vmatprep.subr.bf16.mxu0 0
        %1166 = vmatpush2.bf16.msra.mxu0 0
        %1167 = vmatprep.subr.bf16.mxu0 0
        %1168 = vmatpush2.bf16.msra.mxu0 0
        %1169 = vmatprep.mubr.bf16.mxu0 0
        %1170 = vmatmul.mubr.bf16.gmra.mxu0 %v937
        %v1171 = vpop.f32.mrf.mxu0
        %v1172 = vadd.f32 %v782, %v1171
        %v1173 = vpop.f32.mrf.mxu0
        %v1174 = vadd.f32 %v784, %v1173
        %v1175 = vpop.f32.mrf.mxu0
        %v1176 = vadd.f32 %v786, %v1175
        %v1177 = vpop.f32.mrf.mxu0
        %v1178 = vadd.f32 %v788, %v1177
        %1179 = vmatprep.mubr.bf16.mxu0 0
        %1180 = vmatmul.mubr.bf16.gmra.mxu0 %v940
        %v1181 = vpop.f32.mrf.mxu0
        %v1182 = vadd.f32 %v792, %v1181
        %v1183 = vpop.f32.mrf.mxu0
        %v1184 = vadd.f32 %v794, %v1183
        %v1185 = vpop.f32.mrf.mxu0
        %v1186 = vadd.f32 %v796, %v1185
        %v1187 = vpop.f32.mrf.mxu0
        %v1188 = vadd.f32 %v798, %v1187
        %1189 = vmatprep.mubr.bf16.mxu0 0
        %1190 = vmatmul.mubr.bf16.gmra.mxu0 %v943
        %v1191 = vpop.f32.mrf.mxu0
        %v1192 = vadd.f32 %v802, %v1191
        %v1193 = vpop.f32.mrf.mxu0
        %v1194 = vadd.f32 %v804, %v1193
        %v1195 = vpop.f32.mrf.mxu0
        %v1196 = vadd.f32 %v806, %v1195
        %v1197 = vpop.f32.mrf.mxu0
        %v1198 = vadd.f32 %v808, %v1197
        %1199 = vmatprep.mubr.bf16.mxu0 0
        %1200 = vmatmul.mubr.bf16.gmra.mxu0 %v946
        %v1201 = vpop.f32.mrf.mxu0
        %v1202 = vadd.f32 %v812, %v1201
        %v1203 = vpop.f32.mrf.mxu0
        %v1204 = vadd.f32 %v814, %v1203
        %v1205 = vpop.f32.mrf.mxu0
        %v1206 = vadd.f32 %v816, %v1205
        %v1207 = vpop.f32.mrf.mxu0
        %v1208 = vadd.f32 %v818, %v1207
        %1209 = vmatprep.mubr.bf16.mxu0 0
        %1210 = vmatmul.mubr.bf16.gmra.mxu0 %v949
        %v1211 = vpop.f32.mrf.mxu0
        %v1212 = vadd.f32 %v822, %v1211
        %v1213 = vpop.f32.mrf.mxu0
        %v1214 = vadd.f32 %v824, %v1213
        %v1215 = vpop.f32.mrf.mxu0
        %v1216 = vadd.f32 %v826, %v1215
        %v1217 = vpop.f32.mrf.mxu0
        %v1218 = vadd.f32 %v828, %v1217
        %1219 = vmatprep.mubr.bf16.mxu0 0
        %1220 = vmatmul.mubr.bf16.gmra.mxu0 %v952
        %v1221 = vpop.f32.mrf.mxu0
        %v1222 = vadd.f32 %v832, %v1221
        %v1223 = vpop.f32.mrf.mxu0
        %v1224 = vadd.f32 %v834, %v1223
        %v1225 = vpop.f32.mrf.mxu0
        %v1226 = vadd.f32 %v836, %v1225
        %v1227 = vpop.f32.mrf.mxu0
        %v1228 = vadd.f32 %v838, %v1227
        %1229 = vmatprep.mubr.bf16.mxu0 0
        %1230 = vmatmul.mubr.bf16.gmra.mxu0 %v955
        %v1231 = vpop.f32.mrf.mxu0
        %v1232 = vadd.f32 %v842, %v1231
        %v1233 = vpop.f32.mrf.mxu0
        %v1234 = vadd.f32 %v844, %v1233
        %v1235 = vpop.f32.mrf.mxu0
        %v1236 = vadd.f32 %v846, %v1235
        %v1237 = vpop.f32.mrf.mxu0
        %v1238 = vadd.f32 %v848, %v1237
        %1239 = vmatprep.mubr.bf16.mxu0 0
        %1240 = vmatmul.mubr.bf16.gmra.mxu0 %v958
        %v1241 = vpop.f32.mrf.mxu0
        %v1242 = vadd.f32 %v852, %v1241
        %v1243 = vpop.f32.mrf.mxu0
        %v1244 = vadd.f32 %v854, %v1243
        %v1245 = vpop.f32.mrf.mxu0
        %v1246 = vadd.f32 %v856, %v1245
        %v1247 = vpop.f32.mrf.mxu0
        %v1248 = vadd.f32 %v858, %v1247
        %1249 = vmatprep.mubr.bf16.mxu0 0
        %1250 = vmatmul.mubr.bf16.gmra.mxu0 %v961
        %v1251 = vpop.f32.mrf.mxu0
        %v1252 = vadd.f32 %v862, %v1251
        %v1253 = vpop.f32.mrf.mxu0
        %v1254 = vadd.f32 %v864, %v1253
        %v1255 = vpop.f32.mrf.mxu0
        %v1256 = vadd.f32 %v866, %v1255
        %v1257 = vpop.f32.mrf.mxu0
        %v1258 = vadd.f32 %v868, %v1257
        %1259 = vmatprep.mubr.bf16.mxu0 0
        %1260 = vmatmul.mubr.bf16.gmra.mxu0 %v964
        %v1261 = vpop.f32.mrf.mxu0
        %v1262 = vadd.f32 %v872, %v1261
        %v1263 = vpop.f32.mrf.mxu0
        %v1264 = vadd.f32 %v874, %v1263
        %v1265 = vpop.f32.mrf.mxu0
        %v1266 = vadd.f32 %v876, %v1265
        %v1267 = vpop.f32.mrf.mxu0
        %v1268 = vadd.f32 %v878, %v1267
        %1269 = vmatprep.mubr.bf16.mxu0 0
        %1270 = vmatmul.mubr.bf16.gmra.mxu0 %v967
        %v1271 = vpop.f32.mrf.mxu0
        %v1272 = vadd.f32 %v882, %v1271
        %v1273 = vpop.f32.mrf.mxu0
        %v1274 = vadd.f32 %v884, %v1273
        %v1275 = vpop.f32.mrf.mxu0
        %v1276 = vadd.f32 %v886, %v1275
        %v1277 = vpop.f32.mrf.mxu0
        %v1278 = vadd.f32 %v888, %v1277
        %1279 = vmatprep.mubr.bf16.mxu0 0
        %1280 = vmatmul.mubr.bf16.gmra.mxu0 %v970
        %v1281 = vpop.f32.mrf.mxu0
        %v1282 = vadd.f32 %v892, %v1281
        %v1283 = vpop.f32.mrf.mxu0
        %v1284 = vadd.f32 %v894, %v1283
        %v1285 = vpop.f32.mrf.mxu0
        %v1286 = vadd.f32 %v896, %v1285
        %v1287 = vpop.f32.mrf.mxu0
        %v1288 = vadd.f32 %v898, %v1287
        %1289 = vdwg.mxu0
        %v1290 = vld [vmem:[%s439 + $0x10] sm:$0xff]
        %v1291 = vld [vmem:[%s439 + $0x18] sm:$0xff]
        %v1292 = vld [vmem:[%s439 + $0x20] sm:$0xff]
        %v1293 = vld [vmem:[%s439 + $0x28] sm:$0xff]
        %v1294 = vld [vmem:[%s439 + $0x30] sm:$0xff]
        %v1295 = vld [vmem:[%s439 + $0x38] sm:$0xff]
        %v1296 = vld [vmem:[%s439 + $0x40] sm:$0xff]
        %v1297 = vld [vmem:[%s439 + $0x48] sm:$0xff]
        %v1298 = vld [vmem:[%s439 + $0x50] sm:$0xff]
        %v1299 = vld [vmem:[%s439 + $0x58] sm:$0xff]
        %v1300 = vld [vmem:[%s439 + $0x60] sm:$0xff]
        %v1301 = vld [vmem:[%s439 + $0x68] sm:$0xff]
        %v1302 = vld [vmem:[%s439 + $0x70] sm:$0xff]
        %v1303 = vld [vmem:[%s439 + $0x78] sm:$0xff]
        %v1304 = vld [vmem:[%s439 + $0x80] sm:$0xff]
        %v1305 = vld [vmem:[%s439 + $0x88] sm:$0xff]
        %v1306 = vld [vmem:[%s439 + $0x90] sm:$0xff]
        %v1307 = vld [vmem:[%s439 + $0x98] sm:$0xff]
        %v1308 = vld [vmem:[%s439 + $0xa0] sm:$0xff]
        %v1309 = vld [vmem:[%s439 + $0xa8] sm:$0xff]
        %v1310 = vld [vmem:[%s439 + $0xb0] sm:$0xff]
        %v1311 = vld [vmem:[%s439 + $0xb8] sm:$0xff]
        %v1312 = vld [vmem:[%s439 + $0xc0] sm:$0xff]
        %v1313 = vld [vmem:[%s439 + $0xc8] sm:$0xff]
        %v1314 = vpack.c.bf16 %v1291, %v1290
        %v1315 = vpack.c.bf16 %v1293, %v1292
        %v1316 = vpack.c.bf16 %v1295, %v1294
        %v1317 = vpack.c.bf16 %v1297, %v1296
        %v1318 = vpack.c.bf16 %v1299, %v1298
        %v1319 = vpack.c.bf16 %v1301, %v1300
        %v1320 = vpack.c.bf16 %v1303, %v1302
        %v1321 = vpack.c.bf16 %v1305, %v1304
        %v1322 = vpack.c.bf16 %v1307, %v1306
        %v1323 = vpack.c.bf16 %v1309, %v1308
        %v1324 = vpack.c.bf16 %v1311, %v1310
        %v1325 = vpack.c.bf16 %v1313, %v1312
        %s1326 = scalar_lea.vmem %s1, 128
        %v1327 = vld [vmem:[%s1326] sm:$0xff]
        %v1328 = vld [vmem:[%s1326 + $0x8] sm:$0xff]
        %v1329 = vld [vmem:[%s1326 + $0x10] sm:$0xff]
        %v1330 = vld [vmem:[%s1326 + $0x18] sm:$0xff]
        %v1331 = vld [vmem:[%s1326 + $0x20] sm:$0xff]
        %v1332 = vld [vmem:[%s1326 + $0x28] sm:$0xff]
        %v1333 = vld [vmem:[%s1326 + $0x30] sm:$0x33]
        %v1334 = vld [vmem:[%s1326 + $0x38] sm:$0x33]
        %v1343 = vunpack.c.l.b16 %v1327
        %v1344 = vunpack.c.h.b16 %v1327
        %v1345 = vunpack.c.l.b16 %v1328
        %v1346 = vunpack.c.h.b16 %v1328
        %v1347 = vunpack.c.l.b16 %v1329
        %v1348 = vunpack.c.h.b16 %v1329
        %v1349 = vunpack.c.l.b16 %v1330
        %v1350 = vunpack.c.h.b16 %v1330
        %v1351 = vunpack.c.l.b16 %v1331
        %v1352 = vunpack.c.h.b16 %v1331
        %v1353 = vunpack.c.l.b16 %v1332
        %v1354 = vunpack.c.h.b16 %v1332
        %v1355 = vunpack.c.l.b16 %v1333
        %v1356 = vunpack.c.h.b16 %v1333
        %v1357 = vunpack.c.l.b16 %v1334
        %v1358 = vunpack.c.h.b16 %v1334
        %v1359 = vpack.c.b16 %v1347, %v1343
        %v1360 = vpack.c.b16 %v1348, %v1344
        %v1361 = vpack.c.b16 %v1349, %v1345
        %v1362 = vpack.c.b16 %v1350, %v1346
        %v1363 = vpack.c.b16 %v1355, %v1351
        %v1364 = vpack.c.b16 %v1356, %v1352
        %v1365 = vpack.c.b16 %v1357, %v1353
        %v1366 = vpack.c.b16 %v1358, %v1354
        %v1372 = vsel %vm544, %v1314, 0
        %v1375 = vsel %vm544, %v1315, 0
        %v1378 = vsel %vm544, %v1316, 0
        %v1381 = vsel %vm544, %v1317, 0
        %v1384 = vsel %vm544, %v1318, 0
        %v1387 = vsel %vm544, %v1319, 0
        %v1390 = vsel %vm544, %v1320, 0
        %v1393 = vsel %vm544, %v1321, 0
        %v1396 = vsel %vm544, %v1322, 0
        %v1399 = vsel %vm544, %v1323, 0
        %v1402 = vsel %vm544, %v1324, 0
        %v1405 = vsel %vm544, %v1325, 0
        %v1408 = vsel %vm581, %v1363, 0
        %v1411 = vsel %vm581, %v1364, 0
        %v1414 = vsel %vm581, %v1365, 0
        %v1417 = vsel %vm581, %v1366, 0
        %1419 = vmatprep.subr.bf16.mxu0 0
        %1420 = vmatpush1.bf16.msra.mxu0 0
        %1421 = vmatprep.subr.bf16.mxu0 0
        %1422 = vmatpush1.bf16.msra.mxu0 0
        %1423 = vmatprep.subr.bf16.mxu0 0
        %1424 = vmatpush1.bf16.msra.mxu0 0
        %1425 = vmatprep.subr.bf16.mxu0 0
        %1426 = vmatpush1.bf16.msra.mxu0 0
        %1427 = vmatprep.subr.bf16.mxu0 0
        %1428 = vmatpush1.bf16.msra.mxu0 0
        %1429 = vmatprep.subr.bf16.mxu0 0
        %1430 = vmatpush1.bf16.msra.mxu0 0
        %1431 = vmatprep.subr.bf16.mxu0 %v1411
        %1432 = vmatpush1.bf16.msra.mxu0 %v1408
        %1433 = vmatprep.subr.bf16.mxu0 %v1360
        %1434 = vmatpush1.bf16.msra.mxu0 %v1359
        %1435 = vmatprep.subr.bf16.mxu0 0
        %1436 = vmatpush2.bf16.msra.mxu0 0
        %1437 = vmatprep.subr.bf16.mxu0 0
        %1438 = vmatpush2.bf16.msra.mxu0 0
        %1439 = vmatprep.subr.bf16.mxu0 0
        %1440 = vmatpush2.bf16.msra.mxu0 0
        %1441 = vmatprep.subr.bf16.mxu0 0
        %1442 = vmatpush2.bf16.msra.mxu0 0
        %1443 = vmatprep.subr.bf16.mxu0 0
        %1444 = vmatpush2.bf16.msra.mxu0 0
        %1445 = vmatprep.subr.bf16.mxu0 0
        %1446 = vmatpush2.bf16.msra.mxu0 0
        %1447 = vmatprep.subr.bf16.mxu0 0
        %1448 = vmatpush2.bf16.msra.mxu0 0
        %1449 = vmatprep.subr.bf16.mxu0 0
        %1450 = vmatpush2.bf16.msra.mxu0 0
        %1451 = vmatprep.mubr.bf16.mxu0 0
        %1452 = vmatmul.mubr.bf16.gmra.mxu0 %v1372
        %v1453 = vpop.f32.mrf.mxu0
        %v1454 = vadd.f32 0.0, %v1453
        %v1455 = vpop.f32.mrf.mxu0
        %v1456 = vadd.f32 0.0, %v1455
        %v1457 = vpop.f32.mrf.mxu0
        %v1458 = vadd.f32 0.0, %v1457
        %v1459 = vpop.f32.mrf.mxu0
        %v1460 = vadd.f32 0.0, %v1459
        %1461 = vmatprep.mubr.bf16.mxu0 0
        %1462 = vmatmul.mubr.bf16.gmra.mxu0 %v1375
        %v1463 = vpop.f32.mrf.mxu0
        %v1464 = vadd.f32 0.0, %v1463
        %v1465 = vpop.f32.mrf.mxu0
        %v1466 = vadd.f32 0.0, %v1465
        %v1467 = vpop.f32.mrf.mxu0
        %v1468 = vadd.f32 0.0, %v1467
        %v1469 = vpop.f32.mrf.mxu0
        %v1470 = vadd.f32 0.0, %v1469
        %1471 = vmatprep.mubr.bf16.mxu0 0
        %1472 = vmatmul.mubr.bf16.gmra.mxu0 %v1378
        %v1473 = vpop.f32.mrf.mxu0
        %v1474 = vadd.f32 0.0, %v1473
        %v1475 = vpop.f32.mrf.mxu0
        %v1476 = vadd.f32 0.0, %v1475
        %v1477 = vpop.f32.mrf.mxu0
        %v1478 = vadd.f32 0.0, %v1477
        %v1479 = vpop.f32.mrf.mxu0
        %v1480 = vadd.f32 0.0, %v1479
        %1481 = vmatprep.mubr.bf16.mxu0 0
        %1482 = vmatmul.mubr.bf16.gmra.mxu0 %v1381
        %v1483 = vpop.f32.mrf.mxu0
        %v1484 = vadd.f32 0.0, %v1483
        %v1485 = vpop.f32.mrf.mxu0
        %v1486 = vadd.f32 0.0, %v1485
        %v1487 = vpop.f32.mrf.mxu0
        %v1488 = vadd.f32 0.0, %v1487
        %v1489 = vpop.f32.mrf.mxu0
        %v1490 = vadd.f32 0.0, %v1489
        %1491 = vmatprep.mubr.bf16.mxu0 0
        %1492 = vmatmul.mubr.bf16.gmra.mxu0 %v1384
        %v1493 = vpop.f32.mrf.mxu0
        %v1494 = vadd.f32 0.0, %v1493
        %v1495 = vpop.f32.mrf.mxu0
        %v1496 = vadd.f32 0.0, %v1495
        %v1497 = vpop.f32.mrf.mxu0
        %v1498 = vadd.f32 0.0, %v1497
        %v1499 = vpop.f32.mrf.mxu0
        %v1500 = vadd.f32 0.0, %v1499
        %1501 = vmatprep.mubr.bf16.mxu0 0
        %1502 = vmatmul.mubr.bf16.gmra.mxu0 %v1387
        %v1503 = vpop.f32.mrf.mxu0
        %v1504 = vadd.f32 0.0, %v1503
        %v1505 = vpop.f32.mrf.mxu0
        %v1506 = vadd.f32 0.0, %v1505
        %v1507 = vpop.f32.mrf.mxu0
        %v1508 = vadd.f32 0.0, %v1507
        %v1509 = vpop.f32.mrf.mxu0
        %v1510 = vadd.f32 0.0, %v1509
        %1511 = vmatprep.mubr.bf16.mxu0 0
        %1512 = vmatmul.mubr.bf16.gmra.mxu0 %v1390
        %v1513 = vpop.f32.mrf.mxu0
        %v1514 = vadd.f32 0.0, %v1513
        %v1515 = vpop.f32.mrf.mxu0
        %v1516 = vadd.f32 0.0, %v1515
        %v1517 = vpop.f32.mrf.mxu0
        %v1518 = vadd.f32 0.0, %v1517
        %v1519 = vpop.f32.mrf.mxu0
        %v1520 = vadd.f32 0.0, %v1519
        %1521 = vmatprep.mubr.bf16.mxu0 0
        %1522 = vmatmul.mubr.bf16.gmra.mxu0 %v1393
        %v1523 = vpop.f32.mrf.mxu0
        %v1524 = vadd.f32 0.0, %v1523
        %v1525 = vpop.f32.mrf.mxu0
        %v1526 = vadd.f32 0.0, %v1525
        %v1527 = vpop.f32.mrf.mxu0
        %v1528 = vadd.f32 0.0, %v1527
        %v1529 = vpop.f32.mrf.mxu0
        %v1530 = vadd.f32 0.0, %v1529
        %1531 = vmatprep.mubr.bf16.mxu0 0
        %1532 = vmatmul.mubr.bf16.gmra.mxu0 %v1396
        %v1533 = vpop.f32.mrf.mxu0
        %v1534 = vadd.f32 0.0, %v1533
        %v1535 = vpop.f32.mrf.mxu0
        %v1536 = vadd.f32 0.0, %v1535
        %v1537 = vpop.f32.mrf.mxu0
        %v1538 = vadd.f32 0.0, %v1537
        %v1539 = vpop.f32.mrf.mxu0
        %v1540 = vadd.f32 0.0, %v1539
        %1541 = vmatprep.mubr.bf16.mxu0 0
        %1542 = vmatmul.mubr.bf16.gmra.mxu0 %v1399
        %v1543 = vpop.f32.mrf.mxu0
        %v1544 = vadd.f32 0.0, %v1543
        %v1545 = vpop.f32.mrf.mxu0
        %v1546 = vadd.f32 0.0, %v1545
        %v1547 = vpop.f32.mrf.mxu0
        %v1548 = vadd.f32 0.0, %v1547
        %v1549 = vpop.f32.mrf.mxu0
        %v1550 = vadd.f32 0.0, %v1549
        %1551 = vmatprep.mubr.bf16.mxu0 0
        %1552 = vmatmul.mubr.bf16.gmra.mxu0 %v1402
        %v1553 = vpop.f32.mrf.mxu0
        %v1554 = vadd.f32 0.0, %v1553
        %v1555 = vpop.f32.mrf.mxu0
        %v1556 = vadd.f32 0.0, %v1555
        %v1557 = vpop.f32.mrf.mxu0
        %v1558 = vadd.f32 0.0, %v1557
        %v1559 = vpop.f32.mrf.mxu0
        %v1560 = vadd.f32 0.0, %v1559
        %1561 = vmatprep.mubr.bf16.mxu0 0
        %1562 = vmatmul.mubr.bf16.gmra.mxu0 %v1405
        %v1563 = vpop.f32.mrf.mxu0
        %v1564 = vadd.f32 0.0, %v1563
        %v1565 = vpop.f32.mrf.mxu0
        %v1566 = vadd.f32 0.0, %v1565
        %v1567 = vpop.f32.mrf.mxu0
        %v1568 = vadd.f32 0.0, %v1567
        %v1569 = vpop.f32.mrf.mxu0
        %v1570 = vadd.f32 0.0, %v1569
        %1571 = vdwg.mxu0
        %1572 = vmatprep.subr.bf16.mxu0 0
        %1573 = vmatpush1.bf16.msra.mxu0 0
        %1574 = vmatprep.subr.bf16.mxu0 0
        %1575 = vmatpush1.bf16.msra.mxu0 0
        %1576 = vmatprep.subr.bf16.mxu0 0
        %1577 = vmatpush1.bf16.msra.mxu0 0
        %1578 = vmatprep.subr.bf16.mxu0 0
        %1579 = vmatpush1.bf16.msra.mxu0 0
        %1580 = vmatprep.subr.bf16.mxu0 0
        %1581 = vmatpush1.bf16.msra.mxu0 0
        %1582 = vmatprep.subr.bf16.mxu0 0
        %1583 = vmatpush1.bf16.msra.mxu0 0
        %1584 = vmatprep.subr.bf16.mxu0 %v1417
        %1585 = vmatpush1.bf16.msra.mxu0 %v1414
        %1586 = vmatprep.subr.bf16.mxu0 %v1362
        %1587 = vmatpush1.bf16.msra.mxu0 %v1361
        %1588 = vmatprep.subr.bf16.mxu0 0
        %1589 = vmatpush2.bf16.msra.mxu0 0
        %1590 = vmatprep.subr.bf16.mxu0 0
        %1591 = vmatpush2.bf16.msra.mxu0 0
        %1592 = vmatprep.subr.bf16.mxu0 0
        %1593 = vmatpush2.bf16.msra.mxu0 0
        %1594 = vmatprep.subr.bf16.mxu0 0
        %1595 = vmatpush2.bf16.msra.mxu0 0
        %1596 = vmatprep.subr.bf16.mxu0 0
        %1597 = vmatpush2.bf16.msra.mxu0 0
        %1598 = vmatprep.subr.bf16.mxu0 0
        %1599 = vmatpush2.bf16.msra.mxu0 0
        %1600 = vmatprep.subr.bf16.mxu0 0
        %1601 = vmatpush2.bf16.msra.mxu0 0
        %1602 = vmatprep.subr.bf16.mxu0 0
        %1603 = vmatpush2.bf16.msra.mxu0 0
        %1604 = vmatprep.mubr.bf16.mxu0 0
        %1605 = vmatmul.mubr.bf16.gmra.mxu0 %v1372
        %v1606 = vpop.f32.mrf.mxu0
        %v1607 = vadd.f32 0.0, %v1606
        %v1608 = vpop.f32.mrf.mxu0
        %v1609 = vadd.f32 0.0, %v1608
        %v1610 = vpop.f32.mrf.mxu0
        %v1611 = vadd.f32 0.0, %v1610
        %v1612 = vpop.f32.mrf.mxu0
        %v1613 = vadd.f32 0.0, %v1612
        %1614 = vmatprep.mubr.bf16.mxu0 0
        %1615 = vmatmul.mubr.bf16.gmra.mxu0 %v1375
        %v1616 = vpop.f32.mrf.mxu0
        %v1617 = vadd.f32 0.0, %v1616
        %v1618 = vpop.f32.mrf.mxu0
        %v1619 = vadd.f32 0.0, %v1618
        %v1620 = vpop.f32.mrf.mxu0
        %v1621 = vadd.f32 0.0, %v1620
        %v1622 = vpop.f32.mrf.mxu0
        %v1623 = vadd.f32 0.0, %v1622
        %1624 = vmatprep.mubr.bf16.mxu0 0
        %1625 = vmatmul.mubr.bf16.gmra.mxu0 %v1378
        %v1626 = vpop.f32.mrf.mxu0
        %v1627 = vadd.f32 0.0, %v1626
        %v1628 = vpop.f32.mrf.mxu0
        %v1629 = vadd.f32 0.0, %v1628
        %v1630 = vpop.f32.mrf.mxu0
        %v1631 = vadd.f32 0.0, %v1630
        %v1632 = vpop.f32.mrf.mxu0
        %v1633 = vadd.f32 0.0, %v1632
        %1634 = vmatprep.mubr.bf16.mxu0 0
        %1635 = vmatmul.mubr.bf16.gmra.mxu0 %v1381
        %v1636 = vpop.f32.mrf.mxu0
        %v1637 = vadd.f32 0.0, %v1636
        %v1638 = vpop.f32.mrf.mxu0
        %v1639 = vadd.f32 0.0, %v1638
        %v1640 = vpop.f32.mrf.mxu0
        %v1641 = vadd.f32 0.0, %v1640
        %v1642 = vpop.f32.mrf.mxu0
        %v1643 = vadd.f32 0.0, %v1642
        %1644 = vmatprep.mubr.bf16.mxu0 0
        %1645 = vmatmul.mubr.bf16.gmra.mxu0 %v1384
        %v1646 = vpop.f32.mrf.mxu0
        %v1647 = vadd.f32 0.0, %v1646
        %v1648 = vpop.f32.mrf.mxu0
        %v1649 = vadd.f32 0.0, %v1648
        %v1650 = vpop.f32.mrf.mxu0
        %v1651 = vadd.f32 0.0, %v1650
        %v1652 = vpop.f32.mrf.mxu0
        %v1653 = vadd.f32 0.0, %v1652
        %1654 = vmatprep.mubr.bf16.mxu0 0
        %1655 = vmatmul.mubr.bf16.gmra.mxu0 %v1387
        %v1656 = vpop.f32.mrf.mxu0
        %v1657 = vadd.f32 0.0, %v1656
        %v1658 = vpop.f32.mrf.mxu0
        %v1659 = vadd.f32 0.0, %v1658
        %v1660 = vpop.f32.mrf.mxu0
        %v1661 = vadd.f32 0.0, %v1660
        %v1662 = vpop.f32.mrf.mxu0
        %v1663 = vadd.f32 0.0, %v1662
        %1664 = vmatprep.mubr.bf16.mxu0 0
        %1665 = vmatmul.mubr.bf16.gmra.mxu0 %v1390
        %v1666 = vpop.f32.mrf.mxu0
        %v1667 = vadd.f32 0.0, %v1666
        %v1668 = vpop.f32.mrf.mxu0
        %v1669 = vadd.f32 0.0, %v1668
        %v1670 = vpop.f32.mrf.mxu0
        %v1671 = vadd.f32 0.0, %v1670
        %v1672 = vpop.f32.mrf.mxu0
        %v1673 = vadd.f32 0.0, %v1672
        %1674 = vmatprep.mubr.bf16.mxu0 0
        %1675 = vmatmul.mubr.bf16.gmra.mxu0 %v1393
        %v1676 = vpop.f32.mrf.mxu0
        %v1677 = vadd.f32 0.0, %v1676
        %v1678 = vpop.f32.mrf.mxu0
        %v1679 = vadd.f32 0.0, %v1678
        %v1680 = vpop.f32.mrf.mxu0
        %v1681 = vadd.f32 0.0, %v1680
        %v1682 = vpop.f32.mrf.mxu0
        %v1683 = vadd.f32 0.0, %v1682
        %1684 = vmatprep.mubr.bf16.mxu0 0
        %1685 = vmatmul.mubr.bf16.gmra.mxu0 %v1396
        %v1686 = vpop.f32.mrf.mxu0
        %v1687 = vadd.f32 0.0, %v1686
        %v1688 = vpop.f32.mrf.mxu0
        %v1689 = vadd.f32 0.0, %v1688
        %v1690 = vpop.f32.mrf.mxu0
        %v1691 = vadd.f32 0.0, %v1690
        %v1692 = vpop.f32.mrf.mxu0
        %v1693 = vadd.f32 0.0, %v1692
        %1694 = vmatprep.mubr.bf16.mxu0 0
        %1695 = vmatmul.mubr.bf16.gmra.mxu0 %v1399
        %v1696 = vpop.f32.mrf.mxu0
        %v1697 = vadd.f32 0.0, %v1696
        %v1698 = vpop.f32.mrf.mxu0
        %v1699 = vadd.f32 0.0, %v1698
        %v1700 = vpop.f32.mrf.mxu0
        %v1701 = vadd.f32 0.0, %v1700
        %v1702 = vpop.f32.mrf.mxu0
        %v1703 = vadd.f32 0.0, %v1702
        %1704 = vmatprep.mubr.bf16.mxu0 0
        %1705 = vmatmul.mubr.bf16.gmra.mxu0 %v1402
        %v1706 = vpop.f32.mrf.mxu0
        %v1707 = vadd.f32 0.0, %v1706
        %v1708 = vpop.f32.mrf.mxu0
        %v1709 = vadd.f32 0.0, %v1708
        %v1710 = vpop.f32.mrf.mxu0
        %v1711 = vadd.f32 0.0, %v1710
        %v1712 = vpop.f32.mrf.mxu0
        %v1713 = vadd.f32 0.0, %v1712
        %1714 = vmatprep.mubr.bf16.mxu0 0
        %1715 = vmatmul.mubr.bf16.gmra.mxu0 %v1405
        %v1716 = vpop.f32.mrf.mxu0
        %v1717 = vadd.f32 0.0, %v1716
        %v1718 = vpop.f32.mrf.mxu0
        %v1719 = vadd.f32 0.0, %v1718
        %v1720 = vpop.f32.mrf.mxu0
        %v1721 = vadd.f32 0.0, %v1720
        %v1722 = vpop.f32.mrf.mxu0
        %v1723 = vadd.f32 0.0, %v1722
        %1724 = vdwg.mxu0
        %v1725 = vadd.f32 %v1019, %v1454
        %v1726 = vadd.f32 %v1021, %v1456
        %v1727 = vadd.f32 %v1172, %v1607
        %v1728 = vadd.f32 %v1174, %v1609
        %v1729 = vadd.f32 %v1023, %v1458
        %v1730 = vadd.f32 %v1025, %v1460
        %v1731 = vadd.f32 %v1176, %v1611
        %v1732 = vadd.f32 %v1178, %v1613
        %v1733 = vadd.f32 %v1029, %v1464
        %v1734 = vadd.f32 %v1031, %v1466
        %v1735 = vadd.f32 %v1182, %v1617
        %v1736 = vadd.f32 %v1184, %v1619
        %v1737 = vadd.f32 %v1033, %v1468
        %v1738 = vadd.f32 %v1035, %v1470
        %v1739 = vadd.f32 %v1186, %v1621
        %v1740 = vadd.f32 %v1188, %v1623
        %v1741 = vadd.f32 %v1039, %v1474
        %v1742 = vadd.f32 %v1041, %v1476
        %v1743 = vadd.f32 %v1192, %v1627
        %v1744 = vadd.f32 %v1194, %v1629
        %v1745 = vadd.f32 %v1043, %v1478
        %v1746 = vadd.f32 %v1045, %v1480
        %v1747 = vadd.f32 %v1196, %v1631
        %v1748 = vadd.f32 %v1198, %v1633
        %v1749 = vadd.f32 %v1049, %v1484
        %v1750 = vadd.f32 %v1051, %v1486
        %v1751 = vadd.f32 %v1202, %v1637
        %v1752 = vadd.f32 %v1204, %v1639
        %v1753 = vadd.f32 %v1053, %v1488
        %v1754 = vadd.f32 %v1055, %v1490
        %v1755 = vadd.f32 %v1206, %v1641
        %v1756 = vadd.f32 %v1208, %v1643
        %v1757 = vadd.f32 %v1059, %v1494
        %v1758 = vadd.f32 %v1061, %v1496
        %v1759 = vadd.f32 %v1212, %v1647
        %v1760 = vadd.f32 %v1214, %v1649
        %v1761 = vadd.f32 %v1063, %v1498
        %v1762 = vadd.f32 %v1065, %v1500
        %v1763 = vadd.f32 %v1216, %v1651
        %v1764 = vadd.f32 %v1218, %v1653
        %v1765 = vadd.f32 %v1069, %v1504
        %v1766 = vadd.f32 %v1071, %v1506
        %v1767 = vadd.f32 %v1222, %v1657
        %v1768 = vadd.f32 %v1224, %v1659
        %v1769 = vadd.f32 %v1073, %v1508
        %v1770 = vadd.f32 %v1075, %v1510
        %v1771 = vadd.f32 %v1226, %v1661
        %v1772 = vadd.f32 %v1228, %v1663
        %v1773 = vadd.f32 %v1079, %v1514
        %v1774 = vadd.f32 %v1081, %v1516
        %v1775 = vadd.f32 %v1232, %v1667
        %v1776 = vadd.f32 %v1234, %v1669
        %v1777 = vadd.f32 %v1083, %v1518
        %v1778 = vadd.f32 %v1085, %v1520
        %v1779 = vadd.f32 %v1236, %v1671
        %v1780 = vadd.f32 %v1238, %v1673
        %v1781 = vadd.f32 %v1089, %v1524
        %v1782 = vadd.f32 %v1091, %v1526
        %v1783 = vadd.f32 %v1242, %v1677
        %v1784 = vadd.f32 %v1244, %v1679
        %v1785 = vadd.f32 %v1093, %v1528
        %v1786 = vadd.f32 %v1095, %v1530
        %v1787 = vadd.f32 %v1246, %v1681
        %v1788 = vadd.f32 %v1248, %v1683
        %v1789 = vadd.f32 %v1099, %v1534
        %v1790 = vadd.f32 %v1101, %v1536
        %v1791 = vadd.f32 %v1252, %v1687
        %v1792 = vadd.f32 %v1254, %v1689
        %v1793 = vadd.f32 %v1103, %v1538
        %v1794 = vadd.f32 %v1105, %v1540
        %v1795 = vadd.f32 %v1256, %v1691
        %v1796 = vadd.f32 %v1258, %v1693
        %v1797 = vadd.f32 %v1109, %v1544
        %v1798 = vadd.f32 %v1111, %v1546
        %v1799 = vadd.f32 %v1262, %v1697
        %v1800 = vadd.f32 %v1264, %v1699
        %v1801 = vadd.f32 %v1113, %v1548
        %v1802 = vadd.f32 %v1115, %v1550
        %v1803 = vadd.f32 %v1266, %v1701
        %v1804 = vadd.f32 %v1268, %v1703
        %v1805 = vadd.f32 %v1119, %v1554
        %v1806 = vadd.f32 %v1121, %v1556
        %v1807 = vadd.f32 %v1272, %v1707
        %v1808 = vadd.f32 %v1274, %v1709
        %v1809 = vadd.f32 %v1123, %v1558
        %v1810 = vadd.f32 %v1125, %v1560
        %v1811 = vadd.f32 %v1276, %v1711
        %v1812 = vadd.f32 %v1278, %v1713
        %v1813 = vadd.f32 %v1129, %v1564
        %v1814 = vadd.f32 %v1131, %v1566
        %v1815 = vadd.f32 %v1282, %v1717
        %v1816 = vadd.f32 %v1284, %v1719
        %v1817 = vadd.f32 %v1133, %v1568
        %v1818 = vadd.f32 %v1135, %v1570
        %v1819 = vadd.f32 %v1286, %v1721
        %v1820 = vadd.f32 %v1288, %v1723
        %v1821 = vld [vmem:[%s439 + $0x18] sm:$0xff]
        %v1822 = vld [vmem:[%s439 + $0x20] sm:$0xff]
        %v1823 = vld [vmem:[%s439 + $0x28] sm:$0xff]
        %v1824 = vld [vmem:[%s439 + $0x30] sm:$0xff]
        %v1825 = vld [vmem:[%s439 + $0x38] sm:$0xff]
        %v1826 = vld [vmem:[%s439 + $0x40] sm:$0xff]
        %v1827 = vld [vmem:[%s439 + $0x48] sm:$0xff]
        %v1828 = vld [vmem:[%s439 + $0x50] sm:$0xff]
        %v1829 = vld [vmem:[%s439 + $0x58] sm:$0xff]
        %v1830 = vld [vmem:[%s439 + $0x60] sm:$0xff]
        %v1831 = vld [vmem:[%s439 + $0x68] sm:$0xff]
        %v1832 = vld [vmem:[%s439 + $0x70] sm:$0xff]
        %v1833 = vld [vmem:[%s439 + $0x78] sm:$0xff]
        %v1834 = vld [vmem:[%s439 + $0x80] sm:$0xff]
        %v1835 = vld [vmem:[%s439 + $0x88] sm:$0xff]
        %v1836 = vld [vmem:[%s439 + $0x90] sm:$0xff]
        %v1837 = vld [vmem:[%s439 + $0x98] sm:$0xff]
        %v1838 = vld [vmem:[%s439 + $0xa0] sm:$0xff]
        %v1839 = vld [vmem:[%s439 + $0xa8] sm:$0xff]
        %v1840 = vld [vmem:[%s439 + $0xb0] sm:$0xff]
        %v1841 = vld [vmem:[%s439 + $0xb8] sm:$0xff]
        %v1842 = vld [vmem:[%s439 + $0xc0] sm:$0xff]
        %v1843 = vld [vmem:[%s439 + $0xc8] sm:$0xff]
        %v1844 = vld [vmem:[%s439 + $0xd0] sm:$0xff]
        %v1845 = vpack.c.bf16 %v1822, %v1821
        %v1846 = vpack.c.bf16 %v1824, %v1823
        %v1847 = vpack.c.bf16 %v1826, %v1825
        %v1848 = vpack.c.bf16 %v1828, %v1827
        %v1849 = vpack.c.bf16 %v1830, %v1829
        %v1850 = vpack.c.bf16 %v1832, %v1831
        %v1851 = vpack.c.bf16 %v1834, %v1833
        %v1852 = vpack.c.bf16 %v1836, %v1835
        %v1853 = vpack.c.bf16 %v1838, %v1837
        %v1854 = vpack.c.bf16 %v1840, %v1839
        %v1855 = vpack.c.bf16 %v1842, %v1841
        %v1856 = vpack.c.bf16 %v1844, %v1843
        %s1857 = scalar_lea.vmem %s1, 192
        %v1858 = vld [vmem:[%s1857] sm:$0xff]
        %v1859 = vld [vmem:[%s1857 + $0x8] sm:$0xff]
        %v1860 = vld [vmem:[%s1857 + $0x10] sm:$0xff]
        %v1861 = vld [vmem:[%s1857 + $0x18] sm:$0xff]
        %v1862 = vld [vmem:[%s1857 + $0x20] sm:$0xff]
        %v1863 = vld [vmem:[%s1857 + $0x28] sm:$0xff]
        %v1864 = vld [vmem:[%s1857 + $0x30] sm:$0x33]
        %v1865 = vld [vmem:[%s1857 + $0x38] sm:$0x33]
        %v1874 = vunpack.c.l.b16 %v1858
        %v1875 = vunpack.c.h.b16 %v1858
        %v1876 = vunpack.c.l.b16 %v1859
        %v1877 = vunpack.c.h.b16 %v1859
        %v1878 = vunpack.c.l.b16 %v1860
        %v1879 = vunpack.c.h.b16 %v1860
        %v1880 = vunpack.c.l.b16 %v1861
        %v1881 = vunpack.c.h.b16 %v1861
        %v1882 = vunpack.c.l.b16 %v1862
        %v1883 = vunpack.c.h.b16 %v1862
        %v1884 = vunpack.c.l.b16 %v1863
        %v1885 = vunpack.c.h.b16 %v1863
        %v1886 = vunpack.c.l.b16 %v1864
        %v1887 = vunpack.c.h.b16 %v1864
        %v1888 = vunpack.c.l.b16 %v1865
        %v1889 = vunpack.c.h.b16 %v1865
        %v1890 = vpack.c.b16 %v1878, %v1874
        %v1891 = vpack.c.b16 %v1879, %v1875
        %v1892 = vpack.c.b16 %v1880, %v1876
        %v1893 = vpack.c.b16 %v1881, %v1877
        %v1894 = vpack.c.b16 %v1886, %v1882
        %v1895 = vpack.c.b16 %v1887, %v1883
        %v1896 = vpack.c.b16 %v1888, %v1884
        %v1897 = vpack.c.b16 %v1889, %v1885
        %v1903 = vsel %vm544, %v1845, 0
        %v1906 = vsel %vm544, %v1846, 0
        %v1909 = vsel %vm544, %v1847, 0
        %v1912 = vsel %vm544, %v1848, 0
        %v1915 = vsel %vm544, %v1849, 0
        %v1918 = vsel %vm544, %v1850, 0
        %v1921 = vsel %vm544, %v1851, 0
        %v1924 = vsel %vm544, %v1852, 0
        %v1927 = vsel %vm544, %v1853, 0
        %v1930 = vsel %vm544, %v1854, 0
        %v1933 = vsel %vm544, %v1855, 0
        %v1936 = vsel %vm544, %v1856, 0
        %v1939 = vsel %vm581, %v1894, 0
        %v1942 = vsel %vm581, %v1895, 0
        %v1945 = vsel %vm581, %v1896, 0
        %v1948 = vsel %vm581, %v1897, 0
        %1950 = vmatprep.subr.bf16.mxu0 0
        %1951 = vmatpush1.bf16.msra.mxu0 0
        %1952 = vmatprep.subr.bf16.mxu0 0
        %1953 = vmatpush1.bf16.msra.mxu0 0
        %1954 = vmatprep.subr.bf16.mxu0 0
        %1955 = vmatpush1.bf16.msra.mxu0 0
        %1956 = vmatprep.subr.bf16.mxu0 0
        %1957 = vmatpush1.bf16.msra.mxu0 0
        %1958 = vmatprep.subr.bf16.mxu0 0
        %1959 = vmatpush1.bf16.msra.mxu0 0
        %1960 = vmatprep.subr.bf16.mxu0 0
        %1961 = vmatpush1.bf16.msra.mxu0 0
        %1962 = vmatprep.subr.bf16.mxu0 %v1942
        %1963 = vmatpush1.bf16.msra.mxu0 %v1939
        %1964 = vmatprep.subr.bf16.mxu0 %v1891
        %1965 = vmatpush1.bf16.msra.mxu0 %v1890
        %1966 = vmatprep.subr.bf16.mxu0 0
        %1967 = vmatpush2.bf16.msra.mxu0 0
        %1968 = vmatprep.subr.bf16.mxu0 0
        %1969 = vmatpush2.bf16.msra.mxu0 0
        %1970 = vmatprep.subr.bf16.mxu0 0
        %1971 = vmatpush2.bf16.msra.mxu0 0
        %1972 = vmatprep.subr.bf16.mxu0 0
        %1973 = vmatpush2.bf16.msra.mxu0 0
        %1974 = vmatprep.subr.bf16.mxu0 0
        %1975 = vmatpush2.bf16.msra.mxu0 0
        %1976 = vmatprep.subr.bf16.mxu0 0
        %1977 = vmatpush2.bf16.msra.mxu0 0
        %1978 = vmatprep.subr.bf16.mxu0 0
        %1979 = vmatpush2.bf16.msra.mxu0 0
        %1980 = vmatprep.subr.bf16.mxu0 0
        %1981 = vmatpush2.bf16.msra.mxu0 0
        %1982 = vmatprep.mubr.bf16.mxu0 0
        %1983 = vmatmul.mubr.bf16.gmra.mxu0 %v1903
        %v1984 = vpop.f32.mrf.mxu0
        %v1985 = vadd.f32 0.0, %v1984
        %v1986 = vpop.f32.mrf.mxu0
        %v1987 = vadd.f32 0.0, %v1986
        %v1988 = vpop.f32.mrf.mxu0
        %v1989 = vadd.f32 0.0, %v1988
        %v1990 = vpop.f32.mrf.mxu0
        %v1991 = vadd.f32 0.0, %v1990
        %1992 = vmatprep.mubr.bf16.mxu0 0
        %1993 = vmatmul.mubr.bf16.gmra.mxu0 %v1906
        %v1994 = vpop.f32.mrf.mxu0
        %v1995 = vadd.f32 0.0, %v1994
        %v1996 = vpop.f32.mrf.mxu0
        %v1997 = vadd.f32 0.0, %v1996
        %v1998 = vpop.f32.mrf.mxu0
        %v1999 = vadd.f32 0.0, %v1998
        %v2000 = vpop.f32.mrf.mxu0
        %v2001 = vadd.f32 0.0, %v2000
        %2002 = vmatprep.mubr.bf16.mxu0 0
        %2003 = vmatmul.mubr.bf16.gmra.mxu0 %v1909
        %v2004 = vpop.f32.mrf.mxu0
        %v2005 = vadd.f32 0.0, %v2004
        %v2006 = vpop.f32.mrf.mxu0
        %v2007 = vadd.f32 0.0, %v2006
        %v2008 = vpop.f32.mrf.mxu0
        %v2009 = vadd.f32 0.0, %v2008
        %v2010 = vpop.f32.mrf.mxu0
        %v2011 = vadd.f32 0.0, %v2010
        %2012 = vmatprep.mubr.bf16.mxu0 0
        %2013 = vmatmul.mubr.bf16.gmra.mxu0 %v1912
        %v2014 = vpop.f32.mrf.mxu0
        %v2015 = vadd.f32 0.0, %v2014
        %v2016 = vpop.f32.mrf.mxu0
        %v2017 = vadd.f32 0.0, %v2016
        %v2018 = vpop.f32.mrf.mxu0
        %v2019 = vadd.f32 0.0, %v2018
        %v2020 = vpop.f32.mrf.mxu0
        %v2021 = vadd.f32 0.0, %v2020
        %2022 = vmatprep.mubr.bf16.mxu0 0
        %2023 = vmatmul.mubr.bf16.gmra.mxu0 %v1915
        %v2024 = vpop.f32.mrf.mxu0
        %v2025 = vadd.f32 0.0, %v2024
        %v2026 = vpop.f32.mrf.mxu0
        %v2027 = vadd.f32 0.0, %v2026
        %v2028 = vpop.f32.mrf.mxu0
        %v2029 = vadd.f32 0.0, %v2028
        %v2030 = vpop.f32.mrf.mxu0
        %v2031 = vadd.f32 0.0, %v2030
        %2032 = vmatprep.mubr.bf16.mxu0 0
        %2033 = vmatmul.mubr.bf16.gmra.mxu0 %v1918
        %v2034 = vpop.f32.mrf.mxu0
        %v2035 = vadd.f32 0.0, %v2034
        %v2036 = vpop.f32.mrf.mxu0
        %v2037 = vadd.f32 0.0, %v2036
        %v2038 = vpop.f32.mrf.mxu0
        %v2039 = vadd.f32 0.0, %v2038
        %v2040 = vpop.f32.mrf.mxu0
        %v2041 = vadd.f32 0.0, %v2040
        %2042 = vmatprep.mubr.bf16.mxu0 0
        %2043 = vmatmul.mubr.bf16.gmra.mxu0 %v1921
        %v2044 = vpop.f32.mrf.mxu0
        %v2045 = vadd.f32 0.0, %v2044
        %v2046 = vpop.f32.mrf.mxu0
        %v2047 = vadd.f32 0.0, %v2046
        %v2048 = vpop.f32.mrf.mxu0
        %v2049 = vadd.f32 0.0, %v2048
        %v2050 = vpop.f32.mrf.mxu0
        %v2051 = vadd.f32 0.0, %v2050
        %2052 = vmatprep.mubr.bf16.mxu0 0
        %2053 = vmatmul.mubr.bf16.gmra.mxu0 %v1924
        %v2054 = vpop.f32.mrf.mxu0
        %v2055 = vadd.f32 0.0, %v2054
        %v2056 = vpop.f32.mrf.mxu0
        %v2057 = vadd.f32 0.0, %v2056
        %v2058 = vpop.f32.mrf.mxu0
        %v2059 = vadd.f32 0.0, %v2058
        %v2060 = vpop.f32.mrf.mxu0
        %v2061 = vadd.f32 0.0, %v2060
        %2062 = vmatprep.mubr.bf16.mxu0 0
        %2063 = vmatmul.mubr.bf16.gmra.mxu0 %v1927
        %v2064 = vpop.f32.mrf.mxu0
        %v2065 = vadd.f32 0.0, %v2064
        %v2066 = vpop.f32.mrf.mxu0
        %v2067 = vadd.f32 0.0, %v2066
        %v2068 = vpop.f32.mrf.mxu0
        %v2069 = vadd.f32 0.0, %v2068
        %v2070 = vpop.f32.mrf.mxu0
        %v2071 = vadd.f32 0.0, %v2070
        %2072 = vmatprep.mubr.bf16.mxu0 0
        %2073 = vmatmul.mubr.bf16.gmra.mxu0 %v1930
        %v2074 = vpop.f32.mrf.mxu0
        %v2075 = vadd.f32 0.0, %v2074
        %v2076 = vpop.f32.mrf.mxu0
        %v2077 = vadd.f32 0.0, %v2076
        %v2078 = vpop.f32.mrf.mxu0
        %v2079 = vadd.f32 0.0, %v2078
        %v2080 = vpop.f32.mrf.mxu0
        %v2081 = vadd.f32 0.0, %v2080
        %2082 = vmatprep.mubr.bf16.mxu0 0
        %2083 = vmatmul.mubr.bf16.gmra.mxu0 %v1933
        %v2084 = vpop.f32.mrf.mxu0
        %v2085 = vadd.f32 0.0, %v2084
        %v2086 = vpop.f32.mrf.mxu0
        %v2087 = vadd.f32 0.0, %v2086
        %v2088 = vpop.f32.mrf.mxu0
        %v2089 = vadd.f32 0.0, %v2088
        %v2090 = vpop.f32.mrf.mxu0
        %v2091 = vadd.f32 0.0, %v2090
        %2092 = vmatprep.mubr.bf16.mxu0 0
        %2093 = vmatmul.mubr.bf16.gmra.mxu0 %v1936
        %v2094 = vpop.f32.mrf.mxu0
        %v2095 = vadd.f32 0.0, %v2094
        %v2096 = vpop.f32.mrf.mxu0
        %v2097 = vadd.f32 0.0, %v2096
        %v2098 = vpop.f32.mrf.mxu0
        %v2099 = vadd.f32 0.0, %v2098
        %v2100 = vpop.f32.mrf.mxu0
        %v2101 = vadd.f32 0.0, %v2100
        %2102 = vdwg.mxu0
        %2103 = vmatprep.subr.bf16.mxu0 0
        %2104 = vmatpush1.bf16.msra.mxu0 0
        %2105 = vmatprep.subr.bf16.mxu0 0
        %2106 = vmatpush1.bf16.msra.mxu0 0
        %2107 = vmatprep.subr.bf16.mxu0 0
        %2108 = vmatpush1.bf16.msra.mxu0 0
        %2109 = vmatprep.subr.bf16.mxu0 0
        %2110 = vmatpush1.bf16.msra.mxu0 0
        %2111 = vmatprep.subr.bf16.mxu0 0
        %2112 = vmatpush1.bf16.msra.mxu0 0
        %2113 = vmatprep.subr.bf16.mxu0 0
        %2114 = vmatpush1.bf16.msra.mxu0 0
        %2115 = vmatprep.subr.bf16.mxu0 %v1948
        %2116 = vmatpush1.bf16.msra.mxu0 %v1945
        %2117 = vmatprep.subr.bf16.mxu0 %v1893
        %2118 = vmatpush1.bf16.msra.mxu0 %v1892
        %2119 = vmatprep.subr.bf16.mxu0 0
        %2120 = vmatpush2.bf16.msra.mxu0 0
        %2121 = vmatprep.subr.bf16.mxu0 0
        %2122 = vmatpush2.bf16.msra.mxu0 0
        %2123 = vmatprep.subr.bf16.mxu0 0
        %2124 = vmatpush2.bf16.msra.mxu0 0
        %2125 = vmatprep.subr.bf16.mxu0 0
        %2126 = vmatpush2.bf16.msra.mxu0 0
        %2127 = vmatprep.subr.bf16.mxu0 0
        %2128 = vmatpush2.bf16.msra.mxu0 0
        %2129 = vmatprep.subr.bf16.mxu0 0
        %2130 = vmatpush2.bf16.msra.mxu0 0
        %2131 = vmatprep.subr.bf16.mxu0 0
        %2132 = vmatpush2.bf16.msra.mxu0 0
        %2133 = vmatprep.subr.bf16.mxu0 0
        %2134 = vmatpush2.bf16.msra.mxu0 0
        %2135 = vmatprep.mubr.bf16.mxu0 0
        %2136 = vmatmul.mubr.bf16.gmra.mxu0 %v1903
        %v2137 = vpop.f32.mrf.mxu0
        %v2138 = vadd.f32 0.0, %v2137
        %v2139 = vpop.f32.mrf.mxu0
        %v2140 = vadd.f32 0.0, %v2139
        %v2141 = vpop.f32.mrf.mxu0
        %v2142 = vadd.f32 0.0, %v2141
        %v2143 = vpop.f32.mrf.mxu0
        %v2144 = vadd.f32 0.0, %v2143
        %2145 = vmatprep.mubr.bf16.mxu0 0
        %2146 = vmatmul.mubr.bf16.gmra.mxu0 %v1906
        %v2147 = vpop.f32.mrf.mxu0
        %v2148 = vadd.f32 0.0, %v2147
        %v2149 = vpop.f32.mrf.mxu0
        %v2150 = vadd.f32 0.0, %v2149
        %v2151 = vpop.f32.mrf.mxu0
        %v2152 = vadd.f32 0.0, %v2151
        %v2153 = vpop.f32.mrf.mxu0
        %v2154 = vadd.f32 0.0, %v2153
        %2155 = vmatprep.mubr.bf16.mxu0 0
        %2156 = vmatmul.mubr.bf16.gmra.mxu0 %v1909
        %v2157 = vpop.f32.mrf.mxu0
        %v2158 = vadd.f32 0.0, %v2157
        %v2159 = vpop.f32.mrf.mxu0
        %v2160 = vadd.f32 0.0, %v2159
        %v2161 = vpop.f32.mrf.mxu0
        %v2162 = vadd.f32 0.0, %v2161
        %v2163 = vpop.f32.mrf.mxu0
        %v2164 = vadd.f32 0.0, %v2163
        %2165 = vmatprep.mubr.bf16.mxu0 0
        %2166 = vmatmul.mubr.bf16.gmra.mxu0 %v1912
        %v2167 = vpop.f32.mrf.mxu0
        %v2168 = vadd.f32 0.0, %v2167
        %v2169 = vpop.f32.mrf.mxu0
        %v2170 = vadd.f32 0.0, %v2169
        %v2171 = vpop.f32.mrf.mxu0
        %v2172 = vadd.f32 0.0, %v2171
        %v2173 = vpop.f32.mrf.mxu0
        %v2174 = vadd.f32 0.0, %v2173
        %2175 = vmatprep.mubr.bf16.mxu0 0
        %2176 = vmatmul.mubr.bf16.gmra.mxu0 %v1915
        %v2177 = vpop.f32.mrf.mxu0
        %v2178 = vadd.f32 0.0, %v2177
        %v2179 = vpop.f32.mrf.mxu0
        %v2180 = vadd.f32 0.0, %v2179
        %v2181 = vpop.f32.mrf.mxu0
        %v2182 = vadd.f32 0.0, %v2181
        %v2183 = vpop.f32.mrf.mxu0
        %v2184 = vadd.f32 0.0, %v2183
        %2185 = vmatprep.mubr.bf16.mxu0 0
        %2186 = vmatmul.mubr.bf16.gmra.mxu0 %v1918
        %v2187 = vpop.f32.mrf.mxu0
        %v2188 = vadd.f32 0.0, %v2187
        %v2189 = vpop.f32.mrf.mxu0
        %v2190 = vadd.f32 0.0, %v2189
        %v2191 = vpop.f32.mrf.mxu0
        %v2192 = vadd.f32 0.0, %v2191
        %v2193 = vpop.f32.mrf.mxu0
        %v2194 = vadd.f32 0.0, %v2193
        %2195 = vmatprep.mubr.bf16.mxu0 0
        %2196 = vmatmul.mubr.bf16.gmra.mxu0 %v1921
        %v2197 = vpop.f32.mrf.mxu0
        %v2198 = vadd.f32 0.0, %v2197
        %v2199 = vpop.f32.mrf.mxu0
        %v2200 = vadd.f32 0.0, %v2199
        %v2201 = vpop.f32.mrf.mxu0
        %v2202 = vadd.f32 0.0, %v2201
        %v2203 = vpop.f32.mrf.mxu0
        %v2204 = vadd.f32 0.0, %v2203
        %2205 = vmatprep.mubr.bf16.mxu0 0
        %2206 = vmatmul.mubr.bf16.gmra.mxu0 %v1924
        %v2207 = vpop.f32.mrf.mxu0
        %v2208 = vadd.f32 0.0, %v2207
        %v2209 = vpop.f32.mrf.mxu0
        %v2210 = vadd.f32 0.0, %v2209
        %v2211 = vpop.f32.mrf.mxu0
        %v2212 = vadd.f32 0.0, %v2211
        %v2213 = vpop.f32.mrf.mxu0
        %v2214 = vadd.f32 0.0, %v2213
        %2215 = vmatprep.mubr.bf16.mxu0 0
        %2216 = vmatmul.mubr.bf16.gmra.mxu0 %v1927
        %v2217 = vpop.f32.mrf.mxu0
        %v2218 = vadd.f32 0.0, %v2217
        %v2219 = vpop.f32.mrf.mxu0
        %v2220 = vadd.f32 0.0, %v2219
        %v2221 = vpop.f32.mrf.mxu0
        %v2222 = vadd.f32 0.0, %v2221
        %v2223 = vpop.f32.mrf.mxu0
        %v2224 = vadd.f32 0.0, %v2223
        %2225 = vmatprep.mubr.bf16.mxu0 0
        %2226 = vmatmul.mubr.bf16.gmra.mxu0 %v1930
        %v2227 = vpop.f32.mrf.mxu0
        %v2228 = vadd.f32 0.0, %v2227
        %v2229 = vpop.f32.mrf.mxu0
        %v2230 = vadd.f32 0.0, %v2229
        %v2231 = vpop.f32.mrf.mxu0
        %v2232 = vadd.f32 0.0, %v2231
        %v2233 = vpop.f32.mrf.mxu0
        %v2234 = vadd.f32 0.0, %v2233
        %2235 = vmatprep.mubr.bf16.mxu0 0
        %2236 = vmatmul.mubr.bf16.gmra.mxu0 %v1933
        %v2237 = vpop.f32.mrf.mxu0
        %v2238 = vadd.f32 0.0, %v2237
        %v2239 = vpop.f32.mrf.mxu0
        %v2240 = vadd.f32 0.0, %v2239
        %v2241 = vpop.f32.mrf.mxu0
        %v2242 = vadd.f32 0.0, %v2241
        %v2243 = vpop.f32.mrf.mxu0
        %v2244 = vadd.f32 0.0, %v2243
        %2245 = vmatprep.mubr.bf16.mxu0 0
        %2246 = vmatmul.mubr.bf16.gmra.mxu0 %v1936
        %v2247 = vpop.f32.mrf.mxu0
        %v2248 = vadd.f32 0.0, %v2247
        %v2249 = vpop.f32.mrf.mxu0
        %v2250 = vadd.f32 0.0, %v2249
        %v2251 = vpop.f32.mrf.mxu0
        %v2252 = vadd.f32 0.0, %v2251
        %v2253 = vpop.f32.mrf.mxu0
        %v2254 = vadd.f32 0.0, %v2253
        %2255 = vdwg.mxu0
        %v2256 = vadd.f32 %v1725, %v1985
        %v2257 = vadd.f32 %v1726, %v1987
        %v2258 = vadd.f32 %v1727, %v2138
        %v2259 = vadd.f32 %v1728, %v2140
        %v2260 = vadd.f32 %v1729, %v1989
        %v2261 = vadd.f32 %v1730, %v1991
        %v2262 = vadd.f32 %v1731, %v2142
        %v2263 = vadd.f32 %v1732, %v2144
        %v2264 = vadd.f32 %v1733, %v1995
        %v2265 = vadd.f32 %v1734, %v1997
        %v2266 = vadd.f32 %v1735, %v2148
        %v2267 = vadd.f32 %v1736, %v2150
        %v2268 = vadd.f32 %v1737, %v1999
        %v2269 = vadd.f32 %v1738, %v2001
        %v2270 = vadd.f32 %v1739, %v2152
        %v2271 = vadd.f32 %v1740, %v2154
        %v2272 = vadd.f32 %v1741, %v2005
        %v2273 = vadd.f32 %v1742, %v2007
        %v2274 = vadd.f32 %v1743, %v2158
        %v2275 = vadd.f32 %v1744, %v2160
        %v2276 = vadd.f32 %v1745, %v2009
        %v2277 = vadd.f32 %v1746, %v2011
        %v2278 = vadd.f32 %v1747, %v2162
        %v2279 = vadd.f32 %v1748, %v2164
        %v2280 = vadd.f32 %v1749, %v2015
        %v2281 = vadd.f32 %v1750, %v2017
        %v2282 = vadd.f32 %v1751, %v2168
        %v2283 = vadd.f32 %v1752, %v2170
        %v2284 = vadd.f32 %v1753, %v2019
        %v2285 = vadd.f32 %v1754, %v2021
        %v2286 = vadd.f32 %v1755, %v2172
        %v2287 = vadd.f32 %v1756, %v2174
        %v2288 = vadd.f32 %v1757, %v2025
        %v2289 = vadd.f32 %v1758, %v2027
        %v2290 = vadd.f32 %v1759, %v2178
        %v2291 = vadd.f32 %v1760, %v2180
        %v2292 = vadd.f32 %v1761, %v2029
        %v2293 = vadd.f32 %v1762, %v2031
        %v2294 = vadd.f32 %v1763, %v2182
        %v2295 = vadd.f32 %v1764, %v2184
        %v2296 = vadd.f32 %v1765, %v2035
        %v2297 = vadd.f32 %v1766, %v2037
        %v2298 = vadd.f32 %v1767, %v2188
        %v2299 = vadd.f32 %v1768, %v2190
        %v2300 = vadd.f32 %v1769, %v2039
        %v2301 = vadd.f32 %v1770, %v2041
        %v2302 = vadd.f32 %v1771, %v2192
        %v2303 = vadd.f32 %v1772, %v2194
        %v2304 = vadd.f32 %v1773, %v2045
        %v2305 = vadd.f32 %v1774, %v2047
        %v2306 = vadd.f32 %v1775, %v2198
        %v2307 = vadd.f32 %v1776, %v2200
        %v2308 = vadd.f32 %v1777, %v2049
        %v2309 = vadd.f32 %v1778, %v2051
        %v2310 = vadd.f32 %v1779, %v2202
        %v2311 = vadd.f32 %v1780, %v2204
        %v2312 = vadd.f32 %v1781, %v2055
        %v2313 = vadd.f32 %v1782, %v2057
        %v2314 = vadd.f32 %v1783, %v2208
        %v2315 = vadd.f32 %v1784, %v2210
        %v2316 = vadd.f32 %v1785, %v2059
        %v2317 = vadd.f32 %v1786, %v2061
        %v2318 = vadd.f32 %v1787, %v2212
        %v2319 = vadd.f32 %v1788, %v2214
        %v2320 = vadd.f32 %v1789, %v2065
        %v2321 = vadd.f32 %v1790, %v2067
        %v2322 = vadd.f32 %v1791, %v2218
        %v2323 = vadd.f32 %v1792, %v2220
        %v2324 = vadd.f32 %v1793, %v2069
        %v2325 = vadd.f32 %v1794, %v2071
        %v2326 = vadd.f32 %v1795, %v2222
        %v2327 = vadd.f32 %v1796, %v2224
        %v2328 = vadd.f32 %v1797, %v2075
        %v2329 = vadd.f32 %v1798, %v2077
        %v2330 = vadd.f32 %v1799, %v2228
        %v2331 = vadd.f32 %v1800, %v2230
        %v2332 = vadd.f32 %v1801, %v2079
        %v2333 = vadd.f32 %v1802, %v2081
        %v2334 = vadd.f32 %v1803, %v2232
        %v2335 = vadd.f32 %v1804, %v2234
        %v2336 = vadd.f32 %v1805, %v2085
        %v2337 = vadd.f32 %v1806, %v2087
        %v2338 = vadd.f32 %v1807, %v2238
        %v2339 = vadd.f32 %v1808, %v2240
        %v2340 = vadd.f32 %v1809, %v2089
        %v2341 = vadd.f32 %v1810, %v2091
        %v2342 = vadd.f32 %v1811, %v2242
        %v2343 = vadd.f32 %v1812, %v2244
        %v2344 = vadd.f32 %v1813, %v2095
        %v2345 = vadd.f32 %v1814, %v2097
        %v2346 = vadd.f32 %v1815, %v2248
        %v2347 = vadd.f32 %v1816, %v2250
        %v2348 = vadd.f32 %v1817, %v2099
        %v2349 = vadd.f32 %v1818, %v2101
        %v2350 = vadd.f32 %v1819, %v2252
        %v2351 = vadd.f32 %v1820, %v2254
        %v2352 = vld [vmem:[%s439 + $0x20] sm:$0xff]
        %v2353 = vld [vmem:[%s439 + $0x28] sm:$0xff]
        %v2354 = vld [vmem:[%s439 + $0x30] sm:$0xff]
        %v2355 = vld [vmem:[%s439 + $0x38] sm:$0xff]
        %v2356 = vld [vmem:[%s439 + $0x40] sm:$0xff]
        %v2357 = vld [vmem:[%s439 + $0x48] sm:$0xff]
        %v2358 = vld [vmem:[%s439 + $0x50] sm:$0xff]
        %v2359 = vld [vmem:[%s439 + $0x58] sm:$0xff]
        %v2360 = vld [vmem:[%s439 + $0x60] sm:$0xff]
        %v2361 = vld [vmem:[%s439 + $0x68] sm:$0xff]
        %v2362 = vld [vmem:[%s439 + $0x70] sm:$0xff]
        %v2363 = vld [vmem:[%s439 + $0x78] sm:$0xff]
        %v2364 = vld [vmem:[%s439 + $0x80] sm:$0xff]
        %v2365 = vld [vmem:[%s439 + $0x88] sm:$0xff]
        %v2366 = vld [vmem:[%s439 + $0x90] sm:$0xff]
        %v2367 = vld [vmem:[%s439 + $0x98] sm:$0xff]
        %v2368 = vld [vmem:[%s439 + $0xa0] sm:$0xff]
        %v2369 = vld [vmem:[%s439 + $0xa8] sm:$0xff]
        %v2370 = vld [vmem:[%s439 + $0xb0] sm:$0xff]
        %v2371 = vld [vmem:[%s439 + $0xb8] sm:$0xff]
        %v2372 = vld [vmem:[%s439 + $0xc0] sm:$0xff]
        %v2373 = vld [vmem:[%s439 + $0xc8] sm:$0xff]
        %v2374 = vld [vmem:[%s439 + $0xd0] sm:$0xff]
        %v2375 = vld [vmem:[%s439 + $0xd8] sm:$0xff]
        %v2376 = vpack.c.bf16 %v2353, %v2352
        %v2377 = vpack.c.bf16 %v2355, %v2354
        %v2378 = vpack.c.bf16 %v2357, %v2356
        %v2379 = vpack.c.bf16 %v2359, %v2358
        %v2380 = vpack.c.bf16 %v2361, %v2360
        %v2381 = vpack.c.bf16 %v2363, %v2362
        %v2382 = vpack.c.bf16 %v2365, %v2364
        %v2383 = vpack.c.bf16 %v2367, %v2366
        %v2384 = vpack.c.bf16 %v2369, %v2368
        %v2385 = vpack.c.bf16 %v2371, %v2370
        %v2386 = vpack.c.bf16 %v2373, %v2372
        %v2387 = vpack.c.bf16 %v2375, %v2374
        %s2388 = scalar_lea.vmem %s1, 256
        %v2389 = vld [vmem:[%s2388] sm:$0xff]
        %v2390 = vld [vmem:[%s2388 + $0x8] sm:$0xff]
        %v2391 = vld [vmem:[%s2388 + $0x10] sm:$0xff]
        %v2392 = vld [vmem:[%s2388 + $0x18] sm:$0xff]
        %v2393 = vld [vmem:[%s2388 + $0x20] sm:$0xff]
        %v2394 = vld [vmem:[%s2388 + $0x28] sm:$0xff]
        %v2395 = vld [vmem:[%s2388 + $0x30] sm:$0x33]
        %v2396 = vld [vmem:[%s2388 + $0x38] sm:$0x33]
        %v2405 = vunpack.c.l.b16 %v2389
        %v2406 = vunpack.c.h.b16 %v2389
        %v2407 = vunpack.c.l.b16 %v2390
        %v2408 = vunpack.c.h.b16 %v2390
        %v2409 = vunpack.c.l.b16 %v2391
        %v2410 = vunpack.c.h.b16 %v2391
        %v2411 = vunpack.c.l.b16 %v2392
        %v2412 = vunpack.c.h.b16 %v2392
        %v2413 = vunpack.c.l.b16 %v2393
        %v2414 = vunpack.c.h.b16 %v2393
        %v2415 = vunpack.c.l.b16 %v2394
        %v2416 = vunpack.c.h.b16 %v2394
        %v2417 = vunpack.c.l.b16 %v2395
        %v2418 = vunpack.c.h.b16 %v2395
        %v2419 = vunpack.c.l.b16 %v2396
        %v2420 = vunpack.c.h.b16 %v2396
        %v2421 = vpack.c.b16 %v2409, %v2405
        %v2422 = vpack.c.b16 %v2410, %v2406
        %v2423 = vpack.c.b16 %v2411, %v2407
        %v2424 = vpack.c.b16 %v2412, %v2408
        %v2425 = vpack.c.b16 %v2417, %v2413
        %v2426 = vpack.c.b16 %v2418, %v2414
        %v2427 = vpack.c.b16 %v2419, %v2415
        %v2428 = vpack.c.b16 %v2420, %v2416
        %v2434 = vsel %vm544, %v2376, 0
        %v2437 = vsel %vm544, %v2377, 0
        %v2440 = vsel %vm544, %v2378, 0
        %v2443 = vsel %vm544, %v2379, 0
        %v2446 = vsel %vm544, %v2380, 0
        %v2449 = vsel %vm544, %v2381, 0
        %v2452 = vsel %vm544, %v2382, 0
        %v2455 = vsel %vm544, %v2383, 0
        %v2458 = vsel %vm544, %v2384, 0
        %v2461 = vsel %vm544, %v2385, 0
        %v2464 = vsel %vm544, %v2386, 0
        %v2467 = vsel %vm544, %v2387, 0
        %v2470 = vsel %vm581, %v2425, 0
        %v2473 = vsel %vm581, %v2426, 0
        %v2476 = vsel %vm581, %v2427, 0
        %v2479 = vsel %vm581, %v2428, 0
        %2481 = vmatprep.subr.bf16.mxu0 0
        %2482 = vmatpush1.bf16.msra.mxu0 0
        %2483 = vmatprep.subr.bf16.mxu0 0
        %2484 = vmatpush1.bf16.msra.mxu0 0
        %2485 = vmatprep.subr.bf16.mxu0 0
        %2486 = vmatpush1.bf16.msra.mxu0 0
        %2487 = vmatprep.subr.bf16.mxu0 0
        %2488 = vmatpush1.bf16.msra.mxu0 0
        %2489 = vmatprep.subr.bf16.mxu0 0
        %2490 = vmatpush1.bf16.msra.mxu0 0
        %2491 = vmatprep.subr.bf16.mxu0 0
        %2492 = vmatpush1.bf16.msra.mxu0 0
        %2493 = vmatprep.subr.bf16.mxu0 %v2473
        %2494 = vmatpush1.bf16.msra.mxu0 %v2470
        %2495 = vmatprep.subr.bf16.mxu0 %v2422
        %2496 = vmatpush1.bf16.msra.mxu0 %v2421
        %2497 = vmatprep.subr.bf16.mxu0 0
        %2498 = vmatpush2.bf16.msra.mxu0 0
        %2499 = vmatprep.subr.bf16.mxu0 0
        %2500 = vmatpush2.bf16.msra.mxu0 0
        %2501 = vmatprep.subr.bf16.mxu0 0
        %2502 = vmatpush2.bf16.msra.mxu0 0
        %2503 = vmatprep.subr.bf16.mxu0 0
        %2504 = vmatpush2.bf16.msra.mxu0 0
        %2505 = vmatprep.subr.bf16.mxu0 0
        %2506 = vmatpush2.bf16.msra.mxu0 0
        %2507 = vmatprep.subr.bf16.mxu0 0
        %2508 = vmatpush2.bf16.msra.mxu0 0
        %2509 = vmatprep.subr.bf16.mxu0 0
        %2510 = vmatpush2.bf16.msra.mxu0 0
        %2511 = vmatprep.subr.bf16.mxu0 0
        %2512 = vmatpush2.bf16.msra.mxu0 0
        %2513 = vmatprep.mubr.bf16.mxu0 0
        %2514 = vmatmul.mubr.bf16.gmra.mxu0 %v2434
        %v2515 = vpop.f32.mrf.mxu0
        %v2516 = vadd.f32 0.0, %v2515
        %v2517 = vpop.f32.mrf.mxu0
        %v2518 = vadd.f32 0.0, %v2517
        %v2519 = vpop.f32.mrf.mxu0
        %v2520 = vadd.f32 0.0, %v2519
        %v2521 = vpop.f32.mrf.mxu0
        %v2522 = vadd.f32 0.0, %v2521
        %2523 = vmatprep.mubr.bf16.mxu0 0
        %2524 = vmatmul.mubr.bf16.gmra.mxu0 %v2437
        %v2525 = vpop.f32.mrf.mxu0
        %v2526 = vadd.f32 0.0, %v2525
        %v2527 = vpop.f32.mrf.mxu0
        %v2528 = vadd.f32 0.0, %v2527
        %v2529 = vpop.f32.mrf.mxu0
        %v2530 = vadd.f32 0.0, %v2529
        %v2531 = vpop.f32.mrf.mxu0
        %v2532 = vadd.f32 0.0, %v2531
        %2533 = vmatprep.mubr.bf16.mxu0 0
        %2534 = vmatmul.mubr.bf16.gmra.mxu0 %v2440
        %v2535 = vpop.f32.mrf.mxu0
        %v2536 = vadd.f32 0.0, %v2535
        %v2537 = vpop.f32.mrf.mxu0
        %v2538 = vadd.f32 0.0, %v2537
        %v2539 = vpop.f32.mrf.mxu0
        %v2540 = vadd.f32 0.0, %v2539
        %v2541 = vpop.f32.mrf.mxu0
        %v2542 = vadd.f32 0.0, %v2541
        %2543 = vmatprep.mubr.bf16.mxu0 0
        %2544 = vmatmul.mubr.bf16.gmra.mxu0 %v2443
        %v2545 = vpop.f32.mrf.mxu0
        %v2546 = vadd.f32 0.0, %v2545
        %v2547 = vpop.f32.mrf.mxu0
        %v2548 = vadd.f32 0.0, %v2547
        %v2549 = vpop.f32.mrf.mxu0
        %v2550 = vadd.f32 0.0, %v2549
        %v2551 = vpop.f32.mrf.mxu0
        %v2552 = vadd.f32 0.0, %v2551
        %2553 = vmatprep.mubr.bf16.mxu0 0
        %2554 = vmatmul.mubr.bf16.gmra.mxu0 %v2446
        %v2555 = vpop.f32.mrf.mxu0
        %v2556 = vadd.f32 0.0, %v2555
        %v2557 = vpop.f32.mrf.mxu0
        %v2558 = vadd.f32 0.0, %v2557
        %v2559 = vpop.f32.mrf.mxu0
        %v2560 = vadd.f32 0.0, %v2559
        %v2561 = vpop.f32.mrf.mxu0
        %v2562 = vadd.f32 0.0, %v2561
        %2563 = vmatprep.mubr.bf16.mxu0 0
        %2564 = vmatmul.mubr.bf16.gmra.mxu0 %v2449
        %v2565 = vpop.f32.mrf.mxu0
        %v2566 = vadd.f32 0.0, %v2565
        %v2567 = vpop.f32.mrf.mxu0
        %v2568 = vadd.f32 0.0, %v2567
        %v2569 = vpop.f32.mrf.mxu0
        %v2570 = vadd.f32 0.0, %v2569
        %v2571 = vpop.f32.mrf.mxu0
        %v2572 = vadd.f32 0.0, %v2571
        %2573 = vmatprep.mubr.bf16.mxu0 0
        %2574 = vmatmul.mubr.bf16.gmra.mxu0 %v2452
        %v2575 = vpop.f32.mrf.mxu0
        %v2576 = vadd.f32 0.0, %v2575
        %v2577 = vpop.f32.mrf.mxu0
        %v2578 = vadd.f32 0.0, %v2577
        %v2579 = vpop.f32.mrf.mxu0
        %v2580 = vadd.f32 0.0, %v2579
        %v2581 = vpop.f32.mrf.mxu0
        %v2582 = vadd.f32 0.0, %v2581
        %2583 = vmatprep.mubr.bf16.mxu0 0
        %2584 = vmatmul.mubr.bf16.gmra.mxu0 %v2455
        %v2585 = vpop.f32.mrf.mxu0
        %v2586 = vadd.f32 0.0, %v2585
        %v2587 = vpop.f32.mrf.mxu0
        %v2588 = vadd.f32 0.0, %v2587
        %v2589 = vpop.f32.mrf.mxu0
        %v2590 = vadd.f32 0.0, %v2589
        %v2591 = vpop.f32.mrf.mxu0
        %v2592 = vadd.f32 0.0, %v2591
        %2593 = vmatprep.mubr.bf16.mxu0 0
        %2594 = vmatmul.mubr.bf16.gmra.mxu0 %v2458
        %v2595 = vpop.f32.mrf.mxu0
        %v2596 = vadd.f32 0.0, %v2595
        %v2597 = vpop.f32.mrf.mxu0
        %v2598 = vadd.f32 0.0, %v2597
        %v2599 = vpop.f32.mrf.mxu0
        %v2600 = vadd.f32 0.0, %v2599
        %v2601 = vpop.f32.mrf.mxu0
        %v2602 = vadd.f32 0.0, %v2601
        %2603 = vmatprep.mubr.bf16.mxu0 0
        %2604 = vmatmul.mubr.bf16.gmra.mxu0 %v2461
        %v2605 = vpop.f32.mrf.mxu0
        %v2606 = vadd.f32 0.0, %v2605
        %v2607 = vpop.f32.mrf.mxu0
        %v2608 = vadd.f32 0.0, %v2607
        %v2609 = vpop.f32.mrf.mxu0
        %v2610 = vadd.f32 0.0, %v2609
        %v2611 = vpop.f32.mrf.mxu0
        %v2612 = vadd.f32 0.0, %v2611
        %2613 = vmatprep.mubr.bf16.mxu0 0
        %2614 = vmatmul.mubr.bf16.gmra.mxu0 %v2464
        %v2615 = vpop.f32.mrf.mxu0
        %v2616 = vadd.f32 0.0, %v2615
        %v2617 = vpop.f32.mrf.mxu0
        %v2618 = vadd.f32 0.0, %v2617
        %v2619 = vpop.f32.mrf.mxu0
        %v2620 = vadd.f32 0.0, %v2619
        %v2621 = vpop.f32.mrf.mxu0
        %v2622 = vadd.f32 0.0, %v2621
        %2623 = vmatprep.mubr.bf16.mxu0 0
        %2624 = vmatmul.mubr.bf16.gmra.mxu0 %v2467
        %v2625 = vpop.f32.mrf.mxu0
        %v2626 = vadd.f32 0.0, %v2625
        %v2627 = vpop.f32.mrf.mxu0
        %v2628 = vadd.f32 0.0, %v2627
        %v2629 = vpop.f32.mrf.mxu0
        %v2630 = vadd.f32 0.0, %v2629
        %v2631 = vpop.f32.mrf.mxu0
        %v2632 = vadd.f32 0.0, %v2631
        %2633 = vdwg.mxu0
        %2634 = vmatprep.subr.bf16.mxu0 0
        %2635 = vmatpush1.bf16.msra.mxu0 0
        %2636 = vmatprep.subr.bf16.mxu0 0
        %2637 = vmatpush1.bf16.msra.mxu0 0
        %2638 = vmatprep.subr.bf16.mxu0 0
        %2639 = vmatpush1.bf16.msra.mxu0 0
        %2640 = vmatprep.subr.bf16.mxu0 0
        %2641 = vmatpush1.bf16.msra.mxu0 0
        %2642 = vmatprep.subr.bf16.mxu0 0
        %2643 = vmatpush1.bf16.msra.mxu0 0
        %2644 = vmatprep.subr.bf16.mxu0 0
        %2645 = vmatpush1.bf16.msra.mxu0 0
        %2646 = vmatprep.subr.bf16.mxu0 %v2479
        %2647 = vmatpush1.bf16.msra.mxu0 %v2476
        %2648 = vmatprep.subr.bf16.mxu0 %v2424
        %2649 = vmatpush1.bf16.msra.mxu0 %v2423
        %2650 = vmatprep.subr.bf16.mxu0 0
        %2651 = vmatpush2.bf16.msra.mxu0 0
        %2652 = vmatprep.subr.bf16.mxu0 0
        %2653 = vmatpush2.bf16.msra.mxu0 0
        %2654 = vmatprep.subr.bf16.mxu0 0
        %2655 = vmatpush2.bf16.msra.mxu0 0
        %2656 = vmatprep.subr.bf16.mxu0 0
        %2657 = vmatpush2.bf16.msra.mxu0 0
        %2658 = vmatprep.subr.bf16.mxu0 0
        %2659 = vmatpush2.bf16.msra.mxu0 0
        %2660 = vmatprep.subr.bf16.mxu0 0
        %2661 = vmatpush2.bf16.msra.mxu0 0
        %2662 = vmatprep.subr.bf16.mxu0 0
        %2663 = vmatpush2.bf16.msra.mxu0 0
        %2664 = vmatprep.subr.bf16.mxu0 0
        %2665 = vmatpush2.bf16.msra.mxu0 0
        %2666 = vmatprep.mubr.bf16.mxu0 0
        %2667 = vmatmul.mubr.bf16.gmra.mxu0 %v2434
        %v2668 = vpop.f32.mrf.mxu0
        %v2669 = vadd.f32 0.0, %v2668
        %v2670 = vpop.f32.mrf.mxu0
        %v2671 = vadd.f32 0.0, %v2670
        %v2672 = vpop.f32.mrf.mxu0
        %v2673 = vadd.f32 0.0, %v2672
        %v2674 = vpop.f32.mrf.mxu0
        %v2675 = vadd.f32 0.0, %v2674
        %2676 = vmatprep.mubr.bf16.mxu0 0
        %2677 = vmatmul.mubr.bf16.gmra.mxu0 %v2437
        %v2678 = vpop.f32.mrf.mxu0
        %v2679 = vadd.f32 0.0, %v2678
        %v2680 = vpop.f32.mrf.mxu0
        %v2681 = vadd.f32 0.0, %v2680
        %v2682 = vpop.f32.mrf.mxu0
        %v2683 = vadd.f32 0.0, %v2682
        %v2684 = vpop.f32.mrf.mxu0
        %v2685 = vadd.f32 0.0, %v2684
        %2686 = vmatprep.mubr.bf16.mxu0 0
        %2687 = vmatmul.mubr.bf16.gmra.mxu0 %v2440
        %v2688 = vpop.f32.mrf.mxu0
        %v2689 = vadd.f32 0.0, %v2688
        %v2690 = vpop.f32.mrf.mxu0
        %v2691 = vadd.f32 0.0, %v2690
        %v2692 = vpop.f32.mrf.mxu0
        %v2693 = vadd.f32 0.0, %v2692
        %v2694 = vpop.f32.mrf.mxu0
        %v2695 = vadd.f32 0.0, %v2694
        %2696 = vmatprep.mubr.bf16.mxu0 0
        %2697 = vmatmul.mubr.bf16.gmra.mxu0 %v2443
        %v2698 = vpop.f32.mrf.mxu0
        %v2699 = vadd.f32 0.0, %v2698
        %v2700 = vpop.f32.mrf.mxu0
        %v2701 = vadd.f32 0.0, %v2700
        %v2702 = vpop.f32.mrf.mxu0
        %v2703 = vadd.f32 0.0, %v2702
        %v2704 = vpop.f32.mrf.mxu0
        %v2705 = vadd.f32 0.0, %v2704
        %2706 = vmatprep.mubr.bf16.mxu0 0
        %2707 = vmatmul.mubr.bf16.gmra.mxu0 %v2446
        %v2708 = vpop.f32.mrf.mxu0
        %v2709 = vadd.f32 0.0, %v2708
        %v2710 = vpop.f32.mrf.mxu0
        %v2711 = vadd.f32 0.0, %v2710
        %v2712 = vpop.f32.mrf.mxu0
        %v2713 = vadd.f32 0.0, %v2712
        %v2714 = vpop.f32.mrf.mxu0
        %v2715 = vadd.f32 0.0, %v2714
        %2716 = vmatprep.mubr.bf16.mxu0 0
        %2717 = vmatmul.mubr.bf16.gmra.mxu0 %v2449
        %v2718 = vpop.f32.mrf.mxu0
        %v2719 = vadd.f32 0.0, %v2718
        %v2720 = vpop.f32.mrf.mxu0
        %v2721 = vadd.f32 0.0, %v2720
        %v2722 = vpop.f32.mrf.mxu0
        %v2723 = vadd.f32 0.0, %v2722
        %v2724 = vpop.f32.mrf.mxu0
        %v2725 = vadd.f32 0.0, %v2724
        %2726 = vmatprep.mubr.bf16.mxu0 0
        %2727 = vmatmul.mubr.bf16.gmra.mxu0 %v2452
        %v2728 = vpop.f32.mrf.mxu0
        %v2729 = vadd.f32 0.0, %v2728
        %v2730 = vpop.f32.mrf.mxu0
        %v2731 = vadd.f32 0.0, %v2730
        %v2732 = vpop.f32.mrf.mxu0
        %v2733 = vadd.f32 0.0, %v2732
        %v2734 = vpop.f32.mrf.mxu0
        %v2735 = vadd.f32 0.0, %v2734
        %2736 = vmatprep.mubr.bf16.mxu0 0
        %2737 = vmatmul.mubr.bf16.gmra.mxu0 %v2455
        %v2738 = vpop.f32.mrf.mxu0
        %v2739 = vadd.f32 0.0, %v2738
        %v2740 = vpop.f32.mrf.mxu0
        %v2741 = vadd.f32 0.0, %v2740
        %v2742 = vpop.f32.mrf.mxu0
        %v2743 = vadd.f32 0.0, %v2742
        %v2744 = vpop.f32.mrf.mxu0
        %v2745 = vadd.f32 0.0, %v2744
        %2746 = vmatprep.mubr.bf16.mxu0 0
        %2747 = vmatmul.mubr.bf16.gmra.mxu0 %v2458
        %v2748 = vpop.f32.mrf.mxu0
        %v2749 = vadd.f32 0.0, %v2748
        %v2750 = vpop.f32.mrf.mxu0
        %v2751 = vadd.f32 0.0, %v2750
        %v2752 = vpop.f32.mrf.mxu0
        %v2753 = vadd.f32 0.0, %v2752
        %v2754 = vpop.f32.mrf.mxu0
        %v2755 = vadd.f32 0.0, %v2754
        %2756 = vmatprep.mubr.bf16.mxu0 0
        %2757 = vmatmul.mubr.bf16.gmra.mxu0 %v2461
        %v2758 = vpop.f32.mrf.mxu0
        %v2759 = vadd.f32 0.0, %v2758
        %v2760 = vpop.f32.mrf.mxu0
        %v2761 = vadd.f32 0.0, %v2760
        %v2762 = vpop.f32.mrf.mxu0
        %v2763 = vadd.f32 0.0, %v2762
        %v2764 = vpop.f32.mrf.mxu0
        %v2765 = vadd.f32 0.0, %v2764
        %2766 = vmatprep.mubr.bf16.mxu0 0
        %2767 = vmatmul.mubr.bf16.gmra.mxu0 %v2464
        %v2768 = vpop.f32.mrf.mxu0
        %v2769 = vadd.f32 0.0, %v2768
        %v2770 = vpop.f32.mrf.mxu0
        %v2771 = vadd.f32 0.0, %v2770
        %v2772 = vpop.f32.mrf.mxu0
        %v2773 = vadd.f32 0.0, %v2772
        %v2774 = vpop.f32.mrf.mxu0
        %v2775 = vadd.f32 0.0, %v2774
        %2776 = vmatprep.mubr.bf16.mxu0 0
        %2777 = vmatmul.mubr.bf16.gmra.mxu0 %v2467
        %v2778 = vpop.f32.mrf.mxu0
        %v2779 = vadd.f32 0.0, %v2778
        %v2780 = vpop.f32.mrf.mxu0
        %v2781 = vadd.f32 0.0, %v2780
        %v2782 = vpop.f32.mrf.mxu0
        %v2783 = vadd.f32 0.0, %v2782
        %v2784 = vpop.f32.mrf.mxu0
        %v2785 = vadd.f32 0.0, %v2784
        %2786 = vdwg.mxu0
        %v2787 = vadd.f32 %v2256, %v2516
        %v2788 = vadd.f32 %v2257, %v2518
        %v2789 = vadd.f32 %v2258, %v2669
        %v2790 = vadd.f32 %v2259, %v2671
        %v2791 = vadd.f32 %v2260, %v2520
        %v2792 = vadd.f32 %v2261, %v2522
        %v2793 = vadd.f32 %v2262, %v2673
        %v2794 = vadd.f32 %v2263, %v2675
        %v2795 = vadd.f32 %v2264, %v2526
        %v2796 = vadd.f32 %v2265, %v2528
        %v2797 = vadd.f32 %v2266, %v2679
        %v2798 = vadd.f32 %v2267, %v2681
        %v2799 = vadd.f32 %v2268, %v2530
        %v2800 = vadd.f32 %v2269, %v2532
        %v2801 = vadd.f32 %v2270, %v2683
        %v2802 = vadd.f32 %v2271, %v2685
        %v2803 = vadd.f32 %v2272, %v2536
        %v2804 = vadd.f32 %v2273, %v2538
        %v2805 = vadd.f32 %v2274, %v2689
        %v2806 = vadd.f32 %v2275, %v2691
        %v2807 = vadd.f32 %v2276, %v2540
        %v2808 = vadd.f32 %v2277, %v2542
        %v2809 = vadd.f32 %v2278, %v2693
        %v2810 = vadd.f32 %v2279, %v2695
        %v2811 = vadd.f32 %v2280, %v2546
        %v2812 = vadd.f32 %v2281, %v2548
        %v2813 = vadd.f32 %v2282, %v2699
        %v2814 = vadd.f32 %v2283, %v2701
        %v2815 = vadd.f32 %v2284, %v2550
        %v2816 = vadd.f32 %v2285, %v2552
        %v2817 = vadd.f32 %v2286, %v2703
        %v2818 = vadd.f32 %v2287, %v2705
        %v2819 = vadd.f32 %v2288, %v2556
        %v2820 = vadd.f32 %v2289, %v2558
        %v2821 = vadd.f32 %v2290, %v2709
        %v2822 = vadd.f32 %v2291, %v2711
        %v2823 = vadd.f32 %v2292, %v2560
        %v2824 = vadd.f32 %v2293, %v2562
        %v2825 = vadd.f32 %v2294, %v2713
        %v2826 = vadd.f32 %v2295, %v2715
        %v2827 = vadd.f32 %v2296, %v2566
        %v2828 = vadd.f32 %v2297, %v2568
        %v2829 = vadd.f32 %v2298, %v2719
        %v2830 = vadd.f32 %v2299, %v2721
        %v2831 = vadd.f32 %v2300, %v2570
        %v2832 = vadd.f32 %v2301, %v2572
        %v2833 = vadd.f32 %v2302, %v2723
        %v2834 = vadd.f32 %v2303, %v2725
        %v2835 = vadd.f32 %v2304, %v2576
        %v2836 = vadd.f32 %v2305, %v2578
        %v2837 = vadd.f32 %v2306, %v2729
        %v2838 = vadd.f32 %v2307, %v2731
        %v2839 = vadd.f32 %v2308, %v2580
        %v2840 = vadd.f32 %v2309, %v2582
        %v2841 = vadd.f32 %v2310, %v2733
        %v2842 = vadd.f32 %v2311, %v2735
        %v2843 = vadd.f32 %v2312, %v2586
        %v2844 = vadd.f32 %v2313, %v2588
        %v2845 = vadd.f32 %v2314, %v2739
        %v2846 = vadd.f32 %v2315, %v2741
        %v2847 = vadd.f32 %v2316, %v2590
        %v2848 = vadd.f32 %v2317, %v2592
        %v2849 = vadd.f32 %v2318, %v2743
        %v2850 = vadd.f32 %v2319, %v2745
        %v2851 = vadd.f32 %v2320, %v2596
        %v2852 = vadd.f32 %v2321, %v2598
        %v2853 = vadd.f32 %v2322, %v2749
        %v2854 = vadd.f32 %v2323, %v2751
        %v2855 = vadd.f32 %v2324, %v2600
        %v2856 = vadd.f32 %v2325, %v2602
        %v2857 = vadd.f32 %v2326, %v2753
        %v2858 = vadd.f32 %v2327, %v2755
        %v2859 = vadd.f32 %v2328, %v2606
        %v2860 = vadd.f32 %v2329, %v2608
        %v2861 = vadd.f32 %v2330, %v2759
        %v2862 = vadd.f32 %v2331, %v2761
        %v2863 = vadd.f32 %v2332, %v2610
        %v2864 = vadd.f32 %v2333, %v2612
        %v2865 = vadd.f32 %v2334, %v2763
        %v2866 = vadd.f32 %v2335, %v2765
        %v2867 = vadd.f32 %v2336, %v2616
        %v2868 = vadd.f32 %v2337, %v2618
        %v2869 = vadd.f32 %v2338, %v2769
        %v2870 = vadd.f32 %v2339, %v2771
        %v2871 = vadd.f32 %v2340, %v2620
        %v2872 = vadd.f32 %v2341, %v2622
        %v2873 = vadd.f32 %v2342, %v2773
        %v2874 = vadd.f32 %v2343, %v2775
        %v2875 = vadd.f32 %v2344, %v2626
        %v2876 = vadd.f32 %v2345, %v2628
        %v2877 = vadd.f32 %v2346, %v2779
        %v2878 = vadd.f32 %v2347, %v2781
        %v2879 = vadd.f32 %v2348, %v2630
        %v2880 = vadd.f32 %v2349, %v2632
        %v2881 = vadd.f32 %v2350, %v2783
        %v2882 = vadd.f32 %v2351, %v2785
        %v2883 = vld [vmem:[%s2] sm:$0xf]
        %v2885 = vlaneseq
        %v2886 = vshrl.u32 %v2885, 7
        %v2887 = vsub.s32 0, %v2886
        %v2888 = vrot.slane %v2883, %v2887
        %v2889 = vlaneseq
        %v2890 = vshrl.u32 %v2889, 7
        %v2891 = vsub.s32 1, %v2890
        %v2892 = vrot.slane %v2883, %v2891
        %v2893 = vlaneseq
        %v2894 = vshrl.u32 %v2893, 7
        %v2895 = vsub.s32 2, %v2894
        %v2896 = vrot.slane %v2883, %v2895
        %v2897 = vlaneseq
        %v2898 = vshrl.u32 %v2897, 7
        %v2899 = vsub.s32 3, %v2898
        %v2900 = vrot.slane %v2883, %v2899
        %v2905 = vadd.f32 %v2787, %v2888
        %v2906 = vadd.f32 %v2788, %v2892
        %v2907 = vadd.f32 %v2789, %v2896
        %v2908 = vadd.f32 %v2790, %v2900
        %v2909 = vadd.f32 %v2791, %v2888
        %v2910 = vadd.f32 %v2792, %v2892
        %v2911 = vadd.f32 %v2793, %v2896
        %v2912 = vadd.f32 %v2794, %v2900
        %v2913 = vadd.f32 %v2795, %v2888
        %v2914 = vadd.f32 %v2796, %v2892
        %v2915 = vadd.f32 %v2797, %v2896
        %v2916 = vadd.f32 %v2798, %v2900
        %v2917 = vadd.f32 %v2799, %v2888
        %v2918 = vadd.f32 %v2800, %v2892
        %v2919 = vadd.f32 %v2801, %v2896
        %v2920 = vadd.f32 %v2802, %v2900
        %v2921 = vadd.f32 %v2803, %v2888
        %v2922 = vadd.f32 %v2804, %v2892
        %v2923 = vadd.f32 %v2805, %v2896
        %v2924 = vadd.f32 %v2806, %v2900
        %v2925 = vadd.f32 %v2807, %v2888
        %v2926 = vadd.f32 %v2808, %v2892
        %v2927 = vadd.f32 %v2809, %v2896
        %v2928 = vadd.f32 %v2810, %v2900
        %v2929 = vadd.f32 %v2811, %v2888
        %v2930 = vadd.f32 %v2812, %v2892
        %v2931 = vadd.f32 %v2813, %v2896
        %v2932 = vadd.f32 %v2814, %v2900
        %v2933 = vadd.f32 %v2815, %v2888
        %v2934 = vadd.f32 %v2816, %v2892
        %v2935 = vadd.f32 %v2817, %v2896
        %v2936 = vadd.f32 %v2818, %v2900
        %v2937 = vadd.f32 %v2819, %v2888
        %v2938 = vadd.f32 %v2820, %v2892
        %v2939 = vadd.f32 %v2821, %v2896
        %v2940 = vadd.f32 %v2822, %v2900
        %v2941 = vadd.f32 %v2823, %v2888
        %v2942 = vadd.f32 %v2824, %v2892
        %v2943 = vadd.f32 %v2825, %v2896
        %v2944 = vadd.f32 %v2826, %v2900
        %v2945 = vadd.f32 %v2827, %v2888
        %v2946 = vadd.f32 %v2828, %v2892
        %v2947 = vadd.f32 %v2829, %v2896
        %v2948 = vadd.f32 %v2830, %v2900
        %v2949 = vadd.f32 %v2831, %v2888
        %v2950 = vadd.f32 %v2832, %v2892
        %v2951 = vadd.f32 %v2833, %v2896
        %v2952 = vadd.f32 %v2834, %v2900
        %v2953 = vadd.f32 %v2835, %v2888
        %v2954 = vadd.f32 %v2836, %v2892
        %v2955 = vadd.f32 %v2837, %v2896
        %v2956 = vadd.f32 %v2838, %v2900
        %v2957 = vadd.f32 %v2839, %v2888
        %v2958 = vadd.f32 %v2840, %v2892
        %v2959 = vadd.f32 %v2841, %v2896
        %v2960 = vadd.f32 %v2842, %v2900
        %v2961 = vadd.f32 %v2843, %v2888
        %v2962 = vadd.f32 %v2844, %v2892
        %v2963 = vadd.f32 %v2845, %v2896
        %v2964 = vadd.f32 %v2846, %v2900
        %v2965 = vadd.f32 %v2847, %v2888
        %v2966 = vadd.f32 %v2848, %v2892
        %v2967 = vadd.f32 %v2849, %v2896
        %v2968 = vadd.f32 %v2850, %v2900
        %v2969 = vadd.f32 %v2851, %v2888
        %v2970 = vadd.f32 %v2852, %v2892
        %v2971 = vadd.f32 %v2853, %v2896
        %v2972 = vadd.f32 %v2854, %v2900
        %v2973 = vadd.f32 %v2855, %v2888
        %v2974 = vadd.f32 %v2856, %v2892
        %v2975 = vadd.f32 %v2857, %v2896
        %v2976 = vadd.f32 %v2858, %v2900
        %v2977 = vadd.f32 %v2859, %v2888
        %v2978 = vadd.f32 %v2860, %v2892
        %v2979 = vadd.f32 %v2861, %v2896
        %v2980 = vadd.f32 %v2862, %v2900
        %v2981 = vadd.f32 %v2863, %v2888
        %v2982 = vadd.f32 %v2864, %v2892
        %v2983 = vadd.f32 %v2865, %v2896
        %v2984 = vadd.f32 %v2866, %v2900
        %v2985 = vadd.f32 %v2867, %v2888
        %v2986 = vadd.f32 %v2868, %v2892
        %v2987 = vadd.f32 %v2869, %v2896
        %v2988 = vadd.f32 %v2870, %v2900
        %v2989 = vadd.f32 %v2871, %v2888
        %v2990 = vadd.f32 %v2872, %v2892
        %v2991 = vadd.f32 %v2873, %v2896
        %v2992 = vadd.f32 %v2874, %v2900
        %v2993 = vadd.f32 %v2875, %v2888
        %v2994 = vadd.f32 %v2876, %v2892
        %v2995 = vadd.f32 %v2877, %v2896
        %v2996 = vadd.f32 %v2878, %v2900
        %v2997 = vadd.f32 %v2879, %v2888
        %v2998 = vadd.f32 %v2880, %v2892
        %v2999 = vadd.f32 %v2881, %v2896
        %v3000 = vadd.f32 %v2882, %v2900
        %v3001 = vmax.f32 %v2905, 0.0
        %v3002 = vmax.f32 %v2906, 0.0
        %v3003 = vmax.f32 %v2907, 0.0
        %v3004 = vmax.f32 %v2908, 0.0
        %v3005 = vmax.f32 %v2909, 0.0
        %v3006 = vmax.f32 %v2910, 0.0
        %v3007 = vmax.f32 %v2911, 0.0
        %v3008 = vmax.f32 %v2912, 0.0
        %v3009 = vmax.f32 %v2913, 0.0
        %v3010 = vmax.f32 %v2914, 0.0
        %v3011 = vmax.f32 %v2915, 0.0
        %v3012 = vmax.f32 %v2916, 0.0
        %v3013 = vmax.f32 %v2917, 0.0
        %v3014 = vmax.f32 %v2918, 0.0
        %v3015 = vmax.f32 %v2919, 0.0
        %v3016 = vmax.f32 %v2920, 0.0
        %v3017 = vmax.f32 %v2921, 0.0
        %v3018 = vmax.f32 %v2922, 0.0
        %v3019 = vmax.f32 %v2923, 0.0
        %v3020 = vmax.f32 %v2924, 0.0
        %v3021 = vmax.f32 %v2925, 0.0
        %v3022 = vmax.f32 %v2926, 0.0
        %v3023 = vmax.f32 %v2927, 0.0
        %v3024 = vmax.f32 %v2928, 0.0
        %v3025 = vmax.f32 %v2929, 0.0
        %v3026 = vmax.f32 %v2930, 0.0
        %v3027 = vmax.f32 %v2931, 0.0
        %v3028 = vmax.f32 %v2932, 0.0
        %v3029 = vmax.f32 %v2933, 0.0
        %v3030 = vmax.f32 %v2934, 0.0
        %v3031 = vmax.f32 %v2935, 0.0
        %v3032 = vmax.f32 %v2936, 0.0
        %v3033 = vmax.f32 %v2937, 0.0
        %v3034 = vmax.f32 %v2938, 0.0
        %v3035 = vmax.f32 %v2939, 0.0
        %v3036 = vmax.f32 %v2940, 0.0
        %v3037 = vmax.f32 %v2941, 0.0
        %v3038 = vmax.f32 %v2942, 0.0
        %v3039 = vmax.f32 %v2943, 0.0
        %v3040 = vmax.f32 %v2944, 0.0
        %v3041 = vmax.f32 %v2945, 0.0
        %v3042 = vmax.f32 %v2946, 0.0
        %v3043 = vmax.f32 %v2947, 0.0
        %v3044 = vmax.f32 %v2948, 0.0
        %v3045 = vmax.f32 %v2949, 0.0
        %v3046 = vmax.f32 %v2950, 0.0
        %v3047 = vmax.f32 %v2951, 0.0
        %v3048 = vmax.f32 %v2952, 0.0
        %v3049 = vmax.f32 %v2953, 0.0
        %v3050 = vmax.f32 %v2954, 0.0
        %v3051 = vmax.f32 %v2955, 0.0
        %v3052 = vmax.f32 %v2956, 0.0
        %v3053 = vmax.f32 %v2957, 0.0
        %v3054 = vmax.f32 %v2958, 0.0
        %v3055 = vmax.f32 %v2959, 0.0
        %v3056 = vmax.f32 %v2960, 0.0
        %v3057 = vmax.f32 %v2961, 0.0
        %v3058 = vmax.f32 %v2962, 0.0
        %v3059 = vmax.f32 %v2963, 0.0
        %v3060 = vmax.f32 %v2964, 0.0
        %v3061 = vmax.f32 %v2965, 0.0
        %v3062 = vmax.f32 %v2966, 0.0
        %v3063 = vmax.f32 %v2967, 0.0
        %v3064 = vmax.f32 %v2968, 0.0
        %v3065 = vmax.f32 %v2969, 0.0
        %v3066 = vmax.f32 %v2970, 0.0
        %v3067 = vmax.f32 %v2971, 0.0
        %v3068 = vmax.f32 %v2972, 0.0
        %v3069 = vmax.f32 %v2973, 0.0
        %v3070 = vmax.f32 %v2974, 0.0
        %v3071 = vmax.f32 %v2975, 0.0
        %v3072 = vmax.f32 %v2976, 0.0
        %v3073 = vmax.f32 %v2977, 0.0
        %v3074 = vmax.f32 %v2978, 0.0
        %v3075 = vmax.f32 %v2979, 0.0
        %v3076 = vmax.f32 %v2980, 0.0
        %v3077 = vmax.f32 %v2981, 0.0
        %v3078 = vmax.f32 %v2982, 0.0
        %v3079 = vmax.f32 %v2983, 0.0
        %v3080 = vmax.f32 %v2984, 0.0
        %v3081 = vmax.f32 %v2985, 0.0
        %v3082 = vmax.f32 %v2986, 0.0
        %v3083 = vmax.f32 %v2987, 0.0
        %v3084 = vmax.f32 %v2988, 0.0
        %v3085 = vmax.f32 %v2989, 0.0
        %v3086 = vmax.f32 %v2990, 0.0
        %v3087 = vmax.f32 %v2991, 0.0
        %v3088 = vmax.f32 %v2992, 0.0
        %v3089 = vmax.f32 %v2993, 0.0
        %v3090 = vmax.f32 %v2994, 0.0
        %v3091 = vmax.f32 %v2995, 0.0
        %v3092 = vmax.f32 %v2996, 0.0
        %v3093 = vmax.f32 %v2997, 0.0
        %v3094 = vmax.f32 %v2998, 0.0
        %v3095 = vmax.f32 %v2999, 0.0
        %v3096 = vmax.f32 %v3000, 0.0
        %v3097 = vmax.f32 %v3001, %v3005
        %v3098 = vmax.f32 %v3002, %v3006
        %v3099 = vmax.f32 %v3003, %v3007
        %v3100 = vmax.f32 %v3004, %v3008
        %v3101 = vmax.f32 %v3009, %v3013
        %v3102 = vmax.f32 %v3010, %v3014
        %v3103 = vmax.f32 %v3011, %v3015
        %v3104 = vmax.f32 %v3012, %v3016
        %v3105 = vmax.f32 %v3017, %v3021
        %v3106 = vmax.f32 %v3018, %v3022
        %v3107 = vmax.f32 %v3019, %v3023
        %v3108 = vmax.f32 %v3020, %v3024
        %v3109 = vmax.f32 %v3025, %v3029
        %v3110 = vmax.f32 %v3026, %v3030
        %v3111 = vmax.f32 %v3027, %v3031
        %v3112 = vmax.f32 %v3028, %v3032
        %v3113 = vmax.f32 %v3033, %v3037
        %v3114 = vmax.f32 %v3034, %v3038
        %v3115 = vmax.f32 %v3035, %v3039
        %v3116 = vmax.f32 %v3036, %v3040
        %v3117 = vmax.f32 %v3041, %v3045
        %v3118 = vmax.f32 %v3042, %v3046
        %v3119 = vmax.f32 %v3043, %v3047
        %v3120 = vmax.f32 %v3044, %v3048
        %v3121 = vmax.f32 %v3049, %v3053
        %v3122 = vmax.f32 %v3050, %v3054
        %v3123 = vmax.f32 %v3051, %v3055
        %v3124 = vmax.f32 %v3052, %v3056
        %v3125 = vmax.f32 %v3057, %v3061
        %v3126 = vmax.f32 %v3058, %v3062
        %v3127 = vmax.f32 %v3059, %v3063
        %v3128 = vmax.f32 %v3060, %v3064
        %v3129 = vmax.f32 %v3065, %v3069
        %v3130 = vmax.f32 %v3066, %v3070
        %v3131 = vmax.f32 %v3067, %v3071
        %v3132 = vmax.f32 %v3068, %v3072
        %v3133 = vmax.f32 %v3073, %v3077
        %v3134 = vmax.f32 %v3074, %v3078
        %v3135 = vmax.f32 %v3075, %v3079
        %v3136 = vmax.f32 %v3076, %v3080
        %v3137 = vmax.f32 %v3081, %v3085
        %v3138 = vmax.f32 %v3082, %v3086
        %v3139 = vmax.f32 %v3083, %v3087
        %v3140 = vmax.f32 %v3084, %v3088
        %v3141 = vmax.f32 %v3089, %v3093
        %v3142 = vmax.f32 %v3090, %v3094
        %v3143 = vmax.f32 %v3091, %v3095
        %v3144 = vmax.f32 %v3092, %v3096
        %v3145 = vpack.c.bf16 %v3101, %v3097
        %v3146 = vpack.c.bf16 %v3102, %v3098
        %v3147 = vpack.c.bf16 %v3103, %v3099
        %v3148 = vpack.c.bf16 %v3104, %v3100
        %v3149 = vpack.c.bf16 %v3109, %v3105
        %v3150 = vpack.c.bf16 %v3110, %v3106
        %v3151 = vpack.c.bf16 %v3111, %v3107
        %v3152 = vpack.c.bf16 %v3112, %v3108
        %v3153 = vpack.c.bf16 %v3117, %v3113
        %v3154 = vpack.c.bf16 %v3118, %v3114
        %v3155 = vpack.c.bf16 %v3119, %v3115
        %v3156 = vpack.c.bf16 %v3120, %v3116
        %v3157 = vpack.c.bf16 %v3125, %v3121
        %v3158 = vpack.c.bf16 %v3126, %v3122
        %v3159 = vpack.c.bf16 %v3127, %v3123
        %v3160 = vpack.c.bf16 %v3128, %v3124
        %v3161 = vpack.c.bf16 %v3133, %v3129
        %v3162 = vpack.c.bf16 %v3134, %v3130
        %v3163 = vpack.c.bf16 %v3135, %v3131
        %v3164 = vpack.c.bf16 %v3136, %v3132
        %v3165 = vpack.c.bf16 %v3141, %v3137
        %v3166 = vpack.c.bf16 %v3142, %v3138
        %v3167 = vpack.c.bf16 %v3143, %v3139
        %v3168 = vpack.c.bf16 %v3144, %v3140
        %v3169 = vld [vmem:[%s3] sm:$0xff]
        %v3170 = vld [vmem:[%s3 + $0x8] sm:$0xff]
        %v3171 = vld [vmem:[%s3 + $0x10] sm:$0xff]
        %v3172 = vld [vmem:[%s3 + $0x18] sm:$0xff]
        %v3173 = vld [vmem:[%s3 + $0x20] sm:$0xff]
        %v3174 = vld [vmem:[%s3 + $0x28] sm:$0xff]
        %v3175 = vld [vmem:[%s3 + $0x30] sm:$0xff]
        %v3176 = vld [vmem:[%s3 + $0x38] sm:$0xff]
        %v3177 = vld [vmem:[%s3 + $0x40] sm:$0xff]
        %v3178 = vld [vmem:[%s3 + $0x48] sm:$0xff]
        %v3179 = vld [vmem:[%s3 + $0x50] sm:$0xff]
        %v3180 = vld [vmem:[%s3 + $0x58] sm:$0xff]
        %v3181 = vld [vmem:[%s3 + $0x60] sm:$0xff]
        %v3182 = vld [vmem:[%s3 + $0x68] sm:$0xff]
        %v3183 = vld [vmem:[%s3 + $0x70] sm:$0xff]
        %v3184 = vld [vmem:[%s3 + $0x78] sm:$0xff]
        %v3185 = vld [vmem:[%s3 + $0x80] sm:$0xff]
        %v3186 = vld [vmem:[%s3 + $0x88] sm:$0xff]
        %v3187 = vld [vmem:[%s3 + $0x90] sm:$0xff]
        %v3188 = vld [vmem:[%s3 + $0x98] sm:$0xff]
        %v3189 = vld [vmem:[%s3 + $0xa0] sm:$0xff]
        %v3190 = vld [vmem:[%s3 + $0xa8] sm:$0xff]
        %v3191 = vld [vmem:[%s3 + $0xb0] sm:$0xff]
        %v3192 = vld [vmem:[%s3 + $0xb8] sm:$0xff]
        %v3193 = vld [vmem:[%s3 + $0xc0] sm:$0xff]
        %v3194 = vld [vmem:[%s3 + $0xc8] sm:$0xff]
        %v3195 = vld [vmem:[%s3 + $0xd0] sm:$0xff]
        %v3196 = vld [vmem:[%s3 + $0xd8] sm:$0xff]
        %v3197 = vld [vmem:[%s3 + $0xe0] sm:$0xff]
        %v3198 = vld [vmem:[%s3 + $0xe8] sm:$0xff]
        %v3199 = vld [vmem:[%s3 + $0xf0] sm:$0xff]
        %v3200 = vld [vmem:[%s3 + $0xf8] sm:$0xff]
        %v3201 = vld [vmem:[%s3 + $0x100] sm:$0xff]
        %v3202 = vld [vmem:[%s3 + $0x108] sm:$0xff]
        %v3203 = vld [vmem:[%s3 + $0x110] sm:$0xff]
        %v3204 = vld [vmem:[%s3 + $0x118] sm:$0xff]
        %v3205 = vld [vmem:[%s3 + $0x120] sm:$0xff]
        %v3206 = vld [vmem:[%s3 + $0x128] sm:$0xff]
        %v3207 = vld [vmem:[%s3 + $0x130] sm:$0xff]
        %v3208 = vld [vmem:[%s3 + $0x138] sm:$0xff]
        %v3209 = vld [vmem:[%s3 + $0x140] sm:$0xff]
        %v3210 = vld [vmem:[%s3 + $0x148] sm:$0xff]
        %v3211 = vld [vmem:[%s3 + $0x150] sm:$0xff]
        %v3212 = vld [vmem:[%s3 + $0x158] sm:$0xff]
        %v3213 = vld [vmem:[%s3 + $0x160] sm:$0xff]
        %v3214 = vld [vmem:[%s3 + $0x168] sm:$0xff]
        %v3215 = vld [vmem:[%s3 + $0x170] sm:$0xff]
        %v3216 = vld [vmem:[%s3 + $0x178] sm:$0xff]
        %v3217 = vld [vmem:[%s3 + $0x180] sm:$0xff]
        %v3218 = vld [vmem:[%s3 + $0x188] sm:$0xff]
        %v3219 = vld [vmem:[%s3 + $0x190] sm:$0xff]
        %v3220 = vld [vmem:[%s3 + $0x198] sm:$0xff]
        %v3221 = vld [vmem:[%s3 + $0x1a0] sm:$0xff]
        %v3222 = vld [vmem:[%s3 + $0x1a8] sm:$0xff]
        %v3223 = vld [vmem:[%s3 + $0x1b0] sm:$0xff]
        %v3224 = vld [vmem:[%s3 + $0x1b8] sm:$0xff]
        %v3225 = vld [vmem:[%s3 + $0x1c0] sm:$0xff]
        %v3226 = vld [vmem:[%s3 + $0x1c8] sm:$0xff]
        %v3227 = vld [vmem:[%s3 + $0x1d0] sm:$0xff]
        %v3228 = vld [vmem:[%s3 + $0x1d8] sm:$0xff]
        %v3289 = vunpack.c.l.b16 %v3169
        %v3290 = vunpack.c.h.b16 %v3169
        %v3291 = vunpack.c.l.b16 %v3170
        %v3292 = vunpack.c.h.b16 %v3170
        %v3293 = vunpack.c.l.b16 %v3171
        %v3294 = vunpack.c.h.b16 %v3171
        %v3295 = vunpack.c.l.b16 %v3172
        %v3296 = vunpack.c.h.b16 %v3172
        %v3297 = vunpack.c.l.b16 %v3173
        %v3298 = vunpack.c.h.b16 %v3173
        %v3299 = vunpack.c.l.b16 %v3174
        %v3300 = vunpack.c.h.b16 %v3174
        %v3301 = vunpack.c.l.b16 %v3175
        %v3302 = vunpack.c.h.b16 %v3175
        %v3303 = vunpack.c.l.b16 %v3176
        %v3304 = vunpack.c.h.b16 %v3176
        %v3305 = vunpack.c.l.b16 %v3177
        %v3306 = vunpack.c.h.b16 %v3177
        %v3307 = vunpack.c.l.b16 %v3178
        %v3308 = vunpack.c.h.b16 %v3178
        %v3309 = vunpack.c.l.b16 %v3179
        %v3310 = vunpack.c.h.b16 %v3179
        %v3311 = vunpack.c.l.b16 %v3180
        %v3312 = vunpack.c.h.b16 %v3180
        %v3313 = vunpack.c.l.b16 %v3181
        %v3314 = vunpack.c.h.b16 %v3181
        %v3315 = vunpack.c.l.b16 %v3182
        %v3316 = vunpack.c.h.b16 %v3182
        %v3317 = vunpack.c.l.b16 %v3183
        %v3318 = vunpack.c.h.b16 %v3183
        %v3319 = vunpack.c.l.b16 %v3184
        %v3320 = vunpack.c.h.b16 %v3184
        %v3321 = vunpack.c.l.b16 %v3185
        %v3322 = vunpack.c.h.b16 %v3185
        %v3323 = vunpack.c.l.b16 %v3186
        %v3324 = vunpack.c.h.b16 %v3186
        %v3325 = vunpack.c.l.b16 %v3187
        %v3326 = vunpack.c.h.b16 %v3187
        %v3327 = vunpack.c.l.b16 %v3188
        %v3328 = vunpack.c.h.b16 %v3188
        %v3329 = vunpack.c.l.b16 %v3189
        %v3330 = vunpack.c.h.b16 %v3189
        %v3331 = vunpack.c.l.b16 %v3190
        %v3332 = vunpack.c.h.b16 %v3190
        %v3333 = vunpack.c.l.b16 %v3191
        %v3334 = vunpack.c.h.b16 %v3191
        %v3335 = vunpack.c.l.b16 %v3192
        %v3336 = vunpack.c.h.b16 %v3192
        %v3337 = vunpack.c.l.b16 %v3193
        %v3338 = vunpack.c.h.b16 %v3193
        %v3339 = vunpack.c.l.b16 %v3194
        %v3340 = vunpack.c.h.b16 %v3194
        %v3341 = vunpack.c.l.b16 %v3195
        %v3342 = vunpack.c.h.b16 %v3195
        %v3343 = vunpack.c.l.b16 %v3196
        %v3344 = vunpack.c.h.b16 %v3196
        %v3345 = vunpack.c.l.b16 %v3197
        %v3346 = vunpack.c.h.b16 %v3197
        %v3347 = vunpack.c.l.b16 %v3198
        %v3348 = vunpack.c.h.b16 %v3198
        %v3349 = vunpack.c.l.b16 %v3199
        %v3350 = vunpack.c.h.b16 %v3199
        %v3351 = vunpack.c.l.b16 %v3200
        %v3352 = vunpack.c.h.b16 %v3200
        %v3353 = vunpack.c.l.b16 %v3201
        %v3354 = vunpack.c.h.b16 %v3201
        %v3355 = vunpack.c.l.b16 %v3202
        %v3356 = vunpack.c.h.b16 %v3202
        %v3357 = vunpack.c.l.b16 %v3203
        %v3358 = vunpack.c.h.b16 %v3203
        %v3359 = vunpack.c.l.b16 %v3204
        %v3360 = vunpack.c.h.b16 %v3204
        %v3361 = vunpack.c.l.b16 %v3205
        %v3362 = vunpack.c.h.b16 %v3205
        %v3363 = vunpack.c.l.b16 %v3206
        %v3364 = vunpack.c.h.b16 %v3206
        %v3365 = vunpack.c.l.b16 %v3207
        %v3366 = vunpack.c.h.b16 %v3207
        %v3367 = vunpack.c.l.b16 %v3208
        %v3368 = vunpack.c.h.b16 %v3208
        %v3369 = vunpack.c.l.b16 %v3209
        %v3370 = vunpack.c.h.b16 %v3209
        %v3371 = vunpack.c.l.b16 %v3210
        %v3372 = vunpack.c.h.b16 %v3210
        %v3373 = vunpack.c.l.b16 %v3211
        %v3374 = vunpack.c.h.b16 %v3211
        %v3375 = vunpack.c.l.b16 %v3212
        %v3376 = vunpack.c.h.b16 %v3212
        %v3377 = vunpack.c.l.b16 %v3213
        %v3378 = vunpack.c.h.b16 %v3213
        %v3379 = vunpack.c.l.b16 %v3214
        %v3380 = vunpack.c.h.b16 %v3214
        %v3381 = vunpack.c.l.b16 %v3215
        %v3382 = vunpack.c.h.b16 %v3215
        %v3383 = vunpack.c.l.b16 %v3216
        %v3384 = vunpack.c.h.b16 %v3216
        %v3385 = vunpack.c.l.b16 %v3217
        %v3386 = vunpack.c.h.b16 %v3217
        %v3387 = vunpack.c.l.b16 %v3218
        %v3388 = vunpack.c.h.b16 %v3218
        %v3389 = vunpack.c.l.b16 %v3219
        %v3390 = vunpack.c.h.b16 %v3219
        %v3391 = vunpack.c.l.b16 %v3220
        %v3392 = vunpack.c.h.b16 %v3220
        %v3393 = vunpack.c.l.b16 %v3221
        %v3394 = vunpack.c.h.b16 %v3221
        %v3395 = vunpack.c.l.b16 %v3222
        %v3396 = vunpack.c.h.b16 %v3222
        %v3397 = vunpack.c.l.b16 %v3223
        %v3398 = vunpack.c.h.b16 %v3223
        %v3399 = vunpack.c.l.b16 %v3224
        %v3400 = vunpack.c.h.b16 %v3224
        %v3401 = vunpack.c.l.b16 %v3225
        %v3402 = vunpack.c.h.b16 %v3225
        %v3403 = vunpack.c.l.b16 %v3226
        %v3404 = vunpack.c.h.b16 %v3226
        %v3405 = vunpack.c.l.b16 %v3227
        %v3406 = vunpack.c.h.b16 %v3227
        %v3407 = vunpack.c.l.b16 %v3228
        %v3408 = vunpack.c.h.b16 %v3228
        %v3409 = vpack.c.b16 %v3291, %v3289
        %v3410 = vpack.c.b16 %v3292, %v3290
        %v3411 = vpack.c.b16 %v3295, %v3293
        %v3412 = vpack.c.b16 %v3296, %v3294
        %v3413 = vpack.c.b16 %v3299, %v3297
        %v3414 = vpack.c.b16 %v3300, %v3298
        %v3415 = vpack.c.b16 %v3303, %v3301
        %v3416 = vpack.c.b16 %v3304, %v3302
        %v3417 = vpack.c.b16 %v3307, %v3305
        %v3418 = vpack.c.b16 %v3308, %v3306
        %v3419 = vpack.c.b16 %v3311, %v3309
        %v3420 = vpack.c.b16 %v3312, %v3310
        %v3421 = vpack.c.b16 %v3315, %v3313
        %v3422 = vpack.c.b16 %v3316, %v3314
        %v3423 = vpack.c.b16 %v3319, %v3317
        %v3424 = vpack.c.b16 %v3320, %v3318
        %v3425 = vpack.c.b16 %v3323, %v3321
        %v3426 = vpack.c.b16 %v3324, %v3322
        %v3427 = vpack.c.b16 %v3327, %v3325
        %v3428 = vpack.c.b16 %v3328, %v3326
        %v3429 = vpack.c.b16 %v3331, %v3329
        %v3430 = vpack.c.b16 %v3332, %v3330
        %v3431 = vpack.c.b16 %v3335, %v3333
        %v3432 = vpack.c.b16 %v3336, %v3334
        %v3433 = vpack.c.b16 %v3339, %v3337
        %v3434 = vpack.c.b16 %v3340, %v3338
        %v3435 = vpack.c.b16 %v3343, %v3341
        %v3436 = vpack.c.b16 %v3344, %v3342
        %v3437 = vpack.c.b16 %v3347, %v3345
        %v3438 = vpack.c.b16 %v3348, %v3346
        %v3439 = vpack.c.b16 %v3351, %v3349
        %v3440 = vpack.c.b16 %v3352, %v3350
        %v3441 = vpack.c.b16 %v3355, %v3353
        %v3442 = vpack.c.b16 %v3356, %v3354
        %v3443 = vpack.c.b16 %v3359, %v3357
        %v3444 = vpack.c.b16 %v3360, %v3358
        %v3445 = vpack.c.b16 %v3363, %v3361
        %v3446 = vpack.c.b16 %v3364, %v3362
        %v3447 = vpack.c.b16 %v3367, %v3365
        %v3448 = vpack.c.b16 %v3368, %v3366
        %v3449 = vpack.c.b16 %v3371, %v3369
        %v3450 = vpack.c.b16 %v3372, %v3370
        %v3451 = vpack.c.b16 %v3375, %v3373
        %v3452 = vpack.c.b16 %v3376, %v3374
        %v3453 = vpack.c.b16 %v3379, %v3377
        %v3454 = vpack.c.b16 %v3380, %v3378
        %v3455 = vpack.c.b16 %v3383, %v3381
        %v3456 = vpack.c.b16 %v3384, %v3382
        %v3457 = vpack.c.b16 %v3387, %v3385
        %v3458 = vpack.c.b16 %v3388, %v3386
        %v3459 = vpack.c.b16 %v3391, %v3389
        %v3460 = vpack.c.b16 %v3392, %v3390
        %v3461 = vpack.c.b16 %v3395, %v3393
        %v3462 = vpack.c.b16 %v3396, %v3394
        %v3463 = vpack.c.b16 %v3399, %v3397
        %v3464 = vpack.c.b16 %v3400, %v3398
        %v3465 = vpack.c.b16 %v3403, %v3401
        %v3466 = vpack.c.b16 %v3404, %v3402
        %v3467 = vpack.c.b16 %v3407, %v3405
        %v3468 = vpack.c.b16 %v3408, %v3406
        %vm3529 = vcmask 785408
        %v3531 = vsel %vm3529, %v3148, 0
        %v3534 = vsel %vm3529, %v3152, 0
        %v3537 = vsel %vm3529, %v3156, 0
        %v3540 = vsel %vm3529, %v3160, 0
        %v3543 = vsel %vm3529, %v3164, 0
        %v3546 = vsel %vm3529, %v3168, 0
        %3548 = vmatprep.subr.bf16.mxu0 %v3424
        %3549 = vmatpush1.bf16.msra.mxu0 %v3423
        %3550 = vmatprep.subr.bf16.mxu0 %v3422
        %3551 = vmatpush1.bf16.msra.mxu0 %v3421
        %3552 = vmatprep.subr.bf16.mxu0 %v3420
        %3553 = vmatpush1.bf16.msra.mxu0 %v3419
        %3554 = vmatprep.subr.bf16.mxu0 %v3418
        %3555 = vmatpush1.bf16.msra.mxu0 %v3417
        %3556 = vmatprep.subr.bf16.mxu0 %v3416
        %3557 = vmatpush1.bf16.msra.mxu0 %v3415
        %3558 = vmatprep.subr.bf16.mxu0 %v3414
        %3559 = vmatpush1.bf16.msra.mxu0 %v3413
        %3560 = vmatprep.subr.bf16.mxu0 %v3412
        %3561 = vmatpush1.bf16.msra.mxu0 %v3411
        %3562 = vmatprep.subr.bf16.mxu0 %v3410
        %3563 = vmatpush1.bf16.msra.mxu0 %v3409
        %3564 = vmatprep.subr.bf16.mxu0 %v3440
        %3565 = vmatpush2.bf16.msra.mxu0 %v3439
        %3566 = vmatprep.subr.bf16.mxu0 %v3438
        %3567 = vmatpush2.bf16.msra.mxu0 %v3437
        %3568 = vmatprep.subr.bf16.mxu0 %v3436
        %3569 = vmatpush2.bf16.msra.mxu0 %v3435
        %3570 = vmatprep.subr.bf16.mxu0 %v3434
        %3571 = vmatpush2.bf16.msra.mxu0 %v3433
        %3572 = vmatprep.subr.bf16.mxu0 %v3432
        %3573 = vmatpush2.bf16.msra.mxu0 %v3431
        %3574 = vmatprep.subr.bf16.mxu0 %v3430
        %3575 = vmatpush2.bf16.msra.mxu0 %v3429
        %3576 = vmatprep.subr.bf16.mxu0 %v3428
        %3577 = vmatpush2.bf16.msra.mxu0 %v3427
        %3578 = vmatprep.subr.bf16.mxu0 %v3426
        %3579 = vmatpush2.bf16.msra.mxu0 %v3425
        %3580 = vmatprep.mubr.bf16.mxu0 %v3146
        %3581 = vmatmul.mubr.bf16.gmra.mxu0 %v3145
        %v3582 = vpop.f32.mrf.mxu0
        %v3583 = vadd.f32 0.0, %v3582
        %v3584 = vpop.f32.mrf.mxu0
        %v3585 = vadd.f32 0.0, %v3584
        %v3586 = vpop.f32.mrf.mxu0
        %v3587 = vadd.f32 0.0, %v3586
        %v3588 = vpop.f32.mrf.mxu0
        %v3589 = vadd.f32 0.0, %v3588
        %3590 = vmatprep.mubr.bf16.mxu0 %v3150
        %3591 = vmatmul.mubr.bf16.gmra.mxu0 %v3149
        %v3592 = vpop.f32.mrf.mxu0
        %v3593 = vadd.f32 0.0, %v3592
        %v3594 = vpop.f32.mrf.mxu0
        %v3595 = vadd.f32 0.0, %v3594
        %v3596 = vpop.f32.mrf.mxu0
        %v3597 = vadd.f32 0.0, %v3596
        %v3598 = vpop.f32.mrf.mxu0
        %v3599 = vadd.f32 0.0, %v3598
        %3600 = vmatprep.mubr.bf16.mxu0 %v3154
        %3601 = vmatmul.mubr.bf16.gmra.mxu0 %v3153
        %v3602 = vpop.f32.mrf.mxu0
        %v3603 = vadd.f32 0.0, %v3602
        %v3604 = vpop.f32.mrf.mxu0
        %v3605 = vadd.f32 0.0, %v3604
        %v3606 = vpop.f32.mrf.mxu0
        %v3607 = vadd.f32 0.0, %v3606
        %v3608 = vpop.f32.mrf.mxu0
        %v3609 = vadd.f32 0.0, %v3608
        %3610 = vmatprep.mubr.bf16.mxu0 %v3158
        %3611 = vmatmul.mubr.bf16.gmra.mxu0 %v3157
        %v3612 = vpop.f32.mrf.mxu0
        %v3613 = vadd.f32 0.0, %v3612
        %v3614 = vpop.f32.mrf.mxu0
        %v3615 = vadd.f32 0.0, %v3614
        %v3616 = vpop.f32.mrf.mxu0
        %v3617 = vadd.f32 0.0, %v3616
        %v3618 = vpop.f32.mrf.mxu0
        %v3619 = vadd.f32 0.0, %v3618
        %3620 = vmatprep.mubr.bf16.mxu0 %v3162
        %3621 = vmatmul.mubr.bf16.gmra.mxu0 %v3161
        %v3622 = vpop.f32.mrf.mxu0
        %v3623 = vadd.f32 0.0, %v3622
        %v3624 = vpop.f32.mrf.mxu0
        %v3625 = vadd.f32 0.0, %v3624
        %v3626 = vpop.f32.mrf.mxu0
        %v3627 = vadd.f32 0.0, %v3626
        %v3628 = vpop.f32.mrf.mxu0
        %v3629 = vadd.f32 0.0, %v3628
        %3630 = vmatprep.mubr.bf16.mxu0 %v3166
        %3631 = vmatmul.mubr.bf16.gmra.mxu0 %v3165
        %v3632 = vpop.f32.mrf.mxu0
        %v3633 = vadd.f32 0.0, %v3632
        %v3634 = vpop.f32.mrf.mxu0
        %v3635 = vadd.f32 0.0, %v3634
        %v3636 = vpop.f32.mrf.mxu0
        %v3637 = vadd.f32 0.0, %v3636
        %v3638 = vpop.f32.mrf.mxu0
        %v3639 = vadd.f32 0.0, %v3638
        %3640 = vdwg.mxu0
        %3641 = vmatprep.subr.bf16.mxu0 %v3456
        %3642 = vmatpush1.bf16.msra.mxu0 %v3455
        %3643 = vmatprep.subr.bf16.mxu0 %v3454
        %3644 = vmatpush1.bf16.msra.mxu0 %v3453
        %3645 = vmatprep.subr.bf16.mxu0 %v3452
        %3646 = vmatpush1.bf16.msra.mxu0 %v3451
        %3647 = vmatprep.subr.bf16.mxu0 %v3450
        %3648 = vmatpush1.bf16.msra.mxu0 %v3449
        %3649 = vmatprep.subr.bf16.mxu0 %v3448
        %3650 = vmatpush1.bf16.msra.mxu0 %v3447
        %3651 = vmatprep.subr.bf16.mxu0 %v3446
        %3652 = vmatpush1.bf16.msra.mxu0 %v3445
        %3653 = vmatprep.subr.bf16.mxu0 %v3444
        %3654 = vmatpush1.bf16.msra.mxu0 %v3443
        %3655 = vmatprep.subr.bf16.mxu0 %v3442
        %3656 = vmatpush1.bf16.msra.mxu0 %v3441
        %3657 = vmatprep.subr.bf16.mxu0 0
        %3658 = vmatpush2.bf16.msra.mxu0 0
        %3659 = vmatprep.subr.bf16.mxu0 0
        %3660 = vmatpush2.bf16.msra.mxu0 0
        %3661 = vmatprep.subr.bf16.mxu0 %v3468
        %3662 = vmatpush2.bf16.msra.mxu0 %v3467
        %3663 = vmatprep.subr.bf16.mxu0 %v3466
        %3664 = vmatpush2.bf16.msra.mxu0 %v3465
        %3665 = vmatprep.subr.bf16.mxu0 %v3464
        %3666 = vmatpush2.bf16.msra.mxu0 %v3463
        %3667 = vmatprep.subr.bf16.mxu0 %v3462
        %3668 = vmatpush2.bf16.msra.mxu0 %v3461
        %3669 = vmatprep.subr.bf16.mxu0 %v3460
        %3670 = vmatpush2.bf16.msra.mxu0 %v3459
        %3671 = vmatprep.subr.bf16.mxu0 %v3458
        %3672 = vmatpush2.bf16.msra.mxu0 %v3457
        %3673 = vmatprep.mubr.bf16.mxu0 %v3531
        %3674 = vmatmul.mubr.bf16.gmra.mxu0 %v3147
        %v3675 = vpop.f32.mrf.mxu0
        %v3676 = vadd.f32 %v3583, %v3675
        %v3677 = vpop.f32.mrf.mxu0
        %v3678 = vadd.f32 %v3585, %v3677
        %v3679 = vpop.f32.mrf.mxu0
        %v3680 = vadd.f32 %v3587, %v3679
        %v3681 = vpop.f32.mrf.mxu0
        %v3682 = vadd.f32 %v3589, %v3681
        %3683 = vmatprep.mubr.bf16.mxu0 %v3534
        %3684 = vmatmul.mubr.bf16.gmra.mxu0 %v3151
        %v3685 = vpop.f32.mrf.mxu0
        %v3686 = vadd.f32 %v3593, %v3685
        %v3687 = vpop.f32.mrf.mxu0
        %v3688 = vadd.f32 %v3595, %v3687
        %v3689 = vpop.f32.mrf.mxu0
        %v3690 = vadd.f32 %v3597, %v3689
        %v3691 = vpop.f32.mrf.mxu0
        %v3692 = vadd.f32 %v3599, %v3691
        %3693 = vmatprep.mubr.bf16.mxu0 %v3537
        %3694 = vmatmul.mubr.bf16.gmra.mxu0 %v3155
        %v3695 = vpop.f32.mrf.mxu0
        %v3696 = vadd.f32 %v3603, %v3695
        %v3697 = vpop.f32.mrf.mxu0
        %v3698 = vadd.f32 %v3605, %v3697
        %v3699 = vpop.f32.mrf.mxu0
        %v3700 = vadd.f32 %v3607, %v3699
        %v3701 = vpop.f32.mrf.mxu0
        %v3702 = vadd.f32 %v3609, %v3701
        %3703 = vmatprep.mubr.bf16.mxu0 %v3540
        %3704 = vmatmul.mubr.bf16.gmra.mxu0 %v3159
        %v3705 = vpop.f32.mrf.mxu0
        %v3706 = vadd.f32 %v3613, %v3705
        %v3707 = vpop.f32.mrf.mxu0
        %v3708 = vadd.f32 %v3615, %v3707
        %v3709 = vpop.f32.mrf.mxu0
        %v3710 = vadd.f32 %v3617, %v3709
        %v3711 = vpop.f32.mrf.mxu0
        %v3712 = vadd.f32 %v3619, %v3711
        %3713 = vmatprep.mubr.bf16.mxu0 %v3543
        %3714 = vmatmul.mubr.bf16.gmra.mxu0 %v3163
        %v3715 = vpop.f32.mrf.mxu0
        %v3716 = vadd.f32 %v3623, %v3715
        %v3717 = vpop.f32.mrf.mxu0
        %v3718 = vadd.f32 %v3625, %v3717
        %v3719 = vpop.f32.mrf.mxu0
        %v3720 = vadd.f32 %v3627, %v3719
        %v3721 = vpop.f32.mrf.mxu0
        %v3722 = vadd.f32 %v3629, %v3721
        %3723 = vmatprep.mubr.bf16.mxu0 %v3546
        %3724 = vmatmul.mubr.bf16.gmra.mxu0 %v3167
        %v3725 = vpop.f32.mrf.mxu0
        %v3726 = vadd.f32 %v3633, %v3725
        %v3727 = vpop.f32.mrf.mxu0
        %v3728 = vadd.f32 %v3635, %v3727
        %v3729 = vpop.f32.mrf.mxu0
        %v3730 = vadd.f32 %v3637, %v3729
        %v3731 = vpop.f32.mrf.mxu0
        %v3732 = vadd.f32 %v3639, %v3731
        %3733 = vdwg.mxu0
        %v3734 = vld [vmem:[%s4] sm:$0xff]
        %v3735 = vld [vmem:[%s4 + $0x8] sm:$0xff]
        %v3736 = vld [vmem:[%s4 + $0x10] sm:$0xff]
        %v3737 = vld [vmem:[%s4 + $0x18] sm:$0xff]
        %v3738 = vld [vmem:[%s4 + $0x20] sm:$0xff]
        %v3739 = vld [vmem:[%s4 + $0x28] sm:$0xff]
        %v3740 = vld [vmem:[%s4 + $0x30] sm:$0xff]
        %v3741 = vld [vmem:[%s4 + $0x38] sm:$0xff]
        %v3742 = vld [vmem:[%s4 + $0x40] sm:$0xff]
        %v3743 = vld [vmem:[%s4 + $0x48] sm:$0xff]
        %v3744 = vld [vmem:[%s4 + $0x50] sm:$0xff]
        %v3745 = vld [vmem:[%s4 + $0x58] sm:$0xff]
        %v3746 = vld [vmem:[%s4 + $0x60] sm:$0xff]
        %v3747 = vld [vmem:[%s4 + $0x68] sm:$0xff]
        %v3748 = vld [vmem:[%s4 + $0x70] sm:$0xff]
        %v3749 = vld [vmem:[%s4 + $0x78] sm:$0xff]
        %v3750 = vld [vmem:[%s4 + $0x80] sm:$0xff]
        %v3751 = vld [vmem:[%s4 + $0x88] sm:$0xff]
        %v3752 = vld [vmem:[%s4 + $0x90] sm:$0xff]
        %v3753 = vld [vmem:[%s4 + $0x98] sm:$0xff]
        %v3754 = vld [vmem:[%s4 + $0xa0] sm:$0xff]
        %v3755 = vld [vmem:[%s4 + $0xa8] sm:$0xff]
        %v3756 = vld [vmem:[%s4 + $0xb0] sm:$0xff]
        %v3757 = vld [vmem:[%s4 + $0xb8] sm:$0xff]
        %v3758 = vld [vmem:[%s4 + $0xc0] sm:$0xff]
        %v3759 = vld [vmem:[%s4 + $0xc8] sm:$0xff]
        %v3760 = vld [vmem:[%s4 + $0xd0] sm:$0xff]
        %v3761 = vld [vmem:[%s4 + $0xd8] sm:$0xff]
        %v3762 = vld [vmem:[%s4 + $0xe0] sm:$0xff]
        %v3763 = vld [vmem:[%s4 + $0xe8] sm:$0xff]
        %v3764 = vld [vmem:[%s4 + $0xf0] sm:$0xff]
        %v3765 = vld [vmem:[%s4 + $0xf8] sm:$0xff]
        %v3766 = vld [vmem:[%s4 + $0x100] sm:$0xff]
        %v3767 = vld [vmem:[%s4 + $0x108] sm:$0xff]
        %v3768 = vld [vmem:[%s4 + $0x110] sm:$0xff]
        %v3769 = vld [vmem:[%s4 + $0x118] sm:$0xff]
        %v3770 = vld [vmem:[%s4 + $0x120] sm:$0xff]
        %v3771 = vld [vmem:[%s4 + $0x128] sm:$0xff]
        %v3772 = vld [vmem:[%s4 + $0x130] sm:$0xff]
        %v3773 = vld [vmem:[%s4 + $0x138] sm:$0xff]
        %v3774 = vld [vmem:[%s4 + $0x140] sm:$0xff]
        %v3775 = vld [vmem:[%s4 + $0x148] sm:$0xff]
        %v3776 = vld [vmem:[%s4 + $0x150] sm:$0xff]
        %v3777 = vld [vmem:[%s4 + $0x158] sm:$0xff]
        %v3778 = vld [vmem:[%s4 + $0x160] sm:$0xff]
        %v3779 = vld [vmem:[%s4 + $0x168] sm:$0xff]
        %v3780 = vld [vmem:[%s4 + $0x170] sm:$0xff]
        %v3781 = vld [vmem:[%s4 + $0x178] sm:$0xff]
        %v3782 = vld [vmem:[%s4 + $0x180] sm:$0xff]
        %v3783 = vld [vmem:[%s4 + $0x188] sm:$0xff]
        %v3784 = vld [vmem:[%s4 + $0x190] sm:$0xff]
        %v3785 = vld [vmem:[%s4 + $0x198] sm:$0xff]
        %v3786 = vld [vmem:[%s4 + $0x1a0] sm:$0xff]
        %v3787 = vld [vmem:[%s4 + $0x1a8] sm:$0xff]
        %v3788 = vld [vmem:[%s4 + $0x1b0] sm:$0xff]
        %v3789 = vld [vmem:[%s4 + $0x1b8] sm:$0xff]
        %v3790 = vld [vmem:[%s4 + $0x1c0] sm:$0xff]
        %v3791 = vld [vmem:[%s4 + $0x1c8] sm:$0xff]
        %v3792 = vld [vmem:[%s4 + $0x1d0] sm:$0xff]
        %v3793 = vld [vmem:[%s4 + $0x1d8] sm:$0xff]
        %v3854 = vunpack.c.l.b16 %v3734
        %v3855 = vunpack.c.h.b16 %v3734
        %v3856 = vunpack.c.l.b16 %v3735
        %v3857 = vunpack.c.h.b16 %v3735
        %v3858 = vunpack.c.l.b16 %v3736
        %v3859 = vunpack.c.h.b16 %v3736
        %v3860 = vunpack.c.l.b16 %v3737
        %v3861 = vunpack.c.h.b16 %v3737
        %v3862 = vunpack.c.l.b16 %v3738
        %v3863 = vunpack.c.h.b16 %v3738
        %v3864 = vunpack.c.l.b16 %v3739
        %v3865 = vunpack.c.h.b16 %v3739
        %v3866 = vunpack.c.l.b16 %v3740
        %v3867 = vunpack.c.h.b16 %v3740
        %v3868 = vunpack.c.l.b16 %v3741
        %v3869 = vunpack.c.h.b16 %v3741
        %v3870 = vunpack.c.l.b16 %v3742
        %v3871 = vunpack.c.h.b16 %v3742
        %v3872 = vunpack.c.l.b16 %v3743
        %v3873 = vunpack.c.h.b16 %v3743
        %v3874 = vunpack.c.l.b16 %v3744
        %v3875 = vunpack.c.h.b16 %v3744
        %v3876 = vunpack.c.l.b16 %v3745
        %v3877 = vunpack.c.h.b16 %v3745
        %v3878 = vunpack.c.l.b16 %v3746
        %v3879 = vunpack.c.h.b16 %v3746
        %v3880 = vunpack.c.l.b16 %v3747
        %v3881 = vunpack.c.h.b16 %v3747
        %v3882 = vunpack.c.l.b16 %v3748
        %v3883 = vunpack.c.h.b16 %v3748
        %v3884 = vunpack.c.l.b16 %v3749
        %v3885 = vunpack.c.h.b16 %v3749
        %v3886 = vunpack.c.l.b16 %v3750
        %v3887 = vunpack.c.h.b16 %v3750
        %v3888 = vunpack.c.l.b16 %v3751
        %v3889 = vunpack.c.h.b16 %v3751
        %v3890 = vunpack.c.l.b16 %v3752
        %v3891 = vunpack.c.h.b16 %v3752
        %v3892 = vunpack.c.l.b16 %v3753
        %v3893 = vunpack.c.h.b16 %v3753
        %v3894 = vunpack.c.l.b16 %v3754
        %v3895 = vunpack.c.h.b16 %v3754
        %v3896 = vunpack.c.l.b16 %v3755
        %v3897 = vunpack.c.h.b16 %v3755
        %v3898 = vunpack.c.l.b16 %v3756
        %v3899 = vunpack.c.h.b16 %v3756
        %v3900 = vunpack.c.l.b16 %v3757
        %v3901 = vunpack.c.h.b16 %v3757
        %v3902 = vunpack.c.l.b16 %v3758
        %v3903 = vunpack.c.h.b16 %v3758
        %v3904 = vunpack.c.l.b16 %v3759
        %v3905 = vunpack.c.h.b16 %v3759
        %v3906 = vunpack.c.l.b16 %v3760
        %v3907 = vunpack.c.h.b16 %v3760
        %v3908 = vunpack.c.l.b16 %v3761
        %v3909 = vunpack.c.h.b16 %v3761
        %v3910 = vunpack.c.l.b16 %v3762
        %v3911 = vunpack.c.h.b16 %v3762
        %v3912 = vunpack.c.l.b16 %v3763
        %v3913 = vunpack.c.h.b16 %v3763
        %v3914 = vunpack.c.l.b16 %v3764
        %v3915 = vunpack.c.h.b16 %v3764
        %v3916 = vunpack.c.l.b16 %v3765
        %v3917 = vunpack.c.h.b16 %v3765
        %v3918 = vunpack.c.l.b16 %v3766
        %v3919 = vunpack.c.h.b16 %v3766
        %v3920 = vunpack.c.l.b16 %v3767
        %v3921 = vunpack.c.h.b16 %v3767
        %v3922 = vunpack.c.l.b16 %v3768
        %v3923 = vunpack.c.h.b16 %v3768
        %v3924 = vunpack.c.l.b16 %v3769
        %v3925 = vunpack.c.h.b16 %v3769
        %v3926 = vunpack.c.l.b16 %v3770
        %v3927 = vunpack.c.h.b16 %v3770
        %v3928 = vunpack.c.l.b16 %v3771
        %v3929 = vunpack.c.h.b16 %v3771
        %v3930 = vunpack.c.l.b16 %v3772
        %v3931 = vunpack.c.h.b16 %v3772
        %v3932 = vunpack.c.l.b16 %v3773
        %v3933 = vunpack.c.h.b16 %v3773
        %v3934 = vunpack.c.l.b16 %v3774
        %v3935 = vunpack.c.h.b16 %v3774
        %v3936 = vunpack.c.l.b16 %v3775
        %v3937 = vunpack.c.h.b16 %v3775
        %v3938 = vunpack.c.l.b16 %v3776
        %v3939 = vunpack.c.h.b16 %v3776
        %v3940 = vunpack.c.l.b16 %v3777
        %v3941 = vunpack.c.h.b16 %v3777
        %v3942 = vunpack.c.l.b16 %v3778
        %v3943 = vunpack.c.h.b16 %v3778
        %v3944 = vunpack.c.l.b16 %v3779
        %v3945 = vunpack.c.h.b16 %v3779
        %v3946 = vunpack.c.l.b16 %v3780
        %v3947 = vunpack.c.h.b16 %v3780
        %v3948 = vunpack.c.l.b16 %v3781
        %v3949 = vunpack.c.h.b16 %v3781
        %v3950 = vunpack.c.l.b16 %v3782
        %v3951 = vunpack.c.h.b16 %v3782
        %v3952 = vunpack.c.l.b16 %v3783
        %v3953 = vunpack.c.h.b16 %v3783
        %v3954 = vunpack.c.l.b16 %v3784
        %v3955 = vunpack.c.h.b16 %v3784
        %v3956 = vunpack.c.l.b16 %v3785
        %v3957 = vunpack.c.h.b16 %v3785
        %v3958 = vunpack.c.l.b16 %v3786
        %v3959 = vunpack.c.h.b16 %v3786
        %v3960 = vunpack.c.l.b16 %v3787
        %v3961 = vunpack.c.h.b16 %v3787
        %v3962 = vunpack.c.l.b16 %v3788
        %v3963 = vunpack.c.h.b16 %v3788
        %v3964 = vunpack.c.l.b16 %v3789
        %v3965 = vunpack.c.h.b16 %v3789
        %v3966 = vunpack.c.l.b16 %v3790
        %v3967 = vunpack.c.h.b16 %v3790
        %v3968 = vunpack.c.l.b16 %v3791
        %v3969 = vunpack.c.h.b16 %v3791
        %v3970 = vunpack.c.l.b16 %v3792
        %v3971 = vunpack.c.h.b16 %v3792
        %v3972 = vunpack.c.l.b16 %v3793
        %v3973 = vunpack.c.h.b16 %v3793
        %v3974 = vpack.c.b16 %v3856, %v3854
        %v3975 = vpack.c.b16 %v3857, %v3855
        %v3976 = vpack.c.b16 %v3860, %v3858
        %v3977 = vpack.c.b16 %v3861, %v3859
        %v3978 = vpack.c.b16 %v3864, %v3862
        %v3979 = vpack.c.b16 %v3865, %v3863
        %v3980 = vpack.c.b16 %v3868, %v3866
        %v3981 = vpack.c.b16 %v3869, %v3867
        %v3982 = vpack.c.b16 %v3872, %v3870
        %v3983 = vpack.c.b16 %v3873, %v3871
        %v3984 = vpack.c.b16 %v3876, %v3874
        %v3985 = vpack.c.b16 %v3877, %v3875
        %v3986 = vpack.c.b16 %v3880, %v3878
        %v3987 = vpack.c.b16 %v3881, %v3879
        %v3988 = vpack.c.b16 %v3884, %v3882
        %v3989 = vpack.c.b16 %v3885, %v3883
        %v3990 = vpack.c.b16 %v3888, %v3886
        %v3991 = vpack.c.b16 %v3889, %v3887
        %v3992 = vpack.c.b16 %v3892, %v3890
        %v3993 = vpack.c.b16 %v3893, %v3891
        %v3994 = vpack.c.b16 %v3896, %v3894
        %v3995 = vpack.c.b16 %v3897, %v3895
        %v3996 = vpack.c.b16 %v3900, %v3898
        %v3997 = vpack.c.b16 %v3901, %v3899
        %v3998 = vpack.c.b16 %v3904, %v3902
        %v3999 = vpack.c.b16 %v3905, %v3903
        %v4000 = vpack.c.b16 %v3908, %v3906
        %v4001 = vpack.c.b16 %v3909, %v3907
        %v4002 = vpack.c.b16 %v3912, %v3910
        %v4003 = vpack.c.b16 %v3913, %v3911
        %v4004 = vpack.c.b16 %v3916, %v3914
        %v4005 = vpack.c.b16 %v3917, %v3915
        %v4006 = vpack.c.b16 %v3920, %v3918
        %v4007 = vpack.c.b16 %v3921, %v3919
        %v4008 = vpack.c.b16 %v3924, %v3922
        %v4009 = vpack.c.b16 %v3925, %v3923
        %v4010 = vpack.c.b16 %v3928, %v3926
        %v4011 = vpack.c.b16 %v3929, %v3927
        %v4012 = vpack.c.b16 %v3932, %v3930
        %v4013 = vpack.c.b16 %v3933, %v3931
        %v4014 = vpack.c.b16 %v3936, %v3934
        %v4015 = vpack.c.b16 %v3937, %v3935
        %v4016 = vpack.c.b16 %v3940, %v3938
        %v4017 = vpack.c.b16 %v3941, %v3939
        %v4018 = vpack.c.b16 %v3944, %v3942
        %v4019 = vpack.c.b16 %v3945, %v3943
        %v4020 = vpack.c.b16 %v3948, %v3946
        %v4021 = vpack.c.b16 %v3949, %v3947
        %v4022 = vpack.c.b16 %v3952, %v3950
        %v4023 = vpack.c.b16 %v3953, %v3951
        %v4024 = vpack.c.b16 %v3956, %v3954
        %v4025 = vpack.c.b16 %v3957, %v3955
        %v4026 = vpack.c.b16 %v3960, %v3958
        %v4027 = vpack.c.b16 %v3961, %v3959
        %v4028 = vpack.c.b16 %v3964, %v3962
        %v4029 = vpack.c.b16 %v3965, %v3963
        %v4030 = vpack.c.b16 %v3968, %v3966
        %v4031 = vpack.c.b16 %v3969, %v3967
        %v4032 = vpack.c.b16 %v3972, %v3970
        %v4033 = vpack.c.b16 %v3973, %v3971
        %4094 = vmatprep.subr.bf16.mxu0 %v3989
        %4095 = vmatpush1.bf16.msra.mxu0 %v3988
        %4096 = vmatprep.subr.bf16.mxu0 %v3987
        %4097 = vmatpush1.bf16.msra.mxu0 %v3986
        %4098 = vmatprep.subr.bf16.mxu0 %v3985
        %4099 = vmatpush1.bf16.msra.mxu0 %v3984
        %4100 = vmatprep.subr.bf16.mxu0 %v3983
        %4101 = vmatpush1.bf16.msra.mxu0 %v3982
        %4102 = vmatprep.subr.bf16.mxu0 %v3981
        %4103 = vmatpush1.bf16.msra.mxu0 %v3980
        %4104 = vmatprep.subr.bf16.mxu0 %v3979
        %4105 = vmatpush1.bf16.msra.mxu0 %v3978
        %4106 = vmatprep.subr.bf16.mxu0 %v3977
        %4107 = vmatpush1.bf16.msra.mxu0 %v3976
        %4108 = vmatprep.subr.bf16.mxu0 %v3975
        %4109 = vmatpush1.bf16.msra.mxu0 %v3974
        %4110 = vmatprep.subr.bf16.mxu0 %v4005
        %4111 = vmatpush2.bf16.msra.mxu0 %v4004
        %4112 = vmatprep.subr.bf16.mxu0 %v4003
        %4113 = vmatpush2.bf16.msra.mxu0 %v4002
        %4114 = vmatprep.subr.bf16.mxu0 %v4001
        %4115 = vmatpush2.bf16.msra.mxu0 %v4000
        %4116 = vmatprep.subr.bf16.mxu0 %v3999
        %4117 = vmatpush2.bf16.msra.mxu0 %v3998
        %4118 = vmatprep.subr.bf16.mxu0 %v3997
        %4119 = vmatpush2.bf16.msra.mxu0 %v3996
        %4120 = vmatprep.subr.bf16.mxu0 %v3995
        %4121 = vmatpush2.bf16.msra.mxu0 %v3994
        %4122 = vmatprep.subr.bf16.mxu0 %v3993
        %4123 = vmatpush2.bf16.msra.mxu0 %v3992
        %4124 = vmatprep.subr.bf16.mxu0 %v3991
        %4125 = vmatpush2.bf16.msra.mxu0 %v3990
        %4126 = vmatprep.mubr.bf16.mxu0 %v3146
        %4127 = vmatmul.mubr.bf16.gmra.mxu0 %v3145
        %v4128 = vpop.f32.mrf.mxu0
        %v4129 = vadd.f32 0.0, %v4128
        %v4130 = vpop.f32.mrf.mxu0
        %v4131 = vadd.f32 0.0, %v4130
        %v4132 = vpop.f32.mrf.mxu0
        %v4133 = vadd.f32 0.0, %v4132
        %v4134 = vpop.f32.mrf.mxu0
        %v4135 = vadd.f32 0.0, %v4134
        %4136 = vmatprep.mubr.bf16.mxu0 %v3150
        %4137 = vmatmul.mubr.bf16.gmra.mxu0 %v3149
        %v4138 = vpop.f32.mrf.mxu0
        %v4139 = vadd.f32 0.0, %v4138
        %v4140 = vpop.f32.mrf.mxu0
        %v4141 = vadd.f32 0.0, %v4140
        %v4142 = vpop.f32.mrf.mxu0
        %v4143 = vadd.f32 0.0, %v4142
        %v4144 = vpop.f32.mrf.mxu0
        %v4145 = vadd.f32 0.0, %v4144
        %4146 = vmatprep.mubr.bf16.mxu0 %v3154
        %4147 = vmatmul.mubr.bf16.gmra.mxu0 %v3153
        %v4148 = vpop.f32.mrf.mxu0
        %v4149 = vadd.f32 0.0, %v4148
        %v4150 = vpop.f32.mrf.mxu0
        %v4151 = vadd.f32 0.0, %v4150
        %v4152 = vpop.f32.mrf.mxu0
        %v4153 = vadd.f32 0.0, %v4152
        %v4154 = vpop.f32.mrf.mxu0
        %v4155 = vadd.f32 0.0, %v4154
        %4156 = vmatprep.mubr.bf16.mxu0 %v3158
        %4157 = vmatmul.mubr.bf16.gmra.mxu0 %v3157
        %v4158 = vpop.f32.mrf.mxu0
        %v4159 = vadd.f32 0.0, %v4158
        %v4160 = vpop.f32.mrf.mxu0
        %v4161 = vadd.f32 0.0, %v4160
        %v4162 = vpop.f32.mrf.mxu0
        %v4163 = vadd.f32 0.0, %v4162
        %v4164 = vpop.f32.mrf.mxu0
        %v4165 = vadd.f32 0.0, %v4164
        %4166 = vmatprep.mubr.bf16.mxu0 %v3162
        %4167 = vmatmul.mubr.bf16.gmra.mxu0 %v3161
        %v4168 = vpop.f32.mrf.mxu0
        %v4169 = vadd.f32 0.0, %v4168
        %v4170 = vpop.f32.mrf.mxu0
        %v4171 = vadd.f32 0.0, %v4170
        %v4172 = vpop.f32.mrf.mxu0
        %v4173 = vadd.f32 0.0, %v4172
        %v4174 = vpop.f32.mrf.mxu0
        %v4175 = vadd.f32 0.0, %v4174
        %4176 = vmatprep.mubr.bf16.mxu0 %v3166
        %4177 = vmatmul.mubr.bf16.gmra.mxu0 %v3165
        %v4178 = vpop.f32.mrf.mxu0
        %v4179 = vadd.f32 0.0, %v4178
        %v4180 = vpop.f32.mrf.mxu0
        %v4181 = vadd.f32 0.0, %v4180
        %v4182 = vpop.f32.mrf.mxu0
        %v4183 = vadd.f32 0.0, %v4182
        %v4184 = vpop.f32.mrf.mxu0
        %v4185 = vadd.f32 0.0, %v4184
        %4186 = vdwg.mxu0
        %4187 = vmatprep.subr.bf16.mxu0 %v4021
        %4188 = vmatpush1.bf16.msra.mxu0 %v4020
        %4189 = vmatprep.subr.bf16.mxu0 %v4019
        %4190 = vmatpush1.bf16.msra.mxu0 %v4018
        %4191 = vmatprep.subr.bf16.mxu0 %v4017
        %4192 = vmatpush1.bf16.msra.mxu0 %v4016
        %4193 = vmatprep.subr.bf16.mxu0 %v4015
        %4194 = vmatpush1.bf16.msra.mxu0 %v4014
        %4195 = vmatprep.subr.bf16.mxu0 %v4013
        %4196 = vmatpush1.bf16.msra.mxu0 %v4012
        %4197 = vmatprep.subr.bf16.mxu0 %v4011
        %4198 = vmatpush1.bf16.msra.mxu0 %v4010
        %4199 = vmatprep.subr.bf16.mxu0 %v4009
        %4200 = vmatpush1.bf16.msra.mxu0 %v4008
        %4201 = vmatprep.subr.bf16.mxu0 %v4007
        %4202 = vmatpush1.bf16.msra.mxu0 %v4006
        %4203 = vmatprep.subr.bf16.mxu0 0
        %4204 = vmatpush2.bf16.msra.mxu0 0
        %4205 = vmatprep.subr.bf16.mxu0 0
        %4206 = vmatpush2.bf16.msra.mxu0 0
        %4207 = vmatprep.subr.bf16.mxu0 %v4033
        %4208 = vmatpush2.bf16.msra.mxu0 %v4032
        %4209 = vmatprep.subr.bf16.mxu0 %v4031
        %4210 = vmatpush2.bf16.msra.mxu0 %v4030
        %4211 = vmatprep.subr.bf16.mxu0 %v4029
        %4212 = vmatpush2.bf16.msra.mxu0 %v4028
        %4213 = vmatprep.subr.bf16.mxu0 %v4027
        %4214 = vmatpush2.bf16.msra.mxu0 %v4026
        %4215 = vmatprep.subr.bf16.mxu0 %v4025
        %4216 = vmatpush2.bf16.msra.mxu0 %v4024
        %4217 = vmatprep.subr.bf16.mxu0 %v4023
        %4218 = vmatpush2.bf16.msra.mxu0 %v4022
        %4219 = vmatprep.mubr.bf16.mxu0 %v3531
        %4220 = vmatmul.mubr.bf16.gmra.mxu0 %v3147
        %v4221 = vpop.f32.mrf.mxu0
        %v4222 = vadd.f32 %v4129, %v4221
        %v4223 = vpop.f32.mrf.mxu0
        %v4224 = vadd.f32 %v4131, %v4223
        %v4225 = vpop.f32.mrf.mxu0
        %v4226 = vadd.f32 %v4133, %v4225
        %v4227 = vpop.f32.mrf.mxu0
        %v4228 = vadd.f32 %v4135, %v4227
        %4229 = vmatprep.mubr.bf16.mxu0 %v3534
        %4230 = vmatmul.mubr.bf16.gmra.mxu0 %v3151
        %v4231 = vpop.f32.mrf.mxu0
        %v4232 = vadd.f32 %v4139, %v4231
        %v4233 = vpop.f32.mrf.mxu0
        %v4234 = vadd.f32 %v4141, %v4233
        %v4235 = vpop.f32.mrf.mxu0
        %v4236 = vadd.f32 %v4143, %v4235
        %v4237 = vpop.f32.mrf.mxu0
        %v4238 = vadd.f32 %v4145, %v4237
        %4239 = vmatprep.mubr.bf16.mxu0 %v3537
        %4240 = vmatmul.mubr.bf16.gmra.mxu0 %v3155
        %v4241 = vpop.f32.mrf.mxu0
        %v4242 = vadd.f32 %v4149, %v4241
        %v4243 = vpop.f32.mrf.mxu0
        %v4244 = vadd.f32 %v4151, %v4243
        %v4245 = vpop.f32.mrf.mxu0
        %v4246 = vadd.f32 %v4153, %v4245
        %v4247 = vpop.f32.mrf.mxu0
        %v4248 = vadd.f32 %v4155, %v4247
        %4249 = vmatprep.mubr.bf16.mxu0 %v3540
        %4250 = vmatmul.mubr.bf16.gmra.mxu0 %v3159
        %v4251 = vpop.f32.mrf.mxu0
        %v4252 = vadd.f32 %v4159, %v4251
        %v4253 = vpop.f32.mrf.mxu0
        %v4254 = vadd.f32 %v4161, %v4253
        %v4255 = vpop.f32.mrf.mxu0
        %v4256 = vadd.f32 %v4163, %v4255
        %v4257 = vpop.f32.mrf.mxu0
        %v4258 = vadd.f32 %v4165, %v4257
        %4259 = vmatprep.mubr.bf16.mxu0 %v3543
        %4260 = vmatmul.mubr.bf16.gmra.mxu0 %v3163
        %v4261 = vpop.f32.mrf.mxu0
        %v4262 = vadd.f32 %v4169, %v4261
        %v4263 = vpop.f32.mrf.mxu0
        %v4264 = vadd.f32 %v4171, %v4263
        %v4265 = vpop.f32.mrf.mxu0
        %v4266 = vadd.f32 %v4173, %v4265
        %v4267 = vpop.f32.mrf.mxu0
        %v4268 = vadd.f32 %v4175, %v4267
        %4269 = vmatprep.mubr.bf16.mxu0 %v3546
        %4270 = vmatmul.mubr.bf16.gmra.mxu0 %v3167
        %v4271 = vpop.f32.mrf.mxu0
        %v4272 = vadd.f32 %v4179, %v4271
        %v4273 = vpop.f32.mrf.mxu0
        %v4274 = vadd.f32 %v4181, %v4273
        %v4275 = vpop.f32.mrf.mxu0
        %v4276 = vadd.f32 %v4183, %v4275
        %v4277 = vpop.f32.mrf.mxu0
        %v4278 = vadd.f32 %v4185, %v4277
        %4279 = vdwg.mxu0
        %v4280 = vmax.f32 %v3676, %v4222
        %v4281 = vmax.f32 %v3678, %v4224
        %v4282 = vmax.f32 %v3680, %v4226
        %v4283 = vmax.f32 %v3682, %v4228
        %v4284 = vmax.f32 %v3686, %v4232
        %v4285 = vmax.f32 %v3688, %v4234
        %v4286 = vmax.f32 %v3690, %v4236
        %v4287 = vmax.f32 %v3692, %v4238
        %v4288 = vmax.f32 %v3696, %v4242
        %v4289 = vmax.f32 %v3698, %v4244
        %v4290 = vmax.f32 %v3700, %v4246
        %v4291 = vmax.f32 %v3702, %v4248
        %v4292 = vmax.f32 %v3706, %v4252
        %v4293 = vmax.f32 %v3708, %v4254
        %v4294 = vmax.f32 %v3710, %v4256
        %v4295 = vmax.f32 %v3712, %v4258
        %v4296 = vmax.f32 %v3716, %v4262
        %v4297 = vmax.f32 %v3718, %v4264
        %v4298 = vmax.f32 %v3720, %v4266
        %v4299 = vmax.f32 %v3722, %v4268
        %v4300 = vmax.f32 %v3726, %v4272
        %v4301 = vmax.f32 %v3728, %v4274
        %v4302 = vmax.f32 %v3730, %v4276
        %v4303 = vmax.f32 %v3732, %v4278
        %v4304 = vpack.c.bf16 %v4282, %v4280
        %v4305 = vpack.c.bf16 %v4283, %v4281
        %v4306 = vpack.c.bf16 %v4286, %v4284
        %v4307 = vpack.c.bf16 %v4287, %v4285
        %v4308 = vpack.c.bf16 %v4290, %v4288
        %v4309 = vpack.c.bf16 %v4291, %v4289
        %v4310 = vpack.c.bf16 %v4294, %v4292
        %v4311 = vpack.c.bf16 %v4295, %v4293
        %v4312 = vld [vmem:[%s5] sm:$0xff]
        %v4313 = vld [vmem:[%s5 + $0x8] sm:$0xff]
        %v4314 = vld [vmem:[%s5 + $0x10] sm:$0xff]
        %v4315 = vld [vmem:[%s5 + $0x18] sm:$0xff]
        %v4316 = vld [vmem:[%s5 + $0x20] sm:$0xff]
        %v4317 = vld [vmem:[%s5 + $0x28] sm:$0xff]
        %v4318 = vld [vmem:[%s5 + $0x30] sm:$0xff]
        %v4319 = vld [vmem:[%s5 + $0x38] sm:$0xff]
        %v4320 = vld [vmem:[%s5 + $0x40] sm:$0xff]
        %v4321 = vld [vmem:[%s5 + $0x48] sm:$0xff]
        %v4322 = vld [vmem:[%s5 + $0x50] sm:$0xff]
        %v4323 = vld [vmem:[%s5 + $0x58] sm:$0xff]
        %v4324 = vld [vmem:[%s5 + $0x60] sm:$0xff]
        %v4325 = vld [vmem:[%s5 + $0x68] sm:$0xff]
        %v4326 = vld [vmem:[%s5 + $0x70] sm:$0xff]
        %v4327 = vld [vmem:[%s5 + $0x78] sm:$0xff]
        %v4328 = vld [vmem:[%s5 + $0x80] sm:$0xff]
        %v4329 = vld [vmem:[%s5 + $0x88] sm:$0xff]
        %v4330 = vld [vmem:[%s5 + $0x90] sm:$0xff]
        %v4331 = vld [vmem:[%s5 + $0x98] sm:$0xff]
        %v4332 = vld [vmem:[%s5 + $0xa0] sm:$0xff]
        %v4333 = vld [vmem:[%s5 + $0xa8] sm:$0xff]
        %v4334 = vld [vmem:[%s5 + $0xb0] sm:$0xff]
        %v4335 = vld [vmem:[%s5 + $0xb8] sm:$0xff]
        %v4336 = vld [vmem:[%s5 + $0xc0] sm:$0xff]
        %v4337 = vld [vmem:[%s5 + $0xc8] sm:$0xff]
        %v4338 = vld [vmem:[%s5 + $0xd0] sm:$0xff]
        %v4339 = vld [vmem:[%s5 + $0xd8] sm:$0xff]
        %v4340 = vld [vmem:[%s5 + $0xe0] sm:$0xff]
        %v4341 = vld [vmem:[%s5 + $0xe8] sm:$0xff]
        %v4342 = vld [vmem:[%s5 + $0xf0] sm:$0xff]
        %v4343 = vld [vmem:[%s5 + $0xf8] sm:$0xff]
        %v4344 = vld [vmem:[%s5 + $0x100] sm:$0xff]
        %v4345 = vld [vmem:[%s5 + $0x108] sm:$0xff]
        %v4346 = vld [vmem:[%s5 + $0x110] sm:$0xff]
        %v4347 = vld [vmem:[%s5 + $0x118] sm:$0xff]
        %v4348 = vld [vmem:[%s5 + $0x120] sm:$0xff]
        %v4349 = vld [vmem:[%s5 + $0x128] sm:$0xff]
        %v4350 = vld [vmem:[%s5 + $0x130] sm:$0xff]
        %v4351 = vld [vmem:[%s5 + $0x138] sm:$0xff]
        %v4352 = vld [vmem:[%s5 + $0x140] sm:$0xff]
        %v4353 = vld [vmem:[%s5 + $0x148] sm:$0xff]
        %v4354 = vld [vmem:[%s5 + $0x150] sm:$0xff]
        %v4355 = vld [vmem:[%s5 + $0x158] sm:$0xff]
        %v4356 = vld [vmem:[%s5 + $0x160] sm:$0xff]
        %v4357 = vld [vmem:[%s5 + $0x168] sm:$0xff]
        %v4358 = vld [vmem:[%s5 + $0x170] sm:$0xff]
        %v4359 = vld [vmem:[%s5 + $0x178] sm:$0xff]
        %v4360 = vld [vmem:[%s5 + $0x180] sm:$0xff]
        %v4361 = vld [vmem:[%s5 + $0x188] sm:$0xff]
        %v4362 = vld [vmem:[%s5 + $0x190] sm:$0xff]
        %v4363 = vld [vmem:[%s5 + $0x198] sm:$0xff]
        %v4364 = vld [vmem:[%s5 + $0x1a0] sm:$0xff]
        %v4365 = vld [vmem:[%s5 + $0x1a8] sm:$0xff]
        %v4366 = vld [vmem:[%s5 + $0x1b0] sm:$0xff]
        %v4367 = vld [vmem:[%s5 + $0x1b8] sm:$0xff]
        %v4368 = vld [vmem:[%s5 + $0x1c0] sm:$0xff]
        %v4369 = vld [vmem:[%s5 + $0x1c8] sm:$0xff]
        %v4370 = vld [vmem:[%s5 + $0x1d0] sm:$0xff]
        %v4371 = vld [vmem:[%s5 + $0x1d8] sm:$0xff]
        %v4372 = vpack.c.bf16 %v4284, %v4282
        %v4373 = vpack.c.bf16 %v4285, %v4283
        %v4374 = vpack.c.bf16 %v4288, %v4286
        %v4375 = vpack.c.bf16 %v4289, %v4287
        %v4376 = vpack.c.bf16 %v4292, %v4290
        %v4377 = vpack.c.bf16 %v4293, %v4291
        %v4378 = vpack.c.bf16 %v4296, %v4294
        %v4379 = vpack.c.bf16 %v4297, %v4295
        %s4380 = scalar_lea.vmem %s5, 480
        %v4381 = vld [vmem:[%s4380] sm:$0xff]
        %v4382 = vld [vmem:[%s4380 + $0x8] sm:$0xff]
        %v4383 = vld [vmem:[%s4380 + $0x10] sm:$0xff]
        %v4384 = vld [vmem:[%s4380 + $0x18] sm:$0xff]
        %v4385 = vld [vmem:[%s4380 + $0x20] sm:$0xff]
        %v4386 = vld [vmem:[%s4380 + $0x28] sm:$0xff]
        %v4387 = vld [vmem:[%s4380 + $0x30] sm:$0xff]
        %v4388 = vld [vmem:[%s4380 + $0x38] sm:$0xff]
        %v4389 = vld [vmem:[%s4380 + $0x40] sm:$0xff]
        %v4390 = vld [vmem:[%s4380 + $0x48] sm:$0xff]
        %v4391 = vld [vmem:[%s4380 + $0x50] sm:$0xff]
        %v4392 = vld [vmem:[%s4380 + $0x58] sm:$0xff]
        %v4393 = vld [vmem:[%s4380 + $0x60] sm:$0xff]
        %v4394 = vld [vmem:[%s4380 + $0x68] sm:$0xff]
        %v4395 = vld [vmem:[%s4380 + $0x70] sm:$0xff]
        %v4396 = vld [vmem:[%s4380 + $0x78] sm:$0xff]
        %v4397 = vld [vmem:[%s4380 + $0x80] sm:$0xff]
        %v4398 = vld [vmem:[%s4380 + $0x88] sm:$0xff]
        %v4399 = vld [vmem:[%s4380 + $0x90] sm:$0xff]
        %v4400 = vld [vmem:[%s4380 + $0x98] sm:$0xff]
        %v4401 = vld [vmem:[%s4380 + $0xa0] sm:$0xff]
        %v4402 = vld [vmem:[%s4380 + $0xa8] sm:$0xff]
        %v4403 = vld [vmem:[%s4380 + $0xb0] sm:$0xff]
        %v4404 = vld [vmem:[%s4380 + $0xb8] sm:$0xff]
        %v4405 = vld [vmem:[%s4380 + $0xc0] sm:$0xff]
        %v4406 = vld [vmem:[%s4380 + $0xc8] sm:$0xff]
        %v4407 = vld [vmem:[%s4380 + $0xd0] sm:$0xff]
        %v4408 = vld [vmem:[%s4380 + $0xd8] sm:$0xff]
        %v4409 = vld [vmem:[%s4380 + $0xe0] sm:$0xff]
        %v4410 = vld [vmem:[%s4380 + $0xe8] sm:$0xff]
        %v4411 = vld [vmem:[%s4380 + $0xf0] sm:$0xff]
        %v4412 = vld [vmem:[%s4380 + $0xf8] sm:$0xff]
        %v4413 = vld [vmem:[%s4380 + $0x100] sm:$0xff]
        %v4414 = vld [vmem:[%s4380 + $0x108] sm:$0xff]
        %v4415 = vld [vmem:[%s4380 + $0x110] sm:$0xff]
        %v4416 = vld [vmem:[%s4380 + $0x118] sm:$0xff]
        %v4417 = vld [vmem:[%s4380 + $0x120] sm:$0xff]
        %v4418 = vld [vmem:[%s4380 + $0x128] sm:$0xff]
        %v4419 = vld [vmem:[%s4380 + $0x130] sm:$0xff]
        %v4420 = vld [vmem:[%s4380 + $0x138] sm:$0xff]
        %v4421 = vld [vmem:[%s4380 + $0x140] sm:$0xff]
        %v4422 = vld [vmem:[%s4380 + $0x148] sm:$0xff]
        %v4423 = vld [vmem:[%s4380 + $0x150] sm:$0xff]
        %v4424 = vld [vmem:[%s4380 + $0x158] sm:$0xff]
        %v4425 = vld [vmem:[%s4380 + $0x160] sm:$0xff]
        %v4426 = vld [vmem:[%s4380 + $0x168] sm:$0xff]
        %v4427 = vld [vmem:[%s4380 + $0x170] sm:$0xff]
        %v4428 = vld [vmem:[%s4380 + $0x178] sm:$0xff]
        %v4429 = vld [vmem:[%s4380 + $0x180] sm:$0xff]
        %v4430 = vld [vmem:[%s4380 + $0x188] sm:$0xff]
        %v4431 = vld [vmem:[%s4380 + $0x190] sm:$0xff]
        %v4432 = vld [vmem:[%s4380 + $0x198] sm:$0xff]
        %v4433 = vld [vmem:[%s4380 + $0x1a0] sm:$0xff]
        %v4434 = vld [vmem:[%s4380 + $0x1a8] sm:$0xff]
        %v4435 = vld [vmem:[%s4380 + $0x1b0] sm:$0xff]
        %v4436 = vld [vmem:[%s4380 + $0x1b8] sm:$0xff]
        %v4437 = vld [vmem:[%s4380 + $0x1c0] sm:$0xff]
        %v4438 = vld [vmem:[%s4380 + $0x1c8] sm:$0xff]
        %v4439 = vld [vmem:[%s4380 + $0x1d0] sm:$0xff]
        %v4440 = vld [vmem:[%s4380 + $0x1d8] sm:$0xff]
        %v4501 = vunpack.c.l.b16 %v4381
        %v4502 = vunpack.c.h.b16 %v4381
        %v4503 = vunpack.c.l.b16 %v4382
        %v4504 = vunpack.c.h.b16 %v4382
        %v4505 = vunpack.c.l.b16 %v4383
        %v4506 = vunpack.c.h.b16 %v4383
        %v4507 = vunpack.c.l.b16 %v4384
        %v4508 = vunpack.c.h.b16 %v4384
        %v4509 = vunpack.c.l.b16 %v4385
        %v4510 = vunpack.c.h.b16 %v4385
        %v4511 = vunpack.c.l.b16 %v4386
        %v4512 = vunpack.c.h.b16 %v4386
        %v4513 = vunpack.c.l.b16 %v4387
        %v4514 = vunpack.c.h.b16 %v4387
        %v4515 = vunpack.c.l.b16 %v4388
        %v4516 = vunpack.c.h.b16 %v4388
        %v4517 = vunpack.c.l.b16 %v4389
        %v4518 = vunpack.c.h.b16 %v4389
        %v4519 = vunpack.c.l.b16 %v4390
        %v4520 = vunpack.c.h.b16 %v4390
        %v4521 = vunpack.c.l.b16 %v4391
        %v4522 = vunpack.c.h.b16 %v4391
        %v4523 = vunpack.c.l.b16 %v4392
        %v4524 = vunpack.c.h.b16 %v4392
        %v4525 = vunpack.c.l.b16 %v4393
        %v4526 = vunpack.c.h.b16 %v4393
        %v4527 = vunpack.c.l.b16 %v4394
        %v4528 = vunpack.c.h.b16 %v4394
        %v4529 = vunpack.c.l.b16 %v4395
        %v4530 = vunpack.c.h.b16 %v4395
        %v4531 = vunpack.c.l.b16 %v4396
        %v4532 = vunpack.c.h.b16 %v4396
        %v4533 = vunpack.c.l.b16 %v4397
        %v4534 = vunpack.c.h.b16 %v4397
        %v4535 = vunpack.c.l.b16 %v4398
        %v4536 = vunpack.c.h.b16 %v4398
        %v4537 = vunpack.c.l.b16 %v4399
        %v4538 = vunpack.c.h.b16 %v4399
        %v4539 = vunpack.c.l.b16 %v4400
        %v4540 = vunpack.c.h.b16 %v4400
        %v4541 = vunpack.c.l.b16 %v4401
        %v4542 = vunpack.c.h.b16 %v4401
        %v4543 = vunpack.c.l.b16 %v4402
        %v4544 = vunpack.c.h.b16 %v4402
        %v4545 = vunpack.c.l.b16 %v4403
        %v4546 = vunpack.c.h.b16 %v4403
        %v4547 = vunpack.c.l.b16 %v4404
        %v4548 = vunpack.c.h.b16 %v4404
        %v4549 = vunpack.c.l.b16 %v4405
        %v4550 = vunpack.c.h.b16 %v4405
        %v4551 = vunpack.c.l.b16 %v4406
        %v4552 = vunpack.c.h.b16 %v4406
        %v4553 = vunpack.c.l.b16 %v4407
        %v4554 = vunpack.c.h.b16 %v4407
        %v4555 = vunpack.c.l.b16 %v4408
        %v4556 = vunpack.c.h.b16 %v4408
        %v4557 = vunpack.c.l.b16 %v4409
        %v4558 = vunpack.c.h.b16 %v4409
        %v4559 = vunpack.c.l.b16 %v4410
        %v4560 = vunpack.c.h.b16 %v4410
        %v4561 = vunpack.c.l.b16 %v4411
        %v4562 = vunpack.c.h.b16 %v4411
        %v4563 = vunpack.c.l.b16 %v4412
        %v4564 = vunpack.c.h.b16 %v4412
        %v4565 = vunpack.c.l.b16 %v4413
        %v4566 = vunpack.c.h.b16 %v4413
        %v4567 = vunpack.c.l.b16 %v4414
        %v4568 = vunpack.c.h.b16 %v4414
        %v4569 = vunpack.c.l.b16 %v4415
        %v4570 = vunpack.c.h.b16 %v4415
        %v4571 = vunpack.c.l.b16 %v4416
        %v4572 = vunpack.c.h.b16 %v4416
        %v4573 = vunpack.c.l.b16 %v4417
        %v4574 = vunpack.c.h.b16 %v4417
        %v4575 = vunpack.c.l.b16 %v4418
        %v4576 = vunpack.c.h.b16 %v4418
        %v4577 = vunpack.c.l.b16 %v4419
        %v4578 = vunpack.c.h.b16 %v4419
        %v4579 = vunpack.c.l.b16 %v4420
        %v4580 = vunpack.c.h.b16 %v4420
        %v4581 = vunpack.c.l.b16 %v4421
        %v4582 = vunpack.c.h.b16 %v4421
        %v4583 = vunpack.c.l.b16 %v4422
        %v4584 = vunpack.c.h.b16 %v4422
        %v4585 = vunpack.c.l.b16 %v4423
        %v4586 = vunpack.c.h.b16 %v4423
        %v4587 = vunpack.c.l.b16 %v4424
        %v4588 = vunpack.c.h.b16 %v4424
        %v4589 = vunpack.c.l.b16 %v4425
        %v4590 = vunpack.c.h.b16 %v4425
        %v4591 = vunpack.c.l.b16 %v4426
        %v4592 = vunpack.c.h.b16 %v4426
        %v4593 = vunpack.c.l.b16 %v4427
        %v4594 = vunpack.c.h.b16 %v4427
        %v4595 = vunpack.c.l.b16 %v4428
        %v4596 = vunpack.c.h.b16 %v4428
        %v4597 = vunpack.c.l.b16 %v4429
        %v4598 = vunpack.c.h.b16 %v4429
        %v4599 = vunpack.c.l.b16 %v4430
        %v4600 = vunpack.c.h.b16 %v4430
        %v4601 = vunpack.c.l.b16 %v4431
        %v4602 = vunpack.c.h.b16 %v4431
        %v4603 = vunpack.c.l.b16 %v4432
        %v4604 = vunpack.c.h.b16 %v4432
        %v4605 = vunpack.c.l.b16 %v4433
        %v4606 = vunpack.c.h.b16 %v4433
        %v4607 = vunpack.c.l.b16 %v4434
        %v4608 = vunpack.c.h.b16 %v4434
        %v4609 = vunpack.c.l.b16 %v4435
        %v4610 = vunpack.c.h.b16 %v4435
        %v4611 = vunpack.c.l.b16 %v4436
        %v4612 = vunpack.c.h.b16 %v4436
        %v4613 = vunpack.c.l.b16 %v4437
        %v4614 = vunpack.c.h.b16 %v4437
        %v4615 = vunpack.c.l.b16 %v4438
        %v4616 = vunpack.c.h.b16 %v4438
        %v4617 = vunpack.c.l.b16 %v4439
        %v4618 = vunpack.c.h.b16 %v4439
        %v4619 = vunpack.c.l.b16 %v4440
        %v4620 = vunpack.c.h.b16 %v4440
        %v4621 = vpack.c.b16 %v4505, %v4501
        %v4622 = vpack.c.b16 %v4506, %v4502
        %v4623 = vpack.c.b16 %v4507, %v4503
        %v4624 = vpack.c.b16 %v4508, %v4504
        %v4625 = vpack.c.b16 %v4513, %v4509
        %v4626 = vpack.c.b16 %v4514, %v4510
        %v4627 = vpack.c.b16 %v4515, %v4511
        %v4628 = vpack.c.b16 %v4516, %v4512
        %v4629 = vpack.c.b16 %v4521, %v4517
        %v4630 = vpack.c.b16 %v4522, %v4518
        %v4631 = vpack.c.b16 %v4523, %v4519
        %v4632 = vpack.c.b16 %v4524, %v4520
        %v4633 = vpack.c.b16 %v4529, %v4525
        %v4634 = vpack.c.b16 %v4530, %v4526
        %v4635 = vpack.c.b16 %v4531, %v4527
        %v4636 = vpack.c.b16 %v4532, %v4528
        %v4637 = vpack.c.b16 %v4537, %v4533
        %v4638 = vpack.c.b16 %v4538, %v4534
        %v4639 = vpack.c.b16 %v4539, %v4535
        %v4640 = vpack.c.b16 %v4540, %v4536
        %v4641 = vpack.c.b16 %v4545, %v4541
        %v4642 = vpack.c.b16 %v4546, %v4542
        %v4643 = vpack.c.b16 %v4547, %v4543
        %v4644 = vpack.c.b16 %v4548, %v4544
        %v4645 = vpack.c.b16 %v4553, %v4549
        %v4646 = vpack.c.b16 %v4554, %v4550
        %v4647 = vpack.c.b16 %v4555, %v4551
        %v4648 = vpack.c.b16 %v4556, %v4552
        %v4649 = vpack.c.b16 %v4561, %v4557
        %v4650 = vpack.c.b16 %v4562, %v4558
        %v4651 = vpack.c.b16 %v4563, %v4559
        %v4652 = vpack.c.b16 %v4564, %v4560
        %v4653 = vpack.c.b16 %v4569, %v4565
        %v4654 = vpack.c.b16 %v4570, %v4566
        %v4655 = vpack.c.b16 %v4571, %v4567
        %v4656 = vpack.c.b16 %v4572, %v4568
        %v4657 = vpack.c.b16 %v4577, %v4573
        %v4658 = vpack.c.b16 %v4578, %v4574
        %v4659 = vpack.c.b16 %v4579, %v4575
        %v4660 = vpack.c.b16 %v4580, %v4576
        %v4661 = vpack.c.b16 %v4585, %v4581
        %v4662 = vpack.c.b16 %v4586, %v4582
        %v4663 = vpack.c.b16 %v4587, %v4583
        %v4664 = vpack.c.b16 %v4588, %v4584
        %v4665 = vpack.c.b16 %v4593, %v4589
        %v4666 = vpack.c.b16 %v4594, %v4590
        %v4667 = vpack.c.b16 %v4595, %v4591
        %v4668 = vpack.c.b16 %v4596, %v4592
        %v4669 = vpack.c.b16 %v4601, %v4597
        %v4670 = vpack.c.b16 %v4602, %v4598
        %v4671 = vpack.c.b16 %v4603, %v4599
        %v4672 = vpack.c.b16 %v4604, %v4600
        %v4673 = vpack.c.b16 %v4609, %v4605
        %v4674 = vpack.c.b16 %v4610, %v4606
        %v4675 = vpack.c.b16 %v4611, %v4607
        %v4676 = vpack.c.b16 %v4612, %v4608
        %v4677 = vpack.c.b16 %v4617, %v4613
        %v4678 = vpack.c.b16 %v4618, %v4614
        %v4679 = vpack.c.b16 %v4619, %v4615
        %v4680 = vpack.c.b16 %v4620, %v4616
        %vm4741 = vcmask 916480
        %v4743 = vsel %vm4741, %v4373, 0
        %v4746 = vsel %vm4741, %v4375, 0
        %v4749 = vsel %vm4741, %v4377, 0
        %v4752 = vsel %vm4741, %v4379, 0
        %4754 = vmatprep.subr.bf16.mxu0 %v4650
        %4755 = vmatpush1.bf16.msra.mxu0 %v4649
        %4756 = vmatprep.subr.bf16.mxu0 %v4646
        %4757 = vmatpush1.bf16.msra.mxu0 %v4645
        %4758 = vmatprep.subr.bf16.mxu0 %v4642
        %4759 = vmatpush1.bf16.msra.mxu0 %v4641
        %4760 = vmatprep.subr.bf16.mxu0 %v4638
        %4761 = vmatpush1.bf16.msra.mxu0 %v4637
        %4762 = vmatprep.subr.bf16.mxu0 %v4634
        %4763 = vmatpush1.bf16.msra.mxu0 %v4633
        %4764 = vmatprep.subr.bf16.mxu0 %v4630
        %4765 = vmatpush1.bf16.msra.mxu0 %v4629
        %4766 = vmatprep.subr.bf16.mxu0 %v4626
        %4767 = vmatpush1.bf16.msra.mxu0 %v4625
        %4768 = vmatprep.subr.bf16.mxu0 %v4622
        %4769 = vmatpush1.bf16.msra.mxu0 %v4621
        %4770 = vmatprep.subr.bf16.mxu0 0
        %4771 = vmatpush2.bf16.msra.mxu0 0
        %4772 = vmatprep.subr.bf16.mxu0 %v4678
        %4773 = vmatpush2.bf16.msra.mxu0 %v4677
        %4774 = vmatprep.subr.bf16.mxu0 %v4674
        %4775 = vmatpush2.bf16.msra.mxu0 %v4673
        %4776 = vmatprep.subr.bf16.mxu0 %v4670
        %4777 = vmatpush2.bf16.msra.mxu0 %v4669
        %4778 = vmatprep.subr.bf16.mxu0 %v4666
        %4779 = vmatpush2.bf16.msra.mxu0 %v4665
        %4780 = vmatprep.subr.bf16.mxu0 %v4662
        %4781 = vmatpush2.bf16.msra.mxu0 %v4661
        %4782 = vmatprep.subr.bf16.mxu0 %v4658
        %4783 = vmatpush2.bf16.msra.mxu0 %v4657
        %4784 = vmatprep.subr.bf16.mxu0 %v4654
        %4785 = vmatpush2.bf16.msra.mxu0 %v4653
        %4786 = vmatprep.mubr.bf16.mxu0 %v4743
        %4787 = vmatmul.mubr.bf16.gmra.mxu0 %v4372
        %v4788 = vpop.f32.mrf.mxu0
        %v4789 = vadd.f32 0.0, %v4788
        %v4790 = vpop.f32.mrf.mxu0
        %v4791 = vadd.f32 0.0, %v4790
        %v4792 = vpop.f32.mrf.mxu0
        %v4793 = vadd.f32 0.0, %v4792
        %v4794 = vpop.f32.mrf.mxu0
        %v4795 = vadd.f32 0.0, %v4794
        %4796 = vmatprep.mubr.bf16.mxu0 %v4746
        %4797 = vmatmul.mubr.bf16.gmra.mxu0 %v4374
        %v4798 = vpop.f32.mrf.mxu0
        %v4799 = vadd.f32 0.0, %v4798
        %v4800 = vpop.f32.mrf.mxu0
        %v4801 = vadd.f32 0.0, %v4800
        %v4802 = vpop.f32.mrf.mxu0
        %v4803 = vadd.f32 0.0, %v4802
        %v4804 = vpop.f32.mrf.mxu0
        %v4805 = vadd.f32 0.0, %v4804
        %4806 = vmatprep.mubr.bf16.mxu0 %v4749
        %4807 = vmatmul.mubr.bf16.gmra.mxu0 %v4376
        %v4808 = vpop.f32.mrf.mxu0
        %v4809 = vadd.f32 0.0, %v4808
        %v4810 = vpop.f32.mrf.mxu0
        %v4811 = vadd.f32 0.0, %v4810
        %v4812 = vpop.f32.mrf.mxu0
        %v4813 = vadd.f32 0.0, %v4812
        %v4814 = vpop.f32.mrf.mxu0
        %v4815 = vadd.f32 0.0, %v4814
        %4816 = vmatprep.mubr.bf16.mxu0 %v4752
        %4817 = vmatmul.mubr.bf16.gmra.mxu0 %v4378
        %v4818 = vpop.f32.mrf.mxu0
        %v4819 = vadd.f32 0.0, %v4818
        %v4820 = vpop.f32.mrf.mxu0
        %v4821 = vadd.f32 0.0, %v4820
        %v4822 = vpop.f32.mrf.mxu0
        %v4823 = vadd.f32 0.0, %v4822
        %v4824 = vpop.f32.mrf.mxu0
        %v4825 = vadd.f32 0.0, %v4824
        %4826 = vdwg.mxu0
        %4827 = vmatprep.subr.bf16.mxu0 %v4652
        %4828 = vmatpush1.bf16.msra.mxu0 %v4651
        %4829 = vmatprep.subr.bf16.mxu0 %v4648
        %4830 = vmatpush1.bf16.msra.mxu0 %v4647
        %4831 = vmatprep.subr.bf16.mxu0 %v4644
        %4832 = vmatpush1.bf16.msra.mxu0 %v4643
        %4833 = vmatprep.subr.bf16.mxu0 %v4640
        %4834 = vmatpush1.bf16.msra.mxu0 %v4639
        %4835 = vmatprep.subr.bf16.mxu0 %v4636
        %4836 = vmatpush1.bf16.msra.mxu0 %v4635
        %4837 = vmatprep.subr.bf16.mxu0 %v4632
        %4838 = vmatpush1.bf16.msra.mxu0 %v4631
        %4839 = vmatprep.subr.bf16.mxu0 %v4628
        %4840 = vmatpush1.bf16.msra.mxu0 %v4627
        %4841 = vmatprep.subr.bf16.mxu0 %v4624
        %4842 = vmatpush1.bf16.msra.mxu0 %v4623
        %4843 = vmatprep.subr.bf16.mxu0 0
        %4844 = vmatpush2.bf16.msra.mxu0 0
        %4845 = vmatprep.subr.bf16.mxu0 %v4680
        %4846 = vmatpush2.bf16.msra.mxu0 %v4679
        %4847 = vmatprep.subr.bf16.mxu0 %v4676
        %4848 = vmatpush2.bf16.msra.mxu0 %v4675
        %4849 = vmatprep.subr.bf16.mxu0 %v4672
        %4850 = vmatpush2.bf16.msra.mxu0 %v4671
        %4851 = vmatprep.subr.bf16.mxu0 %v4668
        %4852 = vmatpush2.bf16.msra.mxu0 %v4667
        %4853 = vmatprep.subr.bf16.mxu0 %v4664
        %4854 = vmatpush2.bf16.msra.mxu0 %v4663
        %4855 = vmatprep.subr.bf16.mxu0 %v4660
        %4856 = vmatpush2.bf16.msra.mxu0 %v4659
        %4857 = vmatprep.subr.bf16.mxu0 %v4656
        %4858 = vmatpush2.bf16.msra.mxu0 %v4655
        %4859 = vmatprep.mubr.bf16.mxu0 %v4743
        %4860 = vmatmul.mubr.bf16.gmra.mxu0 %v4372
        %v4861 = vpop.f32.mrf.mxu0
        %v4862 = vadd.f32 0.0, %v4861
        %v4863 = vpop.f32.mrf.mxu0
        %v4864 = vadd.f32 0.0, %v4863
        %v4865 = vpop.f32.mrf.mxu0
        %v4866 = vadd.f32 0.0, %v4865
        %v4867 = vpop.f32.mrf.mxu0
        %v4868 = vadd.f32 0.0, %v4867
        %4869 = vmatprep.mubr.bf16.mxu0 %v4746
        %4870 = vmatmul.mubr.bf16.gmra.mxu0 %v4374
        %v4871 = vpop.f32.mrf.mxu0
        %v4872 = vadd.f32 0.0, %v4871
        %v4873 = vpop.f32.mrf.mxu0
        %v4874 = vadd.f32 0.0, %v4873
        %v4875 = vpop.f32.mrf.mxu0
        %v4876 = vadd.f32 0.0, %v4875
        %v4877 = vpop.f32.mrf.mxu0
        %v4878 = vadd.f32 0.0, %v4877
        %4879 = vmatprep.mubr.bf16.mxu0 %v4749
        %4880 = vmatmul.mubr.bf16.gmra.mxu0 %v4376
        %v4881 = vpop.f32.mrf.mxu0
        %v4882 = vadd.f32 0.0, %v4881
        %v4883 = vpop.f32.mrf.mxu0
        %v4884 = vadd.f32 0.0, %v4883
        %v4885 = vpop.f32.mrf.mxu0
        %v4886 = vadd.f32 0.0, %v4885
        %v4887 = vpop.f32.mrf.mxu0
        %v4888 = vadd.f32 0.0, %v4887
        %4889 = vmatprep.mubr.bf16.mxu0 %v4752
        %4890 = vmatmul.mubr.bf16.gmra.mxu0 %v4378
        %v4891 = vpop.f32.mrf.mxu0
        %v4892 = vadd.f32 0.0, %v4891
        %v4893 = vpop.f32.mrf.mxu0
        %v4894 = vadd.f32 0.0, %v4893
        %v4895 = vpop.f32.mrf.mxu0
        %v4896 = vadd.f32 0.0, %v4895
        %v4897 = vpop.f32.mrf.mxu0
        %v4898 = vadd.f32 0.0, %v4897
        %4899 = vdwg.mxu0
        %v4960 = vunpack.c.l.b16 %v4312
        %v4961 = vunpack.c.h.b16 %v4312
        %v4962 = vunpack.c.l.b16 %v4313
        %v4963 = vunpack.c.h.b16 %v4313
        %v4964 = vunpack.c.l.b16 %v4314
        %v4965 = vunpack.c.h.b16 %v4314
        %v4966 = vunpack.c.l.b16 %v4315
        %v4967 = vunpack.c.h.b16 %v4315
        %v4968 = vunpack.c.l.b16 %v4316
        %v4969 = vunpack.c.h.b16 %v4316
        %v4970 = vunpack.c.l.b16 %v4317
        %v4971 = vunpack.c.h.b16 %v4317
        %v4972 = vunpack.c.l.b16 %v4318
        %v4973 = vunpack.c.h.b16 %v4318
        %v4974 = vunpack.c.l.b16 %v4319
        %v4975 = vunpack.c.h.b16 %v4319
        %v4976 = vunpack.c.l.b16 %v4320
        %v4977 = vunpack.c.h.b16 %v4320
        %v4978 = vunpack.c.l.b16 %v4321
        %v4979 = vunpack.c.h.b16 %v4321
        %v4980 = vunpack.c.l.b16 %v4322
        %v4981 = vunpack.c.h.b16 %v4322
        %v4982 = vunpack.c.l.b16 %v4323
        %v4983 = vunpack.c.h.b16 %v4323
        %v4984 = vunpack.c.l.b16 %v4324
        %v4985 = vunpack.c.h.b16 %v4324
        %v4986 = vunpack.c.l.b16 %v4325
        %v4987 = vunpack.c.h.b16 %v4325
        %v4988 = vunpack.c.l.b16 %v4326
        %v4989 = vunpack.c.h.b16 %v4326
        %v4990 = vunpack.c.l.b16 %v4327
        %v4991 = vunpack.c.h.b16 %v4327
        %v4992 = vunpack.c.l.b16 %v4328
        %v4993 = vunpack.c.h.b16 %v4328
        %v4994 = vunpack.c.l.b16 %v4329
        %v4995 = vunpack.c.h.b16 %v4329
        %v4996 = vunpack.c.l.b16 %v4330
        %v4997 = vunpack.c.h.b16 %v4330
        %v4998 = vunpack.c.l.b16 %v4331
        %v4999 = vunpack.c.h.b16 %v4331
        %v5000 = vunpack.c.l.b16 %v4332
        %v5001 = vunpack.c.h.b16 %v4332
        %v5002 = vunpack.c.l.b16 %v4333
        %v5003 = vunpack.c.h.b16 %v4333
        %v5004 = vunpack.c.l.b16 %v4334
        %v5005 = vunpack.c.h.b16 %v4334
        %v5006 = vunpack.c.l.b16 %v4335
        %v5007 = vunpack.c.h.b16 %v4335
        %v5008 = vunpack.c.l.b16 %v4336
        %v5009 = vunpack.c.h.b16 %v4336
        %v5010 = vunpack.c.l.b16 %v4337
        %v5011 = vunpack.c.h.b16 %v4337
        %v5012 = vunpack.c.l.b16 %v4338
        %v5013 = vunpack.c.h.b16 %v4338
        %v5014 = vunpack.c.l.b16 %v4339
        %v5015 = vunpack.c.h.b16 %v4339
        %v5016 = vunpack.c.l.b16 %v4340
        %v5017 = vunpack.c.h.b16 %v4340
        %v5018 = vunpack.c.l.b16 %v4341
        %v5019 = vunpack.c.h.b16 %v4341
        %v5020 = vunpack.c.l.b16 %v4342
        %v5021 = vunpack.c.h.b16 %v4342
        %v5022 = vunpack.c.l.b16 %v4343
        %v5023 = vunpack.c.h.b16 %v4343
        %v5024 = vunpack.c.l.b16 %v4344
        %v5025 = vunpack.c.h.b16 %v4344
        %v5026 = vunpack.c.l.b16 %v4345
        %v5027 = vunpack.c.h.b16 %v4345
        %v5028 = vunpack.c.l.b16 %v4346
        %v5029 = vunpack.c.h.b16 %v4346
        %v5030 = vunpack.c.l.b16 %v4347
        %v5031 = vunpack.c.h.b16 %v4347
        %v5032 = vunpack.c.l.b16 %v4348
        %v5033 = vunpack.c.h.b16 %v4348
        %v5034 = vunpack.c.l.b16 %v4349
        %v5035 = vunpack.c.h.b16 %v4349
        %v5036 = vunpack.c.l.b16 %v4350
        %v5037 = vunpack.c.h.b16 %v4350
        %v5038 = vunpack.c.l.b16 %v4351
        %v5039 = vunpack.c.h.b16 %v4351
        %v5040 = vunpack.c.l.b16 %v4352
        %v5041 = vunpack.c.h.b16 %v4352
        %v5042 = vunpack.c.l.b16 %v4353
        %v5043 = vunpack.c.h.b16 %v4353
        %v5044 = vunpack.c.l.b16 %v4354
        %v5045 = vunpack.c.h.b16 %v4354
        %v5046 = vunpack.c.l.b16 %v4355
        %v5047 = vunpack.c.h.b16 %v4355
        %v5048 = vunpack.c.l.b16 %v4356
        %v5049 = vunpack.c.h.b16 %v4356
        %v5050 = vunpack.c.l.b16 %v4357
        %v5051 = vunpack.c.h.b16 %v4357
        %v5052 = vunpack.c.l.b16 %v4358
        %v5053 = vunpack.c.h.b16 %v4358
        %v5054 = vunpack.c.l.b16 %v4359
        %v5055 = vunpack.c.h.b16 %v4359
        %v5056 = vunpack.c.l.b16 %v4360
        %v5057 = vunpack.c.h.b16 %v4360
        %v5058 = vunpack.c.l.b16 %v4361
        %v5059 = vunpack.c.h.b16 %v4361
        %v5060 = vunpack.c.l.b16 %v4362
        %v5061 = vunpack.c.h.b16 %v4362
        %v5062 = vunpack.c.l.b16 %v4363
        %v5063 = vunpack.c.h.b16 %v4363
        %v5064 = vunpack.c.l.b16 %v4364
        %v5065 = vunpack.c.h.b16 %v4364
        %v5066 = vunpack.c.l.b16 %v4365
        %v5067 = vunpack.c.h.b16 %v4365
        %v5068 = vunpack.c.l.b16 %v4366
        %v5069 = vunpack.c.h.b16 %v4366
        %v5070 = vunpack.c.l.b16 %v4367
        %v5071 = vunpack.c.h.b16 %v4367
        %v5072 = vunpack.c.l.b16 %v4368
        %v5073 = vunpack.c.h.b16 %v4368
        %v5074 = vunpack.c.l.b16 %v4369
        %v5075 = vunpack.c.h.b16 %v4369
        %v5076 = vunpack.c.l.b16 %v4370
        %v5077 = vunpack.c.h.b16 %v4370
        %v5078 = vunpack.c.l.b16 %v4371
        %v5079 = vunpack.c.h.b16 %v4371
        %v5080 = vpack.c.b16 %v4964, %v4960
        %v5081 = vpack.c.b16 %v4965, %v4961
        %v5082 = vpack.c.b16 %v4966, %v4962
        %v5083 = vpack.c.b16 %v4967, %v4963
        %v5084 = vpack.c.b16 %v4972, %v4968
        %v5085 = vpack.c.b16 %v4973, %v4969
        %v5086 = vpack.c.b16 %v4974, %v4970
        %v5087 = vpack.c.b16 %v4975, %v4971
        %v5088 = vpack.c.b16 %v4980, %v4976
        %v5089 = vpack.c.b16 %v4981, %v4977
        %v5090 = vpack.c.b16 %v4982, %v4978
        %v5091 = vpack.c.b16 %v4983, %v4979
        %v5092 = vpack.c.b16 %v4988, %v4984
        %v5093 = vpack.c.b16 %v4989, %v4985
        %v5094 = vpack.c.b16 %v4990, %v4986
        %v5095 = vpack.c.b16 %v4991, %v4987
        %v5096 = vpack.c.b16 %v4996, %v4992
        %v5097 = vpack.c.b16 %v4997, %v4993
        %v5098 = vpack.c.b16 %v4998, %v4994
        %v5099 = vpack.c.b16 %v4999, %v4995
        %v5100 = vpack.c.b16 %v5004, %v5000
        %v5101 = vpack.c.b16 %v5005, %v5001
        %v5102 = vpack.c.b16 %v5006, %v5002
        %v5103 = vpack.c.b16 %v5007, %v5003
        %v5104 = vpack.c.b16 %v5012, %v5008
        %v5105 = vpack.c.b16 %v5013, %v5009
        %v5106 = vpack.c.b16 %v5014, %v5010
        %v5107 = vpack.c.b16 %v5015, %v5011
        %v5108 = vpack.c.b16 %v5020, %v5016
        %v5109 = vpack.c.b16 %v5021, %v5017
        %v5110 = vpack.c.b16 %v5022, %v5018
        %v5111 = vpack.c.b16 %v5023, %v5019
        %v5112 = vpack.c.b16 %v5028, %v5024
        %v5113 = vpack.c.b16 %v5029, %v5025
        %v5114 = vpack.c.b16 %v5030, %v5026
        %v5115 = vpack.c.b16 %v5031, %v5027
        %v5116 = vpack.c.b16 %v5036, %v5032
        %v5117 = vpack.c.b16 %v5037, %v5033
        %v5118 = vpack.c.b16 %v5038, %v5034
        %v5119 = vpack.c.b16 %v5039, %v5035
        %v5120 = vpack.c.b16 %v5044, %v5040
        %v5121 = vpack.c.b16 %v5045, %v5041
        %v5122 = vpack.c.b16 %v5046, %v5042
        %v5123 = vpack.c.b16 %v5047, %v5043
        %v5124 = vpack.c.b16 %v5052, %v5048
        %v5125 = vpack.c.b16 %v5053, %v5049
        %v5126 = vpack.c.b16 %v5054, %v5050
        %v5127 = vpack.c.b16 %v5055, %v5051
        %v5128 = vpack.c.b16 %v5060, %v5056
        %v5129 = vpack.c.b16 %v5061, %v5057
        %v5130 = vpack.c.b16 %v5062, %v5058
        %v5131 = vpack.c.b16 %v5063, %v5059
        %v5132 = vpack.c.b16 %v5068, %v5064
        %v5133 = vpack.c.b16 %v5069, %v5065
        %v5134 = vpack.c.b16 %v5070, %v5066
        %v5135 = vpack.c.b16 %v5071, %v5067
        %v5136 = vpack.c.b16 %v5076, %v5072
        %v5137 = vpack.c.b16 %v5077, %v5073
        %v5138 = vpack.c.b16 %v5078, %v5074
        %v5139 = vpack.c.b16 %v5079, %v5075
        %v5201 = vsel %vm4741, %v4305, 0
        %v5204 = vsel %vm4741, %v4307, 0
        %v5207 = vsel %vm4741, %v4309, 0
        %v5210 = vsel %vm4741, %v4311, 0
        %5212 = vmatprep.subr.bf16.mxu0 %v5109
        %5213 = vmatpush1.bf16.msra.mxu0 %v5108
        %5214 = vmatprep.subr.bf16.mxu0 %v5105
        %5215 = vmatpush1.bf16.msra.mxu0 %v5104
        %5216 = vmatprep.subr.bf16.mxu0 %v5101
        %5217 = vmatpush1.bf16.msra.mxu0 %v5100
        %5218 = vmatprep.subr.bf16.mxu0 %v5097
        %5219 = vmatpush1.bf16.msra.mxu0 %v5096
        %5220 = vmatprep.subr.bf16.mxu0 %v5093
        %5221 = vmatpush1.bf16.msra.mxu0 %v5092
        %5222 = vmatprep.subr.bf16.mxu0 %v5089
        %5223 = vmatpush1.bf16.msra.mxu0 %v5088
        %5224 = vmatprep.subr.bf16.mxu0 %v5085
        %5225 = vmatpush1.bf16.msra.mxu0 %v5084
        %5226 = vmatprep.subr.bf16.mxu0 %v5081
        %5227 = vmatpush1.bf16.msra.mxu0 %v5080
        %5228 = vmatprep.subr.bf16.mxu0 0
        %5229 = vmatpush2.bf16.msra.mxu0 0
        %5230 = vmatprep.subr.bf16.mxu0 %v5137
        %5231 = vmatpush2.bf16.msra.mxu0 %v5136
        %5232 = vmatprep.subr.bf16.mxu0 %v5133
        %5233 = vmatpush2.bf16.msra.mxu0 %v5132
        %5234 = vmatprep.subr.bf16.mxu0 %v5129
        %5235 = vmatpush2.bf16.msra.mxu0 %v5128
        %5236 = vmatprep.subr.bf16.mxu0 %v5125
        %5237 = vmatpush2.bf16.msra.mxu0 %v5124
        %5238 = vmatprep.subr.bf16.mxu0 %v5121
        %5239 = vmatpush2.bf16.msra.mxu0 %v5120
        %5240 = vmatprep.subr.bf16.mxu0 %v5117
        %5241 = vmatpush2.bf16.msra.mxu0 %v5116
        %5242 = vmatprep.subr.bf16.mxu0 %v5113
        %5243 = vmatpush2.bf16.msra.mxu0 %v5112
        %5244 = vmatprep.mubr.bf16.mxu0 %v5201
        %5245 = vmatmul.mubr.bf16.gmra.mxu0 %v4304
        %v5246 = vpop.f32.mrf.mxu0
        %v5247 = vadd.f32 %v4789, %v5246
        %v5248 = vpop.f32.mrf.mxu0
        %v5249 = vadd.f32 %v4791, %v5248
        %v5250 = vpop.f32.mrf.mxu0
        %v5251 = vadd.f32 %v4793, %v5250
        %v5252 = vpop.f32.mrf.mxu0
        %v5253 = vadd.f32 %v4795, %v5252
        %5254 = vmatprep.mubr.bf16.mxu0 %v5204
        %5255 = vmatmul.mubr.bf16.gmra.mxu0 %v4306
        %v5256 = vpop.f32.mrf.mxu0
        %v5257 = vadd.f32 %v4799, %v5256
        %v5258 = vpop.f32.mrf.mxu0
        %v5259 = vadd.f32 %v4801, %v5258
        %v5260 = vpop.f32.mrf.mxu0
        %v5261 = vadd.f32 %v4803, %v5260
        %v5262 = vpop.f32.mrf.mxu0
        %v5263 = vadd.f32 %v4805, %v5262
        %5264 = vmatprep.mubr.bf16.mxu0 %v5207
        %5265 = vmatmul.mubr.bf16.gmra.mxu0 %v4308
        %v5266 = vpop.f32.mrf.mxu0
        %v5267 = vadd.f32 %v4809, %v5266
        %v5268 = vpop.f32.mrf.mxu0
        %v5269 = vadd.f32 %v4811, %v5268
        %v5270 = vpop.f32.mrf.mxu0
        %v5271 = vadd.f32 %v4813, %v5270
        %v5272 = vpop.f32.mrf.mxu0
        %v5273 = vadd.f32 %v4815, %v5272
        %5274 = vmatprep.mubr.bf16.mxu0 %v5210
        %5275 = vmatmul.mubr.bf16.gmra.mxu0 %v4310
        %v5276 = vpop.f32.mrf.mxu0
        %v5277 = vadd.f32 %v4819, %v5276
        %v5278 = vpop.f32.mrf.mxu0
        %v5279 = vadd.f32 %v4821, %v5278
        %v5280 = vpop.f32.mrf.mxu0
        %v5281 = vadd.f32 %v4823, %v5280
        %v5282 = vpop.f32.mrf.mxu0
        %v5283 = vadd.f32 %v4825, %v5282
        %5284 = vdwg.mxu0
        %5285 = vmatprep.subr.bf16.mxu0 %v5111
        %5286 = vmatpush1.bf16.msra.mxu0 %v5110
        %5287 = vmatprep.subr.bf16.mxu0 %v5107
        %5288 = vmatpush1.bf16.msra.mxu0 %v5106
        %5289 = vmatprep.subr.bf16.mxu0 %v5103
        %5290 = vmatpush1.bf16.msra.mxu0 %v5102
        %5291 = vmatprep.subr.bf16.mxu0 %v5099
        %5292 = vmatpush1.bf16.msra.mxu0 %v5098
        %5293 = vmatprep.subr.bf16.mxu0 %v5095
        %5294 = vmatpush1.bf16.msra.mxu0 %v5094
        %5295 = vmatprep.subr.bf16.mxu0 %v5091
        %5296 = vmatpush1.bf16.msra.mxu0 %v5090
        %5297 = vmatprep.subr.bf16.mxu0 %v5087
        %5298 = vmatpush1.bf16.msra.mxu0 %v5086
        %5299 = vmatprep.subr.bf16.mxu0 %v5083
        %5300 = vmatpush1.bf16.msra.mxu0 %v5082
        %5301 = vmatprep.subr.bf16.mxu0 0
        %5302 = vmatpush2.bf16.msra.mxu0 0
        %5303 = vmatprep.subr.bf16.mxu0 %v5139
        %5304 = vmatpush2.bf16.msra.mxu0 %v5138
        %5305 = vmatprep.subr.bf16.mxu0 %v5135
        %5306 = vmatpush2.bf16.msra.mxu0 %v5134
        %5307 = vmatprep.subr.bf16.mxu0 %v5131
        %5308 = vmatpush2.bf16.msra.mxu0 %v5130
        %5309 = vmatprep.subr.bf16.mxu0 %v5127
        %5310 = vmatpush2.bf16.msra.mxu0 %v5126
        %5311 = vmatprep.subr.bf16.mxu0 %v5123
        %5312 = vmatpush2.bf16.msra.mxu0 %v5122
        %5313 = vmatprep.subr.bf16.mxu0 %v5119
        %5314 = vmatpush2.bf16.msra.mxu0 %v5118
        %5315 = vmatprep.subr.bf16.mxu0 %v5115
        %5316 = vmatpush2.bf16.msra.mxu0 %v5114
        %5317 = vmatprep.mubr.bf16.mxu0 %v5201
        %5318 = vmatmul.mubr.bf16.gmra.mxu0 %v4304
        %v5319 = vpop.f32.mrf.mxu0
        %v5320 = vadd.f32 %v4862, %v5319
        %v5321 = vpop.f32.mrf.mxu0
        %v5322 = vadd.f32 %v4864, %v5321
        %v5323 = vpop.f32.mrf.mxu0
        %v5324 = vadd.f32 %v4866, %v5323
        %v5325 = vpop.f32.mrf.mxu0
        %v5326 = vadd.f32 %v4868, %v5325
        %5327 = vmatprep.mubr.bf16.mxu0 %v5204
        %5328 = vmatmul.mubr.bf16.gmra.mxu0 %v4306
        %v5329 = vpop.f32.mrf.mxu0
        %v5330 = vadd.f32 %v4872, %v5329
        %v5331 = vpop.f32.mrf.mxu0
        %v5332 = vadd.f32 %v4874, %v5331
        %v5333 = vpop.f32.mrf.mxu0
        %v5334 = vadd.f32 %v4876, %v5333
        %v5335 = vpop.f32.mrf.mxu0
        %v5336 = vadd.f32 %v4878, %v5335
        %5337 = vmatprep.mubr.bf16.mxu0 %v5207
        %5338 = vmatmul.mubr.bf16.gmra.mxu0 %v4308
        %v5339 = vpop.f32.mrf.mxu0
        %v5340 = vadd.f32 %v4882, %v5339
        %v5341 = vpop.f32.mrf.mxu0
        %v5342 = vadd.f32 %v4884, %v5341
        %v5343 = vpop.f32.mrf.mxu0
        %v5344 = vadd.f32 %v4886, %v5343
        %v5345 = vpop.f32.mrf.mxu0
        %v5346 = vadd.f32 %v4888, %v5345
        %5347 = vmatprep.mubr.bf16.mxu0 %v5210
        %5348 = vmatmul.mubr.bf16.gmra.mxu0 %v4310
        %v5349 = vpop.f32.mrf.mxu0
        %v5350 = vadd.f32 %v4892, %v5349
        %v5351 = vpop.f32.mrf.mxu0
        %v5352 = vadd.f32 %v4894, %v5351
        %v5353 = vpop.f32.mrf.mxu0
        %v5354 = vadd.f32 %v4896, %v5353
        %v5355 = vpop.f32.mrf.mxu0
        %v5356 = vadd.f32 %v4898, %v5355
        %5357 = vdwg.mxu0
        %v5358 = vpack.c.bf16 %v4298, %v4296
        %v5359 = vpack.c.bf16 %v4299, %v4297
        %s5360 = scalar_lea.vmem %s5, 960
        %v5361 = vld [vmem:[%s5360] sm:$0xff]
        %v5362 = vld [vmem:[%s5360 + $0x8] sm:$0xff]
        %v5363 = vld [vmem:[%s5360 + $0x10] sm:$0xff]
        %v5364 = vld [vmem:[%s5360 + $0x18] sm:$0xff]
        %v5365 = vld [vmem:[%s5360 + $0x20] sm:$0xff]
        %v5366 = vld [vmem:[%s5360 + $0x28] sm:$0xff]
        %v5367 = vld [vmem:[%s5360 + $0x30] sm:$0xff]
        %v5368 = vld [vmem:[%s5360 + $0x38] sm:$0xff]
        %v5369 = vld [vmem:[%s5360 + $0x40] sm:$0xff]
        %v5370 = vld [vmem:[%s5360 + $0x48] sm:$0xff]
        %v5371 = vld [vmem:[%s5360 + $0x50] sm:$0xff]
        %v5372 = vld [vmem:[%s5360 + $0x58] sm:$0xff]
        %v5373 = vld [vmem:[%s5360 + $0x60] sm:$0xff]
        %v5374 = vld [vmem:[%s5360 + $0x68] sm:$0xff]
        %v5375 = vld [vmem:[%s5360 + $0x70] sm:$0xff]
        %v5376 = vld [vmem:[%s5360 + $0x78] sm:$0xff]
        %v5377 = vld [vmem:[%s5360 + $0x80] sm:$0xff]
        %v5378 = vld [vmem:[%s5360 + $0x88] sm:$0xff]
        %v5379 = vld [vmem:[%s5360 + $0x90] sm:$0xff]
        %v5380 = vld [vmem:[%s5360 + $0x98] sm:$0xff]
        %v5381 = vld [vmem:[%s5360 + $0xa0] sm:$0xff]
        %v5382 = vld [vmem:[%s5360 + $0xa8] sm:$0xff]
        %v5383 = vld [vmem:[%s5360 + $0xb0] sm:$0xff]
        %v5384 = vld [vmem:[%s5360 + $0xb8] sm:$0xff]
        %v5385 = vld [vmem:[%s5360 + $0xc0] sm:$0xff]
        %v5386 = vld [vmem:[%s5360 + $0xc8] sm:$0xff]
        %v5387 = vld [vmem:[%s5360 + $0xd0] sm:$0xff]
        %v5388 = vld [vmem:[%s5360 + $0xd8] sm:$0xff]
        %v5389 = vld [vmem:[%s5360 + $0xe0] sm:$0xff]
        %v5390 = vld [vmem:[%s5360 + $0xe8] sm:$0xff]
        %v5391 = vld [vmem:[%s5360 + $0xf0] sm:$0xff]
        %v5392 = vld [vmem:[%s5360 + $0xf8] sm:$0xff]
        %v5393 = vld [vmem:[%s5360 + $0x100] sm:$0xff]
        %v5394 = vld [vmem:[%s5360 + $0x108] sm:$0xff]
        %v5395 = vld [vmem:[%s5360 + $0x110] sm:$0xff]
        %v5396 = vld [vmem:[%s5360 + $0x118] sm:$0xff]
        %v5397 = vld [vmem:[%s5360 + $0x120] sm:$0xff]
        %v5398 = vld [vmem:[%s5360 + $0x128] sm:$0xff]
        %v5399 = vld [vmem:[%s5360 + $0x130] sm:$0xff]
        %v5400 = vld [vmem:[%s5360 + $0x138] sm:$0xff]
        %v5401 = vld [vmem:[%s5360 + $0x140] sm:$0xff]
        %v5402 = vld [vmem:[%s5360 + $0x148] sm:$0xff]
        %v5403 = vld [vmem:[%s5360 + $0x150] sm:$0xff]
        %v5404 = vld [vmem:[%s5360 + $0x158] sm:$0xff]
        %v5405 = vld [vmem:[%s5360 + $0x160] sm:$0xff]
        %v5406 = vld [vmem:[%s5360 + $0x168] sm:$0xff]
        %v5407 = vld [vmem:[%s5360 + $0x170] sm:$0xff]
        %v5408 = vld [vmem:[%s5360 + $0x178] sm:$0xff]
        %v5409 = vld [vmem:[%s5360 + $0x180] sm:$0xff]
        %v5410 = vld [vmem:[%s5360 + $0x188] sm:$0xff]
        %v5411 = vld [vmem:[%s5360 + $0x190] sm:$0xff]
        %v5412 = vld [vmem:[%s5360 + $0x198] sm:$0xff]
        %v5413 = vld [vmem:[%s5360 + $0x1a0] sm:$0xff]
        %v5414 = vld [vmem:[%s5360 + $0x1a8] sm:$0xff]
        %v5415 = vld [vmem:[%s5360 + $0x1b0] sm:$0xff]
        %v5416 = vld [vmem:[%s5360 + $0x1b8] sm:$0xff]
        %v5417 = vld [vmem:[%s5360 + $0x1c0] sm:$0xff]
        %v5418 = vld [vmem:[%s5360 + $0x1c8] sm:$0xff]
        %v5419 = vld [vmem:[%s5360 + $0x1d0] sm:$0xff]
        %v5420 = vld [vmem:[%s5360 + $0x1d8] sm:$0xff]
        %v5481 = vunpack.c.l.b16 %v5361
        %v5482 = vunpack.c.h.b16 %v5361
        %v5483 = vunpack.c.l.b16 %v5362
        %v5484 = vunpack.c.h.b16 %v5362
        %v5485 = vunpack.c.l.b16 %v5363
        %v5486 = vunpack.c.h.b16 %v5363
        %v5487 = vunpack.c.l.b16 %v5364
        %v5488 = vunpack.c.h.b16 %v5364
        %v5489 = vunpack.c.l.b16 %v5365
        %v5490 = vunpack.c.h.b16 %v5365
        %v5491 = vunpack.c.l.b16 %v5366
        %v5492 = vunpack.c.h.b16 %v5366
        %v5493 = vunpack.c.l.b16 %v5367
        %v5494 = vunpack.c.h.b16 %v5367
        %v5495 = vunpack.c.l.b16 %v5368
        %v5496 = vunpack.c.h.b16 %v5368
        %v5497 = vunpack.c.l.b16 %v5369
        %v5498 = vunpack.c.h.b16 %v5369
        %v5499 = vunpack.c.l.b16 %v5370
        %v5500 = vunpack.c.h.b16 %v5370
        %v5501 = vunpack.c.l.b16 %v5371
        %v5502 = vunpack.c.h.b16 %v5371
        %v5503 = vunpack.c.l.b16 %v5372
        %v5504 = vunpack.c.h.b16 %v5372
        %v5505 = vunpack.c.l.b16 %v5373
        %v5506 = vunpack.c.h.b16 %v5373
        %v5507 = vunpack.c.l.b16 %v5374
        %v5508 = vunpack.c.h.b16 %v5374
        %v5509 = vunpack.c.l.b16 %v5375
        %v5510 = vunpack.c.h.b16 %v5375
        %v5511 = vunpack.c.l.b16 %v5376
        %v5512 = vunpack.c.h.b16 %v5376
        %v5513 = vunpack.c.l.b16 %v5377
        %v5514 = vunpack.c.h.b16 %v5377
        %v5515 = vunpack.c.l.b16 %v5378
        %v5516 = vunpack.c.h.b16 %v5378
        %v5517 = vunpack.c.l.b16 %v5379
        %v5518 = vunpack.c.h.b16 %v5379
        %v5519 = vunpack.c.l.b16 %v5380
        %v5520 = vunpack.c.h.b16 %v5380
        %v5521 = vunpack.c.l.b16 %v5381
        %v5522 = vunpack.c.h.b16 %v5381
        %v5523 = vunpack.c.l.b16 %v5382
        %v5524 = vunpack.c.h.b16 %v5382
        %v5525 = vunpack.c.l.b16 %v5383
        %v5526 = vunpack.c.h.b16 %v5383
        %v5527 = vunpack.c.l.b16 %v5384
        %v5528 = vunpack.c.h.b16 %v5384
        %v5529 = vunpack.c.l.b16 %v5385
        %v5530 = vunpack.c.h.b16 %v5385
        %v5531 = vunpack.c.l.b16 %v5386
        %v5532 = vunpack.c.h.b16 %v5386
        %v5533 = vunpack.c.l.b16 %v5387
        %v5534 = vunpack.c.h.b16 %v5387
        %v5535 = vunpack.c.l.b16 %v5388
        %v5536 = vunpack.c.h.b16 %v5388
        %v5537 = vunpack.c.l.b16 %v5389
        %v5538 = vunpack.c.h.b16 %v5389
        %v5539 = vunpack.c.l.b16 %v5390
        %v5540 = vunpack.c.h.b16 %v5390
        %v5541 = vunpack.c.l.b16 %v5391
        %v5542 = vunpack.c.h.b16 %v5391
        %v5543 = vunpack.c.l.b16 %v5392
        %v5544 = vunpack.c.h.b16 %v5392
        %v5545 = vunpack.c.l.b16 %v5393
        %v5546 = vunpack.c.h.b16 %v5393
        %v5547 = vunpack.c.l.b16 %v5394
        %v5548 = vunpack.c.h.b16 %v5394
        %v5549 = vunpack.c.l.b16 %v5395
        %v5550 = vunpack.c.h.b16 %v5395
        %v5551 = vunpack.c.l.b16 %v5396
        %v5552 = vunpack.c.h.b16 %v5396
        %v5553 = vunpack.c.l.b16 %v5397
        %v5554 = vunpack.c.h.b16 %v5397
        %v5555 = vunpack.c.l.b16 %v5398
        %v5556 = vunpack.c.h.b16 %v5398
        %v5557 = vunpack.c.l.b16 %v5399
        %v5558 = vunpack.c.h.b16 %v5399
        %v5559 = vunpack.c.l.b16 %v5400
        %v5560 = vunpack.c.h.b16 %v5400
        %v5561 = vunpack.c.l.b16 %v5401
        %v5562 = vunpack.c.h.b16 %v5401
        %v5563 = vunpack.c.l.b16 %v5402
        %v5564 = vunpack.c.h.b16 %v5402
        %v5565 = vunpack.c.l.b16 %v5403
        %v5566 = vunpack.c.h.b16 %v5403
        %v5567 = vunpack.c.l.b16 %v5404
        %v5568 = vunpack.c.h.b16 %v5404
        %v5569 = vunpack.c.l.b16 %v5405
        %v5570 = vunpack.c.h.b16 %v5405
        %v5571 = vunpack.c.l.b16 %v5406
        %v5572 = vunpack.c.h.b16 %v5406
        %v5573 = vunpack.c.l.b16 %v5407
        %v5574 = vunpack.c.h.b16 %v5407
        %v5575 = vunpack.c.l.b16 %v5408
        %v5576 = vunpack.c.h.b16 %v5408
        %v5577 = vunpack.c.l.b16 %v5409
        %v5578 = vunpack.c.h.b16 %v5409
        %v5579 = vunpack.c.l.b16 %v5410
        %v5580 = vunpack.c.h.b16 %v5410
        %v5581 = vunpack.c.l.b16 %v5411
        %v5582 = vunpack.c.h.b16 %v5411
        %v5583 = vunpack.c.l.b16 %v5412
        %v5584 = vunpack.c.h.b16 %v5412
        %v5585 = vunpack.c.l.b16 %v5413
        %v5586 = vunpack.c.h.b16 %v5413
        %v5587 = vunpack.c.l.b16 %v5414
        %v5588 = vunpack.c.h.b16 %v5414
        %v5589 = vunpack.c.l.b16 %v5415
        %v5590 = vunpack.c.h.b16 %v5415
        %v5591 = vunpack.c.l.b16 %v5416
        %v5592 = vunpack.c.h.b16 %v5416
        %v5593 = vunpack.c.l.b16 %v5417
        %v5594 = vunpack.c.h.b16 %v5417
        %v5595 = vunpack.c.l.b16 %v5418
        %v5596 = vunpack.c.h.b16 %v5418
        %v5597 = vunpack.c.l.b16 %v5419
        %v5598 = vunpack.c.h.b16 %v5419
        %v5599 = vunpack.c.l.b16 %v5420
        %v5600 = vunpack.c.h.b16 %v5420
        %v5601 = vpack.c.b16 %v5485, %v5481
        %v5602 = vpack.c.b16 %v5486, %v5482
        %v5603 = vpack.c.b16 %v5487, %v5483
        %v5604 = vpack.c.b16 %v5488, %v5484
        %v5605 = vpack.c.b16 %v5493, %v5489
        %v5606 = vpack.c.b16 %v5494, %v5490
        %v5607 = vpack.c.b16 %v5495, %v5491
        %v5608 = vpack.c.b16 %v5496, %v5492
        %v5609 = vpack.c.b16 %v5501, %v5497
        %v5610 = vpack.c.b16 %v5502, %v5498
        %v5611 = vpack.c.b16 %v5503, %v5499
        %v5612 = vpack.c.b16 %v5504, %v5500
        %v5613 = vpack.c.b16 %v5509, %v5505
        %v5614 = vpack.c.b16 %v5510, %v5506
        %v5615 = vpack.c.b16 %v5511, %v5507
        %v5616 = vpack.c.b16 %v5512, %v5508
        %v5617 = vpack.c.b16 %v5517, %v5513
        %v5618 = vpack.c.b16 %v5518, %v5514
        %v5619 = vpack.c.b16 %v5519, %v5515
        %v5620 = vpack.c.b16 %v5520, %v5516
        %v5621 = vpack.c.b16 %v5525, %v5521
        %v5622 = vpack.c.b16 %v5526, %v5522
        %v5623 = vpack.c.b16 %v5527, %v5523
        %v5624 = vpack.c.b16 %v5528, %v5524
        %v5625 = vpack.c.b16 %v5533, %v5529
        %v5626 = vpack.c.b16 %v5534, %v5530
        %v5627 = vpack.c.b16 %v5535, %v5531
        %v5628 = vpack.c.b16 %v5536, %v5532
        %v5629 = vpack.c.b16 %v5541, %v5537
        %v5630 = vpack.c.b16 %v5542, %v5538
        %v5631 = vpack.c.b16 %v5543, %v5539
        %v5632 = vpack.c.b16 %v5544, %v5540
        %v5633 = vpack.c.b16 %v5549, %v5545
        %v5634 = vpack.c.b16 %v5550, %v5546
        %v5635 = vpack.c.b16 %v5551, %v5547
        %v5636 = vpack.c.b16 %v5552, %v5548
        %v5637 = vpack.c.b16 %v5557, %v5553
        %v5638 = vpack.c.b16 %v5558, %v5554
        %v5639 = vpack.c.b16 %v5559, %v5555
        %v5640 = vpack.c.b16 %v5560, %v5556
        %v5641 = vpack.c.b16 %v5565, %v5561
        %v5642 = vpack.c.b16 %v5566, %v5562
        %v5643 = vpack.c.b16 %v5567, %v5563
        %v5644 = vpack.c.b16 %v5568, %v5564
        %v5645 = vpack.c.b16 %v5573, %v5569
        %v5646 = vpack.c.b16 %v5574, %v5570
        %v5647 = vpack.c.b16 %v5575, %v5571
        %v5648 = vpack.c.b16 %v5576, %v5572
        %v5649 = vpack.c.b16 %v5581, %v5577
        %v5650 = vpack.c.b16 %v5582, %v5578
        %v5651 = vpack.c.b16 %v5583, %v5579
        %v5652 = vpack.c.b16 %v5584, %v5580
        %v5653 = vpack.c.b16 %v5589, %v5585
        %v5654 = vpack.c.b16 %v5590, %v5586
        %v5655 = vpack.c.b16 %v5591, %v5587
        %v5656 = vpack.c.b16 %v5592, %v5588
        %v5657 = vpack.c.b16 %v5597, %v5593
        %v5658 = vpack.c.b16 %v5598, %v5594
        %v5659 = vpack.c.b16 %v5599, %v5595
        %v5660 = vpack.c.b16 %v5600, %v5596
        %v5722 = vsel %vm4741, %v5359, 0
        %5724 = vmatprep.subr.bf16.mxu0 %v5630
        %5725 = vmatpush1.bf16.msra.mxu0 %v5629
        %5726 = vmatprep.subr.bf16.mxu0 %v5626
        %5727 = vmatpush1.bf16.msra.mxu0 %v5625
        %5728 = vmatprep.subr.bf16.mxu0 %v5622
        %5729 = vmatpush1.bf16.msra.mxu0 %v5621
        %5730 = vmatprep.subr.bf16.mxu0 %v5618
        %5731 = vmatpush1.bf16.msra.mxu0 %v5617
        %5732 = vmatprep.subr.bf16.mxu0 %v5614
        %5733 = vmatpush1.bf16.msra.mxu0 %v5613
        %5734 = vmatprep.subr.bf16.mxu0 %v5610
        %5735 = vmatpush1.bf16.msra.mxu0 %v5609
        %5736 = vmatprep.subr.bf16.mxu0 %v5606
        %5737 = vmatpush1.bf16.msra.mxu0 %v5605
        %5738 = vmatprep.subr.bf16.mxu0 %v5602
        %5739 = vmatpush1.bf16.msra.mxu0 %v5601
        %5740 = vmatprep.subr.bf16.mxu0 0
        %5741 = vmatpush2.bf16.msra.mxu0 0
        %5742 = vmatprep.subr.bf16.mxu0 %v5658
        %5743 = vmatpush2.bf16.msra.mxu0 %v5657
        %5744 = vmatprep.subr.bf16.mxu0 %v5654
        %5745 = vmatpush2.bf16.msra.mxu0 %v5653
        %5746 = vmatprep.subr.bf16.mxu0 %v5650
        %5747 = vmatpush2.bf16.msra.mxu0 %v5649
        %5748 = vmatprep.subr.bf16.mxu0 %v5646
        %5749 = vmatpush2.bf16.msra.mxu0 %v5645
        %5750 = vmatprep.subr.bf16.mxu0 %v5642
        %5751 = vmatpush2.bf16.msra.mxu0 %v5641
        %5752 = vmatprep.subr.bf16.mxu0 %v5638
        %5753 = vmatpush2.bf16.msra.mxu0 %v5637
        %5754 = vmatprep.subr.bf16.mxu0 %v5634
        %5755 = vmatpush2.bf16.msra.mxu0 %v5633
        %5756 = vmatprep.mubr.bf16.mxu0 %v5204
        %5757 = vmatmul.mubr.bf16.gmra.mxu0 %v4306
        %v5758 = vpop.f32.mrf.mxu0
        %v5759 = vadd.f32 0.0, %v5758
        %v5760 = vpop.f32.mrf.mxu0
        %v5761 = vadd.f32 0.0, %v5760
        %v5762 = vpop.f32.mrf.mxu0
        %v5763 = vadd.f32 0.0, %v5762
        %v5764 = vpop.f32.mrf.mxu0
        %v5765 = vadd.f32 0.0, %v5764
        %5766 = vmatprep.mubr.bf16.mxu0 %v5207
        %5767 = vmatmul.mubr.bf16.gmra.mxu0 %v4308
        %v5768 = vpop.f32.mrf.mxu0
        %v5769 = vadd.f32 0.0, %v5768
        %v5770 = vpop.f32.mrf.mxu0
        %v5771 = vadd.f32 0.0, %v5770
        %v5772 = vpop.f32.mrf.mxu0
        %v5773 = vadd.f32 0.0, %v5772
        %v5774 = vpop.f32.mrf.mxu0
        %v5775 = vadd.f32 0.0, %v5774
        %5776 = vmatprep.mubr.bf16.mxu0 %v5210
        %5777 = vmatmul.mubr.bf16.gmra.mxu0 %v4310
        %v5778 = vpop.f32.mrf.mxu0
        %v5779 = vadd.f32 0.0, %v5778
        %v5780 = vpop.f32.mrf.mxu0
        %v5781 = vadd.f32 0.0, %v5780
        %v5782 = vpop.f32.mrf.mxu0
        %v5783 = vadd.f32 0.0, %v5782
        %v5784 = vpop.f32.mrf.mxu0
        %v5785 = vadd.f32 0.0, %v5784
        %5786 = vmatprep.mubr.bf16.mxu0 %v5722
        %5787 = vmatmul.mubr.bf16.gmra.mxu0 %v5358
        %v5788 = vpop.f32.mrf.mxu0
        %v5789 = vadd.f32 0.0, %v5788
        %v5790 = vpop.f32.mrf.mxu0
        %v5791 = vadd.f32 0.0, %v5790
        %v5792 = vpop.f32.mrf.mxu0
        %v5793 = vadd.f32 0.0, %v5792
        %v5794 = vpop.f32.mrf.mxu0
        %v5795 = vadd.f32 0.0, %v5794
        %5796 = vdwg.mxu0
        %5797 = vmatprep.subr.bf16.mxu0 %v5632
        %5798 = vmatpush1.bf16.msra.mxu0 %v5631
        %5799 = vmatprep.subr.bf16.mxu0 %v5628
        %5800 = vmatpush1.bf16.msra.mxu0 %v5627
        %5801 = vmatprep.subr.bf16.mxu0 %v5624
        %5802 = vmatpush1.bf16.msra.mxu0 %v5623
        %5803 = vmatprep.subr.bf16.mxu0 %v5620
        %5804 = vmatpush1.bf16.msra.mxu0 %v5619
        %5805 = vmatprep.subr.bf16.mxu0 %v5616
        %5806 = vmatpush1.bf16.msra.mxu0 %v5615
        %5807 = vmatprep.subr.bf16.mxu0 %v5612
        %5808 = vmatpush1.bf16.msra.mxu0 %v5611
        %5809 = vmatprep.subr.bf16.mxu0 %v5608
        %5810 = vmatpush1.bf16.msra.mxu0 %v5607
        %5811 = vmatprep.subr.bf16.mxu0 %v5604
        %5812 = vmatpush1.bf16.msra.mxu0 %v5603
        %5813 = vmatprep.subr.bf16.mxu0 0
        %5814 = vmatpush2.bf16.msra.mxu0 0
        %5815 = vmatprep.subr.bf16.mxu0 %v5660
        %5816 = vmatpush2.bf16.msra.mxu0 %v5659
        %5817 = vmatprep.subr.bf16.mxu0 %v5656
        %5818 = vmatpush2.bf16.msra.mxu0 %v5655
        %5819 = vmatprep.subr.bf16.mxu0 %v5652
        %5820 = vmatpush2.bf16.msra.mxu0 %v5651
        %5821 = vmatprep.subr.bf16.mxu0 %v5648
        %5822 = vmatpush2.bf16.msra.mxu0 %v5647
        %5823 = vmatprep.subr.bf16.mxu0 %v5644
        %5824 = vmatpush2.bf16.msra.mxu0 %v5643
        %5825 = vmatprep.subr.bf16.mxu0 %v5640
        %5826 = vmatpush2.bf16.msra.mxu0 %v5639
        %5827 = vmatprep.subr.bf16.mxu0 %v5636
        %5828 = vmatpush2.bf16.msra.mxu0 %v5635
        %5829 = vmatprep.mubr.bf16.mxu0 %v5204
        %5830 = vmatmul.mubr.bf16.gmra.mxu0 %v4306
        %v5831 = vpop.f32.mrf.mxu0
        %v5832 = vadd.f32 0.0, %v5831
        %v5833 = vpop.f32.mrf.mxu0
        %v5834 = vadd.f32 0.0, %v5833
        %v5835 = vpop.f32.mrf.mxu0
        %v5836 = vadd.f32 0.0, %v5835
        %v5837 = vpop.f32.mrf.mxu0
        %v5838 = vadd.f32 0.0, %v5837
        %5839 = vmatprep.mubr.bf16.mxu0 %v5207
        %5840 = vmatmul.mubr.bf16.gmra.mxu0 %v4308
        %v5841 = vpop.f32.mrf.mxu0
        %v5842 = vadd.f32 0.0, %v5841
        %v5843 = vpop.f32.mrf.mxu0
        %v5844 = vadd.f32 0.0, %v5843
        %v5845 = vpop.f32.mrf.mxu0
        %v5846 = vadd.f32 0.0, %v5845
        %v5847 = vpop.f32.mrf.mxu0
        %v5848 = vadd.f32 0.0, %v5847
        %5849 = vmatprep.mubr.bf16.mxu0 %v5210
        %5850 = vmatmul.mubr.bf16.gmra.mxu0 %v4310
        %v5851 = vpop.f32.mrf.mxu0
        %v5852 = vadd.f32 0.0, %v5851
        %v5853 = vpop.f32.mrf.mxu0
        %v5854 = vadd.f32 0.0, %v5853
        %v5855 = vpop.f32.mrf.mxu0
        %v5856 = vadd.f32 0.0, %v5855
        %v5857 = vpop.f32.mrf.mxu0
        %v5858 = vadd.f32 0.0, %v5857
        %5859 = vmatprep.mubr.bf16.mxu0 %v5722
        %5860 = vmatmul.mubr.bf16.gmra.mxu0 %v5358
        %v5861 = vpop.f32.mrf.mxu0
        %v5862 = vadd.f32 0.0, %v5861
        %v5863 = vpop.f32.mrf.mxu0
        %v5864 = vadd.f32 0.0, %v5863
        %v5865 = vpop.f32.mrf.mxu0
        %v5866 = vadd.f32 0.0, %v5865
        %v5867 = vpop.f32.mrf.mxu0
        %v5868 = vadd.f32 0.0, %v5867
        %5869 = vdwg.mxu0
        %v5870 = vadd.f32 %v5247, %v5759
        %v5871 = vadd.f32 %v5249, %v5761
        %v5872 = vadd.f32 %v5320, %v5832
        %v5873 = vadd.f32 %v5322, %v5834
        %v5874 = vadd.f32 %v5251, %v5763
        %v5875 = vadd.f32 %v5253, %v5765
        %v5876 = vadd.f32 %v5324, %v5836
        %v5877 = vadd.f32 %v5326, %v5838
        %v5878 = vadd.f32 %v5257, %v5769
        %v5879 = vadd.f32 %v5259, %v5771
        %v5880 = vadd.f32 %v5330, %v5842
        %v5881 = vadd.f32 %v5332, %v5844
        %v5882 = vadd.f32 %v5261, %v5773
        %v5883 = vadd.f32 %v5263, %v5775
        %v5884 = vadd.f32 %v5334, %v5846
        %v5885 = vadd.f32 %v5336, %v5848
        %v5886 = vadd.f32 %v5267, %v5779
        %v5887 = vadd.f32 %v5269, %v5781
        %v5888 = vadd.f32 %v5340, %v5852
        %v5889 = vadd.f32 %v5342, %v5854
        %v5890 = vadd.f32 %v5271, %v5783
        %v5891 = vadd.f32 %v5273, %v5785
        %v5892 = vadd.f32 %v5344, %v5856
        %v5893 = vadd.f32 %v5346, %v5858
        %v5894 = vadd.f32 %v5277, %v5789
        %v5895 = vadd.f32 %v5279, %v5791
        %v5896 = vadd.f32 %v5350, %v5862
        %v5897 = vadd.f32 %v5352, %v5864
        %v5898 = vadd.f32 %v5281, %v5793
        %v5899 = vadd.f32 %v5283, %v5795
        %v5900 = vadd.f32 %v5354, %v5866
        %v5901 = vadd.f32 %v5356, %v5868
        %v5902 = vpack.c.bf16 %v4300, %v4298
        %v5903 = vpack.c.bf16 %v4301, %v4299
        %s5904 = scalar_lea.vmem %s5, 1440
        %v5905 = vld [vmem:[%s5904] sm:$0xff]
        %v5906 = vld [vmem:[%s5904 + $0x8] sm:$0xff]
        %v5907 = vld [vmem:[%s5904 + $0x10] sm:$0xff]
        %v5908 = vld [vmem:[%s5904 + $0x18] sm:$0xff]
        %v5909 = vld [vmem:[%s5904 + $0x20] sm:$0xff]
        %v5910 = vld [vmem:[%s5904 + $0x28] sm:$0xff]
        %v5911 = vld [vmem:[%s5904 + $0x30] sm:$0xff]
        %v5912 = vld [vmem:[%s5904 + $0x38] sm:$0xff]
        %v5913 = vld [vmem:[%s5904 + $0x40] sm:$0xff]
        %v5914 = vld [vmem:[%s5904 + $0x48] sm:$0xff]
        %v5915 = vld [vmem:[%s5904 + $0x50] sm:$0xff]
        %v5916 = vld [vmem:[%s5904 + $0x58] sm:$0xff]
        %v5917 = vld [vmem:[%s5904 + $0x60] sm:$0xff]
        %v5918 = vld [vmem:[%s5904 + $0x68] sm:$0xff]
        %v5919 = vld [vmem:[%s5904 + $0x70] sm:$0xff]
        %v5920 = vld [vmem:[%s5904 + $0x78] sm:$0xff]
        %v5921 = vld [vmem:[%s5904 + $0x80] sm:$0xff]
        %v5922 = vld [vmem:[%s5904 + $0x88] sm:$0xff]
        %v5923 = vld [vmem:[%s5904 + $0x90] sm:$0xff]
        %v5924 = vld [vmem:[%s5904 + $0x98] sm:$0xff]
        %v5925 = vld [vmem:[%s5904 + $0xa0] sm:$0xff]
        %v5926 = vld [vmem:[%s5904 + $0xa8] sm:$0xff]
        %v5927 = vld [vmem:[%s5904 + $0xb0] sm:$0xff]
        %v5928 = vld [vmem:[%s5904 + $0xb8] sm:$0xff]
        %v5929 = vld [vmem:[%s5904 + $0xc0] sm:$0xff]
        %v5930 = vld [vmem:[%s5904 + $0xc8] sm:$0xff]
        %v5931 = vld [vmem:[%s5904 + $0xd0] sm:$0xff]
        %v5932 = vld [vmem:[%s5904 + $0xd8] sm:$0xff]
        %v5933 = vld [vmem:[%s5904 + $0xe0] sm:$0xff]
        %v5934 = vld [vmem:[%s5904 + $0xe8] sm:$0xff]
        %v5935 = vld [vmem:[%s5904 + $0xf0] sm:$0xff]
        %v5936 = vld [vmem:[%s5904 + $0xf8] sm:$0xff]
        %v5937 = vld [vmem:[%s5904 + $0x100] sm:$0xff]
        %v5938 = vld [vmem:[%s5904 + $0x108] sm:$0xff]
        %v5939 = vld [vmem:[%s5904 + $0x110] sm:$0xff]
        %v5940 = vld [vmem:[%s5904 + $0x118] sm:$0xff]
        %v5941 = vld [vmem:[%s5904 + $0x120] sm:$0xff]
        %v5942 = vld [vmem:[%s5904 + $0x128] sm:$0xff]
        %v5943 = vld [vmem:[%s5904 + $0x130] sm:$0xff]
        %v5944 = vld [vmem:[%s5904 + $0x138] sm:$0xff]
        %v5945 = vld [vmem:[%s5904 + $0x140] sm:$0xff]
        %v5946 = vld [vmem:[%s5904 + $0x148] sm:$0xff]
        %v5947 = vld [vmem:[%s5904 + $0x150] sm:$0xff]
        %v5948 = vld [vmem:[%s5904 + $0x158] sm:$0xff]
        %v5949 = vld [vmem:[%s5904 + $0x160] sm:$0xff]
        %v5950 = vld [vmem:[%s5904 + $0x168] sm:$0xff]
        %v5951 = vld [vmem:[%s5904 + $0x170] sm:$0xff]
        %v5952 = vld [vmem:[%s5904 + $0x178] sm:$0xff]
        %v5953 = vld [vmem:[%s5904 + $0x180] sm:$0xff]
        %v5954 = vld [vmem:[%s5904 + $0x188] sm:$0xff]
        %v5955 = vld [vmem:[%s5904 + $0x190] sm:$0xff]
        %v5956 = vld [vmem:[%s5904 + $0x198] sm:$0xff]
        %v5957 = vld [vmem:[%s5904 + $0x1a0] sm:$0xff]
        %v5958 = vld [vmem:[%s5904 + $0x1a8] sm:$0xff]
        %v5959 = vld [vmem:[%s5904 + $0x1b0] sm:$0xff]
        %v5960 = vld [vmem:[%s5904 + $0x1b8] sm:$0xff]
        %v5961 = vld [vmem:[%s5904 + $0x1c0] sm:$0xff]
        %v5962 = vld [vmem:[%s5904 + $0x1c8] sm:$0xff]
        %v5963 = vld [vmem:[%s5904 + $0x1d0] sm:$0xff]
        %v5964 = vld [vmem:[%s5904 + $0x1d8] sm:$0xff]
        %v6025 = vunpack.c.l.b16 %v5905
        %v6026 = vunpack.c.h.b16 %v5905
        %v6027 = vunpack.c.l.b16 %v5906
        %v6028 = vunpack.c.h.b16 %v5906
        %v6029 = vunpack.c.l.b16 %v5907
        %v6030 = vunpack.c.h.b16 %v5907
        %v6031 = vunpack.c.l.b16 %v5908
        %v6032 = vunpack.c.h.b16 %v5908
        %v6033 = vunpack.c.l.b16 %v5909
        %v6034 = vunpack.c.h.b16 %v5909
        %v6035 = vunpack.c.l.b16 %v5910
        %v6036 = vunpack.c.h.b16 %v5910
        %v6037 = vunpack.c.l.b16 %v5911
        %v6038 = vunpack.c.h.b16 %v5911
        %v6039 = vunpack.c.l.b16 %v5912
        %v6040 = vunpack.c.h.b16 %v5912
        %v6041 = vunpack.c.l.b16 %v5913
        %v6042 = vunpack.c.h.b16 %v5913
        %v6043 = vunpack.c.l.b16 %v5914
        %v6044 = vunpack.c.h.b16 %v5914
        %v6045 = vunpack.c.l.b16 %v5915
        %v6046 = vunpack.c.h.b16 %v5915
        %v6047 = vunpack.c.l.b16 %v5916
        %v6048 = vunpack.c.h.b16 %v5916
        %v6049 = vunpack.c.l.b16 %v5917
        %v6050 = vunpack.c.h.b16 %v5917
        %v6051 = vunpack.c.l.b16 %v5918
        %v6052 = vunpack.c.h.b16 %v5918
        %v6053 = vunpack.c.l.b16 %v5919
        %v6054 = vunpack.c.h.b16 %v5919
        %v6055 = vunpack.c.l.b16 %v5920
        %v6056 = vunpack.c.h.b16 %v5920
        %v6057 = vunpack.c.l.b16 %v5921
        %v6058 = vunpack.c.h.b16 %v5921
        %v6059 = vunpack.c.l.b16 %v5922
        %v6060 = vunpack.c.h.b16 %v5922
        %v6061 = vunpack.c.l.b16 %v5923
        %v6062 = vunpack.c.h.b16 %v5923
        %v6063 = vunpack.c.l.b16 %v5924
        %v6064 = vunpack.c.h.b16 %v5924
        %v6065 = vunpack.c.l.b16 %v5925
        %v6066 = vunpack.c.h.b16 %v5925
        %v6067 = vunpack.c.l.b16 %v5926
        %v6068 = vunpack.c.h.b16 %v5926
        %v6069 = vunpack.c.l.b16 %v5927
        %v6070 = vunpack.c.h.b16 %v5927
        %v6071 = vunpack.c.l.b16 %v5928
        %v6072 = vunpack.c.h.b16 %v5928
        %v6073 = vunpack.c.l.b16 %v5929
        %v6074 = vunpack.c.h.b16 %v5929
        %v6075 = vunpack.c.l.b16 %v5930
        %v6076 = vunpack.c.h.b16 %v5930
        %v6077 = vunpack.c.l.b16 %v5931
        %v6078 = vunpack.c.h.b16 %v5931
        %v6079 = vunpack.c.l.b16 %v5932
        %v6080 = vunpack.c.h.b16 %v5932
        %v6081 = vunpack.c.l.b16 %v5933
        %v6082 = vunpack.c.h.b16 %v5933
        %v6083 = vunpack.c.l.b16 %v5934
        %v6084 = vunpack.c.h.b16 %v5934
        %v6085 = vunpack.c.l.b16 %v5935
        %v6086 = vunpack.c.h.b16 %v5935
        %v6087 = vunpack.c.l.b16 %v5936
        %v6088 = vunpack.c.h.b16 %v5936
        %v6089 = vunpack.c.l.b16 %v5937
        %v6090 = vunpack.c.h.b16 %v5937
        %v6091 = vunpack.c.l.b16 %v5938
        %v6092 = vunpack.c.h.b16 %v5938
        %v6093 = vunpack.c.l.b16 %v5939
        %v6094 = vunpack.c.h.b16 %v5939
        %v6095 = vunpack.c.l.b16 %v5940
        %v6096 = vunpack.c.h.b16 %v5940
        %v6097 = vunpack.c.l.b16 %v5941
        %v6098 = vunpack.c.h.b16 %v5941
        %v6099 = vunpack.c.l.b16 %v5942
        %v6100 = vunpack.c.h.b16 %v5942
        %v6101 = vunpack.c.l.b16 %v5943
        %v6102 = vunpack.c.h.b16 %v5943
        %v6103 = vunpack.c.l.b16 %v5944
        %v6104 = vunpack.c.h.b16 %v5944
        %v6105 = vunpack.c.l.b16 %v5945
        %v6106 = vunpack.c.h.b16 %v5945
        %v6107 = vunpack.c.l.b16 %v5946
        %v6108 = vunpack.c.h.b16 %v5946
        %v6109 = vunpack.c.l.b16 %v5947
        %v6110 = vunpack.c.h.b16 %v5947
        %v6111 = vunpack.c.l.b16 %v5948
        %v6112 = vunpack.c.h.b16 %v5948
        %v6113 = vunpack.c.l.b16 %v5949
        %v6114 = vunpack.c.h.b16 %v5949
        %v6115 = vunpack.c.l.b16 %v5950
        %v6116 = vunpack.c.h.b16 %v5950
        %v6117 = vunpack.c.l.b16 %v5951
        %v6118 = vunpack.c.h.b16 %v5951
        %v6119 = vunpack.c.l.b16 %v5952
        %v6120 = vunpack.c.h.b16 %v5952
        %v6121 = vunpack.c.l.b16 %v5953
        %v6122 = vunpack.c.h.b16 %v5953
        %v6123 = vunpack.c.l.b16 %v5954
        %v6124 = vunpack.c.h.b16 %v5954
        %v6125 = vunpack.c.l.b16 %v5955
        %v6126 = vunpack.c.h.b16 %v5955
        %v6127 = vunpack.c.l.b16 %v5956
        %v6128 = vunpack.c.h.b16 %v5956
        %v6129 = vunpack.c.l.b16 %v5957
        %v6130 = vunpack.c.h.b16 %v5957
        %v6131 = vunpack.c.l.b16 %v5958
        %v6132 = vunpack.c.h.b16 %v5958
        %v6133 = vunpack.c.l.b16 %v5959
        %v6134 = vunpack.c.h.b16 %v5959
        %v6135 = vunpack.c.l.b16 %v5960
        %v6136 = vunpack.c.h.b16 %v5960
        %v6137 = vunpack.c.l.b16 %v5961
        %v6138 = vunpack.c.h.b16 %v5961
        %v6139 = vunpack.c.l.b16 %v5962
        %v6140 = vunpack.c.h.b16 %v5962
        %v6141 = vunpack.c.l.b16 %v5963
        %v6142 = vunpack.c.h.b16 %v5963
        %v6143 = vunpack.c.l.b16 %v5964
        %v6144 = vunpack.c.h.b16 %v5964
        %v6145 = vpack.c.b16 %v6029, %v6025
        %v6146 = vpack.c.b16 %v6030, %v6026
        %v6147 = vpack.c.b16 %v6031, %v6027
        %v6148 = vpack.c.b16 %v6032, %v6028
        %v6149 = vpack.c.b16 %v6037, %v6033
        %v6150 = vpack.c.b16 %v6038, %v6034
        %v6151 = vpack.c.b16 %v6039, %v6035
        %v6152 = vpack.c.b16 %v6040, %v6036
        %v6153 = vpack.c.b16 %v6045, %v6041
        %v6154 = vpack.c.b16 %v6046, %v6042
        %v6155 = vpack.c.b16 %v6047, %v6043
        %v6156 = vpack.c.b16 %v6048, %v6044
        %v6157 = vpack.c.b16 %v6053, %v6049
        %v6158 = vpack.c.b16 %v6054, %v6050
        %v6159 = vpack.c.b16 %v6055, %v6051
        %v6160 = vpack.c.b16 %v6056, %v6052
        %v6161 = vpack.c.b16 %v6061, %v6057
        %v6162 = vpack.c.b16 %v6062, %v6058
        %v6163 = vpack.c.b16 %v6063, %v6059
        %v6164 = vpack.c.b16 %v6064, %v6060
        %v6165 = vpack.c.b16 %v6069, %v6065
        %v6166 = vpack.c.b16 %v6070, %v6066
        %v6167 = vpack.c.b16 %v6071, %v6067
        %v6168 = vpack.c.b16 %v6072, %v6068
        %v6169 = vpack.c.b16 %v6077, %v6073
        %v6170 = vpack.c.b16 %v6078, %v6074
        %v6171 = vpack.c.b16 %v6079, %v6075
        %v6172 = vpack.c.b16 %v6080, %v6076
        %v6173 = vpack.c.b16 %v6085, %v6081
        %v6174 = vpack.c.b16 %v6086, %v6082
        %v6175 = vpack.c.b16 %v6087, %v6083
        %v6176 = vpack.c.b16 %v6088, %v6084
        %v6177 = vpack.c.b16 %v6093, %v6089
        %v6178 = vpack.c.b16 %v6094, %v6090
        %v6179 = vpack.c.b16 %v6095, %v6091
        %v6180 = vpack.c.b16 %v6096, %v6092
        %v6181 = vpack.c.b16 %v6101, %v6097
        %v6182 = vpack.c.b16 %v6102, %v6098
        %v6183 = vpack.c.b16 %v6103, %v6099
        %v6184 = vpack.c.b16 %v6104, %v6100
        %v6185 = vpack.c.b16 %v6109, %v6105
        %v6186 = vpack.c.b16 %v6110, %v6106
        %v6187 = vpack.c.b16 %v6111, %v6107
        %v6188 = vpack.c.b16 %v6112, %v6108
        %v6189 = vpack.c.b16 %v6117, %v6113
        %v6190 = vpack.c.b16 %v6118, %v6114
        %v6191 = vpack.c.b16 %v6119, %v6115
        %v6192 = vpack.c.b16 %v6120, %v6116
        %v6193 = vpack.c.b16 %v6125, %v6121
        %v6194 = vpack.c.b16 %v6126, %v6122
        %v6195 = vpack.c.b16 %v6127, %v6123
        %v6196 = vpack.c.b16 %v6128, %v6124
        %v6197 = vpack.c.b16 %v6133, %v6129
        %v6198 = vpack.c.b16 %v6134, %v6130
        %v6199 = vpack.c.b16 %v6135, %v6131
        %v6200 = vpack.c.b16 %v6136, %v6132
        %v6201 = vpack.c.b16 %v6141, %v6137
        %v6202 = vpack.c.b16 %v6142, %v6138
        %v6203 = vpack.c.b16 %v6143, %v6139
        %v6204 = vpack.c.b16 %v6144, %v6140
        %v6266 = vsel %vm4741, %v5903, 0
        %6268 = vmatprep.subr.bf16.mxu0 %v6174
        %6269 = vmatpush1.bf16.msra.mxu0 %v6173
        %6270 = vmatprep.subr.bf16.mxu0 %v6170
        %6271 = vmatpush1.bf16.msra.mxu0 %v6169
        %6272 = vmatprep.subr.bf16.mxu0 %v6166
        %6273 = vmatpush1.bf16.msra.mxu0 %v6165
        %6274 = vmatprep.subr.bf16.mxu0 %v6162
        %6275 = vmatpush1.bf16.msra.mxu0 %v6161
        %6276 = vmatprep.subr.bf16.mxu0 %v6158
        %6277 = vmatpush1.bf16.msra.mxu0 %v6157
        %6278 = vmatprep.subr.bf16.mxu0 %v6154
        %6279 = vmatpush1.bf16.msra.mxu0 %v6153
        %6280 = vmatprep.subr.bf16.mxu0 %v6150
        %6281 = vmatpush1.bf16.msra.mxu0 %v6149
        %6282 = vmatprep.subr.bf16.mxu0 %v6146
        %6283 = vmatpush1.bf16.msra.mxu0 %v6145
        %6284 = vmatprep.subr.bf16.mxu0 0
        %6285 = vmatpush2.bf16.msra.mxu0 0
        %6286 = vmatprep.subr.bf16.mxu0 %v6202
        %6287 = vmatpush2.bf16.msra.mxu0 %v6201
        %6288 = vmatprep.subr.bf16.mxu0 %v6198
        %6289 = vmatpush2.bf16.msra.mxu0 %v6197
        %6290 = vmatprep.subr.bf16.mxu0 %v6194
        %6291 = vmatpush2.bf16.msra.mxu0 %v6193
        %6292 = vmatprep.subr.bf16.mxu0 %v6190
        %6293 = vmatpush2.bf16.msra.mxu0 %v6189
        %6294 = vmatprep.subr.bf16.mxu0 %v6186
        %6295 = vmatpush2.bf16.msra.mxu0 %v6185
        %6296 = vmatprep.subr.bf16.mxu0 %v6182
        %6297 = vmatpush2.bf16.msra.mxu0 %v6181
        %6298 = vmatprep.subr.bf16.mxu0 %v6178
        %6299 = vmatpush2.bf16.msra.mxu0 %v6177
        %6300 = vmatprep.mubr.bf16.mxu0 %v4746
        %6301 = vmatmul.mubr.bf16.gmra.mxu0 %v4374
        %v6302 = vpop.f32.mrf.mxu0
        %v6303 = vadd.f32 0.0, %v6302
        %v6304 = vpop.f32.mrf.mxu0
        %v6305 = vadd.f32 0.0, %v6304
        %v6306 = vpop.f32.mrf.mxu0
        %v6307 = vadd.f32 0.0, %v6306
        %v6308 = vpop.f32.mrf.mxu0
        %v6309 = vadd.f32 0.0, %v6308
        %6310 = vmatprep.mubr.bf16.mxu0 %v4749
        %6311 = vmatmul.mubr.bf16.gmra.mxu0 %v4376
        %v6312 = vpop.f32.mrf.mxu0
        %v6313 = vadd.f32 0.0, %v6312
        %v6314 = vpop.f32.mrf.mxu0
        %v6315 = vadd.f32 0.0, %v6314
        %v6316 = vpop.f32.mrf.mxu0
        %v6317 = vadd.f32 0.0, %v6316
        %v6318 = vpop.f32.mrf.mxu0
        %v6319 = vadd.f32 0.0, %v6318
        %6320 = vmatprep.mubr.bf16.mxu0 %v4752
        %6321 = vmatmul.mubr.bf16.gmra.mxu0 %v4378
        %v6322 = vpop.f32.mrf.mxu0
        %v6323 = vadd.f32 0.0, %v6322
        %v6324 = vpop.f32.mrf.mxu0
        %v6325 = vadd.f32 0.0, %v6324
        %v6326 = vpop.f32.mrf.mxu0
        %v6327 = vadd.f32 0.0, %v6326
        %v6328 = vpop.f32.mrf.mxu0
        %v6329 = vadd.f32 0.0, %v6328
        %6330 = vmatprep.mubr.bf16.mxu0 %v6266
        %6331 = vmatmul.mubr.bf16.gmra.mxu0 %v5902
        %v6332 = vpop.f32.mrf.mxu0
        %v6333 = vadd.f32 0.0, %v6332
        %v6334 = vpop.f32.mrf.mxu0
        %v6335 = vadd.f32 0.0, %v6334
        %v6336 = vpop.f32.mrf.mxu0
        %v6337 = vadd.f32 0.0, %v6336
        %v6338 = vpop.f32.mrf.mxu0
        %v6339 = vadd.f32 0.0, %v6338
        %6340 = vdwg.mxu0
        %6341 = vmatprep.subr.bf16.mxu0 %v6176
        %6342 = vmatpush1.bf16.msra.mxu0 %v6175
        %6343 = vmatprep.subr.bf16.mxu0 %v6172
        %6344 = vmatpush1.bf16.msra.mxu0 %v6171
        %6345 = vmatprep.subr.bf16.mxu0 %v6168
        %6346 = vmatpush1.bf16.msra.mxu0 %v6167
        %6347 = vmatprep.subr.bf16.mxu0 %v6164
        %6348 = vmatpush1.bf16.msra.mxu0 %v6163
        %6349 = vmatprep.subr.bf16.mxu0 %v6160
        %6350 = vmatpush1.bf16.msra.mxu0 %v6159
        %6351 = vmatprep.subr.bf16.mxu0 %v6156
        %6352 = vmatpush1.bf16.msra.mxu0 %v6155
        %6353 = vmatprep.subr.bf16.mxu0 %v6152
        %6354 = vmatpush1.bf16.msra.mxu0 %v6151
        %6355 = vmatprep.subr.bf16.mxu0 %v6148
        %6356 = vmatpush1.bf16.msra.mxu0 %v6147
        %6357 = vmatprep.subr.bf16.mxu0 0
        %6358 = vmatpush2.bf16.msra.mxu0 0
        %6359 = vmatprep.subr.bf16.mxu0 %v6204
        %6360 = vmatpush2.bf16.msra.mxu0 %v6203
        %6361 = vmatprep.subr.bf16.mxu0 %v6200
        %6362 = vmatpush2.bf16.msra.mxu0 %v6199
        %6363 = vmatprep.subr.bf16.mxu0 %v6196
        %6364 = vmatpush2.bf16.msra.mxu0 %v6195
        %6365 = vmatprep.subr.bf16.mxu0 %v6192
        %6366 = vmatpush2.bf16.msra.mxu0 %v6191
        %6367 = vmatprep.subr.bf16.mxu0 %v6188
        %6368 = vmatpush2.bf16.msra.mxu0 %v6187
        %6369 = vmatprep.subr.bf16.mxu0 %v6184
        %6370 = vmatpush2.bf16.msra.mxu0 %v6183
        %6371 = vmatprep.subr.bf16.mxu0 %v6180
        %6372 = vmatpush2.bf16.msra.mxu0 %v6179
        %6373 = vmatprep.mubr.bf16.mxu0 %v4746
        %6374 = vmatmul.mubr.bf16.gmra.mxu0 %v4374
        %v6375 = vpop.f32.mrf.mxu0
        %v6376 = vadd.f32 0.0, %v6375
        %v6377 = vpop.f32.mrf.mxu0
        %v6378 = vadd.f32 0.0, %v6377
        %v6379 = vpop.f32.mrf.mxu0
        %v6380 = vadd.f32 0.0, %v6379
        %v6381 = vpop.f32.mrf.mxu0
        %v6382 = vadd.f32 0.0, %v6381
        %6383 = vmatprep.mubr.bf16.mxu0 %v4749
        %6384 = vmatmul.mubr.bf16.gmra.mxu0 %v4376
        %v6385 = vpop.f32.mrf.mxu0
        %v6386 = vadd.f32 0.0, %v6385
        %v6387 = vpop.f32.mrf.mxu0
        %v6388 = vadd.f32 0.0, %v6387
        %v6389 = vpop.f32.mrf.mxu0
        %v6390 = vadd.f32 0.0, %v6389
        %v6391 = vpop.f32.mrf.mxu0
        %v6392 = vadd.f32 0.0, %v6391
        %6393 = vmatprep.mubr.bf16.mxu0 %v4752
        %6394 = vmatmul.mubr.bf16.gmra.mxu0 %v4378
        %v6395 = vpop.f32.mrf.mxu0
        %v6396 = vadd.f32 0.0, %v6395
        %v6397 = vpop.f32.mrf.mxu0
        %v6398 = vadd.f32 0.0, %v6397
        %v6399 = vpop.f32.mrf.mxu0
        %v6400 = vadd.f32 0.0, %v6399
        %v6401 = vpop.f32.mrf.mxu0
        %v6402 = vadd.f32 0.0, %v6401
        %6403 = vmatprep.mubr.bf16.mxu0 %v6266
        %6404 = vmatmul.mubr.bf16.gmra.mxu0 %v5902
        %v6405 = vpop.f32.mrf.mxu0
        %v6406 = vadd.f32 0.0, %v6405
        %v6407 = vpop.f32.mrf.mxu0
        %v6408 = vadd.f32 0.0, %v6407
        %v6409 = vpop.f32.mrf.mxu0
        %v6410 = vadd.f32 0.0, %v6409
        %v6411 = vpop.f32.mrf.mxu0
        %v6412 = vadd.f32 0.0, %v6411
        %6413 = vdwg.mxu0
        %v6414 = vadd.f32 %v5870, %v6303
        %v6415 = vadd.f32 %v5871, %v6305
        %v6416 = vadd.f32 %v5872, %v6376
        %v6417 = vadd.f32 %v5873, %v6378
        %v6418 = vadd.f32 %v5874, %v6307
        %v6419 = vadd.f32 %v5875, %v6309
        %v6420 = vadd.f32 %v5876, %v6380
        %v6421 = vadd.f32 %v5877, %v6382
        %v6422 = vadd.f32 %v5878, %v6313
        %v6423 = vadd.f32 %v5879, %v6315
        %v6424 = vadd.f32 %v5880, %v6386
        %v6425 = vadd.f32 %v5881, %v6388
        %v6426 = vadd.f32 %v5882, %v6317
        %v6427 = vadd.f32 %v5883, %v6319
        %v6428 = vadd.f32 %v5884, %v6390
        %v6429 = vadd.f32 %v5885, %v6392
        %v6430 = vadd.f32 %v5886, %v6323
        %v6431 = vadd.f32 %v5887, %v6325
        %v6432 = vadd.f32 %v5888, %v6396
        %v6433 = vadd.f32 %v5889, %v6398
        %v6434 = vadd.f32 %v5890, %v6327
        %v6435 = vadd.f32 %v5891, %v6329
        %v6436 = vadd.f32 %v5892, %v6400
        %v6437 = vadd.f32 %v5893, %v6402
        %v6438 = vadd.f32 %v5894, %v6333
        %v6439 = vadd.f32 %v5895, %v6335
        %v6440 = vadd.f32 %v5896, %v6406
        %v6441 = vadd.f32 %v5897, %v6408
        %v6442 = vadd.f32 %v5898, %v6337
        %v6443 = vadd.f32 %v5899, %v6339
        %v6444 = vadd.f32 %v5900, %v6410
        %v6445 = vadd.f32 %v5901, %v6412
        %v6446 = vpack.c.bf16 %v4302, %v4300
        %v6447 = vpack.c.bf16 %v4303, %v4301
        %s6448 = scalar_lea.vmem %s5, 1920
        %v6449 = vld [vmem:[%s6448] sm:$0xff]
        %v6450 = vld [vmem:[%s6448 + $0x8] sm:$0xff]
        %v6451 = vld [vmem:[%s6448 + $0x10] sm:$0xff]
        %v6452 = vld [vmem:[%s6448 + $0x18] sm:$0xff]
        %v6453 = vld [vmem:[%s6448 + $0x20] sm:$0xff]
        %v6454 = vld [vmem:[%s6448 + $0x28] sm:$0xff]
        %v6455 = vld [vmem:[%s6448 + $0x30] sm:$0xff]
        %v6456 = vld [vmem:[%s6448 + $0x38] sm:$0xff]
        %v6457 = vld [vmem:[%s6448 + $0x40] sm:$0xff]
        %v6458 = vld [vmem:[%s6448 + $0x48] sm:$0xff]
        %v6459 = vld [vmem:[%s6448 + $0x50] sm:$0xff]
        %v6460 = vld [vmem:[%s6448 + $0x58] sm:$0xff]
        %v6461 = vld [vmem:[%s6448 + $0x60] sm:$0xff]
        %v6462 = vld [vmem:[%s6448 + $0x68] sm:$0xff]
        %v6463 = vld [vmem:[%s6448 + $0x70] sm:$0xff]
        %v6464 = vld [vmem:[%s6448 + $0x78] sm:$0xff]
        %v6465 = vld [vmem:[%s6448 + $0x80] sm:$0xff]
        %v6466 = vld [vmem:[%s6448 + $0x88] sm:$0xff]
        %v6467 = vld [vmem:[%s6448 + $0x90] sm:$0xff]
        %v6468 = vld [vmem:[%s6448 + $0x98] sm:$0xff]
        %v6469 = vld [vmem:[%s6448 + $0xa0] sm:$0xff]
        %v6470 = vld [vmem:[%s6448 + $0xa8] sm:$0xff]
        %v6471 = vld [vmem:[%s6448 + $0xb0] sm:$0xff]
        %v6472 = vld [vmem:[%s6448 + $0xb8] sm:$0xff]
        %v6473 = vld [vmem:[%s6448 + $0xc0] sm:$0xff]
        %v6474 = vld [vmem:[%s6448 + $0xc8] sm:$0xff]
        %v6475 = vld [vmem:[%s6448 + $0xd0] sm:$0xff]
        %v6476 = vld [vmem:[%s6448 + $0xd8] sm:$0xff]
        %v6477 = vld [vmem:[%s6448 + $0xe0] sm:$0xff]
        %v6478 = vld [vmem:[%s6448 + $0xe8] sm:$0xff]
        %v6479 = vld [vmem:[%s6448 + $0xf0] sm:$0xff]
        %v6480 = vld [vmem:[%s6448 + $0xf8] sm:$0xff]
        %v6481 = vld [vmem:[%s6448 + $0x100] sm:$0xff]
        %v6482 = vld [vmem:[%s6448 + $0x108] sm:$0xff]
        %v6483 = vld [vmem:[%s6448 + $0x110] sm:$0xff]
        %v6484 = vld [vmem:[%s6448 + $0x118] sm:$0xff]
        %v6485 = vld [vmem:[%s6448 + $0x120] sm:$0xff]
        %v6486 = vld [vmem:[%s6448 + $0x128] sm:$0xff]
        %v6487 = vld [vmem:[%s6448 + $0x130] sm:$0xff]
        %v6488 = vld [vmem:[%s6448 + $0x138] sm:$0xff]
        %v6489 = vld [vmem:[%s6448 + $0x140] sm:$0xff]
        %v6490 = vld [vmem:[%s6448 + $0x148] sm:$0xff]
        %v6491 = vld [vmem:[%s6448 + $0x150] sm:$0xff]
        %v6492 = vld [vmem:[%s6448 + $0x158] sm:$0xff]
        %v6493 = vld [vmem:[%s6448 + $0x160] sm:$0xff]
        %v6494 = vld [vmem:[%s6448 + $0x168] sm:$0xff]
        %v6495 = vld [vmem:[%s6448 + $0x170] sm:$0xff]
        %v6496 = vld [vmem:[%s6448 + $0x178] sm:$0xff]
        %v6497 = vld [vmem:[%s6448 + $0x180] sm:$0xff]
        %v6498 = vld [vmem:[%s6448 + $0x188] sm:$0xff]
        %v6499 = vld [vmem:[%s6448 + $0x190] sm:$0xff]
        %v6500 = vld [vmem:[%s6448 + $0x198] sm:$0xff]
        %v6501 = vld [vmem:[%s6448 + $0x1a0] sm:$0xff]
        %v6502 = vld [vmem:[%s6448 + $0x1a8] sm:$0xff]
        %v6503 = vld [vmem:[%s6448 + $0x1b0] sm:$0xff]
        %v6504 = vld [vmem:[%s6448 + $0x1b8] sm:$0xff]
        %v6505 = vld [vmem:[%s6448 + $0x1c0] sm:$0xff]
        %v6506 = vld [vmem:[%s6448 + $0x1c8] sm:$0xff]
        %v6507 = vld [vmem:[%s6448 + $0x1d0] sm:$0xff]
        %v6508 = vld [vmem:[%s6448 + $0x1d8] sm:$0xff]
        %v6569 = vunpack.c.l.b16 %v6449
        %v6570 = vunpack.c.h.b16 %v6449
        %v6571 = vunpack.c.l.b16 %v6450
        %v6572 = vunpack.c.h.b16 %v6450
        %v6573 = vunpack.c.l.b16 %v6451
        %v6574 = vunpack.c.h.b16 %v6451
        %v6575 = vunpack.c.l.b16 %v6452
        %v6576 = vunpack.c.h.b16 %v6452
        %v6577 = vunpack.c.l.b16 %v6453
        %v6578 = vunpack.c.h.b16 %v6453
        %v6579 = vunpack.c.l.b16 %v6454
        %v6580 = vunpack.c.h.b16 %v6454
        %v6581 = vunpack.c.l.b16 %v6455
        %v6582 = vunpack.c.h.b16 %v6455
        %v6583 = vunpack.c.l.b16 %v6456
        %v6584 = vunpack.c.h.b16 %v6456
        %v6585 = vunpack.c.l.b16 %v6457
        %v6586 = vunpack.c.h.b16 %v6457
        %v6587 = vunpack.c.l.b16 %v6458
        %v6588 = vunpack.c.h.b16 %v6458
        %v6589 = vunpack.c.l.b16 %v6459
        %v6590 = vunpack.c.h.b16 %v6459
        %v6591 = vunpack.c.l.b16 %v6460
        %v6592 = vunpack.c.h.b16 %v6460
        %v6593 = vunpack.c.l.b16 %v6461
        %v6594 = vunpack.c.h.b16 %v6461
        %v6595 = vunpack.c.l.b16 %v6462
        %v6596 = vunpack.c.h.b16 %v6462
        %v6597 = vunpack.c.l.b16 %v6463
        %v6598 = vunpack.c.h.b16 %v6463
        %v6599 = vunpack.c.l.b16 %v6464
        %v6600 = vunpack.c.h.b16 %v6464
        %v6601 = vunpack.c.l.b16 %v6465
        %v6602 = vunpack.c.h.b16 %v6465
        %v6603 = vunpack.c.l.b16 %v6466
        %v6604 = vunpack.c.h.b16 %v6466
        %v6605 = vunpack.c.l.b16 %v6467
        %v6606 = vunpack.c.h.b16 %v6467
        %v6607 = vunpack.c.l.b16 %v6468
        %v6608 = vunpack.c.h.b16 %v6468
        %v6609 = vunpack.c.l.b16 %v6469
        %v6610 = vunpack.c.h.b16 %v6469
        %v6611 = vunpack.c.l.b16 %v6470
        %v6612 = vunpack.c.h.b16 %v6470
        %v6613 = vunpack.c.l.b16 %v6471
        %v6614 = vunpack.c.h.b16 %v6471
        %v6615 = vunpack.c.l.b16 %v6472
        %v6616 = vunpack.c.h.b16 %v6472
        %v6617 = vunpack.c.l.b16 %v6473
        %v6618 = vunpack.c.h.b16 %v6473
        %v6619 = vunpack.c.l.b16 %v6474
        %v6620 = vunpack.c.h.b16 %v6474
        %v6621 = vunpack.c.l.b16 %v6475
        %v6622 = vunpack.c.h.b16 %v6475
        %v6623 = vunpack.c.l.b16 %v6476
        %v6624 = vunpack.c.h.b16 %v6476
        %v6625 = vunpack.c.l.b16 %v6477
        %v6626 = vunpack.c.h.b16 %v6477
        %v6627 = vunpack.c.l.b16 %v6478
        %v6628 = vunpack.c.h.b16 %v6478
        %v6629 = vunpack.c.l.b16 %v6479
        %v6630 = vunpack.c.h.b16 %v6479
        %v6631 = vunpack.c.l.b16 %v6480
        %v6632 = vunpack.c.h.b16 %v6480
        %v6633 = vunpack.c.l.b16 %v6481
        %v6634 = vunpack.c.h.b16 %v6481
        %v6635 = vunpack.c.l.b16 %v6482
        %v6636 = vunpack.c.h.b16 %v6482
        %v6637 = vunpack.c.l.b16 %v6483
        %v6638 = vunpack.c.h.b16 %v6483
        %v6639 = vunpack.c.l.b16 %v6484
        %v6640 = vunpack.c.h.b16 %v6484
        %v6641 = vunpack.c.l.b16 %v6485
        %v6642 = vunpack.c.h.b16 %v6485
        %v6643 = vunpack.c.l.b16 %v6486
        %v6644 = vunpack.c.h.b16 %v6486
        %v6645 = vunpack.c.l.b16 %v6487
        %v6646 = vunpack.c.h.b16 %v6487
        %v6647 = vunpack.c.l.b16 %v6488
        %v6648 = vunpack.c.h.b16 %v6488
        %v6649 = vunpack.c.l.b16 %v6489
        %v6650 = vunpack.c.h.b16 %v6489
        %v6651 = vunpack.c.l.b16 %v6490
        %v6652 = vunpack.c.h.b16 %v6490
        %v6653 = vunpack.c.l.b16 %v6491
        %v6654 = vunpack.c.h.b16 %v6491
        %v6655 = vunpack.c.l.b16 %v6492
        %v6656 = vunpack.c.h.b16 %v6492
        %v6657 = vunpack.c.l.b16 %v6493
        %v6658 = vunpack.c.h.b16 %v6493
        %v6659 = vunpack.c.l.b16 %v6494
        %v6660 = vunpack.c.h.b16 %v6494
        %v6661 = vunpack.c.l.b16 %v6495
        %v6662 = vunpack.c.h.b16 %v6495
        %v6663 = vunpack.c.l.b16 %v6496
        %v6664 = vunpack.c.h.b16 %v6496
        %v6665 = vunpack.c.l.b16 %v6497
        %v6666 = vunpack.c.h.b16 %v6497
        %v6667 = vunpack.c.l.b16 %v6498
        %v6668 = vunpack.c.h.b16 %v6498
        %v6669 = vunpack.c.l.b16 %v6499
        %v6670 = vunpack.c.h.b16 %v6499
        %v6671 = vunpack.c.l.b16 %v6500
        %v6672 = vunpack.c.h.b16 %v6500
        %v6673 = vunpack.c.l.b16 %v6501
        %v6674 = vunpack.c.h.b16 %v6501
        %v6675 = vunpack.c.l.b16 %v6502
        %v6676 = vunpack.c.h.b16 %v6502
        %v6677 = vunpack.c.l.b16 %v6503
        %v6678 = vunpack.c.h.b16 %v6503
        %v6679 = vunpack.c.l.b16 %v6504
        %v6680 = vunpack.c.h.b16 %v6504
        %v6681 = vunpack.c.l.b16 %v6505
        %v6682 = vunpack.c.h.b16 %v6505
        %v6683 = vunpack.c.l.b16 %v6506
        %v6684 = vunpack.c.h.b16 %v6506
        %v6685 = vunpack.c.l.b16 %v6507
        %v6686 = vunpack.c.h.b16 %v6507
        %v6687 = vunpack.c.l.b16 %v6508
        %v6688 = vunpack.c.h.b16 %v6508
        %v6689 = vpack.c.b16 %v6573, %v6569
        %v6690 = vpack.c.b16 %v6574, %v6570
        %v6691 = vpack.c.b16 %v6575, %v6571
        %v6692 = vpack.c.b16 %v6576, %v6572
        %v6693 = vpack.c.b16 %v6581, %v6577
        %v6694 = vpack.c.b16 %v6582, %v6578
        %v6695 = vpack.c.b16 %v6583, %v6579
        %v6696 = vpack.c.b16 %v6584, %v6580
        %v6697 = vpack.c.b16 %v6589, %v6585
        %v6698 = vpack.c.b16 %v6590, %v6586
        %v6699 = vpack.c.b16 %v6591, %v6587
        %v6700 = vpack.c.b16 %v6592, %v6588
        %v6701 = vpack.c.b16 %v6597, %v6593
        %v6702 = vpack.c.b16 %v6598, %v6594
        %v6703 = vpack.c.b16 %v6599, %v6595
        %v6704 = vpack.c.b16 %v6600, %v6596
        %v6705 = vpack.c.b16 %v6605, %v6601
        %v6706 = vpack.c.b16 %v6606, %v6602
        %v6707 = vpack.c.b16 %v6607, %v6603
        %v6708 = vpack.c.b16 %v6608, %v6604
        %v6709 = vpack.c.b16 %v6613, %v6609
        %v6710 = vpack.c.b16 %v6614, %v6610
        %v6711 = vpack.c.b16 %v6615, %v6611
        %v6712 = vpack.c.b16 %v6616, %v6612
        %v6713 = vpack.c.b16 %v6621, %v6617
        %v6714 = vpack.c.b16 %v6622, %v6618
        %v6715 = vpack.c.b16 %v6623, %v6619
        %v6716 = vpack.c.b16 %v6624, %v6620
        %v6717 = vpack.c.b16 %v6629, %v6625
        %v6718 = vpack.c.b16 %v6630, %v6626
        %v6719 = vpack.c.b16 %v6631, %v6627
        %v6720 = vpack.c.b16 %v6632, %v6628
        %v6721 = vpack.c.b16 %v6637, %v6633
        %v6722 = vpack.c.b16 %v6638, %v6634
        %v6723 = vpack.c.b16 %v6639, %v6635
        %v6724 = vpack.c.b16 %v6640, %v6636
        %v6725 = vpack.c.b16 %v6645, %v6641
        %v6726 = vpack.c.b16 %v6646, %v6642
        %v6727 = vpack.c.b16 %v6647, %v6643
        %v6728 = vpack.c.b16 %v6648, %v6644
        %v6729 = vpack.c.b16 %v6653, %v6649
        %v6730 = vpack.c.b16 %v6654, %v6650
        %v6731 = vpack.c.b16 %v6655, %v6651
        %v6732 = vpack.c.b16 %v6656, %v6652
        %v6733 = vpack.c.b16 %v6661, %v6657
        %v6734 = vpack.c.b16 %v6662, %v6658
        %v6735 = vpack.c.b16 %v6663, %v6659
        %v6736 = vpack.c.b16 %v6664, %v6660
        %v6737 = vpack.c.b16 %v6669, %v6665
        %v6738 = vpack.c.b16 %v6670, %v6666
        %v6739 = vpack.c.b16 %v6671, %v6667
        %v6740 = vpack.c.b16 %v6672, %v6668
        %v6741 = vpack.c.b16 %v6677, %v6673
        %v6742 = vpack.c.b16 %v6678, %v6674
        %v6743 = vpack.c.b16 %v6679, %v6675
        %v6744 = vpack.c.b16 %v6680, %v6676
        %v6745 = vpack.c.b16 %v6685, %v6681
        %v6746 = vpack.c.b16 %v6686, %v6682
        %v6747 = vpack.c.b16 %v6687, %v6683
        %v6748 = vpack.c.b16 %v6688, %v6684
        %v6810 = vsel %vm4741, %v6447, 0
        %6812 = vmatprep.subr.bf16.mxu0 %v6718
        %6813 = vmatpush1.bf16.msra.mxu0 %v6717
        %6814 = vmatprep.subr.bf16.mxu0 %v6714
        %6815 = vmatpush1.bf16.msra.mxu0 %v6713
        %6816 = vmatprep.subr.bf16.mxu0 %v6710
        %6817 = vmatpush1.bf16.msra.mxu0 %v6709
        %6818 = vmatprep.subr.bf16.mxu0 %v6706
        %6819 = vmatpush1.bf16.msra.mxu0 %v6705
        %6820 = vmatprep.subr.bf16.mxu0 %v6702
        %6821 = vmatpush1.bf16.msra.mxu0 %v6701
        %6822 = vmatprep.subr.bf16.mxu0 %v6698
        %6823 = vmatpush1.bf16.msra.mxu0 %v6697
        %6824 = vmatprep.subr.bf16.mxu0 %v6694
        %6825 = vmatpush1.bf16.msra.mxu0 %v6693
        %6826 = vmatprep.subr.bf16.mxu0 %v6690
        %6827 = vmatpush1.bf16.msra.mxu0 %v6689
        %6828 = vmatprep.subr.bf16.mxu0 0
        %6829 = vmatpush2.bf16.msra.mxu0 0
        %6830 = vmatprep.subr.bf16.mxu0 %v6746
        %6831 = vmatpush2.bf16.msra.mxu0 %v6745
        %6832 = vmatprep.subr.bf16.mxu0 %v6742
        %6833 = vmatpush2.bf16.msra.mxu0 %v6741
        %6834 = vmatprep.subr.bf16.mxu0 %v6738
        %6835 = vmatpush2.bf16.msra.mxu0 %v6737
        %6836 = vmatprep.subr.bf16.mxu0 %v6734
        %6837 = vmatpush2.bf16.msra.mxu0 %v6733
        %6838 = vmatprep.subr.bf16.mxu0 %v6730
        %6839 = vmatpush2.bf16.msra.mxu0 %v6729
        %6840 = vmatprep.subr.bf16.mxu0 %v6726
        %6841 = vmatpush2.bf16.msra.mxu0 %v6725
        %6842 = vmatprep.subr.bf16.mxu0 %v6722
        %6843 = vmatpush2.bf16.msra.mxu0 %v6721
        %6844 = vmatprep.mubr.bf16.mxu0 %v5207
        %6845 = vmatmul.mubr.bf16.gmra.mxu0 %v4308
        %v6846 = vpop.f32.mrf.mxu0
        %v6847 = vadd.f32 0.0, %v6846
        %v6848 = vpop.f32.mrf.mxu0
        %v6849 = vadd.f32 0.0, %v6848
        %v6850 = vpop.f32.mrf.mxu0
        %v6851 = vadd.f32 0.0, %v6850
        %v6852 = vpop.f32.mrf.mxu0
        %v6853 = vadd.f32 0.0, %v6852
        %6854 = vmatprep.mubr.bf16.mxu0 %v5210
        %6855 = vmatmul.mubr.bf16.gmra.mxu0 %v4310
        %v6856 = vpop.f32.mrf.mxu0
        %v6857 = vadd.f32 0.0, %v6856
        %v6858 = vpop.f32.mrf.mxu0
        %v6859 = vadd.f32 0.0, %v6858
        %v6860 = vpop.f32.mrf.mxu0
        %v6861 = vadd.f32 0.0, %v6860
        %v6862 = vpop.f32.mrf.mxu0
        %v6863 = vadd.f32 0.0, %v6862
        %6864 = vmatprep.mubr.bf16.mxu0 %v5722
        %6865 = vmatmul.mubr.bf16.gmra.mxu0 %v5358
        %v6866 = vpop.f32.mrf.mxu0
        %v6867 = vadd.f32 0.0, %v6866
        %v6868 = vpop.f32.mrf.mxu0
        %v6869 = vadd.f32 0.0, %v6868
        %v6870 = vpop.f32.mrf.mxu0
        %v6871 = vadd.f32 0.0, %v6870
        %v6872 = vpop.f32.mrf.mxu0
        %v6873 = vadd.f32 0.0, %v6872
        %6874 = vmatprep.mubr.bf16.mxu0 %v6810
        %6875 = vmatmul.mubr.bf16.gmra.mxu0 %v6446
        %v6876 = vpop.f32.mrf.mxu0
        %v6877 = vadd.f32 0.0, %v6876
        %v6878 = vpop.f32.mrf.mxu0
        %v6879 = vadd.f32 0.0, %v6878
        %v6880 = vpop.f32.mrf.mxu0
        %v6881 = vadd.f32 0.0, %v6880
        %v6882 = vpop.f32.mrf.mxu0
        %v6883 = vadd.f32 0.0, %v6882
        %6884 = vdwg.mxu0
        %6885 = vmatprep.subr.bf16.mxu0 %v6720
        %6886 = vmatpush1.bf16.msra.mxu0 %v6719
        %6887 = vmatprep.subr.bf16.mxu0 %v6716
        %6888 = vmatpush1.bf16.msra.mxu0 %v6715
        %6889 = vmatprep.subr.bf16.mxu0 %v6712
        %6890 = vmatpush1.bf16.msra.mxu0 %v6711
        %6891 = vmatprep.subr.bf16.mxu0 %v6708
        %6892 = vmatpush1.bf16.msra.mxu0 %v6707
        %6893 = vmatprep.subr.bf16.mxu0 %v6704
        %6894 = vmatpush1.bf16.msra.mxu0 %v6703
        %6895 = vmatprep.subr.bf16.mxu0 %v6700
        %6896 = vmatpush1.bf16.msra.mxu0 %v6699
        %6897 = vmatprep.subr.bf16.mxu0 %v6696
        %6898 = vmatpush1.bf16.msra.mxu0 %v6695
        %6899 = vmatprep.subr.bf16.mxu0 %v6692
        %6900 = vmatpush1.bf16.msra.mxu0 %v6691
        %6901 = vmatprep.subr.bf16.mxu0 0
        %6902 = vmatpush2.bf16.msra.mxu0 0
        %6903 = vmatprep.subr.bf16.mxu0 %v6748
        %6904 = vmatpush2.bf16.msra.mxu0 %v6747
        %6905 = vmatprep.subr.bf16.mxu0 %v6744
        %6906 = vmatpush2.bf16.msra.mxu0 %v6743
        %6907 = vmatprep.subr.bf16.mxu0 %v6740
        %6908 = vmatpush2.bf16.msra.mxu0 %v6739
        %6909 = vmatprep.subr.bf16.mxu0 %v6736
        %6910 = vmatpush2.bf16.msra.mxu0 %v6735
        %6911 = vmatprep.subr.bf16.mxu0 %v6732
        %6912 = vmatpush2.bf16.msra.mxu0 %v6731
        %6913 = vmatprep.subr.bf16.mxu0 %v6728
        %6914 = vmatpush2.bf16.msra.mxu0 %v6727
        %6915 = vmatprep.subr.bf16.mxu0 %v6724
        %6916 = vmatpush2.bf16.msra.mxu0 %v6723
        %6917 = vmatprep.mubr.bf16.mxu0 %v5207
        %6918 = vmatmul.mubr.bf16.gmra.mxu0 %v4308
        %v6919 = vpop.f32.mrf.mxu0
        %v6920 = vadd.f32 0.0, %v6919
        %v6921 = vpop.f32.mrf.mxu0
        %v6922 = vadd.f32 0.0, %v6921
        %v6923 = vpop.f32.mrf.mxu0
        %v6924 = vadd.f32 0.0, %v6923
        %v6925 = vpop.f32.mrf.mxu0
        %v6926 = vadd.f32 0.0, %v6925
        %6927 = vmatprep.mubr.bf16.mxu0 %v5210
        %6928 = vmatmul.mubr.bf16.gmra.mxu0 %v4310
        %v6929 = vpop.f32.mrf.mxu0
        %v6930 = vadd.f32 0.0, %v6929
        %v6931 = vpop.f32.mrf.mxu0
        %v6932 = vadd.f32 0.0, %v6931
        %v6933 = vpop.f32.mrf.mxu0
        %v6934 = vadd.f32 0.0, %v6933
        %v6935 = vpop.f32.mrf.mxu0
        %v6936 = vadd.f32 0.0, %v6935
        %6937 = vmatprep.mubr.bf16.mxu0 %v5722
        %6938 = vmatmul.mubr.bf16.gmra.mxu0 %v5358
        %v6939 = vpop.f32.mrf.mxu0
        %v6940 = vadd.f32 0.0, %v6939
        %v6941 = vpop.f32.mrf.mxu0
        %v6942 = vadd.f32 0.0, %v6941
        %v6943 = vpop.f32.mrf.mxu0
        %v6944 = vadd.f32 0.0, %v6943
        %v6945 = vpop.f32.mrf.mxu0
        %v6946 = vadd.f32 0.0, %v6945
        %6947 = vmatprep.mubr.bf16.mxu0 %v6810
        %6948 = vmatmul.mubr.bf16.gmra.mxu0 %v6446
        %v6949 = vpop.f32.mrf.mxu0
        %v6950 = vadd.f32 0.0, %v6949
        %v6951 = vpop.f32.mrf.mxu0
        %v6952 = vadd.f32 0.0, %v6951
        %v6953 = vpop.f32.mrf.mxu0
        %v6954 = vadd.f32 0.0, %v6953
        %v6955 = vpop.f32.mrf.mxu0
        %v6956 = vadd.f32 0.0, %v6955
        %6957 = vdwg.mxu0
        %v6958 = vadd.f32 %v6414, %v6847
        %v6959 = vadd.f32 %v6415, %v6849
        %v6960 = vadd.f32 %v6416, %v6920
        %v6961 = vadd.f32 %v6417, %v6922
        %v6962 = vadd.f32 %v6418, %v6851
        %v6963 = vadd.f32 %v6419, %v6853
        %v6964 = vadd.f32 %v6420, %v6924
        %v6965 = vadd.f32 %v6421, %v6926
        %v6966 = vadd.f32 %v6422, %v6857
        %v6967 = vadd.f32 %v6423, %v6859
        %v6968 = vadd.f32 %v6424, %v6930
        %v6969 = vadd.f32 %v6425, %v6932
        %v6970 = vadd.f32 %v6426, %v6861
        %v6971 = vadd.f32 %v6427, %v6863
        %v6972 = vadd.f32 %v6428, %v6934
        %v6973 = vadd.f32 %v6429, %v6936
        %v6974 = vadd.f32 %v6430, %v6867
        %v6975 = vadd.f32 %v6431, %v6869
        %v6976 = vadd.f32 %v6432, %v6940
        %v6977 = vadd.f32 %v6433, %v6942
        %v6978 = vadd.f32 %v6434, %v6871
        %v6979 = vadd.f32 %v6435, %v6873
        %v6980 = vadd.f32 %v6436, %v6944
        %v6981 = vadd.f32 %v6437, %v6946
        %v6982 = vadd.f32 %v6438, %v6877
        %v6983 = vadd.f32 %v6439, %v6879
        %v6984 = vadd.f32 %v6440, %v6950
        %v6985 = vadd.f32 %v6441, %v6952
        %v6986 = vadd.f32 %v6442, %v6881
        %v6987 = vadd.f32 %v6443, %v6883
        %v6988 = vadd.f32 %v6444, %v6954
        %v6989 = vadd.f32 %v6445, %v6956
        %v6990 = vld [vmem:[%s6] sm:$0xf]
        %v6992 = vlaneseq
        %v6993 = vshrl.u32 %v6992, 7
        %v6994 = vsub.s32 0, %v6993
        %v6995 = vrot.slane %v6990, %v6994
        %v6996 = vlaneseq
        %v6997 = vshrl.u32 %v6996, 7
        %v6998 = vsub.s32 1, %v6997
        %v6999 = vrot.slane %v6990, %v6998
        %v7000 = vlaneseq
        %v7001 = vshrl.u32 %v7000, 7
        %v7002 = vsub.s32 2, %v7001
        %v7003 = vrot.slane %v6990, %v7002
        %v7004 = vlaneseq
        %v7005 = vshrl.u32 %v7004, 7
        %v7006 = vsub.s32 3, %v7005
        %v7007 = vrot.slane %v6990, %v7006
        %v7012 = vadd.f32 %v6958, %v6995
        %v7013 = vadd.f32 %v6959, %v6999
        %v7014 = vadd.f32 %v6960, %v7003
        %v7015 = vadd.f32 %v6961, %v7007
        %v7016 = vadd.f32 %v6962, %v6995
        %v7017 = vadd.f32 %v6963, %v6999
        %v7018 = vadd.f32 %v6964, %v7003
        %v7019 = vadd.f32 %v6965, %v7007
        %v7020 = vadd.f32 %v6966, %v6995
        %v7021 = vadd.f32 %v6967, %v6999
        %v7022 = vadd.f32 %v6968, %v7003
        %v7023 = vadd.f32 %v6969, %v7007
        %v7024 = vadd.f32 %v6970, %v6995
        %v7025 = vadd.f32 %v6971, %v6999
        %v7026 = vadd.f32 %v6972, %v7003
        %v7027 = vadd.f32 %v6973, %v7007
        %v7028 = vadd.f32 %v6974, %v6995
        %v7029 = vadd.f32 %v6975, %v6999
        %v7030 = vadd.f32 %v6976, %v7003
        %v7031 = vadd.f32 %v6977, %v7007
        %v7032 = vadd.f32 %v6978, %v6995
        %v7033 = vadd.f32 %v6979, %v6999
        %v7034 = vadd.f32 %v6980, %v7003
        %v7035 = vadd.f32 %v6981, %v7007
        %v7036 = vadd.f32 %v6982, %v6995
        %v7037 = vadd.f32 %v6983, %v6999
        %v7038 = vadd.f32 %v6984, %v7003
        %v7039 = vadd.f32 %v6985, %v7007
        %v7040 = vadd.f32 %v6986, %v6995
        %v7041 = vadd.f32 %v6987, %v6999
        %v7042 = vadd.f32 %v6988, %v7003
        %v7043 = vadd.f32 %v6989, %v7007
        %v7044 = vmax.f32 %v7012, 0.0
        %v7045 = vmax.f32 %v7013, 0.0
        %v7046 = vmax.f32 %v7014, 0.0
        %v7047 = vmax.f32 %v7015, 0.0
        %v7048 = vmax.f32 %v7016, 0.0
        %v7049 = vmax.f32 %v7017, 0.0
        %v7050 = vmax.f32 %v7018, 0.0
        %v7051 = vmax.f32 %v7019, 0.0
        %v7052 = vmax.f32 %v7020, 0.0
        %v7053 = vmax.f32 %v7021, 0.0
        %v7054 = vmax.f32 %v7022, 0.0
        %v7055 = vmax.f32 %v7023, 0.0
        %v7056 = vmax.f32 %v7024, 0.0
        %v7057 = vmax.f32 %v7025, 0.0
        %v7058 = vmax.f32 %v7026, 0.0
        %v7059 = vmax.f32 %v7027, 0.0
        %v7060 = vmax.f32 %v7028, 0.0
        %v7061 = vmax.f32 %v7029, 0.0
        %v7062 = vmax.f32 %v7030, 0.0
        %v7063 = vmax.f32 %v7031, 0.0
        %v7064 = vmax.f32 %v7032, 0.0
        %v7065 = vmax.f32 %v7033, 0.0
        %v7066 = vmax.f32 %v7034, 0.0
        %v7067 = vmax.f32 %v7035, 0.0
        %v7068 = vmax.f32 %v7036, 0.0
        %v7069 = vmax.f32 %v7037, 0.0
        %v7070 = vmax.f32 %v7038, 0.0
        %v7071 = vmax.f32 %v7039, 0.0
        %v7072 = vmax.f32 %v7040, 0.0
        %v7073 = vmax.f32 %v7041, 0.0
        %v7074 = vmax.f32 %v7042, 0.0
        %v7075 = vmax.f32 %v7043, 0.0
        %v7076 = vmax.f32 %v7044, %v7048
        %v7077 = vmax.f32 %v7045, %v7049
        %v7078 = vmax.f32 %v7046, %v7050
        %v7079 = vmax.f32 %v7047, %v7051
        %v7080 = vmax.f32 %v7052, %v7056
        %v7081 = vmax.f32 %v7053, %v7057
        %v7082 = vmax.f32 %v7054, %v7058
        %v7083 = vmax.f32 %v7055, %v7059
        %v7084 = vmax.f32 %v7060, %v7064
        %v7085 = vmax.f32 %v7061, %v7065
        %v7086 = vmax.f32 %v7062, %v7066
        %v7087 = vmax.f32 %v7063, %v7067
        %v7088 = vmax.f32 %v7068, %v7072
        %v7089 = vmax.f32 %v7069, %v7073
        %v7090 = vmax.f32 %v7070, %v7074
        %v7091 = vmax.f32 %v7071, %v7075
        %v7092 = vpack.c.bf16 %v7080, %v7076
        %v7093 = vpack.c.bf16 %v7081, %v7077
        %v7094 = vpack.c.bf16 %v7082, %v7078
        %v7095 = vpack.c.bf16 %v7083, %v7079
        %v7096 = vpack.c.bf16 %v7088, %v7084
        %v7097 = vpack.c.bf16 %v7089, %v7085
        %v7098 = vpack.c.bf16 %v7090, %v7086
        %v7099 = vpack.c.bf16 %v7091, %v7087
        %v7100 = vld [vmem:[%s7] sm:$0xff]
        %v7101 = vld [vmem:[%s7 + $0x8] sm:$0xff]
        %v7102 = vld [vmem:[%s7 + $0x10] sm:$0xff]
        %v7103 = vld [vmem:[%s7 + $0x18] sm:$0xff]
        %v7104 = vld [vmem:[%s7 + $0x20] sm:$0xff]
        %v7105 = vld [vmem:[%s7 + $0x28] sm:$0xff]
        %v7106 = vld [vmem:[%s7 + $0x30] sm:$0xff]
        %v7107 = vld [vmem:[%s7 + $0x38] sm:$0xff]
        %v7108 = vld [vmem:[%s7 + $0x40] sm:$0xff]
        %v7109 = vld [vmem:[%s7 + $0x48] sm:$0xff]
        %v7110 = vld [vmem:[%s7 + $0x50] sm:$0xff]
        %v7111 = vld [vmem:[%s7 + $0x58] sm:$0xff]
        %v7112 = vld [vmem:[%s7 + $0x60] sm:$0xff]
        %v7113 = vld [vmem:[%s7 + $0x68] sm:$0xff]
        %v7114 = vld [vmem:[%s7 + $0x70] sm:$0xff]
        %v7115 = vld [vmem:[%s7 + $0x78] sm:$0xff]
        %v7116 = vld [vmem:[%s7 + $0x80] sm:$0xff]
        %v7117 = vld [vmem:[%s7 + $0x88] sm:$0xff]
        %v7118 = vld [vmem:[%s7 + $0x90] sm:$0xff]
        %v7119 = vld [vmem:[%s7 + $0x98] sm:$0xff]
        %v7120 = vld [vmem:[%s7 + $0xa0] sm:$0xff]
        %v7121 = vld [vmem:[%s7 + $0xa8] sm:$0xff]
        %v7122 = vld [vmem:[%s7 + $0xb0] sm:$0xff]
        %v7123 = vld [vmem:[%s7 + $0xb8] sm:$0xff]
        %v7124 = vld [vmem:[%s7 + $0xc0] sm:$0xff]
        %v7125 = vld [vmem:[%s7 + $0xc8] sm:$0xff]
        %v7126 = vld [vmem:[%s7 + $0xd0] sm:$0xff]
        %v7127 = vld [vmem:[%s7 + $0xd8] sm:$0xff]
        %v7128 = vld [vmem:[%s7 + $0xe0] sm:$0xff]
        %v7129 = vld [vmem:[%s7 + $0xe8] sm:$0xff]
        %v7130 = vld [vmem:[%s7 + $0xf0] sm:$0xff]
        %v7131 = vld [vmem:[%s7 + $0xf8] sm:$0xff]
        %v7132 = vld [vmem:[%s7 + $0x100] sm:$0xff]
        %v7133 = vld [vmem:[%s7 + $0x108] sm:$0xff]
        %v7134 = vld [vmem:[%s7 + $0x110] sm:$0xff]
        %v7135 = vld [vmem:[%s7 + $0x118] sm:$0xff]
        %v7136 = vld [vmem:[%s7 + $0x120] sm:$0xff]
        %v7137 = vld [vmem:[%s7 + $0x128] sm:$0xff]
        %v7138 = vld [vmem:[%s7 + $0x130] sm:$0xff]
        %v7139 = vld [vmem:[%s7 + $0x138] sm:$0xff]
        %v7140 = vld [vmem:[%s7 + $0x140] sm:$0xff]
        %v7141 = vld [vmem:[%s7 + $0x148] sm:$0xff]
        %v7142 = vld [vmem:[%s7 + $0x150] sm:$0xff]
        %v7143 = vld [vmem:[%s7 + $0x158] sm:$0xff]
        %v7144 = vld [vmem:[%s7 + $0x160] sm:$0xff]
        %v7145 = vld [vmem:[%s7 + $0x168] sm:$0xff]
        %v7146 = vld [vmem:[%s7 + $0x170] sm:$0xff]
        %v7147 = vld [vmem:[%s7 + $0x178] sm:$0xff]
        %v7148 = vld [vmem:[%s7 + $0x180] sm:$0xff]
        %v7149 = vld [vmem:[%s7 + $0x188] sm:$0xff]
        %v7200 = vunpack.c.l.b16 %v7100
        %v7201 = vunpack.c.h.b16 %v7100
        %v7202 = vunpack.c.l.b16 %v7101
        %v7203 = vunpack.c.h.b16 %v7101
        %v7204 = vunpack.c.l.b16 %v7102
        %v7205 = vunpack.c.h.b16 %v7102
        %v7206 = vunpack.c.l.b16 %v7103
        %v7207 = vunpack.c.h.b16 %v7103
        %v7208 = vunpack.c.l.b16 %v7104
        %v7209 = vunpack.c.h.b16 %v7104
        %v7210 = vunpack.c.l.b16 %v7105
        %v7211 = vunpack.c.h.b16 %v7105
        %v7212 = vunpack.c.l.b16 %v7106
        %v7213 = vunpack.c.h.b16 %v7106
        %v7214 = vunpack.c.l.b16 %v7107
        %v7215 = vunpack.c.h.b16 %v7107
        %v7216 = vunpack.c.l.b16 %v7108
        %v7217 = vunpack.c.h.b16 %v7108
        %v7218 = vunpack.c.l.b16 %v7109
        %v7219 = vunpack.c.h.b16 %v7109
        %v7220 = vunpack.c.l.b16 %v7110
        %v7221 = vunpack.c.h.b16 %v7110
        %v7222 = vunpack.c.l.b16 %v7111
        %v7223 = vunpack.c.h.b16 %v7111
        %v7224 = vunpack.c.l.b16 %v7112
        %v7225 = vunpack.c.h.b16 %v7112
        %v7226 = vunpack.c.l.b16 %v7113
        %v7227 = vunpack.c.h.b16 %v7113
        %v7228 = vunpack.c.l.b16 %v7114
        %v7229 = vunpack.c.h.b16 %v7114
        %v7230 = vunpack.c.l.b16 %v7115
        %v7231 = vunpack.c.h.b16 %v7115
        %v7232 = vunpack.c.l.b16 %v7116
        %v7233 = vunpack.c.h.b16 %v7116
        %v7234 = vunpack.c.l.b16 %v7117
        %v7235 = vunpack.c.h.b16 %v7117
        %v7236 = vunpack.c.l.b16 %v7118
        %v7237 = vunpack.c.h.b16 %v7118
        %v7238 = vunpack.c.l.b16 %v7119
        %v7239 = vunpack.c.h.b16 %v7119
        %v7240 = vunpack.c.l.b16 %v7120
        %v7241 = vunpack.c.h.b16 %v7120
        %v7242 = vunpack.c.l.b16 %v7121
        %v7243 = vunpack.c.h.b16 %v7121
        %v7244 = vunpack.c.l.b16 %v7122
        %v7245 = vunpack.c.h.b16 %v7122
        %v7246 = vunpack.c.l.b16 %v7123
        %v7247 = vunpack.c.h.b16 %v7123
        %v7248 = vunpack.c.l.b16 %v7124
        %v7249 = vunpack.c.h.b16 %v7124
        %v7250 = vunpack.c.l.b16 %v7125
        %v7251 = vunpack.c.h.b16 %v7125
        %v7252 = vunpack.c.l.b16 %v7126
        %v7253 = vunpack.c.h.b16 %v7126
        %v7254 = vunpack.c.l.b16 %v7127
        %v7255 = vunpack.c.h.b16 %v7127
        %v7256 = vunpack.c.l.b16 %v7128
        %v7257 = vunpack.c.h.b16 %v7128
        %v7258 = vunpack.c.l.b16 %v7129
        %v7259 = vunpack.c.h.b16 %v7129
        %v7260 = vunpack.c.l.b16 %v7130
        %v7261 = vunpack.c.h.b16 %v7130
        %v7262 = vunpack.c.l.b16 %v7131
        %v7263 = vunpack.c.h.b16 %v7131
        %v7264 = vunpack.c.l.b16 %v7132
        %v7265 = vunpack.c.h.b16 %v7132
        %v7266 = vunpack.c.l.b16 %v7133
        %v7267 = vunpack.c.h.b16 %v7133
        %v7268 = vunpack.c.l.b16 %v7134
        %v7269 = vunpack.c.h.b16 %v7134
        %v7270 = vunpack.c.l.b16 %v7135
        %v7271 = vunpack.c.h.b16 %v7135
        %v7272 = vunpack.c.l.b16 %v7136
        %v7273 = vunpack.c.h.b16 %v7136
        %v7274 = vunpack.c.l.b16 %v7137
        %v7275 = vunpack.c.h.b16 %v7137
        %v7276 = vunpack.c.l.b16 %v7138
        %v7277 = vunpack.c.h.b16 %v7138
        %v7278 = vunpack.c.l.b16 %v7139
        %v7279 = vunpack.c.h.b16 %v7139
        %v7280 = vunpack.c.l.b16 %v7140
        %v7281 = vunpack.c.h.b16 %v7140
        %v7282 = vunpack.c.l.b16 %v7141
        %v7283 = vunpack.c.h.b16 %v7141
        %v7284 = vunpack.c.l.b16 %v7142
        %v7285 = vunpack.c.h.b16 %v7142
        %v7286 = vunpack.c.l.b16 %v7143
        %v7287 = vunpack.c.h.b16 %v7143
        %v7288 = vunpack.c.l.b16 %v7144
        %v7289 = vunpack.c.h.b16 %v7144
        %v7290 = vunpack.c.l.b16 %v7145
        %v7291 = vunpack.c.h.b16 %v7145
        %v7292 = vunpack.c.l.b16 %v7146
        %v7293 = vunpack.c.h.b16 %v7146
        %v7294 = vunpack.c.l.b16 %v7147
        %v7295 = vunpack.c.h.b16 %v7147
        %v7296 = vunpack.c.l.b16 %v7148
        %v7297 = vunpack.c.h.b16 %v7148
        %v7298 = vunpack.c.l.b16 %v7149
        %v7299 = vunpack.c.h.b16 %v7149
        %v7300 = vpack.c.b16 %v7202, %v7200
        %v7301 = vpack.c.b16 %v7203, %v7201
        %v7302 = vpack.c.b16 %v7206, %v7204
        %v7303 = vpack.c.b16 %v7207, %v7205
        %v7304 = vpack.c.b16 %v7210, %v7208
        %v7305 = vpack.c.b16 %v7211, %v7209
        %v7306 = vpack.c.b16 %v7214, %v7212
        %v7307 = vpack.c.b16 %v7215, %v7213
        %v7308 = vpack.c.b16 %v7218, %v7216
        %v7309 = vpack.c.b16 %v7219, %v7217
        %v7310 = vpack.c.b16 %v7222, %v7220
        %v7311 = vpack.c.b16 %v7223, %v7221
        %v7312 = vpack.c.b16 %v7226, %v7224
        %v7313 = vpack.c.b16 %v7227, %v7225
        %v7314 = vpack.c.b16 %v7230, %v7228
        %v7315 = vpack.c.b16 %v7231, %v7229
        %v7316 = vpack.c.b16 %v7234, %v7232
        %v7317 = vpack.c.b16 %v7235, %v7233
        %v7318 = vpack.c.b16 %v7238, %v7236
        %v7319 = vpack.c.b16 %v7239, %v7237
        %v7320 = vpack.c.b16 %v7242, %v7240
        %v7321 = vpack.c.b16 %v7243, %v7241
        %v7322 = vpack.c.b16 %v7246, %v7244
        %v7323 = vpack.c.b16 %v7247, %v7245
        %v7324 = vpack.c.b16 %v7250, %v7248
        %v7325 = vpack.c.b16 %v7251, %v7249
        %v7326 = vpack.c.b16 %v7254, %v7252
        %v7327 = vpack.c.b16 %v7255, %v7253
        %v7328 = vpack.c.b16 %v7258, %v7256
        %v7329 = vpack.c.b16 %v7259, %v7257
        %v7330 = vpack.c.b16 %v7262, %v7260
        %v7331 = vpack.c.b16 %v7263, %v7261
        %v7332 = vpack.c.b16 %v7266, %v7264
        %v7333 = vpack.c.b16 %v7267, %v7265
        %v7334 = vpack.c.b16 %v7270, %v7268
        %v7335 = vpack.c.b16 %v7271, %v7269
        %v7336 = vpack.c.b16 %v7274, %v7272
        %v7337 = vpack.c.b16 %v7275, %v7273
        %v7338 = vpack.c.b16 %v7278, %v7276
        %v7339 = vpack.c.b16 %v7279, %v7277
        %v7340 = vpack.c.b16 %v7282, %v7280
        %v7341 = vpack.c.b16 %v7283, %v7281
        %v7342 = vpack.c.b16 %v7286, %v7284
        %v7343 = vpack.c.b16 %v7287, %v7285
        %v7344 = vpack.c.b16 %v7290, %v7288
        %v7345 = vpack.c.b16 %v7291, %v7289
        %v7346 = vpack.c.b16 %v7294, %v7292
        %v7347 = vpack.c.b16 %v7295, %v7293
        %v7348 = vpack.c.b16 %v7298, %v7296
        %v7349 = vpack.c.b16 %v7299, %v7297
        %vm7400 = vcmask 130048
        %v7402 = vsel %vm7400, %v7095, 0
        %v7405 = vsel %vm7400, %v7099, 0
        %7407 = vmatprep.subr.bf16.mxu0 %v7315
        %7408 = vmatpush1.bf16.msra.mxu0 %v7314
        %7409 = vmatprep.subr.bf16.mxu0 %v7313
        %7410 = vmatpush1.bf16.msra.mxu0 %v7312
        %7411 = vmatprep.subr.bf16.mxu0 %v7311
        %7412 = vmatpush1.bf16.msra.mxu0 %v7310
        %7413 = vmatprep.subr.bf16.mxu0 %v7309
        %7414 = vmatpush1.bf16.msra.mxu0 %v7308
        %7415 = vmatprep.subr.bf16.mxu0 %v7307
        %7416 = vmatpush1.bf16.msra.mxu0 %v7306
        %7417 = vmatprep.subr.bf16.mxu0 %v7305
        %7418 = vmatpush1.bf16.msra.mxu0 %v7304
        %7419 = vmatprep.subr.bf16.mxu0 %v7303
        %7420 = vmatpush1.bf16.msra.mxu0 %v7302
        %7421 = vmatprep.subr.bf16.mxu0 %v7301
        %7422 = vmatpush1.bf16.msra.mxu0 %v7300
        %7423 = vmatprep.subr.bf16.mxu0 %v7331
        %7424 = vmatpush2.bf16.msra.mxu0 %v7330
        %7425 = vmatprep.subr.bf16.mxu0 %v7329
        %7426 = vmatpush2.bf16.msra.mxu0 %v7328
        %7427 = vmatprep.subr.bf16.mxu0 %v7327
        %7428 = vmatpush2.bf16.msra.mxu0 %v7326
        %7429 = vmatprep.subr.bf16.mxu0 %v7325
        %7430 = vmatpush2.bf16.msra.mxu0 %v7324
        %7431 = vmatprep.subr.bf16.mxu0 %v7323
        %7432 = vmatpush2.bf16.msra.mxu0 %v7322
        %7433 = vmatprep.subr.bf16.mxu0 %v7321
        %7434 = vmatpush2.bf16.msra.mxu0 %v7320
        %7435 = vmatprep.subr.bf16.mxu0 %v7319
        %7436 = vmatpush2.bf16.msra.mxu0 %v7318
        %7437 = vmatprep.subr.bf16.mxu0 %v7317
        %7438 = vmatpush2.bf16.msra.mxu0 %v7316
        %7439 = vmatprep.mubr.bf16.mxu0 %v7093
        %7440 = vmatmul.mubr.bf16.gmra.mxu0 %v7092
        %v7441 = vpop.f32.mrf.mxu0
        %v7442 = vadd.f32 0.0, %v7441
        %v7443 = vpop.f32.mrf.mxu0
        %v7444 = vadd.f32 0.0, %v7443
        %v7445 = vpop.f32.mrf.mxu0
        %v7446 = vadd.f32 0.0, %v7445
        %v7447 = vpop.f32.mrf.mxu0
        %v7448 = vadd.f32 0.0, %v7447
        %7449 = vmatprep.mubr.bf16.mxu0 %v7097
        %7450 = vmatmul.mubr.bf16.gmra.mxu0 %v7096
        %v7451 = vpop.f32.mrf.mxu0
        %v7452 = vadd.f32 0.0, %v7451
        %v7453 = vpop.f32.mrf.mxu0
        %v7454 = vadd.f32 0.0, %v7453
        %v7455 = vpop.f32.mrf.mxu0
        %v7456 = vadd.f32 0.0, %v7455
        %v7457 = vpop.f32.mrf.mxu0
        %v7458 = vadd.f32 0.0, %v7457
        %7459 = vdwg.mxu0
        %7460 = vmatprep.subr.bf16.mxu0 %v7347
        %7461 = vmatpush1.bf16.msra.mxu0 %v7346
        %7462 = vmatprep.subr.bf16.mxu0 %v7345
        %7463 = vmatpush1.bf16.msra.mxu0 %v7344
        %7464 = vmatprep.subr.bf16.mxu0 %v7343
        %7465 = vmatpush1.bf16.msra.mxu0 %v7342
        %7466 = vmatprep.subr.bf16.mxu0 %v7341
        %7467 = vmatpush1.bf16.msra.mxu0 %v7340
        %7468 = vmatprep.subr.bf16.mxu0 %v7339
        %7469 = vmatpush1.bf16.msra.mxu0 %v7338
        %7470 = vmatprep.subr.bf16.mxu0 %v7337
        %7471 = vmatpush1.bf16.msra.mxu0 %v7336
        %7472 = vmatprep.subr.bf16.mxu0 %v7335
        %7473 = vmatpush1.bf16.msra.mxu0 %v7334
        %7474 = vmatprep.subr.bf16.mxu0 %v7333
        %7475 = vmatpush1.bf16.msra.mxu0 %v7332
        %7476 = vmatprep.subr.bf16.mxu0 0
        %7477 = vmatpush2.bf16.msra.mxu0 0
        %7478 = vmatprep.subr.bf16.mxu0 0
        %7479 = vmatpush2.bf16.msra.mxu0 0
        %7480 = vmatprep.subr.bf16.mxu0 0
        %7481 = vmatpush2.bf16.msra.mxu0 0
        %7482 = vmatprep.subr.bf16.mxu0 0
        %7483 = vmatpush2.bf16.msra.mxu0 0
        %7484 = vmatprep.subr.bf16.mxu0 0
        %7485 = vmatpush2.bf16.msra.mxu0 0
        %7486 = vmatprep.subr.bf16.mxu0 0
        %7487 = vmatpush2.bf16.msra.mxu0 0
        %7488 = vmatprep.subr.bf16.mxu0 0
        %7489 = vmatpush2.bf16.msra.mxu0 0
        %7490 = vmatprep.subr.bf16.mxu0 %v7349
        %7491 = vmatpush2.bf16.msra.mxu0 %v7348
        %7492 = vmatprep.mubr.bf16.mxu0 %v7402
        %7493 = vmatmul.mubr.bf16.gmra.mxu0 %v7094
        %v7494 = vpop.f32.mrf.mxu0
        %v7495 = vadd.f32 %v7442, %v7494
        %v7496 = vpop.f32.mrf.mxu0
        %v7497 = vadd.f32 %v7444, %v7496
        %v7498 = vpop.f32.mrf.mxu0
        %v7499 = vadd.f32 %v7446, %v7498
        %v7500 = vpop.f32.mrf.mxu0
        %v7501 = vadd.f32 %v7448, %v7500
        %7502 = vmatprep.mubr.bf16.mxu0 %v7405
        %7503 = vmatmul.mubr.bf16.gmra.mxu0 %v7098
        %v7504 = vpop.f32.mrf.mxu0
        %v7505 = vadd.f32 %v7452, %v7504
        %v7506 = vpop.f32.mrf.mxu0
        %v7507 = vadd.f32 %v7454, %v7506
        %v7508 = vpop.f32.mrf.mxu0
        %v7509 = vadd.f32 %v7456, %v7508
        %v7510 = vpop.f32.mrf.mxu0
        %v7511 = vadd.f32 %v7458, %v7510
        %7512 = vdwg.mxu0
        %v7513 = vld [vmem:[%s8] sm:$0xff]
        %v7514 = vld [vmem:[%s8 + $0x8] sm:$0xff]
        %v7515 = vld [vmem:[%s8 + $0x10] sm:$0xff]
        %v7516 = vld [vmem:[%s8 + $0x18] sm:$0xff]
        %v7517 = vld [vmem:[%s8 + $0x20] sm:$0xff]
        %v7518 = vld [vmem:[%s8 + $0x28] sm:$0xff]
        %v7519 = vld [vmem:[%s8 + $0x30] sm:$0xff]
        %v7520 = vld [vmem:[%s8 + $0x38] sm:$0xff]
        %v7521 = vld [vmem:[%s8 + $0x40] sm:$0xff]
        %v7522 = vld [vmem:[%s8 + $0x48] sm:$0xff]
        %v7523 = vld [vmem:[%s8 + $0x50] sm:$0xff]
        %v7524 = vld [vmem:[%s8 + $0x58] sm:$0xff]
        %v7525 = vld [vmem:[%s8 + $0x60] sm:$0xff]
        %v7526 = vld [vmem:[%s8 + $0x68] sm:$0xff]
        %v7527 = vld [vmem:[%s8 + $0x70] sm:$0xff]
        %v7528 = vld [vmem:[%s8 + $0x78] sm:$0xff]
        %v7529 = vld [vmem:[%s8 + $0x80] sm:$0xff]
        %v7530 = vld [vmem:[%s8 + $0x88] sm:$0xff]
        %v7531 = vld [vmem:[%s8 + $0x90] sm:$0xff]
        %v7532 = vld [vmem:[%s8 + $0x98] sm:$0xff]
        %v7533 = vld [vmem:[%s8 + $0xa0] sm:$0xff]
        %v7534 = vld [vmem:[%s8 + $0xa8] sm:$0xff]
        %v7535 = vld [vmem:[%s8 + $0xb0] sm:$0xff]
        %v7536 = vld [vmem:[%s8 + $0xb8] sm:$0xff]
        %v7537 = vld [vmem:[%s8 + $0xc0] sm:$0xff]
        %v7538 = vld [vmem:[%s8 + $0xc8] sm:$0xff]
        %v7539 = vld [vmem:[%s8 + $0xd0] sm:$0xff]
        %v7540 = vld [vmem:[%s8 + $0xd8] sm:$0xff]
        %v7541 = vld [vmem:[%s8 + $0xe0] sm:$0xff]
        %v7542 = vld [vmem:[%s8 + $0xe8] sm:$0xff]
        %v7543 = vld [vmem:[%s8 + $0xf0] sm:$0xff]
        %v7544 = vld [vmem:[%s8 + $0xf8] sm:$0xff]
        %v7545 = vld [vmem:[%s8 + $0x100] sm:$0xff]
        %v7546 = vld [vmem:[%s8 + $0x108] sm:$0xff]
        %v7547 = vld [vmem:[%s8 + $0x110] sm:$0xff]
        %v7548 = vld [vmem:[%s8 + $0x118] sm:$0xff]
        %v7549 = vld [vmem:[%s8 + $0x120] sm:$0xff]
        %v7550 = vld [vmem:[%s8 + $0x128] sm:$0xff]
        %v7551 = vld [vmem:[%s8 + $0x130] sm:$0xff]
        %v7552 = vld [vmem:[%s8 + $0x138] sm:$0xff]
        %v7553 = vld [vmem:[%s8 + $0x140] sm:$0xff]
        %v7554 = vld [vmem:[%s8 + $0x148] sm:$0xff]
        %v7555 = vld [vmem:[%s8 + $0x150] sm:$0xff]
        %v7556 = vld [vmem:[%s8 + $0x158] sm:$0xff]
        %v7557 = vld [vmem:[%s8 + $0x160] sm:$0xff]
        %v7558 = vld [vmem:[%s8 + $0x168] sm:$0xff]
        %v7559 = vld [vmem:[%s8 + $0x170] sm:$0xff]
        %v7560 = vld [vmem:[%s8 + $0x178] sm:$0xff]
        %v7561 = vld [vmem:[%s8 + $0x180] sm:$0xff]
        %v7562 = vld [vmem:[%s8 + $0x188] sm:$0xff]
        %v7613 = vunpack.c.l.b16 %v7513
        %v7614 = vunpack.c.h.b16 %v7513
        %v7615 = vunpack.c.l.b16 %v7514
        %v7616 = vunpack.c.h.b16 %v7514
        %v7617 = vunpack.c.l.b16 %v7515
        %v7618 = vunpack.c.h.b16 %v7515
        %v7619 = vunpack.c.l.b16 %v7516
        %v7620 = vunpack.c.h.b16 %v7516
        %v7621 = vunpack.c.l.b16 %v7517
        %v7622 = vunpack.c.h.b16 %v7517
        %v7623 = vunpack.c.l.b16 %v7518
        %v7624 = vunpack.c.h.b16 %v7518
        %v7625 = vunpack.c.l.b16 %v7519
        %v7626 = vunpack.c.h.b16 %v7519
        %v7627 = vunpack.c.l.b16 %v7520
        %v7628 = vunpack.c.h.b16 %v7520
        %v7629 = vunpack.c.l.b16 %v7521
        %v7630 = vunpack.c.h.b16 %v7521
        %v7631 = vunpack.c.l.b16 %v7522
        %v7632 = vunpack.c.h.b16 %v7522
        %v7633 = vunpack.c.l.b16 %v7523
        %v7634 = vunpack.c.h.b16 %v7523
        %v7635 = vunpack.c.l.b16 %v7524
        %v7636 = vunpack.c.h.b16 %v7524
        %v7637 = vunpack.c.l.b16 %v7525
        %v7638 = vunpack.c.h.b16 %v7525
        %v7639 = vunpack.c.l.b16 %v7526
        %v7640 = vunpack.c.h.b16 %v7526
        %v7641 = vunpack.c.l.b16 %v7527
        %v7642 = vunpack.c.h.b16 %v7527
        %v7643 = vunpack.c.l.b16 %v7528
        %v7644 = vunpack.c.h.b16 %v7528
        %v7645 = vunpack.c.l.b16 %v7529
        %v7646 = vunpack.c.h.b16 %v7529
        %v7647 = vunpack.c.l.b16 %v7530
        %v7648 = vunpack.c.h.b16 %v7530
        %v7649 = vunpack.c.l.b16 %v7531
        %v7650 = vunpack.c.h.b16 %v7531
        %v7651 = vunpack.c.l.b16 %v7532
        %v7652 = vunpack.c.h.b16 %v7532
        %v7653 = vunpack.c.l.b16 %v7533
        %v7654 = vunpack.c.h.b16 %v7533
        %v7655 = vunpack.c.l.b16 %v7534
        %v7656 = vunpack.c.h.b16 %v7534
        %v7657 = vunpack.c.l.b16 %v7535
        %v7658 = vunpack.c.h.b16 %v7535
        %v7659 = vunpack.c.l.b16 %v7536
        %v7660 = vunpack.c.h.b16 %v7536
        %v7661 = vunpack.c.l.b16 %v7537
        %v7662 = vunpack.c.h.b16 %v7537
        %v7663 = vunpack.c.l.b16 %v7538
        %v7664 = vunpack.c.h.b16 %v7538
        %v7665 = vunpack.c.l.b16 %v7539
        %v7666 = vunpack.c.h.b16 %v7539
        %v7667 = vunpack.c.l.b16 %v7540
        %v7668 = vunpack.c.h.b16 %v7540
        %v7669 = vunpack.c.l.b16 %v7541
        %v7670 = vunpack.c.h.b16 %v7541
        %v7671 = vunpack.c.l.b16 %v7542
        %v7672 = vunpack.c.h.b16 %v7542
        %v7673 = vunpack.c.l.b16 %v7543
        %v7674 = vunpack.c.h.b16 %v7543
        %v7675 = vunpack.c.l.b16 %v7544
        %v7676 = vunpack.c.h.b16 %v7544
        %v7677 = vunpack.c.l.b16 %v7545
        %v7678 = vunpack.c.h.b16 %v7545
        %v7679 = vunpack.c.l.b16 %v7546
        %v7680 = vunpack.c.h.b16 %v7546
        %v7681 = vunpack.c.l.b16 %v7547
        %v7682 = vunpack.c.h.b16 %v7547
        %v7683 = vunpack.c.l.b16 %v7548
        %v7684 = vunpack.c.h.b16 %v7548
        %v7685 = vunpack.c.l.b16 %v7549
        %v7686 = vunpack.c.h.b16 %v7549
        %v7687 = vunpack.c.l.b16 %v7550
        %v7688 = vunpack.c.h.b16 %v7550
        %v7689 = vunpack.c.l.b16 %v7551
        %v7690 = vunpack.c.h.b16 %v7551
        %v7691 = vunpack.c.l.b16 %v7552
        %v7692 = vunpack.c.h.b16 %v7552
        %v7693 = vunpack.c.l.b16 %v7553
        %v7694 = vunpack.c.h.b16 %v7553
        %v7695 = vunpack.c.l.b16 %v7554
        %v7696 = vunpack.c.h.b16 %v7554
        %v7697 = vunpack.c.l.b16 %v7555
        %v7698 = vunpack.c.h.b16 %v7555
        %v7699 = vunpack.c.l.b16 %v7556
        %v7700 = vunpack.c.h.b16 %v7556
        %v7701 = vunpack.c.l.b16 %v7557
        %v7702 = vunpack.c.h.b16 %v7557
        %v7703 = vunpack.c.l.b16 %v7558
        %v7704 = vunpack.c.h.b16 %v7558
        %v7705 = vunpack.c.l.b16 %v7559
        %v7706 = vunpack.c.h.b16 %v7559
        %v7707 = vunpack.c.l.b16 %v7560
        %v7708 = vunpack.c.h.b16 %v7560
        %v7709 = vunpack.c.l.b16 %v7561
        %v7710 = vunpack.c.h.b16 %v7561
        %v7711 = vunpack.c.l.b16 %v7562
        %v7712 = vunpack.c.h.b16 %v7562
        %v7713 = vpack.c.b16 %v7615, %v7613
        %v7714 = vpack.c.b16 %v7616, %v7614
        %v7715 = vpack.c.b16 %v7619, %v7617
        %v7716 = vpack.c.b16 %v7620, %v7618
        %v7717 = vpack.c.b16 %v7623, %v7621
        %v7718 = vpack.c.b16 %v7624, %v7622
        %v7719 = vpack.c.b16 %v7627, %v7625
        %v7720 = vpack.c.b16 %v7628, %v7626
        %v7721 = vpack.c.b16 %v7631, %v7629
        %v7722 = vpack.c.b16 %v7632, %v7630
        %v7723 = vpack.c.b16 %v7635, %v7633
        %v7724 = vpack.c.b16 %v7636, %v7634
        %v7725 = vpack.c.b16 %v7639, %v7637
        %v7726 = vpack.c.b16 %v7640, %v7638
        %v7727 = vpack.c.b16 %v7643, %v7641
        %v7728 = vpack.c.b16 %v7644, %v7642
        %v7729 = vpack.c.b16 %v7647, %v7645
        %v7730 = vpack.c.b16 %v7648, %v7646
        %v7731 = vpack.c.b16 %v7651, %v7649
        %v7732 = vpack.c.b16 %v7652, %v7650
        %v7733 = vpack.c.b16 %v7655, %v7653
        %v7734 = vpack.c.b16 %v7656, %v7654
        %v7735 = vpack.c.b16 %v7659, %v7657
        %v7736 = vpack.c.b16 %v7660, %v7658
        %v7737 = vpack.c.b16 %v7663, %v7661
        %v7738 = vpack.c.b16 %v7664, %v7662
        %v7739 = vpack.c.b16 %v7667, %v7665
        %v7740 = vpack.c.b16 %v7668, %v7666
        %v7741 = vpack.c.b16 %v7671, %v7669
        %v7742 = vpack.c.b16 %v7672, %v7670
        %v7743 = vpack.c.b16 %v7675, %v7673
        %v7744 = vpack.c.b16 %v7676, %v7674
        %v7745 = vpack.c.b16 %v7679, %v7677
        %v7746 = vpack.c.b16 %v7680, %v7678
        %v7747 = vpack.c.b16 %v7683, %v7681
        %v7748 = vpack.c.b16 %v7684, %v7682
        %v7749 = vpack.c.b16 %v7687, %v7685
        %v7750 = vpack.c.b16 %v7688, %v7686
        %v7751 = vpack.c.b16 %v7691, %v7689
        %v7752 = vpack.c.b16 %v7692, %v7690
        %v7753 = vpack.c.b16 %v7695, %v7693
        %v7754 = vpack.c.b16 %v7696, %v7694
        %v7755 = vpack.c.b16 %v7699, %v7697
        %v7756 = vpack.c.b16 %v7700, %v7698
        %v7757 = vpack.c.b16 %v7703, %v7701
        %v7758 = vpack.c.b16 %v7704, %v7702
        %v7759 = vpack.c.b16 %v7707, %v7705
        %v7760 = vpack.c.b16 %v7708, %v7706
        %v7761 = vpack.c.b16 %v7711, %v7709
        %v7762 = vpack.c.b16 %v7712, %v7710
        %7813 = vmatprep.subr.bf16.mxu0 %v7728
        %7814 = vmatpush1.bf16.msra.mxu0 %v7727
        %7815 = vmatprep.subr.bf16.mxu0 %v7726
        %7816 = vmatpush1.bf16.msra.mxu0 %v7725
        %7817 = vmatprep.subr.bf16.mxu0 %v7724
        %7818 = vmatpush1.bf16.msra.mxu0 %v7723
        %7819 = vmatprep.subr.bf16.mxu0 %v7722
        %7820 = vmatpush1.bf16.msra.mxu0 %v7721
        %7821 = vmatprep.subr.bf16.mxu0 %v7720
        %7822 = vmatpush1.bf16.msra.mxu0 %v7719
        %7823 = vmatprep.subr.bf16.mxu0 %v7718
        %7824 = vmatpush1.bf16.msra.mxu0 %v7717
        %7825 = vmatprep.subr.bf16.mxu0 %v7716
        %7826 = vmatpush1.bf16.msra.mxu0 %v7715
        %7827 = vmatprep.subr.bf16.mxu0 %v7714
        %7828 = vmatpush1.bf16.msra.mxu0 %v7713
        %7829 = vmatprep.subr.bf16.mxu0 %v7744
        %7830 = vmatpush2.bf16.msra.mxu0 %v7743
        %7831 = vmatprep.subr.bf16.mxu0 %v7742
        %7832 = vmatpush2.bf16.msra.mxu0 %v7741
        %7833 = vmatprep.subr.bf16.mxu0 %v7740
        %7834 = vmatpush2.bf16.msra.mxu0 %v7739
        %7835 = vmatprep.subr.bf16.mxu0 %v7738
        %7836 = vmatpush2.bf16.msra.mxu0 %v7737
        %7837 = vmatprep.subr.bf16.mxu0 %v7736
        %7838 = vmatpush2.bf16.msra.mxu0 %v7735
        %7839 = vmatprep.subr.bf16.mxu0 %v7734
        %7840 = vmatpush2.bf16.msra.mxu0 %v7733
        %7841 = vmatprep.subr.bf16.mxu0 %v7732
        %7842 = vmatpush2.bf16.msra.mxu0 %v7731
        %7843 = vmatprep.subr.bf16.mxu0 %v7730
        %7844 = vmatpush2.bf16.msra.mxu0 %v7729
        %7845 = vmatprep.mubr.bf16.mxu0 %v7093
        %7846 = vmatmul.mubr.bf16.gmra.mxu0 %v7092
        %v7847 = vpop.f32.mrf.mxu0
        %v7848 = vadd.f32 0.0, %v7847
        %v7849 = vpop.f32.mrf.mxu0
        %v7850 = vadd.f32 0.0, %v7849
        %v7851 = vpop.f32.mrf.mxu0
        %v7852 = vadd.f32 0.0, %v7851
        %v7853 = vpop.f32.mrf.mxu0
        %v7854 = vadd.f32 0.0, %v7853
        %7855 = vmatprep.mubr.bf16.mxu0 %v7097
        %7856 = vmatmul.mubr.bf16.gmra.mxu0 %v7096
        %v7857 = vpop.f32.mrf.mxu0
        %v7858 = vadd.f32 0.0, %v7857
        %v7859 = vpop.f32.mrf.mxu0
        %v7860 = vadd.f32 0.0, %v7859
        %v7861 = vpop.f32.mrf.mxu0
        %v7862 = vadd.f32 0.0, %v7861
        %v7863 = vpop.f32.mrf.mxu0
        %v7864 = vadd.f32 0.0, %v7863
        %7865 = vdwg.mxu0
        %7866 = vmatprep.subr.bf16.mxu0 %v7760
        %7867 = vmatpush1.bf16.msra.mxu0 %v7759
        %7868 = vmatprep.subr.bf16.mxu0 %v7758
        %7869 = vmatpush1.bf16.msra.mxu0 %v7757
        %7870 = vmatprep.subr.bf16.mxu0 %v7756
        %7871 = vmatpush1.bf16.msra.mxu0 %v7755
        %7872 = vmatprep.subr.bf16.mxu0 %v7754
        %7873 = vmatpush1.bf16.msra.mxu0 %v7753
        %7874 = vmatprep.subr.bf16.mxu0 %v7752
        %7875 = vmatpush1.bf16.msra.mxu0 %v7751
        %7876 = vmatprep.subr.bf16.mxu0 %v7750
        %7877 = vmatpush1.bf16.msra.mxu0 %v7749
        %7878 = vmatprep.subr.bf16.mxu0 %v7748
        %7879 = vmatpush1.bf16.msra.mxu0 %v7747
        %7880 = vmatprep.subr.bf16.mxu0 %v7746
        %7881 = vmatpush1.bf16.msra.mxu0 %v7745
        %7882 = vmatprep.subr.bf16.mxu0 0
        %7883 = vmatpush2.bf16.msra.mxu0 0
        %7884 = vmatprep.subr.bf16.mxu0 0
        %7885 = vmatpush2.bf16.msra.mxu0 0
        %7886 = vmatprep.subr.bf16.mxu0 0
        %7887 = vmatpush2.bf16.msra.mxu0 0
        %7888 = vmatprep.subr.bf16.mxu0 0
        %7889 = vmatpush2.bf16.msra.mxu0 0
        %7890 = vmatprep.subr.bf16.mxu0 0
        %7891 = vmatpush2.bf16.msra.mxu0 0
        %7892 = vmatprep.subr.bf16.mxu0 0
        %7893 = vmatpush2.bf16.msra.mxu0 0
        %7894 = vmatprep.subr.bf16.mxu0 0
        %7895 = vmatpush2.bf16.msra.mxu0 0
        %7896 = vmatprep.subr.bf16.mxu0 %v7762
        %7897 = vmatpush2.bf16.msra.mxu0 %v7761
        %7898 = vmatprep.mubr.bf16.mxu0 %v7402
        %7899 = vmatmul.mubr.bf16.gmra.mxu0 %v7094
        %v7900 = vpop.f32.mrf.mxu0
        %v7901 = vadd.f32 %v7848, %v7900
        %v7902 = vpop.f32.mrf.mxu0
        %v7903 = vadd.f32 %v7850, %v7902
        %v7904 = vpop.f32.mrf.mxu0
        %v7905 = vadd.f32 %v7852, %v7904
        %v7906 = vpop.f32.mrf.mxu0
        %v7907 = vadd.f32 %v7854, %v7906
        %7908 = vmatprep.mubr.bf16.mxu0 %v7405
        %7909 = vmatmul.mubr.bf16.gmra.mxu0 %v7098
        %v7910 = vpop.f32.mrf.mxu0
        %v7911 = vadd.f32 %v7858, %v7910
        %v7912 = vpop.f32.mrf.mxu0
        %v7913 = vadd.f32 %v7860, %v7912
        %v7914 = vpop.f32.mrf.mxu0
        %v7915 = vadd.f32 %v7862, %v7914
        %v7916 = vpop.f32.mrf.mxu0
        %v7917 = vadd.f32 %v7864, %v7916
        %7918 = vdwg.mxu0
        %v7919 = vmax.f32 %v7495, %v7901
        %v7920 = vmax.f32 %v7497, %v7903
        %v7921 = vmax.f32 %v7499, %v7905
        %v7922 = vmax.f32 %v7501, %v7907
        %v7923 = vmax.f32 %v7505, %v7911
        %v7924 = vmax.f32 %v7507, %v7913
        %v7925 = vmax.f32 %v7509, %v7915
        %v7926 = vmax.f32 %v7511, %v7917
        %v7927 = vld [vmem:[%s10] sm:$0xf]
        %v7928 = vpack.c.bf16 %v7919, %v7919
        %v7929 = vpack.c.bf16 %v7920, %v7920
        %v7930 = vld [vmem:[%s9] sm:$0xff]
        %v7931 = vld [vmem:[%s9 + $0x8] sm:$0xff]
        %v7932 = vld [vmem:[%s9 + $0x10] sm:$0xff]
        %v7933 = vld [vmem:[%s9 + $0x18] sm:$0xff]
        %v7934 = vld [vmem:[%s9 + $0x20] sm:$0xff]
        %v7935 = vld [vmem:[%s9 + $0x28] sm:$0xff]
        %v7936 = vld [vmem:[%s9 + $0x30] sm:$0xff]
        %v7937 = vld [vmem:[%s9 + $0x38] sm:$0xff]
        %v7938 = vld [vmem:[%s9 + $0x40] sm:$0xff]
        %v7939 = vld [vmem:[%s9 + $0x48] sm:$0xff]
        %v7940 = vld [vmem:[%s9 + $0x50] sm:$0xff]
        %v7941 = vld [vmem:[%s9 + $0x58] sm:$0xff]
        %v7942 = vld [vmem:[%s9 + $0x60] sm:$0xff]
        %v7943 = vld [vmem:[%s9 + $0x68] sm:$0xff]
        %v7944 = vld [vmem:[%s9 + $0x70] sm:$0xff]
        %v7945 = vld [vmem:[%s9 + $0x78] sm:$0xff]
        %v7946 = vld [vmem:[%s9 + $0x80] sm:$0xff]
        %v7947 = vld [vmem:[%s9 + $0x88] sm:$0xff]
        %v7948 = vld [vmem:[%s9 + $0x90] sm:$0xff]
        %v7949 = vld [vmem:[%s9 + $0x98] sm:$0xff]
        %v7950 = vld [vmem:[%s9 + $0xa0] sm:$0xff]
        %v7951 = vld [vmem:[%s9 + $0xa8] sm:$0xff]
        %v7952 = vld [vmem:[%s9 + $0xb0] sm:$0xff]
        %v7953 = vld [vmem:[%s9 + $0xb8] sm:$0xff]
        %v7954 = vld [vmem:[%s9 + $0xc0] sm:$0xff]
        %v7955 = vld [vmem:[%s9 + $0xc8] sm:$0xff]
        %v7956 = vld [vmem:[%s9 + $0xd0] sm:$0xff]
        %v7957 = vld [vmem:[%s9 + $0xd8] sm:$0xff]
        %v7958 = vld [vmem:[%s9 + $0xe0] sm:$0xff]
        %v7959 = vld [vmem:[%s9 + $0xe8] sm:$0xff]
        %v7960 = vld [vmem:[%s9 + $0xf0] sm:$0xff]
        %v7961 = vld [vmem:[%s9 + $0xf8] sm:$0xff]
        %v7962 = vld [vmem:[%s9 + $0x100] sm:$0xff]
        %v7963 = vld [vmem:[%s9 + $0x108] sm:$0xff]
        %v7964 = vld [vmem:[%s9 + $0x110] sm:$0xff]
        %v7965 = vld [vmem:[%s9 + $0x118] sm:$0xff]
        %v7966 = vld [vmem:[%s9 + $0x120] sm:$0xff]
        %v7967 = vld [vmem:[%s9 + $0x128] sm:$0xff]
        %v7968 = vld [vmem:[%s9 + $0x130] sm:$0xff]
        %v7969 = vld [vmem:[%s9 + $0x138] sm:$0xff]
        %v7970 = vld [vmem:[%s9 + $0x140] sm:$0xff]
        %v7971 = vld [vmem:[%s9 + $0x148] sm:$0xff]
        %v7972 = vld [vmem:[%s9 + $0x150] sm:$0xff]
        %v7973 = vld [vmem:[%s9 + $0x158] sm:$0xff]
        %v7974 = vld [vmem:[%s9 + $0x160] sm:$0xff]
        %v7975 = vld [vmem:[%s9 + $0x168] sm:$0xff]
        %v7976 = vld [vmem:[%s9 + $0x170] sm:$0xff]
        %v7977 = vld [vmem:[%s9 + $0x178] sm:$0xff]
        %v7978 = vld [vmem:[%s9 + $0x180] sm:$0xff]
        %v7979 = vld [vmem:[%s9 + $0x188] sm:$0xff]
        %v8030 = vunpack.c.l.b16 %v7930
        %v8031 = vunpack.c.h.b16 %v7930
        %v8032 = vunpack.c.l.b16 %v7931
        %v8033 = vunpack.c.h.b16 %v7931
        %v8034 = vunpack.c.l.b16 %v7932
        %v8035 = vunpack.c.h.b16 %v7932
        %v8036 = vunpack.c.l.b16 %v7933
        %v8037 = vunpack.c.h.b16 %v7933
        %v8038 = vunpack.c.l.b16 %v7934
        %v8039 = vunpack.c.h.b16 %v7934
        %v8040 = vunpack.c.l.b16 %v7935
        %v8041 = vunpack.c.h.b16 %v7935
        %v8042 = vunpack.c.l.b16 %v7936
        %v8043 = vunpack.c.h.b16 %v7936
        %v8044 = vunpack.c.l.b16 %v7937
        %v8045 = vunpack.c.h.b16 %v7937
        %v8046 = vunpack.c.l.b16 %v7938
        %v8047 = vunpack.c.h.b16 %v7938
        %v8048 = vunpack.c.l.b16 %v7939
        %v8049 = vunpack.c.h.b16 %v7939
        %v8050 = vunpack.c.l.b16 %v7940
        %v8051 = vunpack.c.h.b16 %v7940
        %v8052 = vunpack.c.l.b16 %v7941
        %v8053 = vunpack.c.h.b16 %v7941
        %v8054 = vunpack.c.l.b16 %v7942
        %v8055 = vunpack.c.h.b16 %v7942
        %v8056 = vunpack.c.l.b16 %v7943
        %v8057 = vunpack.c.h.b16 %v7943
        %v8058 = vunpack.c.l.b16 %v7944
        %v8059 = vunpack.c.h.b16 %v7944
        %v8060 = vunpack.c.l.b16 %v7945
        %v8061 = vunpack.c.h.b16 %v7945
        %v8062 = vunpack.c.l.b16 %v7946
        %v8063 = vunpack.c.h.b16 %v7946
        %v8064 = vunpack.c.l.b16 %v7947
        %v8065 = vunpack.c.h.b16 %v7947
        %v8066 = vunpack.c.l.b16 %v7948
        %v8067 = vunpack.c.h.b16 %v7948
        %v8068 = vunpack.c.l.b16 %v7949
        %v8069 = vunpack.c.h.b16 %v7949
        %v8070 = vunpack.c.l.b16 %v7950
        %v8071 = vunpack.c.h.b16 %v7950
        %v8072 = vunpack.c.l.b16 %v7951
        %v8073 = vunpack.c.h.b16 %v7951
        %v8074 = vunpack.c.l.b16 %v7952
        %v8075 = vunpack.c.h.b16 %v7952
        %v8076 = vunpack.c.l.b16 %v7953
        %v8077 = vunpack.c.h.b16 %v7953
        %v8078 = vunpack.c.l.b16 %v7954
        %v8079 = vunpack.c.h.b16 %v7954
        %v8080 = vunpack.c.l.b16 %v7955
        %v8081 = vunpack.c.h.b16 %v7955
        %v8082 = vunpack.c.l.b16 %v7956
        %v8083 = vunpack.c.h.b16 %v7956
        %v8084 = vunpack.c.l.b16 %v7957
        %v8085 = vunpack.c.h.b16 %v7957
        %v8086 = vunpack.c.l.b16 %v7958
        %v8087 = vunpack.c.h.b16 %v7958
        %v8088 = vunpack.c.l.b16 %v7959
        %v8089 = vunpack.c.h.b16 %v7959
        %v8090 = vunpack.c.l.b16 %v7960
        %v8091 = vunpack.c.h.b16 %v7960
        %v8092 = vunpack.c.l.b16 %v7961
        %v8093 = vunpack.c.h.b16 %v7961
        %v8094 = vunpack.c.l.b16 %v7962
        %v8095 = vunpack.c.h.b16 %v7962
        %v8096 = vunpack.c.l.b16 %v7963
        %v8097 = vunpack.c.h.b16 %v7963
        %v8098 = vunpack.c.l.b16 %v7964
        %v8099 = vunpack.c.h.b16 %v7964
        %v8100 = vunpack.c.l.b16 %v7965
        %v8101 = vunpack.c.h.b16 %v7965
        %v8102 = vunpack.c.l.b16 %v7966
        %v8103 = vunpack.c.h.b16 %v7966
        %v8104 = vunpack.c.l.b16 %v7967
        %v8105 = vunpack.c.h.b16 %v7967
        %v8106 = vunpack.c.l.b16 %v7968
        %v8107 = vunpack.c.h.b16 %v7968
        %v8108 = vunpack.c.l.b16 %v7969
        %v8109 = vunpack.c.h.b16 %v7969
        %v8110 = vunpack.c.l.b16 %v7970
        %v8111 = vunpack.c.h.b16 %v7970
        %v8112 = vunpack.c.l.b16 %v7971
        %v8113 = vunpack.c.h.b16 %v7971
        %v8114 = vunpack.c.l.b16 %v7972
        %v8115 = vunpack.c.h.b16 %v7972
        %v8116 = vunpack.c.l.b16 %v7973
        %v8117 = vunpack.c.h.b16 %v7973
        %v8118 = vunpack.c.l.b16 %v7974
        %v8119 = vunpack.c.h.b16 %v7974
        %v8120 = vunpack.c.l.b16 %v7975
        %v8121 = vunpack.c.h.b16 %v7975
        %v8122 = vunpack.c.l.b16 %v7976
        %v8123 = vunpack.c.h.b16 %v7976
        %v8124 = vunpack.c.l.b16 %v7977
        %v8125 = vunpack.c.h.b16 %v7977
        %v8126 = vunpack.c.l.b16 %v7978
        %v8127 = vunpack.c.h.b16 %v7978
        %v8128 = vunpack.c.l.b16 %v7979
        %v8129 = vunpack.c.h.b16 %v7979
        %v8130 = vpack.c.b16 %v8034, %v8030
        %v8131 = vpack.c.b16 %v8035, %v8031
        %v8132 = vpack.c.b16 %v8036, %v8032
        %v8133 = vpack.c.b16 %v8037, %v8033
        %v8134 = vpack.c.b16 %v8042, %v8038
        %v8135 = vpack.c.b16 %v8043, %v8039
        %v8136 = vpack.c.b16 %v8044, %v8040
        %v8137 = vpack.c.b16 %v8045, %v8041
        %v8138 = vpack.c.b16 %v8050, %v8046
        %v8139 = vpack.c.b16 %v8051, %v8047
        %v8140 = vpack.c.b16 %v8052, %v8048
        %v8141 = vpack.c.b16 %v8053, %v8049
        %v8142 = vpack.c.b16 %v8058, %v8054
        %v8143 = vpack.c.b16 %v8059, %v8055
        %v8144 = vpack.c.b16 %v8060, %v8056
        %v8145 = vpack.c.b16 %v8061, %v8057
        %v8146 = vpack.c.b16 %v8066, %v8062
        %v8147 = vpack.c.b16 %v8067, %v8063
        %v8148 = vpack.c.b16 %v8068, %v8064
        %v8149 = vpack.c.b16 %v8069, %v8065
        %v8150 = vpack.c.b16 %v8074, %v8070
        %v8151 = vpack.c.b16 %v8075, %v8071
        %v8152 = vpack.c.b16 %v8076, %v8072
        %v8153 = vpack.c.b16 %v8077, %v8073
        %v8154 = vpack.c.b16 %v8082, %v8078
        %v8155 = vpack.c.b16 %v8083, %v8079
        %v8156 = vpack.c.b16 %v8084, %v8080
        %v8157 = vpack.c.b16 %v8085, %v8081
        %v8158 = vpack.c.b16 %v8090, %v8086
        %v8159 = vpack.c.b16 %v8091, %v8087
        %v8160 = vpack.c.b16 %v8092, %v8088
        %v8161 = vpack.c.b16 %v8093, %v8089
        %v8162 = vpack.c.b16 %v8098, %v8094
        %v8163 = vpack.c.b16 %v8099, %v8095
        %v8164 = vpack.c.b16 %v8100, %v8096
        %v8165 = vpack.c.b16 %v8101, %v8097
        %v8166 = vpack.c.b16 %v8106, %v8102
        %v8167 = vpack.c.b16 %v8107, %v8103
        %v8168 = vpack.c.b16 %v8108, %v8104
        %v8169 = vpack.c.b16 %v8109, %v8105
        %v8170 = vpack.c.b16 %v8114, %v8110
        %v8171 = vpack.c.b16 %v8115, %v8111
        %v8172 = vpack.c.b16 %v8116, %v8112
        %v8173 = vpack.c.b16 %v8117, %v8113
        %v8174 = vpack.c.b16 %v8122, %v8118
        %v8175 = vpack.c.b16 %v8123, %v8119
        %v8176 = vpack.c.b16 %v8124, %v8120
        %v8177 = vpack.c.b16 %v8125, %v8121
        %v8178 = vpack.c.b16 %v8126, %v8126
        %v8179 = vpack.c.b16 %v8127, %v8127
        %v8180 = vpack.c.b16 %v8128, %v8128
        %v8181 = vpack.c.b16 %v8129, %v8129
        %vm8230 = vcmask 588800
        %v8232 = vsel %vm8230, %v7929, 0
        %vm8234 = vcmask 1043456
        %v8236 = vsel %vm8234, %v8178, 0
        %v8239 = vsel %vm8234, %v8179, 0
        %v8242 = vsel %vm8234, %v8180, 0
        %v8245 = vsel %vm8234, %v8181, 0
        %8247 = vmatprep.subr.bf16.mxu0 %v8159
        %8248 = vmatpush1.bf16.msra.mxu0 %v8158
        %8249 = vmatprep.subr.bf16.mxu0 %v8155
        %8250 = vmatpush1.bf16.msra.mxu0 %v8154
        %8251 = vmatprep.subr.bf16.mxu0 %v8151
        %8252 = vmatpush1.bf16.msra.mxu0 %v8150
        %8253 = vmatprep.subr.bf16.mxu0 %v8147
        %8254 = vmatpush1.bf16.msra.mxu0 %v8146
        %8255 = vmatprep.subr.bf16.mxu0 %v8143
        %8256 = vmatpush1.bf16.msra.mxu0 %v8142
        %8257 = vmatprep.subr.bf16.mxu0 %v8139
        %8258 = vmatpush1.bf16.msra.mxu0 %v8138
        %8259 = vmatprep.subr.bf16.mxu0 %v8135
        %8260 = vmatpush1.bf16.msra.mxu0 %v8134
        %8261 = vmatprep.subr.bf16.mxu0 %v8131
        %8262 = vmatpush1.bf16.msra.mxu0 %v8130
        %8263 = vmatprep.subr.bf16.mxu0 0
        %8264 = vmatpush2.bf16.msra.mxu0 0
        %8265 = vmatprep.subr.bf16.mxu0 0
        %8266 = vmatpush2.bf16.msra.mxu0 0
        %8267 = vmatprep.subr.bf16.mxu0 0
        %8268 = vmatpush2.bf16.msra.mxu0 0
        %8269 = vmatprep.subr.bf16.mxu0 %v8239
        %8270 = vmatpush2.bf16.msra.mxu0 %v8236
        %8271 = vmatprep.subr.bf16.mxu0 %v8175
        %8272 = vmatpush2.bf16.msra.mxu0 %v8174
        %8273 = vmatprep.subr.bf16.mxu0 %v8171
        %8274 = vmatpush2.bf16.msra.mxu0 %v8170
        %8275 = vmatprep.subr.bf16.mxu0 %v8167
        %8276 = vmatpush2.bf16.msra.mxu0 %v8166
        %8277 = vmatprep.subr.bf16.mxu0 %v8163
        %8278 = vmatpush2.bf16.msra.mxu0 %v8162
        %8279 = vmatprep.mubr.bf16.mxu0 %v8232
        %8280 = vmatmul.mubr.bf16.gmra.mxu0 %v7928
        %v8281 = vpop.f32.mrf.mxu0
        %v8282 = vadd.f32 0.0, %v8281
        %v8283 = vpop.f32.mrf.mxu0
        %v8284 = vadd.f32 0.0, %v8283
        %v8285 = vpop.f32.mrf.mxu0
        %v8286 = vpop.f32.mrf.mxu0
        %8287 = vdwg.mxu0
        %8288 = vmatprep.subr.bf16.mxu0 %v8161
        %8289 = vmatpush1.bf16.msra.mxu0 %v8160
        %8290 = vmatprep.subr.bf16.mxu0 %v8157
        %8291 = vmatpush1.bf16.msra.mxu0 %v8156
        %8292 = vmatprep.subr.bf16.mxu0 %v8153
        %8293 = vmatpush1.bf16.msra.mxu0 %v8152
        %8294 = vmatprep.subr.bf16.mxu0 %v8149
        %8295 = vmatpush1.bf16.msra.mxu0 %v8148
        %8296 = vmatprep.subr.bf16.mxu0 %v8145
        %8297 = vmatpush1.bf16.msra.mxu0 %v8144
        %8298 = vmatprep.subr.bf16.mxu0 %v8141
        %8299 = vmatpush1.bf16.msra.mxu0 %v8140
        %8300 = vmatprep.subr.bf16.mxu0 %v8137
        %8301 = vmatpush1.bf16.msra.mxu0 %v8136
        %8302 = vmatprep.subr.bf16.mxu0 %v8133
        %8303 = vmatpush1.bf16.msra.mxu0 %v8132
        %8304 = vmatprep.subr.bf16.mxu0 0
        %8305 = vmatpush2.bf16.msra.mxu0 0
        %8306 = vmatprep.subr.bf16.mxu0 0
        %8307 = vmatpush2.bf16.msra.mxu0 0
        %8308 = vmatprep.subr.bf16.mxu0 0
        %8309 = vmatpush2.bf16.msra.mxu0 0
        %8310 = vmatprep.subr.bf16.mxu0 %v8245
        %8311 = vmatpush2.bf16.msra.mxu0 %v8242
        %8312 = vmatprep.subr.bf16.mxu0 %v8177
        %8313 = vmatpush2.bf16.msra.mxu0 %v8176
        %8314 = vmatprep.subr.bf16.mxu0 %v8173
        %8315 = vmatpush2.bf16.msra.mxu0 %v8172
        %8316 = vmatprep.subr.bf16.mxu0 %v8169
        %8317 = vmatpush2.bf16.msra.mxu0 %v8168
        %8318 = vmatprep.subr.bf16.mxu0 %v8165
        %8319 = vmatpush2.bf16.msra.mxu0 %v8164
        %8320 = vmatprep.mubr.bf16.mxu0 %v8232
        %8321 = vmatmul.mubr.bf16.gmra.mxu0 %v7928
        %v8322 = vpop.f32.mrf.mxu0
        %v8323 = vadd.f32 0.0, %v8322
        %v8324 = vpop.f32.mrf.mxu0
        %v8325 = vadd.f32 0.0, %v8324
        %v8326 = vpop.f32.mrf.mxu0
        %v8327 = vpop.f32.mrf.mxu0
        %8328 = vdwg.mxu0
        %v8330 = vlaneseq
        %v8331 = vshrl.u32 %v8330, 7
        %v8332 = vsub.s32 0, %v8331
        %v8333 = vrot.slane %v7927, %v8332
        %v8334 = vlaneseq
        %v8335 = vshrl.u32 %v8334, 7
        %v8336 = vsub.s32 1, %v8335
        %v8337 = vrot.slane %v7927, %v8336
        %v8338 = vlaneseq
        %v8339 = vshrl.u32 %v8338, 7
        %v8340 = vsub.s32 2, %v8339
        %v8341 = vrot.slane %v7927, %v8340
        %v8342 = vlaneseq
        %v8343 = vshrl.u32 %v8342, 7
        %v8344 = vsub.s32 3, %v8343
        %v8345 = vrot.slane %v7927, %v8344
        %v8350 = vadd.f32 %v8333, %v8282
        %v8351 = vadd.f32 %v8337, %v8284
        %v8352 = vadd.f32 %v8341, %v8323
        %v8353 = vadd.f32 %v8345, %v8325
        %v8354 = vpack.c.bf16 %v7921, %v7921
        %v8355 = vpack.c.bf16 %v7922, %v7922
        %s8356 = scalar_lea.vmem %s9, 400
        %v8357 = vld [vmem:[%s8356] sm:$0xff]
        %v8358 = vld [vmem:[%s8356 + $0x8] sm:$0xff]
        %v8359 = vld [vmem:[%s8356 + $0x10] sm:$0xff]
        %v8360 = vld [vmem:[%s8356 + $0x18] sm:$0xff]
        %v8361 = vld [vmem:[%s8356 + $0x20] sm:$0xff]
        %v8362 = vld [vmem:[%s8356 + $0x28] sm:$0xff]
        %v8363 = vld [vmem:[%s8356 + $0x30] sm:$0xff]
        %v8364 = vld [vmem:[%s8356 + $0x38] sm:$0xff]
        %v8365 = vld [vmem:[%s8356 + $0x40] sm:$0xff]
        %v8366 = vld [vmem:[%s8356 + $0x48] sm:$0xff]
        %v8367 = vld [vmem:[%s8356 + $0x50] sm:$0xff]
        %v8368 = vld [vmem:[%s8356 + $0x58] sm:$0xff]
        %v8369 = vld [vmem:[%s8356 + $0x60] sm:$0xff]
        %v8370 = vld [vmem:[%s8356 + $0x68] sm:$0xff]
        %v8371 = vld [vmem:[%s8356 + $0x70] sm:$0xff]
        %v8372 = vld [vmem:[%s8356 + $0x78] sm:$0xff]
        %v8373 = vld [vmem:[%s8356 + $0x80] sm:$0xff]
        %v8374 = vld [vmem:[%s8356 + $0x88] sm:$0xff]
        %v8375 = vld [vmem:[%s8356 + $0x90] sm:$0xff]
        %v8376 = vld [vmem:[%s8356 + $0x98] sm:$0xff]
        %v8377 = vld [vmem:[%s8356 + $0xa0] sm:$0xff]
        %v8378 = vld [vmem:[%s8356 + $0xa8] sm:$0xff]
        %v8379 = vld [vmem:[%s8356 + $0xb0] sm:$0xff]
        %v8380 = vld [vmem:[%s8356 + $0xb8] sm:$0xff]
        %v8381 = vld [vmem:[%s8356 + $0xc0] sm:$0xff]
        %v8382 = vld [vmem:[%s8356 + $0xc8] sm:$0xff]
        %v8383 = vld [vmem:[%s8356 + $0xd0] sm:$0xff]
        %v8384 = vld [vmem:[%s8356 + $0xd8] sm:$0xff]
        %v8385 = vld [vmem:[%s8356 + $0xe0] sm:$0xff]
        %v8386 = vld [vmem:[%s8356 + $0xe8] sm:$0xff]
        %v8387 = vld [vmem:[%s8356 + $0xf0] sm:$0xff]
        %v8388 = vld [vmem:[%s8356 + $0xf8] sm:$0xff]
        %v8389 = vld [vmem:[%s8356 + $0x100] sm:$0xff]
        %v8390 = vld [vmem:[%s8356 + $0x108] sm:$0xff]
        %v8391 = vld [vmem:[%s8356 + $0x110] sm:$0xff]
        %v8392 = vld [vmem:[%s8356 + $0x118] sm:$0xff]
        %v8393 = vld [vmem:[%s8356 + $0x120] sm:$0xff]
        %v8394 = vld [vmem:[%s8356 + $0x128] sm:$0xff]
        %v8395 = vld [vmem:[%s8356 + $0x130] sm:$0xff]
        %v8396 = vld [vmem:[%s8356 + $0x138] sm:$0xff]
        %v8397 = vld [vmem:[%s8356 + $0x140] sm:$0xff]
        %v8398 = vld [vmem:[%s8356 + $0x148] sm:$0xff]
        %v8399 = vld [vmem:[%s8356 + $0x150] sm:$0xff]
        %v8400 = vld [vmem:[%s8356 + $0x158] sm:$0xff]
        %v8401 = vld [vmem:[%s8356 + $0x160] sm:$0xff]
        %v8402 = vld [vmem:[%s8356 + $0x168] sm:$0xff]
        %v8403 = vld [vmem:[%s8356 + $0x170] sm:$0xff]
        %v8404 = vld [vmem:[%s8356 + $0x178] sm:$0xff]
        %v8405 = vld [vmem:[%s8356 + $0x180] sm:$0xff]
        %v8406 = vld [vmem:[%s8356 + $0x188] sm:$0xff]
        %v8457 = vunpack.c.l.b16 %v8357
        %v8458 = vunpack.c.h.b16 %v8357
        %v8459 = vunpack.c.l.b16 %v8358
        %v8460 = vunpack.c.h.b16 %v8358
        %v8461 = vunpack.c.l.b16 %v8359
        %v8462 = vunpack.c.h.b16 %v8359
        %v8463 = vunpack.c.l.b16 %v8360
        %v8464 = vunpack.c.h.b16 %v8360
        %v8465 = vunpack.c.l.b16 %v8361
        %v8466 = vunpack.c.h.b16 %v8361
        %v8467 = vunpack.c.l.b16 %v8362
        %v8468 = vunpack.c.h.b16 %v8362
        %v8469 = vunpack.c.l.b16 %v8363
        %v8470 = vunpack.c.h.b16 %v8363
        %v8471 = vunpack.c.l.b16 %v8364
        %v8472 = vunpack.c.h.b16 %v8364
        %v8473 = vunpack.c.l.b16 %v8365
        %v8474 = vunpack.c.h.b16 %v8365
        %v8475 = vunpack.c.l.b16 %v8366
        %v8476 = vunpack.c.h.b16 %v8366
        %v8477 = vunpack.c.l.b16 %v8367
        %v8478 = vunpack.c.h.b16 %v8367
        %v8479 = vunpack.c.l.b16 %v8368
        %v8480 = vunpack.c.h.b16 %v8368
        %v8481 = vunpack.c.l.b16 %v8369
        %v8482 = vunpack.c.h.b16 %v8369
        %v8483 = vunpack.c.l.b16 %v8370
        %v8484 = vunpack.c.h.b16 %v8370
        %v8485 = vunpack.c.l.b16 %v8371
        %v8486 = vunpack.c.h.b16 %v8371
        %v8487 = vunpack.c.l.b16 %v8372
        %v8488 = vunpack.c.h.b16 %v8372
        %v8489 = vunpack.c.l.b16 %v8373
        %v8490 = vunpack.c.h.b16 %v8373
        %v8491 = vunpack.c.l.b16 %v8374
        %v8492 = vunpack.c.h.b16 %v8374
        %v8493 = vunpack.c.l.b16 %v8375
        %v8494 = vunpack.c.h.b16 %v8375
        %v8495 = vunpack.c.l.b16 %v8376
        %v8496 = vunpack.c.h.b16 %v8376
        %v8497 = vunpack.c.l.b16 %v8377
        %v8498 = vunpack.c.h.b16 %v8377
        %v8499 = vunpack.c.l.b16 %v8378
        %v8500 = vunpack.c.h.b16 %v8378
        %v8501 = vunpack.c.l.b16 %v8379
        %v8502 = vunpack.c.h.b16 %v8379
        %v8503 = vunpack.c.l.b16 %v8380
        %v8504 = vunpack.c.h.b16 %v8380
        %v8505 = vunpack.c.l.b16 %v8381
        %v8506 = vunpack.c.h.b16 %v8381
        %v8507 = vunpack.c.l.b16 %v8382
        %v8508 = vunpack.c.h.b16 %v8382
        %v8509 = vunpack.c.l.b16 %v8383
        %v8510 = vunpack.c.h.b16 %v8383
        %v8511 = vunpack.c.l.b16 %v8384
        %v8512 = vunpack.c.h.b16 %v8384
        %v8513 = vunpack.c.l.b16 %v8385
        %v8514 = vunpack.c.h.b16 %v8385
        %v8515 = vunpack.c.l.b16 %v8386
        %v8516 = vunpack.c.h.b16 %v8386
        %v8517 = vunpack.c.l.b16 %v8387
        %v8518 = vunpack.c.h.b16 %v8387
        %v8519 = vunpack.c.l.b16 %v8388
        %v8520 = vunpack.c.h.b16 %v8388
        %v8521 = vunpack.c.l.b16 %v8389
        %v8522 = vunpack.c.h.b16 %v8389
        %v8523 = vunpack.c.l.b16 %v8390
        %v8524 = vunpack.c.h.b16 %v8390
        %v8525 = vunpack.c.l.b16 %v8391
        %v8526 = vunpack.c.h.b16 %v8391
        %v8527 = vunpack.c.l.b16 %v8392
        %v8528 = vunpack.c.h.b16 %v8392
        %v8529 = vunpack.c.l.b16 %v8393
        %v8530 = vunpack.c.h.b16 %v8393
        %v8531 = vunpack.c.l.b16 %v8394
        %v8532 = vunpack.c.h.b16 %v8394
        %v8533 = vunpack.c.l.b16 %v8395
        %v8534 = vunpack.c.h.b16 %v8395
        %v8535 = vunpack.c.l.b16 %v8396
        %v8536 = vunpack.c.h.b16 %v8396
        %v8537 = vunpack.c.l.b16 %v8397
        %v8538 = vunpack.c.h.b16 %v8397
        %v8539 = vunpack.c.l.b16 %v8398
        %v8540 = vunpack.c.h.b16 %v8398
        %v8541 = vunpack.c.l.b16 %v8399
        %v8542 = vunpack.c.h.b16 %v8399
        %v8543 = vunpack.c.l.b16 %v8400
        %v8544 = vunpack.c.h.b16 %v8400
        %v8545 = vunpack.c.l.b16 %v8401
        %v8546 = vunpack.c.h.b16 %v8401
        %v8547 = vunpack.c.l.b16 %v8402
        %v8548 = vunpack.c.h.b16 %v8402
        %v8549 = vunpack.c.l.b16 %v8403
        %v8550 = vunpack.c.h.b16 %v8403
        %v8551 = vunpack.c.l.b16 %v8404
        %v8552 = vunpack.c.h.b16 %v8404
        %v8553 = vunpack.c.l.b16 %v8405
        %v8554 = vunpack.c.h.b16 %v8405
        %v8555 = vunpack.c.l.b16 %v8406
        %v8556 = vunpack.c.h.b16 %v8406
        %v8557 = vpack.c.b16 %v8461, %v8457
        %v8558 = vpack.c.b16 %v8462, %v8458
        %v8559 = vpack.c.b16 %v8463, %v8459
        %v8560 = vpack.c.b16 %v8464, %v8460
        %v8561 = vpack.c.b16 %v8469, %v8465
        %v8562 = vpack.c.b16 %v8470, %v8466
        %v8563 = vpack.c.b16 %v8471, %v8467
        %v8564 = vpack.c.b16 %v8472, %v8468
        %v8565 = vpack.c.b16 %v8477, %v8473
        %v8566 = vpack.c.b16 %v8478, %v8474
        %v8567 = vpack.c.b16 %v8479, %v8475
        %v8568 = vpack.c.b16 %v8480, %v8476
        %v8569 = vpack.c.b16 %v8485, %v8481
        %v8570 = vpack.c.b16 %v8486, %v8482
        %v8571 = vpack.c.b16 %v8487, %v8483
        %v8572 = vpack.c.b16 %v8488, %v8484
        %v8573 = vpack.c.b16 %v8493, %v8489
        %v8574 = vpack.c.b16 %v8494, %v8490
        %v8575 = vpack.c.b16 %v8495, %v8491
        %v8576 = vpack.c.b16 %v8496, %v8492
        %v8577 = vpack.c.b16 %v8501, %v8497
        %v8578 = vpack.c.b16 %v8502, %v8498
        %v8579 = vpack.c.b16 %v8503, %v8499
        %v8580 = vpack.c.b16 %v8504, %v8500
        %v8581 = vpack.c.b16 %v8509, %v8505
        %v8582 = vpack.c.b16 %v8510, %v8506
        %v8583 = vpack.c.b16 %v8511, %v8507
        %v8584 = vpack.c.b16 %v8512, %v8508
        %v8585 = vpack.c.b16 %v8517, %v8513
        %v8586 = vpack.c.b16 %v8518, %v8514
        %v8587 = vpack.c.b16 %v8519, %v8515
        %v8588 = vpack.c.b16 %v8520, %v8516
        %v8589 = vpack.c.b16 %v8525, %v8521
        %v8590 = vpack.c.b16 %v8526, %v8522
        %v8591 = vpack.c.b16 %v8527, %v8523
        %v8592 = vpack.c.b16 %v8528, %v8524
        %v8593 = vpack.c.b16 %v8533, %v8529
        %v8594 = vpack.c.b16 %v8534, %v8530
        %v8595 = vpack.c.b16 %v8535, %v8531
        %v8596 = vpack.c.b16 %v8536, %v8532
        %v8597 = vpack.c.b16 %v8541, %v8537
        %v8598 = vpack.c.b16 %v8542, %v8538
        %v8599 = vpack.c.b16 %v8543, %v8539
        %v8600 = vpack.c.b16 %v8544, %v8540
        %v8601 = vpack.c.b16 %v8549, %v8545
        %v8602 = vpack.c.b16 %v8550, %v8546
        %v8603 = vpack.c.b16 %v8551, %v8547
        %v8604 = vpack.c.b16 %v8552, %v8548
        %v8605 = vpack.c.b16 %v8553, %v8553
        %v8606 = vpack.c.b16 %v8554, %v8554
        %v8607 = vpack.c.b16 %v8555, %v8555
        %v8608 = vpack.c.b16 %v8556, %v8556
        %v8658 = vsel %vm8230, %v8355, 0
        %v8661 = vsel %vm8234, %v8605, 0
        %v8664 = vsel %vm8234, %v8606, 0
        %v8667 = vsel %vm8234, %v8607, 0
        %v8670 = vsel %vm8234, %v8608, 0
        %8672 = vmatprep.subr.bf16.mxu0 %v8586
        %8673 = vmatpush1.bf16.msra.mxu0 %v8585
        %8674 = vmatprep.subr.bf16.mxu0 %v8582
        %8675 = vmatpush1.bf16.msra.mxu0 %v8581
        %8676 = vmatprep.subr.bf16.mxu0 %v8578
        %8677 = vmatpush1.bf16.msra.mxu0 %v8577
        %8678 = vmatprep.subr.bf16.mxu0 %v8574
        %8679 = vmatpush1.bf16.msra.mxu0 %v8573
        %8680 = vmatprep.subr.bf16.mxu0 %v8570
        %8681 = vmatpush1.bf16.msra.mxu0 %v8569
        %8682 = vmatprep.subr.bf16.mxu0 %v8566
        %8683 = vmatpush1.bf16.msra.mxu0 %v8565
        %8684 = vmatprep.subr.bf16.mxu0 %v8562
        %8685 = vmatpush1.bf16.msra.mxu0 %v8561
        %8686 = vmatprep.subr.bf16.mxu0 %v8558
        %8687 = vmatpush1.bf16.msra.mxu0 %v8557
        %8688 = vmatprep.subr.bf16.mxu0 0
        %8689 = vmatpush2.bf16.msra.mxu0 0
        %8690 = vmatprep.subr.bf16.mxu0 0
        %8691 = vmatpush2.bf16.msra.mxu0 0
        %8692 = vmatprep.subr.bf16.mxu0 0
        %8693 = vmatpush2.bf16.msra.mxu0 0
        %8694 = vmatprep.subr.bf16.mxu0 %v8664
        %8695 = vmatpush2.bf16.msra.mxu0 %v8661
        %8696 = vmatprep.subr.bf16.mxu0 %v8602
        %8697 = vmatpush2.bf16.msra.mxu0 %v8601
        %8698 = vmatprep.subr.bf16.mxu0 %v8598
        %8699 = vmatpush2.bf16.msra.mxu0 %v8597
        %8700 = vmatprep.subr.bf16.mxu0 %v8594
        %8701 = vmatpush2.bf16.msra.mxu0 %v8593
        %8702 = vmatprep.subr.bf16.mxu0 %v8590
        %8703 = vmatpush2.bf16.msra.mxu0 %v8589
        %8704 = vmatprep.mubr.bf16.mxu0 %v8658
        %8705 = vmatmul.mubr.bf16.gmra.mxu0 %v8354
        %v8706 = vpop.f32.mrf.mxu0
        %v8707 = vadd.f32 0.0, %v8706
        %v8708 = vpop.f32.mrf.mxu0
        %v8709 = vadd.f32 0.0, %v8708
        %v8710 = vpop.f32.mrf.mxu0
        %v8711 = vpop.f32.mrf.mxu0
        %8712 = vdwg.mxu0
        %8713 = vmatprep.subr.bf16.mxu0 %v8588
        %8714 = vmatpush1.bf16.msra.mxu0 %v8587
        %8715 = vmatprep.subr.bf16.mxu0 %v8584
        %8716 = vmatpush1.bf16.msra.mxu0 %v8583
        %8717 = vmatprep.subr.bf16.mxu0 %v8580
        %8718 = vmatpush1.bf16.msra.mxu0 %v8579
        %8719 = vmatprep.subr.bf16.mxu0 %v8576
        %8720 = vmatpush1.bf16.msra.mxu0 %v8575
        %8721 = vmatprep.subr.bf16.mxu0 %v8572
        %8722 = vmatpush1.bf16.msra.mxu0 %v8571
        %8723 = vmatprep.subr.bf16.mxu0 %v8568
        %8724 = vmatpush1.bf16.msra.mxu0 %v8567
        %8725 = vmatprep.subr.bf16.mxu0 %v8564
        %8726 = vmatpush1.bf16.msra.mxu0 %v8563
        %8727 = vmatprep.subr.bf16.mxu0 %v8560
        %8728 = vmatpush1.bf16.msra.mxu0 %v8559
        %8729 = vmatprep.subr.bf16.mxu0 0
        %8730 = vmatpush2.bf16.msra.mxu0 0
        %8731 = vmatprep.subr.bf16.mxu0 0
        %8732 = vmatpush2.bf16.msra.mxu0 0
        %8733 = vmatprep.subr.bf16.mxu0 0
        %8734 = vmatpush2.bf16.msra.mxu0 0
        %8735 = vmatprep.subr.bf16.mxu0 %v8670
        %8736 = vmatpush2.bf16.msra.mxu0 %v8667
        %8737 = vmatprep.subr.bf16.mxu0 %v8604
        %8738 = vmatpush2.bf16.msra.mxu0 %v8603
        %8739 = vmatprep.subr.bf16.mxu0 %v8600
        %8740 = vmatpush2.bf16.msra.mxu0 %v8599
        %8741 = vmatprep.subr.bf16.mxu0 %v8596
        %8742 = vmatpush2.bf16.msra.mxu0 %v8595
        %8743 = vmatprep.subr.bf16.mxu0 %v8592
        %8744 = vmatpush2.bf16.msra.mxu0 %v8591
        %8745 = vmatprep.mubr.bf16.mxu0 %v8658
        %8746 = vmatmul.mubr.bf16.gmra.mxu0 %v8354
        %v8747 = vpop.f32.mrf.mxu0
        %v8748 = vadd.f32 0.0, %v8747
        %v8749 = vpop.f32.mrf.mxu0
        %v8750 = vadd.f32 0.0, %v8749
        %v8751 = vpop.f32.mrf.mxu0
        %v8752 = vpop.f32.mrf.mxu0
        %8753 = vdwg.mxu0
        %v8754 = vadd.f32 %v8350, %v8707
        %v8755 = vadd.f32 %v8351, %v8709
        %v8756 = vadd.f32 %v8352, %v8748
        %v8757 = vadd.f32 %v8353, %v8750
        %v8758 = vpack.c.bf16 %v7923, %v7923
        %v8759 = vpack.c.bf16 %v7924, %v7924
        %s8760 = scalar_lea.vmem %s9, 800
        %v8761 = vld [vmem:[%s8760] sm:$0xff]
        %v8762 = vld [vmem:[%s8760 + $0x8] sm:$0xff]
        %v8763 = vld [vmem:[%s8760 + $0x10] sm:$0xff]
        %v8764 = vld [vmem:[%s8760 + $0x18] sm:$0xff]
        %v8765 = vld [vmem:[%s8760 + $0x20] sm:$0xff]
        %v8766 = vld [vmem:[%s8760 + $0x28] sm:$0xff]
        %v8767 = vld [vmem:[%s8760 + $0x30] sm:$0xff]
        %v8768 = vld [vmem:[%s8760 + $0x38] sm:$0xff]
        %v8769 = vld [vmem:[%s8760 + $0x40] sm:$0xff]
        %v8770 = vld [vmem:[%s8760 + $0x48] sm:$0xff]
        %v8771 = vld [vmem:[%s8760 + $0x50] sm:$0xff]
        %v8772 = vld [vmem:[%s8760 + $0x58] sm:$0xff]
        %v8773 = vld [vmem:[%s8760 + $0x60] sm:$0xff]
        %v8774 = vld [vmem:[%s8760 + $0x68] sm:$0xff]
        %v8775 = vld [vmem:[%s8760 + $0x70] sm:$0xff]
        %v8776 = vld [vmem:[%s8760 + $0x78] sm:$0xff]
        %v8777 = vld [vmem:[%s8760 + $0x80] sm:$0xff]
        %v8778 = vld [vmem:[%s8760 + $0x88] sm:$0xff]
        %v8779 = vld [vmem:[%s8760 + $0x90] sm:$0xff]
        %v8780 = vld [vmem:[%s8760 + $0x98] sm:$0xff]
        %v8781 = vld [vmem:[%s8760 + $0xa0] sm:$0xff]
        %v8782 = vld [vmem:[%s8760 + $0xa8] sm:$0xff]
        %v8783 = vld [vmem:[%s8760 + $0xb0] sm:$0xff]
        %v8784 = vld [vmem:[%s8760 + $0xb8] sm:$0xff]
        %v8785 = vld [vmem:[%s8760 + $0xc0] sm:$0xff]
        %v8786 = vld [vmem:[%s8760 + $0xc8] sm:$0xff]
        %v8787 = vld [vmem:[%s8760 + $0xd0] sm:$0xff]
        %v8788 = vld [vmem:[%s8760 + $0xd8] sm:$0xff]
        %v8789 = vld [vmem:[%s8760 + $0xe0] sm:$0xff]
        %v8790 = vld [vmem:[%s8760 + $0xe8] sm:$0xff]
        %v8791 = vld [vmem:[%s8760 + $0xf0] sm:$0xff]
        %v8792 = vld [vmem:[%s8760 + $0xf8] sm:$0xff]
        %v8793 = vld [vmem:[%s8760 + $0x100] sm:$0xff]
        %v8794 = vld [vmem:[%s8760 + $0x108] sm:$0xff]
        %v8795 = vld [vmem:[%s8760 + $0x110] sm:$0xff]
        %v8796 = vld [vmem:[%s8760 + $0x118] sm:$0xff]
        %v8797 = vld [vmem:[%s8760 + $0x120] sm:$0xff]
        %v8798 = vld [vmem:[%s8760 + $0x128] sm:$0xff]
        %v8799 = vld [vmem:[%s8760 + $0x130] sm:$0xff]
        %v8800 = vld [vmem:[%s8760 + $0x138] sm:$0xff]
        %v8801 = vld [vmem:[%s8760 + $0x140] sm:$0xff]
        %v8802 = vld [vmem:[%s8760 + $0x148] sm:$0xff]
        %v8803 = vld [vmem:[%s8760 + $0x150] sm:$0xff]
        %v8804 = vld [vmem:[%s8760 + $0x158] sm:$0xff]
        %v8805 = vld [vmem:[%s8760 + $0x160] sm:$0xff]
        %v8806 = vld [vmem:[%s8760 + $0x168] sm:$0xff]
        %v8807 = vld [vmem:[%s8760 + $0x170] sm:$0xff]
        %v8808 = vld [vmem:[%s8760 + $0x178] sm:$0xff]
        %v8809 = vld [vmem:[%s8760 + $0x180] sm:$0xff]
        %v8810 = vld [vmem:[%s8760 + $0x188] sm:$0xff]
        %v8861 = vunpack.c.l.b16 %v8761
        %v8862 = vunpack.c.h.b16 %v8761
        %v8863 = vunpack.c.l.b16 %v8762
        %v8864 = vunpack.c.h.b16 %v8762
        %v8865 = vunpack.c.l.b16 %v8763
        %v8866 = vunpack.c.h.b16 %v8763
        %v8867 = vunpack.c.l.b16 %v8764
        %v8868 = vunpack.c.h.b16 %v8764
        %v8869 = vunpack.c.l.b16 %v8765
        %v8870 = vunpack.c.h.b16 %v8765
        %v8871 = vunpack.c.l.b16 %v8766
        %v8872 = vunpack.c.h.b16 %v8766
        %v8873 = vunpack.c.l.b16 %v8767
        %v8874 = vunpack.c.h.b16 %v8767
        %v8875 = vunpack.c.l.b16 %v8768
        %v8876 = vunpack.c.h.b16 %v8768
        %v8877 = vunpack.c.l.b16 %v8769
        %v8878 = vunpack.c.h.b16 %v8769
        %v8879 = vunpack.c.l.b16 %v8770
        %v8880 = vunpack.c.h.b16 %v8770
        %v8881 = vunpack.c.l.b16 %v8771
        %v8882 = vunpack.c.h.b16 %v8771
        %v8883 = vunpack.c.l.b16 %v8772
        %v8884 = vunpack.c.h.b16 %v8772
        %v8885 = vunpack.c.l.b16 %v8773
        %v8886 = vunpack.c.h.b16 %v8773
        %v8887 = vunpack.c.l.b16 %v8774
        %v8888 = vunpack.c.h.b16 %v8774
        %v8889 = vunpack.c.l.b16 %v8775
        %v8890 = vunpack.c.h.b16 %v8775
        %v8891 = vunpack.c.l.b16 %v8776
        %v8892 = vunpack.c.h.b16 %v8776
        %v8893 = vunpack.c.l.b16 %v8777
        %v8894 = vunpack.c.h.b16 %v8777
        %v8895 = vunpack.c.l.b16 %v8778
        %v8896 = vunpack.c.h.b16 %v8778
        %v8897 = vunpack.c.l.b16 %v8779
        %v8898 = vunpack.c.h.b16 %v8779
        %v8899 = vunpack.c.l.b16 %v8780
        %v8900 = vunpack.c.h.b16 %v8780
        %v8901 = vunpack.c.l.b16 %v8781
        %v8902 = vunpack.c.h.b16 %v8781
        %v8903 = vunpack.c.l.b16 %v8782
        %v8904 = vunpack.c.h.b16 %v8782
        %v8905 = vunpack.c.l.b16 %v8783
        %v8906 = vunpack.c.h.b16 %v8783
        %v8907 = vunpack.c.l.b16 %v8784
        %v8908 = vunpack.c.h.b16 %v8784
        %v8909 = vunpack.c.l.b16 %v8785
        %v8910 = vunpack.c.h.b16 %v8785
        %v8911 = vunpack.c.l.b16 %v8786
        %v8912 = vunpack.c.h.b16 %v8786
        %v8913 = vunpack.c.l.b16 %v8787
        %v8914 = vunpack.c.h.b16 %v8787
        %v8915 = vunpack.c.l.b16 %v8788
        %v8916 = vunpack.c.h.b16 %v8788
        %v8917 = vunpack.c.l.b16 %v8789
        %v8918 = vunpack.c.h.b16 %v8789
        %v8919 = vunpack.c.l.b16 %v8790
        %v8920 = vunpack.c.h.b16 %v8790
        %v8921 = vunpack.c.l.b16 %v8791
        %v8922 = vunpack.c.h.b16 %v8791
        %v8923 = vunpack.c.l.b16 %v8792
        %v8924 = vunpack.c.h.b16 %v8792
        %v8925 = vunpack.c.l.b16 %v8793
        %v8926 = vunpack.c.h.b16 %v8793
        %v8927 = vunpack.c.l.b16 %v8794
        %v8928 = vunpack.c.h.b16 %v8794
        %v8929 = vunpack.c.l.b16 %v8795
        %v8930 = vunpack.c.h.b16 %v8795
        %v8931 = vunpack.c.l.b16 %v8796
        %v8932 = vunpack.c.h.b16 %v8796
        %v8933 = vunpack.c.l.b16 %v8797
        %v8934 = vunpack.c.h.b16 %v8797
        %v8935 = vunpack.c.l.b16 %v8798
        %v8936 = vunpack.c.h.b16 %v8798
        %v8937 = vunpack.c.l.b16 %v8799
        %v8938 = vunpack.c.h.b16 %v8799
        %v8939 = vunpack.c.l.b16 %v8800
        %v8940 = vunpack.c.h.b16 %v8800
        %v8941 = vunpack.c.l.b16 %v8801
        %v8942 = vunpack.c.h.b16 %v8801
        %v8943 = vunpack.c.l.b16 %v8802
        %v8944 = vunpack.c.h.b16 %v8802
        %v8945 = vunpack.c.l.b16 %v8803
        %v8946 = vunpack.c.h.b16 %v8803
        %v8947 = vunpack.c.l.b16 %v8804
        %v8948 = vunpack.c.h.b16 %v8804
        %v8949 = vunpack.c.l.b16 %v8805
        %v8950 = vunpack.c.h.b16 %v8805
        %v8951 = vunpack.c.l.b16 %v8806
        %v8952 = vunpack.c.h.b16 %v8806
        %v8953 = vunpack.c.l.b16 %v8807
        %v8954 = vunpack.c.h.b16 %v8807
        %v8955 = vunpack.c.l.b16 %v8808
        %v8956 = vunpack.c.h.b16 %v8808
        %v8957 = vunpack.c.l.b16 %v8809
        %v8958 = vunpack.c.h.b16 %v8809
        %v8959 = vunpack.c.l.b16 %v8810
        %v8960 = vunpack.c.h.b16 %v8810
        %v8961 = vpack.c.b16 %v8865, %v8861
        %v8962 = vpack.c.b16 %v8866, %v8862
        %v8963 = vpack.c.b16 %v8867, %v8863
        %v8964 = vpack.c.b16 %v8868, %v8864
        %v8965 = vpack.c.b16 %v8873, %v8869
        %v8966 = vpack.c.b16 %v8874, %v8870
        %v8967 = vpack.c.b16 %v8875, %v8871
        %v8968 = vpack.c.b16 %v8876, %v8872
        %v8969 = vpack.c.b16 %v8881, %v8877
        %v8970 = vpack.c.b16 %v8882, %v8878
        %v8971 = vpack.c.b16 %v8883, %v8879
        %v8972 = vpack.c.b16 %v8884, %v8880
        %v8973 = vpack.c.b16 %v8889, %v8885
        %v8974 = vpack.c.b16 %v8890, %v8886
        %v8975 = vpack.c.b16 %v8891, %v8887
        %v8976 = vpack.c.b16 %v8892, %v8888
        %v8977 = vpack.c.b16 %v8897, %v8893
        %v8978 = vpack.c.b16 %v8898, %v8894
        %v8979 = vpack.c.b16 %v8899, %v8895
        %v8980 = vpack.c.b16 %v8900, %v8896
        %v8981 = vpack.c.b16 %v8905, %v8901
        %v8982 = vpack.c.b16 %v8906, %v8902
        %v8983 = vpack.c.b16 %v8907, %v8903
        %v8984 = vpack.c.b16 %v8908, %v8904
        %v8985 = vpack.c.b16 %v8913, %v8909
        %v8986 = vpack.c.b16 %v8914, %v8910
        %v8987 = vpack.c.b16 %v8915, %v8911
        %v8988 = vpack.c.b16 %v8916, %v8912
        %v8989 = vpack.c.b16 %v8921, %v8917
        %v8990 = vpack.c.b16 %v8922, %v8918
        %v8991 = vpack.c.b16 %v8923, %v8919
        %v8992 = vpack.c.b16 %v8924, %v8920
        %v8993 = vpack.c.b16 %v8929, %v8925
        %v8994 = vpack.c.b16 %v8930, %v8926
        %v8995 = vpack.c.b16 %v8931, %v8927
        %v8996 = vpack.c.b16 %v8932, %v8928
        %v8997 = vpack.c.b16 %v8937, %v8933
        %v8998 = vpack.c.b16 %v8938, %v8934
        %v8999 = vpack.c.b16 %v8939, %v8935
        %v9000 = vpack.c.b16 %v8940, %v8936
        %v9001 = vpack.c.b16 %v8945, %v8941
        %v9002 = vpack.c.b16 %v8946, %v8942
        %v9003 = vpack.c.b16 %v8947, %v8943
        %v9004 = vpack.c.b16 %v8948, %v8944
        %v9005 = vpack.c.b16 %v8953, %v8949
        %v9006 = vpack.c.b16 %v8954, %v8950
        %v9007 = vpack.c.b16 %v8955, %v8951
        %v9008 = vpack.c.b16 %v8956, %v8952
        %v9009 = vpack.c.b16 %v8957, %v8957
        %v9010 = vpack.c.b16 %v8958, %v8958
        %v9011 = vpack.c.b16 %v8959, %v8959
        %v9012 = vpack.c.b16 %v8960, %v8960
        %v9062 = vsel %vm8230, %v8759, 0
        %v9065 = vsel %vm8234, %v9009, 0
        %v9068 = vsel %vm8234, %v9010, 0
        %v9071 = vsel %vm8234, %v9011, 0
        %v9074 = vsel %vm8234, %v9012, 0
        %9076 = vmatprep.subr.bf16.mxu0 %v8990
        %9077 = vmatpush1.bf16.msra.mxu0 %v8989
        %9078 = vmatprep.subr.bf16.mxu0 %v8986
        %9079 = vmatpush1.bf16.msra.mxu0 %v8985
        %9080 = vmatprep.subr.bf16.mxu0 %v8982
        %9081 = vmatpush1.bf16.msra.mxu0 %v8981
        %9082 = vmatprep.subr.bf16.mxu0 %v8978
        %9083 = vmatpush1.bf16.msra.mxu0 %v8977
        %9084 = vmatprep.subr.bf16.mxu0 %v8974
        %9085 = vmatpush1.bf16.msra.mxu0 %v8973
        %9086 = vmatprep.subr.bf16.mxu0 %v8970
        %9087 = vmatpush1.bf16.msra.mxu0 %v8969
        %9088 = vmatprep.subr.bf16.mxu0 %v8966
        %9089 = vmatpush1.bf16.msra.mxu0 %v8965
        %9090 = vmatprep.subr.bf16.mxu0 %v8962
        %9091 = vmatpush1.bf16.msra.mxu0 %v8961
        %9092 = vmatprep.subr.bf16.mxu0 0
        %9093 = vmatpush2.bf16.msra.mxu0 0
        %9094 = vmatprep.subr.bf16.mxu0 0
        %9095 = vmatpush2.bf16.msra.mxu0 0
        %9096 = vmatprep.subr.bf16.mxu0 0
        %9097 = vmatpush2.bf16.msra.mxu0 0
        %9098 = vmatprep.subr.bf16.mxu0 %v9068
        %9099 = vmatpush2.bf16.msra.mxu0 %v9065
        %9100 = vmatprep.subr.bf16.mxu0 %v9006
        %9101 = vmatpush2.bf16.msra.mxu0 %v9005
        %9102 = vmatprep.subr.bf16.mxu0 %v9002
        %9103 = vmatpush2.bf16.msra.mxu0 %v9001
        %9104 = vmatprep.subr.bf16.mxu0 %v8998
        %9105 = vmatpush2.bf16.msra.mxu0 %v8997
        %9106 = vmatprep.subr.bf16.mxu0 %v8994
        %9107 = vmatpush2.bf16.msra.mxu0 %v8993
        %9108 = vmatprep.mubr.bf16.mxu0 %v9062
        %9109 = vmatmul.mubr.bf16.gmra.mxu0 %v8758
        %v9110 = vpop.f32.mrf.mxu0
        %v9111 = vadd.f32 0.0, %v9110
        %v9112 = vpop.f32.mrf.mxu0
        %v9113 = vadd.f32 0.0, %v9112
        %v9114 = vpop.f32.mrf.mxu0
        %v9115 = vpop.f32.mrf.mxu0
        %9116 = vdwg.mxu0
        %9117 = vmatprep.subr.bf16.mxu0 %v8992
        %9118 = vmatpush1.bf16.msra.mxu0 %v8991
        %9119 = vmatprep.subr.bf16.mxu0 %v8988
        %9120 = vmatpush1.bf16.msra.mxu0 %v8987
        %9121 = vmatprep.subr.bf16.mxu0 %v8984
        %9122 = vmatpush1.bf16.msra.mxu0 %v8983
        %9123 = vmatprep.subr.bf16.mxu0 %v8980
        %9124 = vmatpush1.bf16.msra.mxu0 %v8979
        %9125 = vmatprep.subr.bf16.mxu0 %v8976
        %9126 = vmatpush1.bf16.msra.mxu0 %v8975
        %9127 = vmatprep.subr.bf16.mxu0 %v8972
        %9128 = vmatpush1.bf16.msra.mxu0 %v8971
        %9129 = vmatprep.subr.bf16.mxu0 %v8968
        %9130 = vmatpush1.bf16.msra.mxu0 %v8967
        %9131 = vmatprep.subr.bf16.mxu0 %v8964
        %9132 = vmatpush1.bf16.msra.mxu0 %v8963
        %9133 = vmatprep.subr.bf16.mxu0 0
        %9134 = vmatpush2.bf16.msra.mxu0 0
        %9135 = vmatprep.subr.bf16.mxu0 0
        %9136 = vmatpush2.bf16.msra.mxu0 0
        %9137 = vmatprep.subr.bf16.mxu0 0
        %9138 = vmatpush2.bf16.msra.mxu0 0
        %9139 = vmatprep.subr.bf16.mxu0 %v9074
        %9140 = vmatpush2.bf16.msra.mxu0 %v9071
        %9141 = vmatprep.subr.bf16.mxu0 %v9008
        %9142 = vmatpush2.bf16.msra.mxu0 %v9007
        %9143 = vmatprep.subr.bf16.mxu0 %v9004
        %9144 = vmatpush2.bf16.msra.mxu0 %v9003
        %9145 = vmatprep.subr.bf16.mxu0 %v9000
        %9146 = vmatpush2.bf16.msra.mxu0 %v8999
        %9147 = vmatprep.subr.bf16.mxu0 %v8996
        %9148 = vmatpush2.bf16.msra.mxu0 %v8995
        %9149 = vmatprep.mubr.bf16.mxu0 %v9062
        %9150 = vmatmul.mubr.bf16.gmra.mxu0 %v8758
        %v9151 = vpop.f32.mrf.mxu0
        %v9152 = vadd.f32 0.0, %v9151
        %v9153 = vpop.f32.mrf.mxu0
        %v9154 = vadd.f32 0.0, %v9153
        %v9155 = vpop.f32.mrf.mxu0
        %v9156 = vpop.f32.mrf.mxu0
        %9157 = vdwg.mxu0
        %v9158 = vadd.f32 %v8754, %v9111
        %v9159 = vadd.f32 %v8755, %v9113
        %v9160 = vadd.f32 %v8756, %v9152
        %v9161 = vadd.f32 %v8757, %v9154
        %v9162 = vpack.c.bf16 %v7925, %v7925
        %v9163 = vpack.c.bf16 %v7926, %v7926
        %s9164 = scalar_lea.vmem %s9, 1200
        %v9165 = vld [vmem:[%s9164] sm:$0xff]
        %v9166 = vld [vmem:[%s9164 + $0x8] sm:$0xff]
        %v9167 = vld [vmem:[%s9164 + $0x10] sm:$0xff]
        %v9168 = vld [vmem:[%s9164 + $0x18] sm:$0xff]
        %v9169 = vld [vmem:[%s9164 + $0x20] sm:$0xff]
        %v9170 = vld [vmem:[%s9164 + $0x28] sm:$0xff]
        %v9171 = vld [vmem:[%s9164 + $0x30] sm:$0xff]
        %v9172 = vld [vmem:[%s9164 + $0x38] sm:$0xff]
        %v9173 = vld [vmem:[%s9164 + $0x40] sm:$0xff]
        %v9174 = vld [vmem:[%s9164 + $0x48] sm:$0xff]
        %v9175 = vld [vmem:[%s9164 + $0x50] sm:$0xff]
        %v9176 = vld [vmem:[%s9164 + $0x58] sm:$0xff]
        %v9177 = vld [vmem:[%s9164 + $0x60] sm:$0xff]
        %v9178 = vld [vmem:[%s9164 + $0x68] sm:$0xff]
        %v9179 = vld [vmem:[%s9164 + $0x70] sm:$0xff]
        %v9180 = vld [vmem:[%s9164 + $0x78] sm:$0xff]
        %v9181 = vld [vmem:[%s9164 + $0x80] sm:$0xff]
        %v9182 = vld [vmem:[%s9164 + $0x88] sm:$0xff]
        %v9183 = vld [vmem:[%s9164 + $0x90] sm:$0xff]
        %v9184 = vld [vmem:[%s9164 + $0x98] sm:$0xff]
        %v9185 = vld [vmem:[%s9164 + $0xa0] sm:$0xff]
        %v9186 = vld [vmem:[%s9164 + $0xa8] sm:$0xff]
        %v9187 = vld [vmem:[%s9164 + $0xb0] sm:$0xff]
        %v9188 = vld [vmem:[%s9164 + $0xb8] sm:$0xff]
        %v9189 = vld [vmem:[%s9164 + $0xc0] sm:$0xff]
        %v9190 = vld [vmem:[%s9164 + $0xc8] sm:$0xff]
        %v9191 = vld [vmem:[%s9164 + $0xd0] sm:$0xff]
        %v9192 = vld [vmem:[%s9164 + $0xd8] sm:$0xff]
        %v9193 = vld [vmem:[%s9164 + $0xe0] sm:$0xff]
        %v9194 = vld [vmem:[%s9164 + $0xe8] sm:$0xff]
        %v9195 = vld [vmem:[%s9164 + $0xf0] sm:$0xff]
        %v9196 = vld [vmem:[%s9164 + $0xf8] sm:$0xff]
        %v9197 = vld [vmem:[%s9164 + $0x100] sm:$0xff]
        %v9198 = vld [vmem:[%s9164 + $0x108] sm:$0xff]
        %v9199 = vld [vmem:[%s9164 + $0x110] sm:$0xff]
        %v9200 = vld [vmem:[%s9164 + $0x118] sm:$0xff]
        %v9201 = vld [vmem:[%s9164 + $0x120] sm:$0xff]
        %v9202 = vld [vmem:[%s9164 + $0x128] sm:$0xff]
        %v9203 = vld [vmem:[%s9164 + $0x130] sm:$0xff]
        %v9204 = vld [vmem:[%s9164 + $0x138] sm:$0xff]
        %v9205 = vld [vmem:[%s9164 + $0x140] sm:$0xff]
        %v9206 = vld [vmem:[%s9164 + $0x148] sm:$0xff]
        %v9207 = vld [vmem:[%s9164 + $0x150] sm:$0xff]
        %v9208 = vld [vmem:[%s9164 + $0x158] sm:$0xff]
        %v9209 = vld [vmem:[%s9164 + $0x160] sm:$0xff]
        %v9210 = vld [vmem:[%s9164 + $0x168] sm:$0xff]
        %v9211 = vld [vmem:[%s9164 + $0x170] sm:$0xff]
        %v9212 = vld [vmem:[%s9164 + $0x178] sm:$0xff]
        %v9213 = vld [vmem:[%s9164 + $0x180] sm:$0xff]
        %v9214 = vld [vmem:[%s9164 + $0x188] sm:$0xff]
        %v9265 = vunpack.c.l.b16 %v9165
        %v9266 = vunpack.c.h.b16 %v9165
        %v9267 = vunpack.c.l.b16 %v9166
        %v9268 = vunpack.c.h.b16 %v9166
        %v9269 = vunpack.c.l.b16 %v9167
        %v9270 = vunpack.c.h.b16 %v9167
        %v9271 = vunpack.c.l.b16 %v9168
        %v9272 = vunpack.c.h.b16 %v9168
        %v9273 = vunpack.c.l.b16 %v9169
        %v9274 = vunpack.c.h.b16 %v9169
        %v9275 = vunpack.c.l.b16 %v9170
        %v9276 = vunpack.c.h.b16 %v9170
        %v9277 = vunpack.c.l.b16 %v9171
        %v9278 = vunpack.c.h.b16 %v9171
        %v9279 = vunpack.c.l.b16 %v9172
        %v9280 = vunpack.c.h.b16 %v9172
        %v9281 = vunpack.c.l.b16 %v9173
        %v9282 = vunpack.c.h.b16 %v9173
        %v9283 = vunpack.c.l.b16 %v9174
        %v9284 = vunpack.c.h.b16 %v9174
        %v9285 = vunpack.c.l.b16 %v9175
        %v9286 = vunpack.c.h.b16 %v9175
        %v9287 = vunpack.c.l.b16 %v9176
        %v9288 = vunpack.c.h.b16 %v9176
        %v9289 = vunpack.c.l.b16 %v9177
        %v9290 = vunpack.c.h.b16 %v9177
        %v9291 = vunpack.c.l.b16 %v9178
        %v9292 = vunpack.c.h.b16 %v9178
        %v9293 = vunpack.c.l.b16 %v9179
        %v9294 = vunpack.c.h.b16 %v9179
        %v9295 = vunpack.c.l.b16 %v9180
        %v9296 = vunpack.c.h.b16 %v9180
        %v9297 = vunpack.c.l.b16 %v9181
        %v9298 = vunpack.c.h.b16 %v9181
        %v9299 = vunpack.c.l.b16 %v9182
        %v9300 = vunpack.c.h.b16 %v9182
        %v9301 = vunpack.c.l.b16 %v9183
        %v9302 = vunpack.c.h.b16 %v9183
        %v9303 = vunpack.c.l.b16 %v9184
        %v9304 = vunpack.c.h.b16 %v9184
        %v9305 = vunpack.c.l.b16 %v9185
        %v9306 = vunpack.c.h.b16 %v9185
        %v9307 = vunpack.c.l.b16 %v9186
        %v9308 = vunpack.c.h.b16 %v9186
        %v9309 = vunpack.c.l.b16 %v9187
        %v9310 = vunpack.c.h.b16 %v9187
        %v9311 = vunpack.c.l.b16 %v9188
        %v9312 = vunpack.c.h.b16 %v9188
        %v9313 = vunpack.c.l.b16 %v9189
        %v9314 = vunpack.c.h.b16 %v9189
        %v9315 = vunpack.c.l.b16 %v9190
        %v9316 = vunpack.c.h.b16 %v9190
        %v9317 = vunpack.c.l.b16 %v9191
        %v9318 = vunpack.c.h.b16 %v9191
        %v9319 = vunpack.c.l.b16 %v9192
        %v9320 = vunpack.c.h.b16 %v9192
        %v9321 = vunpack.c.l.b16 %v9193
        %v9322 = vunpack.c.h.b16 %v9193
        %v9323 = vunpack.c.l.b16 %v9194
        %v9324 = vunpack.c.h.b16 %v9194
        %v9325 = vunpack.c.l.b16 %v9195
        %v9326 = vunpack.c.h.b16 %v9195
        %v9327 = vunpack.c.l.b16 %v9196
        %v9328 = vunpack.c.h.b16 %v9196
        %v9329 = vunpack.c.l.b16 %v9197
        %v9330 = vunpack.c.h.b16 %v9197
        %v9331 = vunpack.c.l.b16 %v9198
        %v9332 = vunpack.c.h.b16 %v9198
        %v9333 = vunpack.c.l.b16 %v9199
        %v9334 = vunpack.c.h.b16 %v9199
        %v9335 = vunpack.c.l.b16 %v9200
        %v9336 = vunpack.c.h.b16 %v9200
        %v9337 = vunpack.c.l.b16 %v9201
        %v9338 = vunpack.c.h.b16 %v9201
        %v9339 = vunpack.c.l.b16 %v9202
        %v9340 = vunpack.c.h.b16 %v9202
        %v9341 = vunpack.c.l.b16 %v9203
        %v9342 = vunpack.c.h.b16 %v9203
        %v9343 = vunpack.c.l.b16 %v9204
        %v9344 = vunpack.c.h.b16 %v9204
        %v9345 = vunpack.c.l.b16 %v9205
        %v9346 = vunpack.c.h.b16 %v9205
        %v9347 = vunpack.c.l.b16 %v9206
        %v9348 = vunpack.c.h.b16 %v9206
        %v9349 = vunpack.c.l.b16 %v9207
        %v9350 = vunpack.c.h.b16 %v9207
        %v9351 = vunpack.c.l.b16 %v9208
        %v9352 = vunpack.c.h.b16 %v9208
        %v9353 = vunpack.c.l.b16 %v9209
        %v9354 = vunpack.c.h.b16 %v9209
        %v9355 = vunpack.c.l.b16 %v9210
        %v9356 = vunpack.c.h.b16 %v9210
        %v9357 = vunpack.c.l.b16 %v9211
        %v9358 = vunpack.c.h.b16 %v9211
        %v9359 = vunpack.c.l.b16 %v9212
        %v9360 = vunpack.c.h.b16 %v9212
        %v9361 = vunpack.c.l.b16 %v9213
        %v9362 = vunpack.c.h.b16 %v9213
        %v9363 = vunpack.c.l.b16 %v9214
        %v9364 = vunpack.c.h.b16 %v9214
        %v9365 = vpack.c.b16 %v9269, %v9265
        %v9366 = vpack.c.b16 %v9270, %v9266
        %v9367 = vpack.c.b16 %v9271, %v9267
        %v9368 = vpack.c.b16 %v9272, %v9268
        %v9369 = vpack.c.b16 %v9277, %v9273
        %v9370 = vpack.c.b16 %v9278, %v9274
        %v9371 = vpack.c.b16 %v9279, %v9275
        %v9372 = vpack.c.b16 %v9280, %v9276
        %v9373 = vpack.c.b16 %v9285, %v9281
        %v9374 = vpack.c.b16 %v9286, %v9282
        %v9375 = vpack.c.b16 %v9287, %v9283
        %v9376 = vpack.c.b16 %v9288, %v9284
        %v9377 = vpack.c.b16 %v9293, %v9289
        %v9378 = vpack.c.b16 %v9294, %v9290
        %v9379 = vpack.c.b16 %v9295, %v9291
        %v9380 = vpack.c.b16 %v9296, %v9292
        %v9381 = vpack.c.b16 %v9301, %v9297
        %v9382 = vpack.c.b16 %v9302, %v9298
        %v9383 = vpack.c.b16 %v9303, %v9299
        %v9384 = vpack.c.b16 %v9304, %v9300
        %v9385 = vpack.c.b16 %v9309, %v9305
        %v9386 = vpack.c.b16 %v9310, %v9306
        %v9387 = vpack.c.b16 %v9311, %v9307
        %v9388 = vpack.c.b16 %v9312, %v9308
        %v9389 = vpack.c.b16 %v9317, %v9313
        %v9390 = vpack.c.b16 %v9318, %v9314
        %v9391 = vpack.c.b16 %v9319, %v9315
        %v9392 = vpack.c.b16 %v9320, %v9316
        %v9393 = vpack.c.b16 %v9325, %v9321
        %v9394 = vpack.c.b16 %v9326, %v9322
        %v9395 = vpack.c.b16 %v9327, %v9323
        %v9396 = vpack.c.b16 %v9328, %v9324
        %v9397 = vpack.c.b16 %v9333, %v9329
        %v9398 = vpack.c.b16 %v9334, %v9330
        %v9399 = vpack.c.b16 %v9335, %v9331
        %v9400 = vpack.c.b16 %v9336, %v9332
        %v9401 = vpack.c.b16 %v9341, %v9337
        %v9402 = vpack.c.b16 %v9342, %v9338
        %v9403 = vpack.c.b16 %v9343, %v9339
        %v9404 = vpack.c.b16 %v9344, %v9340
        %v9405 = vpack.c.b16 %v9349, %v9345
        %v9406 = vpack.c.b16 %v9350, %v9346
        %v9407 = vpack.c.b16 %v9351, %v9347
        %v9408 = vpack.c.b16 %v9352, %v9348
        %v9409 = vpack.c.b16 %v9357, %v9353
        %v9410 = vpack.c.b16 %v9358, %v9354
        %v9411 = vpack.c.b16 %v9359, %v9355
        %v9412 = vpack.c.b16 %v9360, %v9356
        %v9413 = vpack.c.b16 %v9361, %v9361
        %v9414 = vpack.c.b16 %v9362, %v9362
        %v9415 = vpack.c.b16 %v9363, %v9363
        %v9416 = vpack.c.b16 %v9364, %v9364
        %v9466 = vsel %vm8230, %v9163, 0
        %v9469 = vsel %vm8234, %v9413, 0
        %v9472 = vsel %vm8234, %v9414, 0
        %v9475 = vsel %vm8234, %v9415, 0
        %v9478 = vsel %vm8234, %v9416, 0
        %9480 = vmatprep.subr.bf16.mxu0 %v9394
        %9481 = vmatpush1.bf16.msra.mxu0 %v9393
        %9482 = vmatprep.subr.bf16.mxu0 %v9390
        %9483 = vmatpush1.bf16.msra.mxu0 %v9389
        %9484 = vmatprep.subr.bf16.mxu0 %v9386
        %9485 = vmatpush1.bf16.msra.mxu0 %v9385
        %9486 = vmatprep.subr.bf16.mxu0 %v9382
        %9487 = vmatpush1.bf16.msra.mxu0 %v9381
        %9488 = vmatprep.subr.bf16.mxu0 %v9378
        %9489 = vmatpush1.bf16.msra.mxu0 %v9377
        %9490 = vmatprep.subr.bf16.mxu0 %v9374
        %9491 = vmatpush1.bf16.msra.mxu0 %v9373
        %9492 = vmatprep.subr.bf16.mxu0 %v9370
        %9493 = vmatpush1.bf16.msra.mxu0 %v9369
        %9494 = vmatprep.subr.bf16.mxu0 %v9366
        %9495 = vmatpush1.bf16.msra.mxu0 %v9365
        %9496 = vmatprep.subr.bf16.mxu0 0
        %9497 = vmatpush2.bf16.msra.mxu0 0
        %9498 = vmatprep.subr.bf16.mxu0 0
        %9499 = vmatpush2.bf16.msra.mxu0 0
        %9500 = vmatprep.subr.bf16.mxu0 0
        %9501 = vmatpush2.bf16.msra.mxu0 0
        %9502 = vmatprep.subr.bf16.mxu0 %v9472
        %9503 = vmatpush2.bf16.msra.mxu0 %v9469
        %9504 = vmatprep.subr.bf16.mxu0 %v9410
        %9505 = vmatpush2.bf16.msra.mxu0 %v9409
        %9506 = vmatprep.subr.bf16.mxu0 %v9406
        %9507 = vmatpush2.bf16.msra.mxu0 %v9405
        %9508 = vmatprep.subr.bf16.mxu0 %v9402
        %9509 = vmatpush2.bf16.msra.mxu0 %v9401
        %9510 = vmatprep.subr.bf16.mxu0 %v9398
        %9511 = vmatpush2.bf16.msra.mxu0 %v9397
        %9512 = vmatprep.mubr.bf16.mxu0 %v9466
        %9513 = vmatmul.mubr.bf16.gmra.mxu0 %v9162
        %v9514 = vpop.f32.mrf.mxu0
        %v9515 = vadd.f32 0.0, %v9514
        %v9516 = vpop.f32.mrf.mxu0
        %v9517 = vadd.f32 0.0, %v9516
        %v9518 = vpop.f32.mrf.mxu0
        %v9519 = vpop.f32.mrf.mxu0
        %9520 = vdwg.mxu0
        %9521 = vmatprep.subr.bf16.mxu0 %v9396
        %9522 = vmatpush1.bf16.msra.mxu0 %v9395
        %9523 = vmatprep.subr.bf16.mxu0 %v9392
        %9524 = vmatpush1.bf16.msra.mxu0 %v9391
        %9525 = vmatprep.subr.bf16.mxu0 %v9388
        %9526 = vmatpush1.bf16.msra.mxu0 %v9387
        %9527 = vmatprep.subr.bf16.mxu0 %v9384
        %9528 = vmatpush1.bf16.msra.mxu0 %v9383
        %9529 = vmatprep.subr.bf16.mxu0 %v9380
        %9530 = vmatpush1.bf16.msra.mxu0 %v9379
        %9531 = vmatprep.subr.bf16.mxu0 %v9376
        %9532 = vmatpush1.bf16.msra.mxu0 %v9375
        %9533 = vmatprep.subr.bf16.mxu0 %v9372
        %9534 = vmatpush1.bf16.msra.mxu0 %v9371
        %9535 = vmatprep.subr.bf16.mxu0 %v9368
        %9536 = vmatpush1.bf16.msra.mxu0 %v9367
        %9537 = vmatprep.subr.bf16.mxu0 0
        %9538 = vmatpush2.bf16.msra.mxu0 0
        %9539 = vmatprep.subr.bf16.mxu0 0
        %9540 = vmatpush2.bf16.msra.mxu0 0
        %9541 = vmatprep.subr.bf16.mxu0 0
        %9542 = vmatpush2.bf16.msra.mxu0 0
        %9543 = vmatprep.subr.bf16.mxu0 %v9478
        %9544 = vmatpush2.bf16.msra.mxu0 %v9475
        %9545 = vmatprep.subr.bf16.mxu0 %v9412
        %9546 = vmatpush2.bf16.msra.mxu0 %v9411
        %9547 = vmatprep.subr.bf16.mxu0 %v9408
        %9548 = vmatpush2.bf16.msra.mxu0 %v9407
        %9549 = vmatprep.subr.bf16.mxu0 %v9404
        %9550 = vmatpush2.bf16.msra.mxu0 %v9403
        %9551 = vmatprep.subr.bf16.mxu0 %v9400
        %9552 = vmatpush2.bf16.msra.mxu0 %v9399
        %9553 = vmatprep.mubr.bf16.mxu0 %v9466
        %9554 = vmatmul.mubr.bf16.gmra.mxu0 %v9162
        %v9555 = vpop.f32.mrf.mxu0
        %v9556 = vadd.f32 0.0, %v9555
        %v9557 = vpop.f32.mrf.mxu0
        %v9558 = vadd.f32 0.0, %v9557
        %v9559 = vpop.f32.mrf.mxu0
        %v9560 = vpop.f32.mrf.mxu0
        %9561 = vdwg.mxu0
        %v9562 = vadd.f32 %v9158, %v9515
        %v9563 = vadd.f32 %v9159, %v9517
        %v9564 = vadd.f32 %v9160, %v9556
        %v9565 = vadd.f32 %v9161, %v9558
        %v9566 = vmax.f32 %v9562, 0.0
        %v9567 = vmax.f32 %v9563, 0.0
        %v9568 = vmax.f32 %v9564, 0.0
        %v9569 = vmax.f32 %v9565, 0.0
        %v9570 = vpack.c.bf16 %v9566, %v9566
        %v9571 = vpack.c.bf16 %v9567, %v9567
        %v9572 = vpack.c.bf16 %v9568, %v9568
        %v9573 = vpack.c.bf16 %v9569, %v9569
        %v9574 = vld [vmem:[%s11] sm:$0xf]
        %v9575 = vld [vmem:[%s11 + $0x4] sm:$0xf]
        %v9576 = vld [vmem:[%s11 + $0x8] sm:$0xf]
        %v9577 = vld [vmem:[%s11 + $0xc] sm:$0xf]
        %v9578 = vld [vmem:[%s11 + $0x10] sm:$0xf]
        %v9579 = vld [vmem:[%s11 + $0x14] sm:$0xf]
        %v9580 = vld [vmem:[%s11 + $0x18] sm:$0xf]
        %v9581 = vld [vmem:[%s11 + $0x1c] sm:$0xf]
        %v9582 = vld [vmem:[%s11 + $0x20] sm:$0xf]
        %v9583 = vld [vmem:[%s11 + $0x24] sm:$0xf]
        %v9584 = vld [vmem:[%s11 + $0x28] sm:$0xf]
        %v9585 = vld [vmem:[%s11 + $0x2c] sm:$0xf]
        %v9586 = vld [vmem:[%s11 + $0x30] sm:$0xf]
        %v9587 = vld [vmem:[%s11 + $0x34] sm:$0xf]
        %v9588 = vld [vmem:[%s11 + $0x38] sm:$0xf]
        %v9589 = vld [vmem:[%s11 + $0x3c] sm:$0xf]
        %v9590 = vld [vmem:[%s11 + $0x40] sm:$0xf]
        %v9591 = vld [vmem:[%s11 + $0x44] sm:$0xf]
        %v9592 = vld [vmem:[%s11 + $0x48] sm:$0xf]
        %v9593 = vld [vmem:[%s11 + $0x4c] sm:$0xf]
        %v9594 = vld [vmem:[%s11 + $0x50] sm:$0xf]
        %v9595 = vld [vmem:[%s11 + $0x54] sm:$0xf]
        %v9596 = vld [vmem:[%s11 + $0x58] sm:$0xf]
        %v9597 = vld [vmem:[%s11 + $0x5c] sm:$0xf]
        %v9598 = vld [vmem:[%s11 + $0x60] sm:$0xf]
        %v9599 = vld [vmem:[%s11 + $0x64] sm:$0xf]
        %v9600 = vld [vmem:[%s11 + $0x68] sm:$0xf]
        %v9601 = vld [vmem:[%s11 + $0x6c] sm:$0xf]
        %v9602 = vld [vmem:[%s11 + $0x70] sm:$0xf]
        %v9603 = vld [vmem:[%s11 + $0x74] sm:$0xf]
        %v9604 = vld [vmem:[%s11 + $0x78] sm:$0xf]
        %v9605 = vld [vmem:[%s11 + $0x7c] sm:$0xf]
        %v9606 = vld [vmem:[%s11 + $0x80] sm:$0xf]
        %v9607 = vld [vmem:[%s11 + $0x84] sm:$0xf]
        %v9608 = vld [vmem:[%s11 + $0x88] sm:$0xf]
        %v9609 = vld [vmem:[%s11 + $0x8c] sm:$0xf]
        %v9610 = vld [vmem:[%s11 + $0x90] sm:$0xf]
        %v9611 = vld [vmem:[%s11 + $0x94] sm:$0xf]
        %v9612 = vld [vmem:[%s11 + $0x98] sm:$0xf]
        %v9613 = vld [vmem:[%s11 + $0x9c] sm:$0xf]
        %v9614 = vld [vmem:[%s11 + $0xa0] sm:$0xf]
        %v9615 = vld [vmem:[%s11 + $0xa4] sm:$0xf]
        %v9616 = vld [vmem:[%s11 + $0xa8] sm:$0xf]
        %v9617 = vld [vmem:[%s11 + $0xac] sm:$0xf]
        %v9618 = vld [vmem:[%s11 + $0xb0] sm:$0xf]
        %v9619 = vld [vmem:[%s11 + $0xb4] sm:$0xf]
        %v9620 = vld [vmem:[%s11 + $0xb8] sm:$0xf]
        %v9621 = vld [vmem:[%s11 + $0xbc] sm:$0xf]
        %v9622 = vld [vmem:[%s11 + $0xc0] sm:$0xf]
        %v9623 = vld [vmem:[%s11 + $0xc4] sm:$0xf]
        %v9624 = vld [vmem:[%s11 + $0xc8] sm:$0xf]
        %v9625 = vld [vmem:[%s11 + $0xcc] sm:$0xf]
        %v9626 = vld [vmem:[%s11 + $0xd0] sm:$0xf]
        %v9627 = vld [vmem:[%s11 + $0xd4] sm:$0xf]
        %v9628 = vld [vmem:[%s11 + $0xd8] sm:$0xf]
        %v9629 = vld [vmem:[%s11 + $0xdc] sm:$0xf]
        %v9630 = vld [vmem:[%s11 + $0xe0] sm:$0xf]
        %v9631 = vld [vmem:[%s11 + $0xe4] sm:$0xf]
        %v9632 = vld [vmem:[%s11 + $0xe8] sm:$0xf]
        %v9633 = vld [vmem:[%s11 + $0xec] sm:$0xf]
        %v9634 = vld [vmem:[%s11 + $0xf0] sm:$0xf]
        %v9635 = vld [vmem:[%s11 + $0xf4] sm:$0xf]
        %v9636 = vld [vmem:[%s11 + $0xf8] sm:$0x3]
        %v9637 = vld [vmem:[%s12] sm:$0x1]
        %v9639 = vlaneseq
        %v9640 = vshrl.u32 %v9639, 7
        %v9641 = vsub.s32 0, %v9640
        %v9642 = vrot.slane %v9637, %v9641
        %v9707 = vunpack.c.l.b16 %v9574
        %v9708 = vunpack.c.l.b16 %v9575
        %v9709 = vunpack.c.l.b16 %v9576
        %v9710 = vunpack.c.l.b16 %v9577
        %v9711 = vunpack.c.l.b16 %v9578
        %v9712 = vunpack.c.l.b16 %v9579
        %v9713 = vunpack.c.l.b16 %v9580
        %v9714 = vunpack.c.l.b16 %v9581
        %v9715 = vunpack.c.l.b16 %v9582
        %v9716 = vunpack.c.l.b16 %v9583
        %v9717 = vunpack.c.l.b16 %v9584
        %v9718 = vunpack.c.l.b16 %v9585
        %v9719 = vunpack.c.l.b16 %v9586
        %v9720 = vunpack.c.l.b16 %v9587
        %v9721 = vunpack.c.l.b16 %v9588
        %v9722 = vunpack.c.l.b16 %v9589
        %v9723 = vunpack.c.l.b16 %v9590
        %v9724 = vunpack.c.l.b16 %v9591
        %v9725 = vunpack.c.l.b16 %v9592
        %v9726 = vunpack.c.l.b16 %v9593
        %v9727 = vunpack.c.l.b16 %v9594
        %v9728 = vunpack.c.l.b16 %v9595
        %v9729 = vunpack.c.l.b16 %v9596
        %v9730 = vunpack.c.l.b16 %v9597
        %v9731 = vunpack.c.l.b16 %v9598
        %v9732 = vunpack.c.l.b16 %v9599
        %v9733 = vunpack.c.l.b16 %v9600
        %v9734 = vunpack.c.l.b16 %v9601
        %v9735 = vunpack.c.l.b16 %v9602
        %v9736 = vunpack.c.l.b16 %v9603
        %v9737 = vunpack.c.l.b16 %v9604
        %v9738 = vunpack.c.l.b16 %v9605
        %v9739 = vunpack.c.l.b16 %v9606
        %v9740 = vunpack.c.l.b16 %v9607
        %v9741 = vunpack.c.l.b16 %v9608
        %v9742 = vunpack.c.l.b16 %v9609
        %v9743 = vunpack.c.l.b16 %v9610
        %v9744 = vunpack.c.l.b16 %v9611
        %v9745 = vunpack.c.l.b16 %v9612
        %v9746 = vunpack.c.l.b16 %v9613
        %v9747 = vunpack.c.l.b16 %v9614
        %v9748 = vunpack.c.l.b16 %v9615
        %v9749 = vunpack.c.l.b16 %v9616
        %v9750 = vunpack.c.l.b16 %v9617
        %v9751 = vunpack.c.l.b16 %v9618
        %v9752 = vunpack.c.l.b16 %v9619
        %v9753 = vunpack.c.l.b16 %v9620
        %v9754 = vunpack.c.l.b16 %v9621
        %v9755 = vunpack.c.l.b16 %v9622
        %v9756 = vunpack.c.l.b16 %v9623
        %v9757 = vunpack.c.l.b16 %v9624
        %v9758 = vunpack.c.l.b16 %v9625
        %v9759 = vunpack.c.l.b16 %v9626
        %v9760 = vunpack.c.l.b16 %v9627
        %v9761 = vunpack.c.l.b16 %v9628
        %v9762 = vunpack.c.l.b16 %v9629
        %v9763 = vunpack.c.l.b16 %v9630
        %v9764 = vunpack.c.l.b16 %v9631
        %v9765 = vunpack.c.l.b16 %v9632
        %v9766 = vunpack.c.l.b16 %v9633
        %v9767 = vunpack.c.l.b16 %v9634
        %v9768 = vunpack.c.l.b16 %v9635
        %v9769 = vunpack.c.l.b16 %v9636
        %v9770 = vpack.c.b16 %v9708, %v9707
        %v9771 = vpack.c.b16 %v9710, %v9709
        %v9772 = vpack.c.b16 %v9712, %v9711
        %v9773 = vpack.c.b16 %v9714, %v9713
        %v9774 = vpack.c.b16 %v9716, %v9715
        %v9775 = vpack.c.b16 %v9718, %v9717
        %v9776 = vpack.c.b16 %v9720, %v9719
        %v9777 = vpack.c.b16 %v9722, %v9721
        %v9778 = vpack.c.b16 %v9724, %v9723
        %v9779 = vpack.c.b16 %v9726, %v9725
        %v9780 = vpack.c.b16 %v9728, %v9727
        %v9781 = vpack.c.b16 %v9730, %v9729
        %v9782 = vpack.c.b16 %v9732, %v9731
        %v9783 = vpack.c.b16 %v9734, %v9733
        %v9784 = vpack.c.b16 %v9736, %v9735
        %v9785 = vpack.c.b16 %v9738, %v9737
        %v9786 = vpack.c.b16 %v9740, %v9739
        %v9787 = vpack.c.b16 %v9742, %v9741
        %v9788 = vpack.c.b16 %v9744, %v9743
        %v9789 = vpack.c.b16 %v9746, %v9745
        %v9790 = vpack.c.b16 %v9748, %v9747
        %v9791 = vpack.c.b16 %v9750, %v9749
        %v9792 = vpack.c.b16 %v9752, %v9751
        %v9793 = vpack.c.b16 %v9754, %v9753
        %v9794 = vpack.c.b16 %v9756, %v9755
        %v9795 = vpack.c.b16 %v9758, %v9757
        %v9796 = vpack.c.b16 %v9760, %v9759
        %v9797 = vpack.c.b16 %v9762, %v9761
        %v9798 = vpack.c.b16 %v9764, %v9763
        %v9799 = vpack.c.b16 %v9766, %v9765
        %v9800 = vpack.c.b16 %v9768, %v9767
        %v9801 = vpack.c.b16 %v9769, %v9769
        %vm9833 = vcmask 949248
        %v9835 = vsel %vm9833, %v9573, 0
        %vm9837 = vcmask 1041408
        %v9839 = vsel %vm9837, %v9801, 0
        %9841 = vmatprep.subr.bf16.mxu0 0
        %9842 = vmatpush1.bf16.msra.mxu0 %v9777
        %9843 = vmatprep.subr.bf16.mxu0 0
        %9844 = vmatpush1.bf16.msra.mxu0 %v9776
        %9845 = vmatprep.subr.bf16.mxu0 0
        %9846 = vmatpush1.bf16.msra.mxu0 %v9775
        %9847 = vmatprep.subr.bf16.mxu0 0
        %9848 = vmatpush1.bf16.msra.mxu0 %v9774
        %9849 = vmatprep.subr.bf16.mxu0 0
        %9850 = vmatpush1.bf16.msra.mxu0 %v9773
        %9851 = vmatprep.subr.bf16.mxu0 0
        %9852 = vmatpush1.bf16.msra.mxu0 %v9772
        %9853 = vmatprep.subr.bf16.mxu0 0
        %9854 = vmatpush1.bf16.msra.mxu0 %v9771
        %9855 = vmatprep.subr.bf16.mxu0 0
        %9856 = vmatpush1.bf16.msra.mxu0 %v9770
        %9857 = vmatprep.subr.bf16.mxu0 0
        %9858 = vmatpush2.bf16.msra.mxu0 %v9785
        %9859 = vmatprep.subr.bf16.mxu0 0
        %9860 = vmatpush2.bf16.msra.mxu0 %v9784
        %9861 = vmatprep.subr.bf16.mxu0 0
        %9862 = vmatpush2.bf16.msra.mxu0 %v9783
        %9863 = vmatprep.subr.bf16.mxu0 0
        %9864 = vmatpush2.bf16.msra.mxu0 %v9782
        %9865 = vmatprep.subr.bf16.mxu0 0
        %9866 = vmatpush2.bf16.msra.mxu0 %v9781
        %9867 = vmatprep.subr.bf16.mxu0 0
        %9868 = vmatpush2.bf16.msra.mxu0 %v9780
        %9869 = vmatprep.subr.bf16.mxu0 0
        %9870 = vmatpush2.bf16.msra.mxu0 %v9779
        %9871 = vmatprep.subr.bf16.mxu0 0
        %9872 = vmatpush2.bf16.msra.mxu0 %v9778
        %9873 = vmatprep.mubr.bf16.mxu0 %v9571
        %9874 = vmatmul.mubr.bf16.gmra.mxu0 %v9570
        %v9875 = vpop.f32.mrf.mxu0
        %v9876 = vadd.f32 %v9642, %v9875
        %v9877 = vpop.f32.mrf.mxu0
        %v9878 = vpop.f32.mrf.mxu0
        %v9879 = vpop.f32.mrf.mxu0
        %9880 = vdwg.mxu0
        %9881 = vmatprep.subr.bf16.mxu0 0
        %9882 = vmatpush1.bf16.msra.mxu0 %v9793
        %9883 = vmatprep.subr.bf16.mxu0 0
        %9884 = vmatpush1.bf16.msra.mxu0 %v9792
        %9885 = vmatprep.subr.bf16.mxu0 0
        %9886 = vmatpush1.bf16.msra.mxu0 %v9791
        %9887 = vmatprep.subr.bf16.mxu0 0
        %9888 = vmatpush1.bf16.msra.mxu0 %v9790
        %9889 = vmatprep.subr.bf16.mxu0 0
        %9890 = vmatpush1.bf16.msra.mxu0 %v9789
        %9891 = vmatprep.subr.bf16.mxu0 0
        %9892 = vmatpush1.bf16.msra.mxu0 %v9788
        %9893 = vmatprep.subr.bf16.mxu0 0
        %9894 = vmatpush1.bf16.msra.mxu0 %v9787
        %9895 = vmatprep.subr.bf16.mxu0 0
        %9896 = vmatpush1.bf16.msra.mxu0 %v9786
        %9897 = vmatprep.subr.bf16.mxu0 0
        %9898 = vmatpush2.bf16.msra.mxu0 %v9839
        %9899 = vmatprep.subr.bf16.mxu0 0
        %9900 = vmatpush2.bf16.msra.mxu0 %v9800
        %9901 = vmatprep.subr.bf16.mxu0 0
        %9902 = vmatpush2.bf16.msra.mxu0 %v9799
        %9903 = vmatprep.subr.bf16.mxu0 0
        %9904 = vmatpush2.bf16.msra.mxu0 %v9798
        %9905 = vmatprep.subr.bf16.mxu0 0
        %9906 = vmatpush2.bf16.msra.mxu0 %v9797
        %9907 = vmatprep.subr.bf16.mxu0 0
        %9908 = vmatpush2.bf16.msra.mxu0 %v9796
        %9909 = vmatprep.subr.bf16.mxu0 0
        %9910 = vmatpush2.bf16.msra.mxu0 %v9795
        %9911 = vmatprep.subr.bf16.mxu0 0
        %9912 = vmatpush2.bf16.msra.mxu0 %v9794
        %9913 = vmatprep.mubr.bf16.mxu0 %v9835
        %9914 = vmatmul.mubr.bf16.gmra.mxu0 %v9572
        %v9915 = vpop.f32.mrf.mxu0
        %v9916 = vadd.f32 %v9876, %v9915
        %v9917 = vpop.f32.mrf.mxu0
        %v9918 = vpop.f32.mrf.mxu0
        %v9919 = vpop.f32.mrf.mxu0
        %9920 = vdwg.mxu0
        %vm9921 = vcmask 80896
        %9922 = vst.msk [vmem:[%s434] sm:$0xff] %vm9921, %v9916
        %s9923 = sand.u32 %s313, 1
        %s9924 = scalar_lea.sflag [#allocation3], %s9923
        %s9925 = sand.u32 %s313, 1
        %s9926 = smul.addr %s9925, 8
        %s9927 = scalar_lea.vmem [#allocation2], %s9926
        // Predicated region
        $region73: #{net_forward.1} parent=71 // pred_check
          %p9928 = pneg %p323
        $region74: #{net_forward.1} parent=71 // pred_check_branch
          %9930 = sbr.rel (%p9928) target = $region76
        $region75: #{net_forward.1} parent=71 // pred_region
          %s9932 = ssub.s32 128, 128
          %9933 = vsyncadd %s9924, %s9932
          %s9934 = smul.addr %s27, 128
          %s9935 = scalar_lea.hbm %s13, %s9934
          %s9937 = sshll.u32 %s9927, 4
          %s9938 = int_to_ptr.vmem [resolvable:$true] %s9937
          %9940 = dma.vmem_to_hbm [thread:$0]  %s9938, 128, %s9935, %s9924
        $region76: #{net_forward.1} parent=71 // pred_fallthru
          _
      $region72: #{net_forward.1} parent=5 // pred_fallthru
        _
      %p9941 = scmp.le.s32.totalorder 2, %s22
      // Predicated region
      $region77: #{net_forward.1} parent=5 // pred_check
        %p9942 = pneg %p9941
      $region78: #{net_forward.1} parent=5 // pred_check_branch
        %9944 = sbr.rel (%p9942) target = $region80
      $region79: #{net_forward.1} parent=5 // pred_region
        %s9945 = ssub.s32 %s22, 2
        // Predicated region
        $region81: #{net_forward.1} parent=79 // pred_check
          %p9946 = pneg %p329
        $region82: #{net_forward.1} parent=79 // pred_check_branch
          %9948 = sbr.rel (%p9946) target = $region84
        $region83: #{net_forward.1} parent=79 // pred_region
          %s9949 = sand.u32 %s314, 1
          %s9950 = scalar_lea.sflag [#allocation3], %s9949
          %s9951 = sand.u32 %s314, 1
          %s9952 = smul.addr %s9951, 8
          %s9953 = scalar_lea.vmem [#allocation2], %s9952
          %9954 = dma.done %s9950, 128
        $region84: #{net_forward.1} parent=79 // pred_fallthru
          _
      $region80: #{net_forward.1} parent=5 // pred_fallthru
        _
    $region6: #{net_forward.1} parent=1 // loop_footer
      %s26 = sadd.s32 1, %s22
    $region7: #{net_forward.1} parent=1 // loop_footer_branch
      %21 = sbr.rel target = $region3
    $region8: #{net_forward.1} parent=1 // loop_exit
      _
    %9955 = vsyncpa [#allocation3], 1
    %s9956 = scalar_lea.sflag [#allocation3], 1
    %9957 = vsyncpa %s9956, 1

</llo_original>
